<compile_context>
chip_gen: v7x
topology: tpu7x:2x2x1
jax: 0.10.0
libtpu: 0.0.40
codegen_flags: <defaults>
</compile_context>

<pallas_src>
import numpy as np

import jax
import jax.numpy as jnp
from jax.experimental import pallas as pl
from jax.experimental.pallas import tpu as pltpu


# ---------------------------------------------------------------------------
# Pallas kernels
# ---------------------------------------------------------------------------
def _conv_relu_pool_kernel(q_ref, g_ref, b_ref, o_ref):
    """Fused conv3x3 + bias + ReLU + 2x2 max-pool for one row tile.

    q_ref : (tm, 4*Wi*Ci) bf16 -- each row corresponds to one (image, pooled
            output row ph) pair and holds the four input rows 2*ph..2*ph+3,
            each flattened as (w, ci) (w-major, channel-minor).
    g_ref : (4*Wi*Ci, 4*Wo*Co) bf16 -- block-banded conv weights; output lane
            group g = 2*dy+dx holds the un-pooled conv output at spatial
            offset (2*ph+dy, 2*pw+dx) for all (pw, co).
    b_ref : (1, Wo*Co) f32 -- bias tiled over pw.
    o_ref : (tm, Wo*Co) bf16 -- pooled+ReLU activation, lane = pw*Co + co.
    """
    acc = jnp.dot(q_ref[...], g_ref[...], preferred_element_type=jnp.float32)
    nwc = o_ref.shape[-1]
    pooled = jnp.maximum(
        jnp.maximum(acc[:, 0 * nwc:1 * nwc], acc[:, 1 * nwc:2 * nwc]),
        jnp.maximum(acc[:, 2 * nwc:3 * nwc], acc[:, 3 * nwc:4 * nwc]))
    o_ref[...] = jnp.maximum(pooled + b_ref[...], 0.0).astype(o_ref.dtype)


def _fused_mlp_kernel(x_ref, w1_ref, b1_ref, w2_ref, b2_ref, o_ref):
    h = jnp.dot(x_ref[...], w1_ref[...], preferred_element_type=jnp.float32)
    h = jnp.maximum(h + b1_ref[...], 0.0)
    o = jnp.dot(h.astype(jnp.bfloat16), w2_ref[...],
                preferred_element_type=jnp.float32)
    o_ref[...] = o + b2_ref[...]


def _pick_tm(m, target):
    """Row-tile size: multiple of 8 (or full extent), <= target, and producing
    >=2 grid tiles whenever m allows it (keeps both v7x TensorCores busy)
    while staying large enough to amortize per-grid-step overhead."""
    if m < 16:
        return m
    tm = min(target, -(-m // 2))      # at least 2 tiles
    tm = -(-tm // 8) * 8              # round up to a multiple of 8
    return min(tm, m)


def conv_relu_pool(q, g, b, *, target_rows):
    m, k = q.shape
    _, n4 = g.shape
    nwc = n4 // 4
    tm = _pick_tm(m, target_rows)
    return pl.pallas_call(
        _conv_relu_pool_kernel,
        out_shape=jax.ShapeDtypeStruct((m, nwc), jnp.bfloat16),
        grid=(pl.cdiv(m, tm),),
        in_specs=[
            pl.BlockSpec((tm, k), lambda i: (i, 0)),
            pl.BlockSpec((k, n4), lambda i: (0, 0)),   # weights stay resident
            pl.BlockSpec((1, nwc), lambda i: (0, 0)),
        ],
        out_specs=pl.BlockSpec((tm, nwc), lambda i: (i, 0)),
        compiler_params=pltpu.CompilerParams(
            dimension_semantics=("parallel",)),
    )(q, g, b)


def fused_mlp(x, w1, b1, w2, b2, *, target_rows=256):
    m, k1 = x.shape
    _, h = w1.shape
    _, n = w2.shape
    tm = _pick_tm(m, target_rows)
    return pl.pallas_call(
        _fused_mlp_kernel,
        out_shape=jax.ShapeDtypeStruct((m, n), jnp.float32),
        grid=(pl.cdiv(m, tm),),
        in_specs=[
            pl.BlockSpec((tm, k1), lambda i: (i, 0)),
            pl.BlockSpec((k1, h), lambda i: (0, 0)),
            pl.BlockSpec((1, h), lambda i: (0, 0)),
            pl.BlockSpec((h, n), lambda i: (0, 0)),
            pl.BlockSpec((1, n), lambda i: (0, 0)),
        ],
        out_specs=pl.BlockSpec((tm, n), lambda i: (i, 0)),
        compiler_params=pltpu.CompilerParams(
            dimension_semantics=("parallel",)),
    )(x, w1, b1, w2, b2)


# ---------------------------------------------------------------------------
# One-time parameter layout preparation
# ---------------------------------------------------------------------------
def _build_pooled_conv_weight(w_conv, w_in, wo):
    """(Co,Ci,3,3) torch conv weight -> (4*w_in*Ci, 4*wo*Co) matmul weight.

    With q[k] = x[2*ph + r0, w, ci] at k = (r0*w_in + w)*Ci + ci (r0 in 0..3),
    (q @ G)[(g*wo + pw)*Co + co], g = 2*dy + dx, equals the valid conv3x3
    output at spatial position (2*ph + dy, 2*pw + dx), channel co -- i.e. the
    four candidates of the 2x2 pool window for pooled position (ph, pw).
    """
    w = np.asarray(w_conv, np.float32)
    co_n, ci_n, kh, kw = w.shape
    mat = np.zeros((4 * w_in * ci_n, 4 * wo * co_n), np.float32)
    for dy in range(2):
        for dx in range(2):
            grp = 2 * dy + dx
            for i in range(kh):
                r0 = dy + i                      # row within the 4-row slab
                for j in range(kw):
                    for pw in range(wo):
                        win = 2 * pw + dx + j    # input column
                        if win >= w_in:
                            continue
                        k0 = (r0 * w_in + win) * ci_n
                        n0 = (grp * wo + pw) * co_n
                        mat[k0:k0 + ci_n, n0:n0 + co_n] = w[:, :, i, j].T
    return jnp.asarray(mat, jnp.bfloat16)


def prepare_params(params):
    """One-time conversion of PyTorch-layout weights into kernel layouts."""
    g1 = _build_pooled_conv_weight(params["conv1_w"], w_in=28, wo=13)  # (112, 1664)
    g2 = _build_pooled_conv_weight(params["conv2_w"], w_in=12, wo=5)   # (1536, 1280)
    b1 = jnp.tile(params["conv1_b"].astype(jnp.float32), 13).reshape(1, 13 * 32)
    b2 = jnp.tile(params["conv2_b"].astype(jnp.float32), 5).reshape(1, 5 * 64)

    # fc1: fold torch's (C,H,W) flatten order into the columns so the kernel
    # consumes the NHWC (h,w,c) flatten coming out of conv2 directly.
    fc1_w = params["fc1_w"].reshape(128, 64, 5, 5)               # (out, C, H, W)
    fc1_w = jnp.transpose(fc1_w, (0, 2, 3, 1)).reshape(128, 1600)
    fc1_wT = jnp.transpose(fc1_w).astype(jnp.bfloat16)           # (1600, 128)

    # fc2: pad 10 -> 128 output lanes for a lane-dense final store.
    fc2_wT = jnp.pad(jnp.transpose(params["fc2_w"]),
                     ((0, 0), (0, 118))).astype(jnp.bfloat16)    # (128, 128)
    fc2_b = jnp.pad(params["fc2_b"], (0, 118)).astype(jnp.float32).reshape(1, 128)

    return {"g1": g1, "b1": b1, "g2": g2, "b2": b2,
            "fc1_w": fc1_wT,
            "fc1_b": params["fc1_b"].astype(jnp.float32).reshape(1, -1),
            "fc2_w": fc2_wT, "fc2_b": fc2_b}


# ---------------------------------------------------------------------------
# Forward pass
# ---------------------------------------------------------------------------
def _pooled_row_slab(x_rows, ho):
    """(N, H, W*C) -> (N*ho, 4*W*C): for pooled output row ph, concatenate the
    four input rows 2*ph .. 2*ph+3 feeding its 2x2 pool window.  Cheap XLA
    glue on the small *input* of each conv stage (~2x its bytes, bf16).
    # TODO(synk): could be folded into the kernel via a manual HBM DMA +
    # in-kernel row gather if this glue ever shows up in profiles.
    """
    n, h, wc = x_rows.shape
    pairs = x_rows.reshape(n, h // 2, 2 * wc)
    q = jnp.concatenate([pairs[:, 0:ho, :], pairs[:, 1:ho + 1, :]], axis=2)
    return q.reshape(n * ho, 4 * wc)


def mnist_cnn_forward(x_nchw, prep):
    n = x_nchw.shape[0]
    assert x_nchw.shape[1:] == (1, 28, 28), "MNIST geometry fixed by fc1 (64*5*5)"
    x = x_nchw.reshape(n, 28, 28).astype(jnp.bfloat16)     # Cin=1 row slab

    # conv1 + ReLU + 2x2 pool  ->  (N*13, 13*32) bf16, lane = w*32 + c
    q1 = _pooled_row_slab(x, 13)                            # (N*13, 112)
    y1 = conv_relu_pool(q1, prep["g1"], prep["b1"], target_rows=1024)

    # conv2 + ReLU + 2x2 pool.  Its pooled output only needs the top-left
    # 12x12 window of the 13x13 pooled conv1 activation (floor pooling).
    y1 = y1.reshape(n, 13, 13 * 32)[:, :12, :12 * 32]        # (N, 12, 384)
    q2 = _pooled_row_slab(y1, 5)                             # (N*5, 1536)
    y2 = conv_relu_pool(q2, prep["g2"], prep["b2"], target_rows=512)

    # The conv2 output slab already is the NHWC (h, w, c) flatten fc1 expects.
    flat = y2.reshape(n, 5 * 5 * 64)                         # (N, 1600) bf16
    logits = fused_mlp(flat, prep["fc1_w"], prep["fc1_b"],
                       prep["fc2_w"], prep["fc2_b"], target_rows=256)
    return logits[:, :10]                                    # (N, 10) f32


# ---------------------------------------------------------------------------
# Reference + test harness
# ---------------------------------------------------------------------------
def mnist_cnn_reference(x, params):
    """Plain-JAX f32 reference of the PyTorch module (self-check)."""
    dn = ("NCHW", "OIHW", "NCHW")
    y = jax.lax.conv_general_dilated(x, params["conv1_w"], (1, 1), "VALID",
                                     dimension_numbers=dn)
    y = jax.nn.relu(y + params["conv1_b"][None, :, None, None])
    y = jax.lax.reduce_window(y, -jnp.inf, jax.lax.max, (1, 1, 2, 2),
                              (1, 1, 2, 2), "VALID")
    y = jax.lax.conv_general_dilated(y, params["conv2_w"], (1, 1), "VALID",
                                     dimension_numbers=dn)
    y = jax.nn.relu(y + params["conv2_b"][None, :, None, None])
    y = jax.lax.reduce_window(y, -jnp.inf, jax.lax.max, (1, 1, 2, 2),
                              (1, 1, 2, 2), "VALID")
    y = y.reshape(y.shape[0], -1)                           # (N, 1600) CHW order
    y = jax.nn.relu(y @ params["fc1_w"].T + params["fc1_b"])
    return y @ params["fc2_w"].T + params["fc2_b"]


def init_params(key):
    ks = jax.random.split(key, 8)
    scale = 0.05
    return {
        "conv1_w": scale * jax.random.normal(ks[0], (32, 1, 3, 3), jnp.float32),
        "conv1_b": scale * jax.random.normal(ks[1], (32,), jnp.float32),
        "conv2_w": scale * jax.random.normal(ks[2], (64, 32, 3, 3), jnp.float32),
        "conv2_b": scale * jax.random.normal(ks[3], (64,), jnp.float32),
        "fc1_w": scale * jax.random.normal(ks[4], (128, 64 * 5 * 5), jnp.float32),
        "fc1_b": scale * jax.random.normal(ks[5], (128,), jnp.float32),
        "fc2_w": scale * jax.random.normal(ks[6], (10, 128), jnp.float32),
        "fc2_b": scale * jax.random.normal(ks[7], (10,), jnp.float32),
    }


if __name__ == "__main__":
    key = jax.random.PRNGKey(0)
    k_x, k_p = jax.random.split(key)
    # MNIST geometry is fixed by fc1 (64*5*5): input must be (N, 1, 28, 28).
    x = jax.random.normal(k_x, (2, 1, 28, 28), jnp.float32)
    params = init_params(k_p)
    prep = prepare_params(params)          # one-time weight layout conversion

    logits = jax.jit(mnist_cnn_forward)(x, prep)
    jax.block_until_ready(logits)
    assert logits.shape == (2, 10) and logits.dtype == jnp.float32

    # Numerical self-check vs. a plain-JAX f32 reference.  bf16 weights /
    # inter-stage activations in the kernels => ~1e-2-level relative
    # differences are expected and accepted.
    ref = mnist_cnn_reference(x, params)
    err = float(jnp.max(jnp.abs(logits - ref)))
    assert err < 5e-2, f"kernel/reference mismatch: max|diff|={err:.4f}"
    print("KERNEL_OK")
</pallas_src>

<mosaic_0001>
module attributes {stable_mosaic.version = 11 : i64} {
  func.func @_conv_relu_pool_kernel(%arg0: i32, %arg1: memref<16x112xbf16, #tpu.memory_space<vmem>>, %arg2: memref<112x1664xbf16, #tpu.memory_space<vmem>>, %arg3: memref<1x416xf32, #tpu.memory_space<vmem>>, %arg4: memref<16x416xbf16, #tpu.memory_space<vmem>>) attributes {dimension_semantics = [#tpu.dimension_semantics<parallel>], iteration_bounds = array<i64: 2>, scalar_prefetch = 0 : i64, scratch_operands = 0 : i64, tpu.core_type = #tpu.core_type<tc>, window_params = [{transform_indices = @transform_0, window_bounds = array<i64: 16, 112>}, {pipeline_mode = #tpu.pipeline_mode<synchronous>, transform_indices = @transform_1, window_bounds = array<i64: 112, 1664>}, {pipeline_mode = #tpu.pipeline_mode<synchronous>, transform_indices = @transform_2, window_bounds = array<i64: 1, 416>}, {transform_indices = @transform_3, window_bounds = array<i64: 16, 416>}]} {
    %c0 = arith.constant 0 : index
    %c0_0 = arith.constant 0 : index
    %0 = vector.load %arg1[%c0, %c0_0] : memref<16x112xbf16, #tpu.memory_space<vmem>>, vector<16x112xbf16>
    %c0_1 = arith.constant 0 : index
    %c0_2 = arith.constant 0 : index
    %1 = vector.load %arg2[%c0_1, %c0_2] : memref<112x1664xbf16, #tpu.memory_space<vmem>>, vector<112x1664xbf16>
    %cst = arith.constant dense<0.000000e+00> : vector<16x1664xf32>
    %2 = tpu.matmul %0, %1, %cst {dimension_numbers = #tpu.dot_dimension_numbers<[1], [0], [0], [1], [0, 0, 1, 1], [], []>} : vector<16x112xbf16>, vector<112x1664xbf16>, vector<16x1664xf32> -> vector<16x1664xf32>
    %3 = vector.extract_strided_slice %2 {offsets = [0, 0], sizes = [16, 416], strides = [1, 1]} : vector<16x1664xf32> to vector<16x416xf32>
    %4 = vector.extract_strided_slice %2 {offsets = [0, 416], sizes = [16, 416], strides = [1, 1]} : vector<16x1664xf32> to vector<16x416xf32>
    %5 = arith.maximumf %3, %4 : vector<16x416xf32>
    %6 = vector.extract_strided_slice %2 {offsets = [0, 832], sizes = [16, 416], strides = [1, 1]} : vector<16x1664xf32> to vector<16x416xf32>
    %7 = vector.extract_strided_slice %2 {offsets = [0, 1248], sizes = [16, 416], strides = [1, 1]} : vector<16x1664xf32> to vector<16x416xf32>
    %8 = arith.maximumf %6, %7 : vector<16x416xf32>
    %9 = arith.maximumf %5, %8 : vector<16x416xf32>
    %c0_3 = arith.constant 0 : index
    %c0_4 = arith.constant 0 : index
    %10 = vector.load %arg3[%c0_3, %c0_4] : memref<1x416xf32, #tpu.memory_space<vmem>>, vector<1x416xf32>
    %11 = vector.broadcast %10 : vector<1x416xf32> to vector<16x416xf32>
    %12 = arith.addf %9, %11 : vector<16x416xf32>
    %cst_5 = arith.constant 0.000000e+00 : f32
    %13 = vector.broadcast %cst_5 : f32 to vector<16x416xf32>
    %14 = arith.maximumf %12, %13 : vector<16x416xf32>
    %15 = arith.truncf %14 : vector<16x416xf32> to vector<16x416xbf16>
    %c0_6 = arith.constant 0 : index
    %c0_7 = arith.constant 0 : index
    %16 = vector.load %arg4[%c0_6, %c0_7] : memref<16x416xbf16, #tpu.memory_space<vmem>>, vector<16x416xbf16>
    tpu.vector_store %arg4[%c0_6, %c0_7], %15 {strides = array<i32>} : memref<16x416xbf16, #tpu.memory_space<vmem>>, vector<16x416xbf16>,
    return
  }
  func.func @transform_0(%arg0: i32) -> (i32, i32) {
    %c0_i32 = arith.constant 0 : i32
    %c0_i32_0 = arith.constant 0 : i32
    return %arg0, %c0_i32 : i32, i32
  }
  func.func @transform_1(%arg0: i32) -> (i32, i32) {
    %c0_i32 = arith.constant 0 : i32
    %c0_i32_0 = arith.constant 0 : i32
    %c0_i32_1 = arith.constant 0 : i32
    return %c0_i32, %c0_i32_0 : i32, i32
  }
  func.func @transform_2(%arg0: i32) -> (i32, i32) {
    %c0_i32 = arith.constant 0 : i32
    %c0_i32_0 = arith.constant 0 : i32
    %c0_i32_1 = arith.constant 0 : i32
    return %c0_i32, %c0_i32_0 : i32, i32
  }
  func.func @transform_3(%arg0: i32) -> (i32, i32) {
    %c0_i32 = arith.constant 0 : i32
    %c0_i32_0 = arith.constant 0 : i32
    return %arg0, %c0_i32 : i32, i32
  }
}

module attributes {stable_mosaic.version = 11 : i64} {
  func.func @_fused_mlp_kernel(%arg0: i32, %arg1: memref<2x1600xbf16, #tpu.memory_space<vmem>>, %arg2: memref<1600x128xbf16, #tpu.memory_space<vmem>>, %arg3: memref<1x128xf32, #tpu.memory_space<vmem>>, %arg4: memref<128x128xbf16, #tpu.memory_space<vmem>>, %arg5: memref<1x128xf32, #tpu.memory_space<vmem>>, %arg6: memref<2x128xf32, #tpu.memory_space<vmem>>) attributes {dimension_semantics = [#tpu.dimension_semantics<parallel>], iteration_bounds = array<i64: 1>, scalar_prefetch = 0 : i64, scratch_operands = 0 : i64, tpu.core_type = #tpu.core_type<tc>, window_params = [{transform_indices = @transform_0, window_bounds = array<i64: 2, 1600>}, {pipeline_mode = #tpu.pipeline_mode<synchronous>, transform_indices = @transform_1, window_bounds = array<i64: 1600, 128>}, {pipeline_mode = #tpu.pipeline_mode<synchronous>, transform_indices = @transform_2, window_bounds = array<i64: 1, 128>}, {pipeline_mode = #tpu.pipeline_mode<synchronous>, transform_indices = @transform_3, window_bounds = array<i64: 128, 128>}, {pipeline_mode = #tpu.pipeline_mode<synchronous>, transform_indices = @transform_4, window_bounds = array<i64: 1, 128>}, {transform_indices = @transform_5, window_bounds = array<i64: 2, 128>}]} {
    %c0 = arith.constant 0 : index
    %c0_0 = arith.constant 0 : index
    %0 = vector.load %arg1[%c0, %c0_0] : memref<2x1600xbf16, #tpu.memory_space<vmem>>, vector<2x1600xbf16>
    %c0_1 = arith.constant 0 : index
    %c0_2 = arith.constant 0 : index
    %1 = vector.load %arg2[%c0_1, %c0_2] : memref<1600x128xbf16, #tpu.memory_space<vmem>>, vector<1600x128xbf16>
    %cst = arith.constant dense<0.000000e+00> : vector<2x128xf32>
    %2 = tpu.matmul %0, %1, %cst {dimension_numbers = #tpu.dot_dimension_numbers<[1], [0], [0], [1], [0, 0, 1, 1], [], []>} : vector<2x1600xbf16>, vector<1600x128xbf16>, vector<2x128xf32> -> vector<2x128xf32>
    %c0_3 = arith.constant 0 : index
    %c0_4 = arith.constant 0 : index
    %3 = vector.load %arg3[%c0_3, %c0_4] : memref<1x128xf32, #tpu.memory_space<vmem>>, vector<1x128xf32>
    %4 = vector.broadcast %3 : vector<1x128xf32> to vector<2x128xf32>
    %5 = arith.addf %2, %4 : vector<2x128xf32>
    %cst_5 = arith.constant 0.000000e+00 : f32
    %6 = vector.broadcast %cst_5 : f32 to vector<2x128xf32>
    %7 = arith.maximumf %5, %6 : vector<2x128xf32>
    %8 = arith.truncf %7 : vector<2x128xf32> to vector<2x128xbf16>
    %c0_6 = arith.constant 0 : index
    %c0_7 = arith.constant 0 : index
    %9 = vector.load %arg4[%c0_6, %c0_7] : memref<128x128xbf16, #tpu.memory_space<vmem>>, vector<128x128xbf16>
    %cst_8 = arith.constant dense<0.000000e+00> : vector<2x128xf32>
    %10 = tpu.matmul %8, %9, %cst_8 {dimension_numbers = #tpu.dot_dimension_numbers<[1], [0], [0], [1], [0, 0, 1, 1], [], []>} : vector<2x128xbf16>, vector<128x128xbf16>, vector<2x128xf32> -> vector<2x128xf32>
    %c0_9 = arith.constant 0 : index
    %c0_10 = arith.constant 0 : index
    %11 = vector.load %arg5[%c0_9, %c0_10] : memref<1x128xf32, #tpu.memory_space<vmem>>, vector<1x128xf32>
    %12 = vector.broadcast %11 : vector<1x128xf32> to vector<2x128xf32>
    %13 = arith.addf %10, %12 : vector<2x128xf32>
    %c0_11 = arith.constant 0 : index
    %c0_12 = arith.constant 0 : index
    %14 = vector.load %arg6[%c0_11, %c0_12] : memref<2x128xf32, #tpu.memory_space<vmem>>, vector<2x128xf32>
    tpu.vector_store %arg6[%c0_11, %c0_12], %13 {strides = array<i32>} : memref<2x128xf32, #tpu.memory_space<vmem>>, vector<2x128xf32>,
    return
  }
  func.func @transform_0(%arg0: i32) -> (i32, i32) {
    %c0_i32 = arith.constant 0 : i32
    %c0_i32_0 = arith.constant 0 : i32
    return %arg0, %c0_i32 : i32, i32
  }
  func.func @transform_1(%arg0: i32) -> (i32, i32) {
    %c0_i32 = arith.constant 0 : i32
    %c0_i32_0 = arith.constant 0 : i32
    %c0_i32_1 = arith.constant 0 : i32
    return %c0_i32, %c0_i32_0 : i32, i32
  }
  func.func @transform_2(%arg0: i32) -> (i32, i32) {
    %c0_i32 = arith.constant 0 : i32
    %c0_i32_0 = arith.constant 0 : i32
    %c0_i32_1 = arith.constant 0 : i32
    return %c0_i32, %c0_i32_0 : i32, i32
  }
  func.func @transform_3(%arg0: i32) -> (i32, i32) {
    %c0_i32 = arith.constant 0 : i32
    %c0_i32_0 = arith.constant 0 : i32
    %c0_i32_1 = arith.constant 0 : i32
    return %c0_i32, %c0_i32_0 : i32, i32
  }
  func.func @transform_4(%arg0: i32) -> (i32, i32) {
    %c0_i32 = arith.constant 0 : i32
    %c0_i32_0 = arith.constant 0 : i32
    %c0_i32_1 = arith.constant 0 : i32
    return %c0_i32, %c0_i32_0 : i32, i32
  }
  func.func @transform_5(%arg0: i32) -> (i32, i32) {
    %c0_i32 = arith.constant 0 : i32
    %c0_i32_0 = arith.constant 0 : i32
    return %arg0, %c0_i32 : i32, i32
  }
}

module attributes {stable_mosaic.version = 11 : i64} {
  func.func @_conv_relu_pool_kernel(%arg0: i32, %arg1: memref<10x1536xbf16, #tpu.memory_space<vmem>>, %arg2: memref<1536x1280xbf16, #tpu.memory_space<vmem>>, %arg3: memref<1x320xf32, #tpu.memory_space<vmem>>, %arg4: memref<10x320xbf16, #tpu.memory_space<vmem>>) attributes {dimension_semantics = [#tpu.dimension_semantics<parallel>], iteration_bounds = array<i64: 1>, scalar_prefetch = 0 : i64, scratch_operands = 0 : i64, tpu.core_type = #tpu.core_type<tc>, window_params = [{transform_indices = @transform_0, window_bounds = array<i64: 10, 1536>}, {pipeline_mode = #tpu.pipeline_mode<synchronous>, transform_indices = @transform_1, window_bounds = array<i64: 1536, 1280>}, {pipeline_mode = #tpu.pipeline_mode<synchronous>, transform_indices = @transform_2, window_bounds = array<i64: 1, 320>}, {transform_indices = @transform_3, window_bounds = array<i64: 10, 320>}]} {
    %c0 = arith.constant 0 : index
    %c0_0 = arith.constant 0 : index
    %0 = vector.load %arg1[%c0, %c0_0] : memref<10x1536xbf16, #tpu.memory_space<vmem>>, vector<10x1536xbf16>
    %c0_1 = arith.constant 0 : index
    %c0_2 = arith.constant 0 : index
    %1 = vector.load %arg2[%c0_1, %c0_2] : memref<1536x1280xbf16, #tpu.memory_space<vmem>>, vector<1536x1280xbf16>
    %cst = arith.constant dense<0.000000e+00> : vector<10x1280xf32>
    %2 = tpu.matmul %0, %1, %cst {dimension_numbers = #tpu.dot_dimension_numbers<[1], [0], [0], [1], [0, 0, 1, 1], [], []>} : vector<10x1536xbf16>, vector<1536x1280xbf16>, vector<10x1280xf32> -> vector<10x1280xf32>
    %3 = vector.extract_strided_slice %2 {offsets = [0, 0], sizes = [10, 320], strides = [1, 1]} : vector<10x1280xf32> to vector<10x320xf32>
    %4 = vector.extract_strided_slice %2 {offsets = [0, 320], sizes = [10, 320], strides = [1, 1]} : vector<10x1280xf32> to vector<10x320xf32>
    %5 = arith.maximumf %3, %4 : vector<10x320xf32>
    %6 = vector.extract_strided_slice %2 {offsets = [0, 640], sizes = [10, 320], strides = [1, 1]} : vector<10x1280xf32> to vector<10x320xf32>
    %7 = vector.extract_strided_slice %2 {offsets = [0, 960], sizes = [10, 320], strides = [1, 1]} : vector<10x1280xf32> to vector<10x320xf32>
    %8 = arith.maximumf %6, %7 : vector<10x320xf32>
    %9 = arith.maximumf %5, %8 : vector<10x320xf32>
    %c0_3 = arith.constant 0 : index
    %c0_4 = arith.constant 0 : index
    %10 = vector.load %arg3[%c0_3, %c0_4] : memref<1x320xf32, #tpu.memory_space<vmem>>, vector<1x320xf32>
    %11 = vector.broadcast %10 : vector<1x320xf32> to vector<10x320xf32>
    %12 = arith.addf %9, %11 : vector<10x320xf32>
    %cst_5 = arith.constant 0.000000e+00 : f32
    %13 = vector.broadcast %cst_5 : f32 to vector<10x320xf32>
    %14 = arith.maximumf %12, %13 : vector<10x320xf32>
    %15 = arith.truncf %14 : vector<10x320xf32> to vector<10x320xbf16>
    %c0_6 = arith.constant 0 : index
    %c0_7 = arith.constant 0 : index
    %16 = vector.load %arg4[%c0_6, %c0_7] : memref<10x320xbf16, #tpu.memory_space<vmem>>, vector<10x320xbf16>
    tpu.vector_store %arg4[%c0_6, %c0_7], %15 {strides = array<i32>} : memref<10x320xbf16, #tpu.memory_space<vmem>>, vector<10x320xbf16>,
    return
  }
  func.func @transform_0(%arg0: i32) -> (i32, i32) {
    %c0_i32 = arith.constant 0 : i32
    %c0_i32_0 = arith.constant 0 : i32
    return %arg0, %c0_i32 : i32, i32
  }
  func.func @transform_1(%arg0: i32) -> (i32, i32) {
    %c0_i32 = arith.constant 0 : i32
    %c0_i32_0 = arith.constant 0 : i32
    %c0_i32_1 = arith.constant 0 : i32
    return %c0_i32, %c0_i32_0 : i32, i32
  }
  func.func @transform_2(%arg0: i32) -> (i32, i32) {
    %c0_i32 = arith.constant 0 : i32
    %c0_i32_0 = arith.constant 0 : i32
    %c0_i32_1 = arith.constant 0 : i32
    return %c0_i32, %c0_i32_0 : i32, i32
  }
  func.func @transform_3(%arg0: i32) -> (i32, i32) {
    %c0_i32 = arith.constant 0 : i32
    %c0_i32_0 = arith.constant 0 : i32
    return %arg0, %c0_i32 : i32, i32
  }
}

</mosaic_0001>

<llo_original>
// kernel: mnist_cnn_forward.3
$region0: #{mnist_cnn_forward.3}
  #allocation0 [shape = 'u32[]', space=smem, size = 0x4, offset = 0x4, fixed_abs, tag = 'smem constant byte address 0x4 - core index']
  #allocation1 [shape = 'u32[144,128]{1,0:T(1,128)}', space=vmem, size = 0x12000, scoped, tag = 'internal scratch']
  %s0 = inlined_call_operand.vmem [shape: bf16[26,112], index: 0, kind: input, shape index: {}]
  %s1 = inlined_call_operand.hbm [shape: bf16[112,1664], index: 1, kind: input, shape index: {}]
  %s2 = inlined_call_operand.hbm [shape: f32[1,416], index: 2, kind: input, shape index: {}]
  %s3 = inlined_call_operand.vmem [shape: bf16[26,416], index: 3, kind: output, shape index: {}]
  %s4 = sld [smem:[#allocation0]]
  $region53: #{mnist_cnn_forward.3} parent=0
    _
  %s6 = ssub.s32 1, %s4
  %s7 = scalar_select 0, %s6, %s4
  $region1: #{mnist_cnn_forward.3} parent=0
    #allocation2 [shape = 'u8[372736]{0}', space=vmem, size = 0x5b000, scoped, tag = 'input window, operand 1, single buffered']
    #allocation3 [shape = 's32[2]{0}', space=sflag, size = 0x8, scoped, tag = 'scoped memory for mnist_cnn_forward.3']
    #allocation4 [shape = 'u8[2048]{0}', space=vmem, size = 0x800, scoped, tag = 'input window, operand 2, single buffered']
    #allocation5 [shape = 's32[1]{0}', space=sflag, size = 0x4, scoped, tag = 'scoped memory for mnist_cnn_forward.3']
    %8 = vsyncpa [#allocation3], 0
    %9 = vsyncpa [#allocation5], 0
    loop: start=0, step=1, limit=4
    $region2: #{mnist_cnn_forward.3} parent=1 // loop_pre_header
      _
    $region3: #{mnist_cnn_forward.3} parent=1 // loop_header
      %s11 = sphi 0, %s15
      %p12 = scmp.ge.s32.totalorder %s11, 4
      %s21 = sphi 0, %s23
      %s24 = sphi 0, %s21
      %s25 = sphi 0, %s24
      %s41 = sphi 0, %s25
      %s45 = sphi 0, %s45
      %s47 = sphi 0, %s45
      %s48 = sphi 0, %s47
      %s62 = sphi 0, %s48
      %s66 = sphi 0, %s66
      %s68 = sphi 0, %s66
      %s69 = sphi 0, %s68
      %s83 = sphi 0, %s69
      %s89 = sphi 0, %s91
      %s92 = sphi 0, %s89
      %s93 = sphi 0, %s92
      %s109 = sphi 0, %s93
    $region4: #{mnist_cnn_forward.3} parent=1 // loop_header_branch
      %14 = sbr.rel (%p12) target = $region8
    $region5: #{mnist_cnn_forward.3} parent=1 // loop_body
      %s16 = ssub.s32 %s11, 1
      %s17 = ssub.s32 %s11, 2
      %s18 = sadd.s32 %s11, 1
      %s19 = ssub.s32 %s11, %s18
      %p20 = scmp.eq.s32.totalorder %s19, 0
      %s22 = sadd.s32 %s21, 1
      %s23 = scalar_select %p20, %s21, %s22
      %p26 = pneg %p20
      %p27 = scmp.eq.s32.totalorder %s11, 1
      %p28 = por %p26, %p27
      %p29 = scmp.ne.s32.totalorder %s21, %s24
      %p30 = scmp.eq.s32.totalorder %s11, 0
      %p31 = por %p29, %p30
      %p32 = scmp.ne.s32.totalorder %s21, %s24
      %p33 = scmp.eq.s32.totalorder %s16, 1
      %p34 = por %p32, %p33
      %p35 = scmp.ne.s32.totalorder %s24, %s25
      %p36 = scmp.eq.s32.totalorder %s16, 0
      %p37 = por %p35, %p36
      %p38 = scmp.ne.s32.totalorder %s24, %s25
      %p39 = scmp.eq.s32.totalorder %s17, 1
      %p40 = por %p38, %p39
      %p42 = scmp.ne.s32.totalorder %s25, %s41
      %p43 = scmp.eq.s32.totalorder %s17, 0
      %p44 = por %p42, %p43
      %s46 = sadd.s32 %s45, 1
      %p49 = scmp.eq.s32.totalorder %s11, 1
      %p50 = scmp.ne.s32.totalorder %s45, %s47
      %p51 = scmp.eq.s32.totalorder %s11, 0
      %p52 = por %p50, %p51
      %p53 = scmp.ne.s32.totalorder %s45, %s47
      %p54 = scmp.eq.s32.totalorder %s16, 1
      %p55 = por %p53, %p54
      %p56 = scmp.ne.s32.totalorder %s47, %s48
      %p57 = scmp.eq.s32.totalorder %s16, 0
      %p58 = por %p56, %p57
      %p59 = scmp.ne.s32.totalorder %s47, %s48
      %p60 = scmp.eq.s32.totalorder %s17, 1
      %p61 = por %p59, %p60
      %p63 = scmp.ne.s32.totalorder %s48, %s62
      %p64 = scmp.eq.s32.totalorder %s17, 0
      %p65 = por %p63, %p64
      %s67 = sadd.s32 %s66, 1
      %p70 = scmp.eq.s32.totalorder %s11, 1
      %p71 = scmp.ne.s32.totalorder %s66, %s68
      %p72 = scmp.eq.s32.totalorder %s11, 0
      %p73 = por %p71, %p72
      %p74 = scmp.ne.s32.totalorder %s66, %s68
      %p75 = scmp.eq.s32.totalorder %s16, 1
      %p76 = por %p74, %p75
      %p77 = scmp.ne.s32.totalorder %s68, %s69
      %p78 = scmp.eq.s32.totalorder %s16, 0
      %p79 = por %p77, %p78
      %p80 = scmp.ne.s32.totalorder %s68, %s69
      %p81 = scmp.eq.s32.totalorder %s17, 1
      %p82 = por %p80, %p81
      %p84 = scmp.ne.s32.totalorder %s69, %s83
      %p85 = scmp.eq.s32.totalorder %s17, 0
      %p86 = por %p84, %p85
      %s87 = ssub.s32 %s11, %s18
      %p88 = scmp.eq.s32.totalorder %s87, 0
      %s90 = sadd.s32 %s89, 1
      %s91 = scalar_select %p88, %s89, %s90
      %p94 = pneg %p88
      %p95 = scmp.eq.s32.totalorder %s11, 1
      %p96 = por %p94, %p95
      %p97 = scmp.ne.s32.totalorder %s89, %s92
      %p98 = scmp.eq.s32.totalorder %s11, 0
      %p99 = por %p97, %p98
      %p100 = scmp.ne.s32.totalorder %s89, %s92
      %p101 = scmp.eq.s32.totalorder %s16, 1
      %p102 = por %p100, %p101
      %p103 = scmp.ne.s32.totalorder %s92, %s93
      %p104 = scmp.eq.s32.totalorder %s16, 0
      %p105 = por %p103, %p104
      %p106 = scmp.ne.s32.totalorder %s92, %s93
      %p107 = scmp.eq.s32.totalorder %s17, 1
      %p108 = por %p106, %p107
      %p110 = scmp.ne.s32.totalorder %s93, %s109
      %p111 = scmp.eq.s32.totalorder %s17, 0
      %p112 = por %p110, %p111
      %p113 = scmp.le.s32.totalorder 1, %s11
      %p114 = scmp.lt.s32.totalorder %s11, 3
      %p115 = pnand %p113, %p114
      %p116 = pneg %p115
      // Predicated region
      $region9: #{mnist_cnn_forward.3} parent=5 // pred_check
        _
      $region10: #{mnist_cnn_forward.3} parent=5 // pred_check_branch
        %118 = sbr.rel (%p115) target = $region12
      $region11: #{mnist_cnn_forward.3} parent=5 // pred_region
        %s119 = ssub.s32 %s11, 1
        // Predicated region
        $region13: #{mnist_cnn_forward.3} parent=11 // pred_check
          %p120 = pneg %p58
        $region14: #{mnist_cnn_forward.3} parent=11 // pred_check_branch
          %122 = sbr.rel (%p120) target = $region16
        $region15: #{mnist_cnn_forward.3} parent=11 // pred_region
          %s124 = ssub.s32 11648, 11648
          %125 = vsyncadd [#allocation3], %s124
          %s126 = sshll.u32 [#allocation2], 4
          %s127 = int_to_ptr.vmem [resolvable:$true] %s126
          %132 = dma.hbm_to_vmem [thread:$0]  %s1, 11648, %s127, [#allocation3], 832, 832, 52
        $region16: #{mnist_cnn_forward.3} parent=11 // pred_fallthru
          _
        // Predicated region
        $region17: #{mnist_cnn_forward.3} parent=11 // pred_check
          %p133 = pneg %p79
        $region18: #{mnist_cnn_forward.3} parent=11 // pred_check_branch
          %135 = sbr.rel (%p133) target = $region20
        $region19: #{mnist_cnn_forward.3} parent=11 // pred_region
          %s137 = ssub.s32 64, 64
          %138 = vsyncadd [#allocation5], %s137
          %s140 = sshll.u32 [#allocation4], 4
          %s141 = int_to_ptr.vmem [resolvable:$true] %s140
          %143 = dma.hbm_to_vmem [thread:$0]  %s2, 64, %s141, [#allocation5]
        $region20: #{mnist_cnn_forward.3} parent=11 // pred_fallthru
          _
      $region12: #{mnist_cnn_forward.3} parent=5 // pred_fallthru
        _
      %p144 = scmp.lt.s32.totalorder %s11, 2
      // Predicated region
      $region21: #{mnist_cnn_forward.3} parent=5 // pred_check
        %p145 = pneg %p144
      $region22: #{mnist_cnn_forward.3} parent=5 // pred_check_branch
        %147 = sbr.rel (%p145) target = $region24
      $region23: #{mnist_cnn_forward.3} parent=5 // pred_region
        // Predicated region
        $region25: #{mnist_cnn_forward.3} parent=23 // pred_check
          %p148 = pneg %p31
        $region26: #{mnist_cnn_forward.3} parent=23 // pred_check_branch
          %150 = sbr.rel (%p148) target = $region28
        $region27: #{mnist_cnn_forward.3} parent=23 // pred_region
          %s151 = smul.u32 2, %s11
          %p152 = scmp.lt.s32.totalorder %s151, 3
          %s153 = scalar_select %p152, %s151, 3
          %s154 = smul.addr %s153, 4
          %s155 = scalar_lea.vmem %s0, %s154
          %s156 = smul.u32 2, %s11
        $region28: #{mnist_cnn_forward.3} parent=23 // pred_fallthru
          _
      $region24: #{mnist_cnn_forward.3} parent=5 // pred_fallthru
        _
      %p157 = scmp.le.s32.totalorder 1, %s11
      %p158 = scmp.lt.s32.totalorder %s11, 3
      %p159 = pnand %p157, %p158
      %p160 = pneg %p159
      // Predicated region
      $region29: #{mnist_cnn_forward.3} parent=5 // pred_check
        _
      $region30: #{mnist_cnn_forward.3} parent=5 // pred_check_branch
        %162 = sbr.rel (%p159) target = $region32
      $region31: #{mnist_cnn_forward.3} parent=5 // pred_region
        %s163 = ssub.s32 %s11, 1
        // Predicated region
        $region33: #{mnist_cnn_forward.3} parent=31 // pred_check
          %p164 = pneg %p58
        $region34: #{mnist_cnn_forward.3} parent=31 // pred_check_branch
          %166 = sbr.rel (%p164) target = $region36
        $region35: #{mnist_cnn_forward.3} parent=31 // pred_region
          %167 = dma.done [#allocation3], 11648
        $region36: #{mnist_cnn_forward.3} parent=31 // pred_fallthru
          _
        // Predicated region
        $region37: #{mnist_cnn_forward.3} parent=31 // pred_check
          %p168 = pneg %p79
        $region38: #{mnist_cnn_forward.3} parent=31 // pred_check_branch
          %170 = sbr.rel (%p168) target = $region40
        $region39: #{mnist_cnn_forward.3} parent=31 // pred_region
          %171 = dma.done [#allocation5], 64
        $region40: #{mnist_cnn_forward.3} parent=31 // pred_fallthru
          _
        %s172 = smul.u32 2, %s16
        %p173 = scmp.lt.s32.totalorder %s172, 3
        %s174 = scalar_select %p173, %s172, 3
        %s175 = smul.addr %s174, 4
        %s176 = scalar_lea.vmem %s0, %s175
        %p177 = pneg %p37
        %p178 = pneg %p34
        %p179 = pneg %p58
        %p180 = pneg %p55
        %p181 = pneg %p79
        %p182 = pneg %p76
        %p183 = pneg %p105
        %p184 = pneg %p102
        %s185 = smul.u32 2, %s16
        %p186 = scmp.lt.s32.totalorder %s185, 3
        %s187 = scalar_select %p186, %s185, 3
        %s188 = smul.addr %s187, 4
        %s189 = smul.addr %s188, 4
        %s190 = scalar_lea.vmem %s3, %s189
        %s191 = smul.u32 2, %s16
        %p192 = scmp.lt.s32.totalorder %s191, 3
        %s193 = scalar_select %p192, %s191, 3
        %s194 = smul.addr %s193, 4
        %s195 = scalar_lea.vmem %s0, %s194
        %s196 = smul.u32 2, %s16
        %s197 = smul.u32 2, %s16
        %p198 = scmp.lt.s32.totalorder %s197, 3
        %s199 = scalar_select %p198, %s197, 3
        %s200 = smul.addr %s199, 4
        %s201 = smul.addr %s200, 4
        %s202 = scalar_lea.vmem %s3, %s201
        %s203 = smul.u32 2, %s16
        %v205 = vld [vmem:[%s195] sm:$0xf]
        %v206 = vld [vmem:[%s195 + $0x4] sm:$0xf]
        %v207 = vld [vmem:[#allocation2] sm:$0xff]
        %v208 = vld [vmem:[#allocation2 + $0x8] sm:$0xff]
        %v209 = vld [vmem:[#allocation2 + $0x10] sm:$0xff]
        %v210 = vld [vmem:[#allocation2 + $0x18] sm:$0xff]
        %v211 = vld [vmem:[#allocation2 + $0x20] sm:$0xff]
        %v212 = vld [vmem:[#allocation2 + $0x28] sm:$0xff]
        %v213 = vld [vmem:[#allocation2 + $0x30] sm:$0xf]
        %v214 = vld [vmem:[#allocation2 + $0x34] sm:$0xff]
        %v215 = vld [vmem:[#allocation2 + $0x3c] sm:$0xff]
        %v216 = vld [vmem:[#allocation2 + $0x44] sm:$0xff]
        %v217 = vld [vmem:[#allocation2 + $0x4c] sm:$0xff]
        %v218 = vld [vmem:[#allocation2 + $0x54] sm:$0xff]
        %v219 = vld [vmem:[#allocation2 + $0x5c] sm:$0xff]
        %v220 = vld [vmem:[#allocation2 + $0x64] sm:$0xf]
        %v221 = vld [vmem:[#allocation2 + $0x68] sm:$0xff]
        %v222 = vld [vmem:[#allocation2 + $0x70] sm:$0xff]
        %v223 = vld [vmem:[#allocation2 + $0x78] sm:$0xff]
        %v224 = vld [vmem:[#allocation2 + $0x80] sm:$0xff]
        %v225 = vld [vmem:[#allocation2 + $0x88] sm:$0xff]
        %v226 = vld [vmem:[#allocation2 + $0x90] sm:$0xff]
        %v227 = vld [vmem:[#allocation2 + $0x98] sm:$0xf]
        %v228 = vld [vmem:[#allocation2 + $0x9c] sm:$0xff]
        %v229 = vld [vmem:[#allocation2 + $0xa4] sm:$0xff]
        %v230 = vld [vmem:[#allocation2 + $0xac] sm:$0xff]
        %v231 = vld [vmem:[#allocation2 + $0xb4] sm:$0xff]
        %v232 = vld [vmem:[#allocation2 + $0xbc] sm:$0xff]
        %v233 = vld [vmem:[#allocation2 + $0xc4] sm:$0xff]
        %v234 = vld [vmem:[#allocation2 + $0xcc] sm:$0xf]
        %v235 = vld [vmem:[#allocation2 + $0xd0] sm:$0xff]
        %v236 = vld [vmem:[#allocation2 + $0xd8] sm:$0xff]
        %v237 = vld [vmem:[#allocation2 + $0xe0] sm:$0xff]
        %v238 = vld [vmem:[#allocation2 + $0xe8] sm:$0xff]
        %v239 = vld [vmem:[#allocation2 + $0xf0] sm:$0xff]
        %v240 = vld [vmem:[#allocation2 + $0xf8] sm:$0xff]
        %v241 = vld [vmem:[#allocation2 + $0x100] sm:$0xf]
        %v242 = vld [vmem:[#allocation2 + $0x104] sm:$0xff]
        %v243 = vld [vmem:[#allocation2 + $0x10c] sm:$0xff]
        %v244 = vld [vmem:[#allocation2 + $0x114] sm:$0xff]
        %v245 = vld [vmem:[#allocation2 + $0x11c] sm:$0xff]
        %v246 = vld [vmem:[#allocation2 + $0x124] sm:$0xff]
        %v247 = vld [vmem:[#allocation2 + $0x12c] sm:$0xff]
        %v248 = vld [vmem:[#allocation2 + $0x134] sm:$0xf]
        %v249 = vld [vmem:[#allocation2 + $0x138] sm:$0xff]
        %v250 = vld [vmem:[#allocation2 + $0x140] sm:$0xff]
        %v251 = vld [vmem:[#allocation2 + $0x148] sm:$0xff]
        %v252 = vld [vmem:[#allocation2 + $0x150] sm:$0xff]
        %v253 = vld [vmem:[#allocation2 + $0x158] sm:$0xff]
        %v254 = vld [vmem:[#allocation2 + $0x160] sm:$0xff]
        %v255 = vld [vmem:[#allocation2 + $0x168] sm:$0xf]
        %v256 = vld [vmem:[#allocation2 + $0x16c] sm:$0xff]
        %v257 = vld [vmem:[#allocation2 + $0x174] sm:$0xff]
        %v258 = vld [vmem:[#allocation2 + $0x17c] sm:$0xff]
        %v259 = vld [vmem:[#allocation2 + $0x184] sm:$0xff]
        %v260 = vld [vmem:[#allocation2 + $0x18c] sm:$0xff]
        %v261 = vld [vmem:[#allocation2 + $0x194] sm:$0xff]
        %v262 = vld [vmem:[#allocation2 + $0x19c] sm:$0xf]
        %v263 = vld [vmem:[#allocation2 + $0x1a0] sm:$0xff]
        %v264 = vld [vmem:[#allocation2 + $0x1a8] sm:$0xff]
        %v265 = vld [vmem:[#allocation2 + $0x1b0] sm:$0xff]
        %v266 = vld [vmem:[#allocation2 + $0x1b8] sm:$0xff]
        %v267 = vld [vmem:[#allocation2 + $0x1c0] sm:$0xff]
        %v268 = vld [vmem:[#allocation2 + $0x1c8] sm:$0xff]
        %v269 = vld [vmem:[#allocation2 + $0x1d0] sm:$0xf]
        %v270 = vld [vmem:[#allocation2 + $0x1d4] sm:$0xff]
        %v271 = vld [vmem:[#allocation2 + $0x1dc] sm:$0xff]
        %v272 = vld [vmem:[#allocation2 + $0x1e4] sm:$0xff]
        %v273 = vld [vmem:[#allocation2 + $0x1ec] sm:$0xff]
        %v274 = vld [vmem:[#allocation2 + $0x1f4] sm:$0xff]
        %v275 = vld [vmem:[#allocation2 + $0x1fc] sm:$0xff]
        %v276 = vld [vmem:[#allocation2 + $0x204] sm:$0xf]
        %v277 = vld [vmem:[#allocation2 + $0x208] sm:$0xff]
        %v278 = vld [vmem:[#allocation2 + $0x210] sm:$0xff]
        %v279 = vld [vmem:[#allocation2 + $0x218] sm:$0xff]
        %v280 = vld [vmem:[#allocation2 + $0x220] sm:$0xff]
        %v281 = vld [vmem:[#allocation2 + $0x228] sm:$0xff]
        %v282 = vld [vmem:[#allocation2 + $0x230] sm:$0xff]
        %v283 = vld [vmem:[#allocation2 + $0x238] sm:$0xf]
        %v284 = vld [vmem:[#allocation2 + $0x23c] sm:$0xff]
        %v285 = vld [vmem:[#allocation2 + $0x244] sm:$0xff]
        %v286 = vld [vmem:[#allocation2 + $0x24c] sm:$0xff]
        %v287 = vld [vmem:[#allocation2 + $0x254] sm:$0xff]
        %v288 = vld [vmem:[#allocation2 + $0x25c] sm:$0xff]
        %v289 = vld [vmem:[#allocation2 + $0x264] sm:$0xff]
        %v290 = vld [vmem:[#allocation2 + $0x26c] sm:$0xf]
        %v291 = vld [vmem:[#allocation2 + $0x270] sm:$0xff]
        %v292 = vld [vmem:[#allocation2 + $0x278] sm:$0xff]
        %v293 = vld [vmem:[#allocation2 + $0x280] sm:$0xff]
        %v294 = vld [vmem:[#allocation2 + $0x288] sm:$0xff]
        %v295 = vld [vmem:[#allocation2 + $0x290] sm:$0xff]
        %v296 = vld [vmem:[#allocation2 + $0x298] sm:$0xff]
        %v297 = vld [vmem:[#allocation2 + $0x2a0] sm:$0xf]
        %v298 = vld [vmem:[#allocation2 + $0x2a4] sm:$0xff]
        %v299 = vld [vmem:[#allocation2 + $0x2ac] sm:$0xff]
        %v300 = vld [vmem:[#allocation2 + $0x2b4] sm:$0xff]
        %v301 = vld [vmem:[#allocation2 + $0x2bc] sm:$0xff]
        %v302 = vld [vmem:[#allocation2 + $0x2c4] sm:$0xff]
        %v303 = vld [vmem:[#allocation2 + $0x2cc] sm:$0xff]
        %v304 = vld [vmem:[#allocation2 + $0x2d4] sm:$0xf]
        %v307 = vunpack.c.l.b16 %v205
        %v308 = vunpack.c.l.b16 %v206
        %v309 = vpack.c.b16 %v308, %v307
        %v408 = vunpack.c.l.b16 %v207
        %v409 = vunpack.c.h.b16 %v207
        %v410 = vunpack.c.l.b16 %v208
        %v411 = vunpack.c.h.b16 %v208
        %v412 = vunpack.c.l.b16 %v209
        %v413 = vunpack.c.h.b16 %v209
        %v414 = vunpack.c.l.b16 %v210
        %v415 = vunpack.c.h.b16 %v210
        %v416 = vunpack.c.l.b16 %v211
        %v417 = vunpack.c.h.b16 %v211
        %v418 = vunpack.c.l.b16 %v212
        %v419 = vunpack.c.h.b16 %v212
        %v420 = vunpack.c.l.b16 %v213
        %v421 = vunpack.c.l.b16 %v214
        %v422 = vunpack.c.h.b16 %v214
        %v423 = vunpack.c.l.b16 %v215
        %v424 = vunpack.c.h.b16 %v215
        %v425 = vunpack.c.l.b16 %v216
        %v426 = vunpack.c.h.b16 %v216
        %v427 = vunpack.c.l.b16 %v217
        %v428 = vunpack.c.h.b16 %v217
        %v429 = vunpack.c.l.b16 %v218
        %v430 = vunpack.c.h.b16 %v218
        %v431 = vunpack.c.l.b16 %v219
        %v432 = vunpack.c.h.b16 %v219
        %v433 = vunpack.c.l.b16 %v220
        %v434 = vunpack.c.l.b16 %v221
        %v435 = vunpack.c.h.b16 %v221
        %v436 = vunpack.c.l.b16 %v222
        %v437 = vunpack.c.h.b16 %v222
        %v438 = vunpack.c.l.b16 %v223
        %v439 = vunpack.c.h.b16 %v223
        %v440 = vunpack.c.l.b16 %v224
        %v441 = vunpack.c.h.b16 %v224
        %v442 = vunpack.c.l.b16 %v225
        %v443 = vunpack.c.h.b16 %v225
        %v444 = vunpack.c.l.b16 %v226
        %v445 = vunpack.c.h.b16 %v226
        %v446 = vunpack.c.l.b16 %v227
        %v447 = vunpack.c.l.b16 %v228
        %v448 = vunpack.c.h.b16 %v228
        %v449 = vunpack.c.l.b16 %v229
        %v450 = vunpack.c.h.b16 %v229
        %v451 = vunpack.c.l.b16 %v230
        %v452 = vunpack.c.h.b16 %v230
        %v453 = vunpack.c.l.b16 %v231
        %v454 = vunpack.c.h.b16 %v231
        %v455 = vunpack.c.l.b16 %v232
        %v456 = vunpack.c.h.b16 %v232
        %v457 = vunpack.c.l.b16 %v233
        %v458 = vunpack.c.h.b16 %v233
        %v459 = vunpack.c.l.b16 %v234
        %v460 = vunpack.c.l.b16 %v235
        %v461 = vunpack.c.h.b16 %v235
        %v462 = vunpack.c.l.b16 %v236
        %v463 = vunpack.c.h.b16 %v236
        %v464 = vunpack.c.l.b16 %v237
        %v465 = vunpack.c.h.b16 %v237
        %v466 = vunpack.c.l.b16 %v238
        %v467 = vunpack.c.h.b16 %v238
        %v468 = vunpack.c.l.b16 %v239
        %v469 = vunpack.c.h.b16 %v239
        %v470 = vunpack.c.l.b16 %v240
        %v471 = vunpack.c.h.b16 %v240
        %v472 = vunpack.c.l.b16 %v241
        %v473 = vunpack.c.l.b16 %v242
        %v474 = vunpack.c.h.b16 %v242
        %v475 = vunpack.c.l.b16 %v243
        %v476 = vunpack.c.h.b16 %v243
        %v477 = vunpack.c.l.b16 %v244
        %v478 = vunpack.c.h.b16 %v244
        %v479 = vunpack.c.l.b16 %v245
        %v480 = vunpack.c.h.b16 %v245
        %v481 = vunpack.c.l.b16 %v246
        %v482 = vunpack.c.h.b16 %v246
        %v483 = vunpack.c.l.b16 %v247
        %v484 = vunpack.c.h.b16 %v247
        %v485 = vunpack.c.l.b16 %v248
        %v486 = vunpack.c.l.b16 %v249
        %v487 = vunpack.c.h.b16 %v249
        %v488 = vunpack.c.l.b16 %v250
        %v489 = vunpack.c.h.b16 %v250
        %v490 = vunpack.c.l.b16 %v251
        %v491 = vunpack.c.h.b16 %v251
        %v492 = vunpack.c.l.b16 %v252
        %v493 = vunpack.c.h.b16 %v252
        %v494 = vunpack.c.l.b16 %v253
        %v495 = vunpack.c.h.b16 %v253
        %v496 = vunpack.c.l.b16 %v254
        %v497 = vunpack.c.h.b16 %v254
        %v498 = vunpack.c.l.b16 %v255
        %v499 = vunpack.c.l.b16 %v256
        %v500 = vunpack.c.h.b16 %v256
        %v501 = vunpack.c.l.b16 %v257
        %v502 = vunpack.c.h.b16 %v257
        %v503 = vunpack.c.l.b16 %v258
        %v504 = vunpack.c.h.b16 %v258
        %v505 = vunpack.c.l.b16 %v259
        %v506 = vunpack.c.h.b16 %v259
        %v507 = vunpack.c.l.b16 %v260
        %v508 = vunpack.c.h.b16 %v260
        %v509 = vunpack.c.l.b16 %v261
        %v510 = vunpack.c.h.b16 %v261
        %v511 = vunpack.c.l.b16 %v262
        %v512 = vunpack.c.l.b16 %v263
        %v513 = vunpack.c.h.b16 %v263
        %v514 = vunpack.c.l.b16 %v264
        %v515 = vunpack.c.h.b16 %v264
        %v516 = vunpack.c.l.b16 %v265
        %v517 = vunpack.c.h.b16 %v265
        %v518 = vunpack.c.l.b16 %v266
        %v519 = vunpack.c.h.b16 %v266
        %v520 = vunpack.c.l.b16 %v267
        %v521 = vunpack.c.h.b16 %v267
        %v522 = vunpack.c.l.b16 %v268
        %v523 = vunpack.c.h.b16 %v268
        %v524 = vunpack.c.l.b16 %v269
        %v525 = vunpack.c.l.b16 %v270
        %v526 = vunpack.c.h.b16 %v270
        %v527 = vunpack.c.l.b16 %v271
        %v528 = vunpack.c.h.b16 %v271
        %v529 = vunpack.c.l.b16 %v272
        %v530 = vunpack.c.h.b16 %v272
        %v531 = vunpack.c.l.b16 %v273
        %v532 = vunpack.c.h.b16 %v273
        %v533 = vunpack.c.l.b16 %v274
        %v534 = vunpack.c.h.b16 %v274
        %v535 = vunpack.c.l.b16 %v275
        %v536 = vunpack.c.h.b16 %v275
        %v537 = vunpack.c.l.b16 %v276
        %v538 = vunpack.c.l.b16 %v277
        %v539 = vunpack.c.h.b16 %v277
        %v540 = vunpack.c.l.b16 %v278
        %v541 = vunpack.c.h.b16 %v278
        %v542 = vunpack.c.l.b16 %v279
        %v543 = vunpack.c.h.b16 %v279
        %v544 = vunpack.c.l.b16 %v280
        %v545 = vunpack.c.h.b16 %v280
        %v546 = vunpack.c.l.b16 %v281
        %v547 = vunpack.c.h.b16 %v281
        %v548 = vunpack.c.l.b16 %v282
        %v549 = vunpack.c.h.b16 %v282
        %v550 = vunpack.c.l.b16 %v283
        %v551 = vunpack.c.l.b16 %v284
        %v552 = vunpack.c.h.b16 %v284
        %v553 = vunpack.c.l.b16 %v285
        %v554 = vunpack.c.h.b16 %v285
        %v555 = vunpack.c.l.b16 %v286
        %v556 = vunpack.c.h.b16 %v286
        %v557 = vunpack.c.l.b16 %v287
        %v558 = vunpack.c.h.b16 %v287
        %v559 = vunpack.c.l.b16 %v288
        %v560 = vunpack.c.h.b16 %v288
        %v561 = vunpack.c.l.b16 %v289
        %v562 = vunpack.c.h.b16 %v289
        %v563 = vunpack.c.l.b16 %v290
        %v564 = vunpack.c.l.b16 %v291
        %v565 = vunpack.c.h.b16 %v291
        %v566 = vunpack.c.l.b16 %v292
        %v567 = vunpack.c.h.b16 %v292
        %v568 = vunpack.c.l.b16 %v293
        %v569 = vunpack.c.h.b16 %v293
        %v570 = vunpack.c.l.b16 %v294
        %v571 = vunpack.c.h.b16 %v294
        %v572 = vunpack.c.l.b16 %v295
        %v573 = vunpack.c.h.b16 %v295
        %v574 = vunpack.c.l.b16 %v296
        %v575 = vunpack.c.h.b16 %v296
        %v576 = vunpack.c.l.b16 %v297
        %v577 = vunpack.c.l.b16 %v298
        %v578 = vunpack.c.h.b16 %v298
        %v579 = vunpack.c.l.b16 %v299
        %v580 = vunpack.c.h.b16 %v299
        %v581 = vunpack.c.l.b16 %v300
        %v582 = vunpack.c.h.b16 %v300
        %v583 = vunpack.c.l.b16 %v301
        %v584 = vunpack.c.h.b16 %v301
        %v585 = vunpack.c.l.b16 %v302
        %v586 = vunpack.c.h.b16 %v302
        %v587 = vunpack.c.l.b16 %v303
        %v588 = vunpack.c.h.b16 %v303
        %v589 = vunpack.c.l.b16 %v304
        %v590 = vpack.c.b16 %v421, %v408
        %v591 = vpack.c.b16 %v422, %v409
        %v592 = vpack.c.b16 %v423, %v410
        %v593 = vpack.c.b16 %v424, %v411
        %v594 = vpack.c.b16 %v425, %v412
        %v595 = vpack.c.b16 %v426, %v413
        %v596 = vpack.c.b16 %v427, %v414
        %v597 = vpack.c.b16 %v428, %v415
        %v598 = vpack.c.b16 %v429, %v416
        %v599 = vpack.c.b16 %v430, %v417
        %v600 = vpack.c.b16 %v431, %v418
        %v601 = vpack.c.b16 %v432, %v419
        %v602 = vpack.c.b16 %v433, %v420
        %v603 = vpack.c.b16 %v447, %v434
        %v604 = vpack.c.b16 %v448, %v435
        %v605 = vpack.c.b16 %v449, %v436
        %v606 = vpack.c.b16 %v450, %v437
        %v607 = vpack.c.b16 %v451, %v438
        %v608 = vpack.c.b16 %v452, %v439
        %v609 = vpack.c.b16 %v453, %v440
        %v610 = vpack.c.b16 %v454, %v441
        %v611 = vpack.c.b16 %v455, %v442
        %v612 = vpack.c.b16 %v456, %v443
        %v613 = vpack.c.b16 %v457, %v444
        %v614 = vpack.c.b16 %v458, %v445
        %v615 = vpack.c.b16 %v459, %v446
        %v616 = vpack.c.b16 %v473, %v460
        %v617 = vpack.c.b16 %v474, %v461
        %v618 = vpack.c.b16 %v475, %v462
        %v619 = vpack.c.b16 %v476, %v463
        %v620 = vpack.c.b16 %v477, %v464
        %v621 = vpack.c.b16 %v478, %v465
        %v622 = vpack.c.b16 %v479, %v466
        %v623 = vpack.c.b16 %v480, %v467
        %v624 = vpack.c.b16 %v481, %v468
        %v625 = vpack.c.b16 %v482, %v469
        %v626 = vpack.c.b16 %v483, %v470
        %v627 = vpack.c.b16 %v484, %v471
        %v628 = vpack.c.b16 %v485, %v472
        %v629 = vpack.c.b16 %v499, %v486
        %v630 = vpack.c.b16 %v500, %v487
        %v631 = vpack.c.b16 %v501, %v488
        %v632 = vpack.c.b16 %v502, %v489
        %v633 = vpack.c.b16 %v503, %v490
        %v634 = vpack.c.b16 %v504, %v491
        %v635 = vpack.c.b16 %v505, %v492
        %v636 = vpack.c.b16 %v506, %v493
        %v637 = vpack.c.b16 %v507, %v494
        %v638 = vpack.c.b16 %v508, %v495
        %v639 = vpack.c.b16 %v509, %v496
        %v640 = vpack.c.b16 %v510, %v497
        %v641 = vpack.c.b16 %v511, %v498
        %v642 = vpack.c.b16 %v525, %v512
        %v643 = vpack.c.b16 %v526, %v513
        %v644 = vpack.c.b16 %v527, %v514
        %v645 = vpack.c.b16 %v528, %v515
        %v646 = vpack.c.b16 %v529, %v516
        %v647 = vpack.c.b16 %v530, %v517
        %v648 = vpack.c.b16 %v531, %v518
        %v649 = vpack.c.b16 %v532, %v519
        %v650 = vpack.c.b16 %v533, %v520
        %v651 = vpack.c.b16 %v534, %v521
        %v652 = vpack.c.b16 %v535, %v522
        %v653 = vpack.c.b16 %v536, %v523
        %v654 = vpack.c.b16 %v537, %v524
        %v655 = vpack.c.b16 %v551, %v538
        %v656 = vpack.c.b16 %v552, %v539
        %v657 = vpack.c.b16 %v553, %v540
        %v658 = vpack.c.b16 %v554, %v541
        %v659 = vpack.c.b16 %v555, %v542
        %v660 = vpack.c.b16 %v556, %v543
        %v661 = vpack.c.b16 %v557, %v544
        %v662 = vpack.c.b16 %v558, %v545
        %v663 = vpack.c.b16 %v559, %v546
        %v664 = vpack.c.b16 %v560, %v547
        %v665 = vpack.c.b16 %v561, %v548
        %v666 = vpack.c.b16 %v562, %v549
        %v667 = vpack.c.b16 %v563, %v550
        %v668 = vpack.c.b16 %v577, %v564
        %v669 = vpack.c.b16 %v578, %v565
        %v670 = vpack.c.b16 %v579, %v566
        %v671 = vpack.c.b16 %v580, %v567
        %v672 = vpack.c.b16 %v581, %v568
        %v673 = vpack.c.b16 %v582, %v569
        %v674 = vpack.c.b16 %v583, %v570
        %v675 = vpack.c.b16 %v584, %v571
        %v676 = vpack.c.b16 %v585, %v572
        %v677 = vpack.c.b16 %v586, %v573
        %v678 = vpack.c.b16 %v587, %v574
        %v679 = vpack.c.b16 %v588, %v575
        %v680 = vpack.c.b16 %v589, %v576
        %vm772 = vcmask 916480
        %v774 = vsel %vm772, %v309, 0
        %776 = vmatprep.subr.bf16.mxu0 %v591
        %777 = vmatpush1.bf16.msra.mxu0 %v590
        %778 = vmatprep.subr.bf16.mxu0 %v604
        %779 = vmatpush1.bf16.msra.mxu0 %v603
        %780 = vmatprep.subr.bf16.mxu0 %v617
        %781 = vmatpush1.bf16.msra.mxu0 %v616
        %782 = vmatprep.subr.bf16.mxu0 %v630
        %783 = vmatpush1.bf16.msra.mxu0 %v629
        %784 = vmatprep.subr.bf16.mxu0 %v643
        %785 = vmatpush1.bf16.msra.mxu0 %v642
        %786 = vmatprep.subr.bf16.mxu0 %v656
        %787 = vmatpush1.bf16.msra.mxu0 %v655
        %788 = vmatprep.subr.bf16.mxu0 %v669
        %789 = vmatpush1.bf16.msra.mxu0 %v668
        %790 = vmatprep.subr.bf16.mxu0 0
        %791 = vmatpush1.bf16.msra.mxu0 0
        %792 = vmatprep.subr.bf16.mxu0 0
        %793 = vmatpush1.bf16.msra.mxu0 0
        %794 = vmatprep.subr.bf16.mxu0 0
        %795 = vmatpush1.bf16.msra.mxu0 0
        %796 = vmatprep.subr.bf16.mxu0 0
        %797 = vmatpush1.bf16.msra.mxu0 0
        %798 = vmatprep.subr.bf16.mxu0 0
        %799 = vmatpush1.bf16.msra.mxu0 0
        %800 = vmatprep.subr.bf16.mxu0 0
        %801 = vmatpush1.bf16.msra.mxu0 0
        %802 = vmatprep.subr.bf16.mxu0 0
        %803 = vmatpush1.bf16.msra.mxu0 0
        %804 = vmatprep.subr.bf16.mxu0 0
        %805 = vmatpush1.bf16.msra.mxu0 0
        %806 = vmatprep.subr.bf16.mxu0 0
        %807 = vmatpush1.bf16.msra.mxu0 0
        %808 = vmatprep.mubr.bf16.mxu0 0
        %809 = vmatmul.mubr.bf16.gmra.mrb[0].mxu0 %v774
        %v810 = vpop.f32.mrb[0].mxu0
        %v811 = vadd.f32 0.0, %v810
        %v812 = vpop.f32.mrb[0].mxu0
        %v813 = vadd.f32 0.0, %v812
        %v814 = vpop.f32.mrb[0].mxu0
        %v815 = vadd.f32 0.0, %v814
        %v816 = vpop.f32.mrb[0].mxu0
        %v817 = vadd.f32 0.0, %v816
        %818 = vdwg.mxu0
        %819 = vmatprep.subr.bf16.mxu0 %v593
        %820 = vmatpush1.bf16.msra.mxu0 %v592
        %821 = vmatprep.subr.bf16.mxu0 %v606
        %822 = vmatpush1.bf16.msra.mxu0 %v605
        %823 = vmatprep.subr.bf16.mxu0 %v619
        %824 = vmatpush1.bf16.msra.mxu0 %v618
        %825 = vmatprep.subr.bf16.mxu0 %v632
        %826 = vmatpush1.bf16.msra.mxu0 %v631
        %827 = vmatprep.subr.bf16.mxu0 %v645
        %828 = vmatpush1.bf16.msra.mxu0 %v644
        %829 = vmatprep.subr.bf16.mxu0 %v658
        %830 = vmatpush1.bf16.msra.mxu0 %v657
        %831 = vmatprep.subr.bf16.mxu0 %v671
        %832 = vmatpush1.bf16.msra.mxu0 %v670
        %833 = vmatprep.subr.bf16.mxu0 0
        %834 = vmatpush1.bf16.msra.mxu0 0
        %835 = vmatprep.subr.bf16.mxu0 0
        %836 = vmatpush1.bf16.msra.mxu0 0
        %837 = vmatprep.subr.bf16.mxu0 0
        %838 = vmatpush1.bf16.msra.mxu0 0
        %839 = vmatprep.subr.bf16.mxu0 0
        %840 = vmatpush1.bf16.msra.mxu0 0
        %841 = vmatprep.subr.bf16.mxu0 0
        %842 = vmatpush1.bf16.msra.mxu0 0
        %843 = vmatprep.subr.bf16.mxu0 0
        %844 = vmatpush1.bf16.msra.mxu0 0
        %845 = vmatprep.subr.bf16.mxu0 0
        %846 = vmatpush1.bf16.msra.mxu0 0
        %847 = vmatprep.subr.bf16.mxu0 0
        %848 = vmatpush1.bf16.msra.mxu0 0
        %849 = vmatprep.subr.bf16.mxu0 0
        %850 = vmatpush1.bf16.msra.mxu0 0
        %851 = vmatprep.mubr.bf16.mxu0 0
        %852 = vmatmul.mubr.bf16.gmra.mrb[0].mxu0 %v774
        %v853 = vpop.f32.mrb[0].mxu0
        %v854 = vadd.f32 0.0, %v853
        %v855 = vpop.f32.mrb[0].mxu0
        %v856 = vadd.f32 0.0, %v855
        %v857 = vpop.f32.mrb[0].mxu0
        %v858 = vadd.f32 0.0, %v857
        %v859 = vpop.f32.mrb[0].mxu0
        %v860 = vadd.f32 0.0, %v859
        %861 = vdwg.mxu0
        %862 = vmatprep.subr.bf16.mxu0 %v595
        %863 = vmatpush1.bf16.msra.mxu0 %v594
        %864 = vmatprep.subr.bf16.mxu0 %v608
        %865 = vmatpush1.bf16.msra.mxu0 %v607
        %866 = vmatprep.subr.bf16.mxu0 %v621
        %867 = vmatpush1.bf16.msra.mxu0 %v620
        %868 = vmatprep.subr.bf16.mxu0 %v634
        %869 = vmatpush1.bf16.msra.mxu0 %v633
        %870 = vmatprep.subr.bf16.mxu0 %v647
        %871 = vmatpush1.bf16.msra.mxu0 %v646
        %872 = vmatprep.subr.bf16.mxu0 %v660
        %873 = vmatpush1.bf16.msra.mxu0 %v659
        %874 = vmatprep.subr.bf16.mxu0 %v673
        %875 = vmatpush1.bf16.msra.mxu0 %v672
        %876 = vmatprep.subr.bf16.mxu0 0
        %877 = vmatpush1.bf16.msra.mxu0 0
        %878 = vmatprep.subr.bf16.mxu0 0
        %879 = vmatpush1.bf16.msra.mxu0 0
        %880 = vmatprep.subr.bf16.mxu0 0
        %881 = vmatpush1.bf16.msra.mxu0 0
        %882 = vmatprep.subr.bf16.mxu0 0
        %883 = vmatpush1.bf16.msra.mxu0 0
        %884 = vmatprep.subr.bf16.mxu0 0
        %885 = vmatpush1.bf16.msra.mxu0 0
        %886 = vmatprep.subr.bf16.mxu0 0
        %887 = vmatpush1.bf16.msra.mxu0 0
        %888 = vmatprep.subr.bf16.mxu0 0
        %889 = vmatpush1.bf16.msra.mxu0 0
        %890 = vmatprep.subr.bf16.mxu0 0
        %891 = vmatpush1.bf16.msra.mxu0 0
        %892 = vmatprep.subr.bf16.mxu0 0
        %893 = vmatpush1.bf16.msra.mxu0 0
        %894 = vmatprep.mubr.bf16.mxu0 0
        %895 = vmatmul.mubr.bf16.gmra.mrb[0].mxu0 %v774
        %v896 = vpop.f32.mrb[0].mxu0
        %v897 = vadd.f32 0.0, %v896
        %v898 = vpop.f32.mrb[0].mxu0
        %v899 = vadd.f32 0.0, %v898
        %v900 = vpop.f32.mrb[0].mxu0
        %v901 = vadd.f32 0.0, %v900
        %v902 = vpop.f32.mrb[0].mxu0
        %v903 = vadd.f32 0.0, %v902
        %904 = vdwg.mxu0
        %905 = vmatprep.subr.bf16.mxu0 %v597
        %906 = vmatpush1.bf16.msra.mxu0 %v596
        %907 = vmatprep.subr.bf16.mxu0 %v610
        %908 = vmatpush1.bf16.msra.mxu0 %v609
        %909 = vmatprep.subr.bf16.mxu0 %v623
        %910 = vmatpush1.bf16.msra.mxu0 %v622
        %911 = vmatprep.subr.bf16.mxu0 %v636
        %912 = vmatpush1.bf16.msra.mxu0 %v635
        %913 = vmatprep.subr.bf16.mxu0 %v649
        %914 = vmatpush1.bf16.msra.mxu0 %v648
        %915 = vmatprep.subr.bf16.mxu0 %v662
        %916 = vmatpush1.bf16.msra.mxu0 %v661
        %917 = vmatprep.subr.bf16.mxu0 %v675
        %918 = vmatpush1.bf16.msra.mxu0 %v674
        %919 = vmatprep.subr.bf16.mxu0 0
        %920 = vmatpush1.bf16.msra.mxu0 0
        %921 = vmatprep.subr.bf16.mxu0 0
        %922 = vmatpush1.bf16.msra.mxu0 0
        %923 = vmatprep.subr.bf16.mxu0 0
        %924 = vmatpush1.bf16.msra.mxu0 0
        %925 = vmatprep.subr.bf16.mxu0 0
        %926 = vmatpush1.bf16.msra.mxu0 0
        %927 = vmatprep.subr.bf16.mxu0 0
        %928 = vmatpush1.bf16.msra.mxu0 0
        %929 = vmatprep.subr.bf16.mxu0 0
        %930 = vmatpush1.bf16.msra.mxu0 0
        %931 = vmatprep.subr.bf16.mxu0 0
        %932 = vmatpush1.bf16.msra.mxu0 0
        %933 = vmatprep.subr.bf16.mxu0 0
        %934 = vmatpush1.bf16.msra.mxu0 0
        %935 = vmatprep.subr.bf16.mxu0 0
        %936 = vmatpush1.bf16.msra.mxu0 0
        %937 = vmatprep.mubr.bf16.mxu0 0
        %938 = vmatmul.mubr.bf16.gmra.mrb[0].mxu0 %v774
        %v939 = vpop.f32.mrb[0].mxu0
        %v940 = vadd.f32 0.0, %v939
        %v941 = vpop.f32.mrb[0].mxu0
        %v942 = vadd.f32 0.0, %v941
        %v943 = vpop.f32.mrb[0].mxu0
        %v944 = vadd.f32 0.0, %v943
        %v945 = vpop.f32.mrb[0].mxu0
        %v946 = vadd.f32 0.0, %v945
        %947 = vdwg.mxu0
        %948 = vmatprep.subr.bf16.mxu0 %v599
        %949 = vmatpush1.bf16.msra.mxu0 %v598
        %950 = vmatprep.subr.bf16.mxu0 %v612
        %951 = vmatpush1.bf16.msra.mxu0 %v611
        %952 = vmatprep.subr.bf16.mxu0 %v625
        %953 = vmatpush1.bf16.msra.mxu0 %v624
        %954 = vmatprep.subr.bf16.mxu0 %v638
        %955 = vmatpush1.bf16.msra.mxu0 %v637
        %956 = vmatprep.subr.bf16.mxu0 %v651
        %957 = vmatpush1.bf16.msra.mxu0 %v650
        %958 = vmatprep.subr.bf16.mxu0 %v664
        %959 = vmatpush1.bf16.msra.mxu0 %v663
        %960 = vmatprep.subr.bf16.mxu0 %v677
        %961 = vmatpush1.bf16.msra.mxu0 %v676
        %962 = vmatprep.subr.bf16.mxu0 0
        %963 = vmatpush1.bf16.msra.mxu0 0
        %964 = vmatprep.subr.bf16.mxu0 0
        %965 = vmatpush1.bf16.msra.mxu0 0
        %966 = vmatprep.subr.bf16.mxu0 0
        %967 = vmatpush1.bf16.msra.mxu0 0
        %968 = vmatprep.subr.bf16.mxu0 0
        %969 = vmatpush1.bf16.msra.mxu0 0
        %970 = vmatprep.subr.bf16.mxu0 0
        %971 = vmatpush1.bf16.msra.mxu0 0
        %972 = vmatprep.subr.bf16.mxu0 0
        %973 = vmatpush1.bf16.msra.mxu0 0
        %974 = vmatprep.subr.bf16.mxu0 0
        %975 = vmatpush1.bf16.msra.mxu0 0
        %976 = vmatprep.subr.bf16.mxu0 0
        %977 = vmatpush1.bf16.msra.mxu0 0
        %978 = vmatprep.subr.bf16.mxu0 0
        %979 = vmatpush1.bf16.msra.mxu0 0
        %980 = vmatprep.mubr.bf16.mxu0 0
        %981 = vmatmul.mubr.bf16.gmra.mrb[0].mxu0 %v774
        %v982 = vpop.f32.mrb[0].mxu0
        %v983 = vadd.f32 0.0, %v982
        %v984 = vpop.f32.mrb[0].mxu0
        %v985 = vadd.f32 0.0, %v984
        %v986 = vpop.f32.mrb[0].mxu0
        %v987 = vadd.f32 0.0, %v986
        %v988 = vpop.f32.mrb[0].mxu0
        %v989 = vadd.f32 0.0, %v988
        %990 = vdwg.mxu0
        %991 = vmatprep.subr.bf16.mxu0 %v601
        %992 = vmatpush1.bf16.msra.mxu0 %v600
        %993 = vmatprep.subr.bf16.mxu0 %v614
        %994 = vmatpush1.bf16.msra.mxu0 %v613
        %995 = vmatprep.subr.bf16.mxu0 %v627
        %996 = vmatpush1.bf16.msra.mxu0 %v626
        %997 = vmatprep.subr.bf16.mxu0 %v640
        %998 = vmatpush1.bf16.msra.mxu0 %v639
        %999 = vmatprep.subr.bf16.mxu0 %v653
        %1000 = vmatpush1.bf16.msra.mxu0 %v652
        %1001 = vmatprep.subr.bf16.mxu0 %v666
        %1002 = vmatpush1.bf16.msra.mxu0 %v665
        %1003 = vmatprep.subr.bf16.mxu0 %v679
        %1004 = vmatpush1.bf16.msra.mxu0 %v678
        %1005 = vmatprep.subr.bf16.mxu0 0
        %1006 = vmatpush1.bf16.msra.mxu0 0
        %1007 = vmatprep.subr.bf16.mxu0 0
        %1008 = vmatpush1.bf16.msra.mxu0 0
        %1009 = vmatprep.subr.bf16.mxu0 0
        %1010 = vmatpush1.bf16.msra.mxu0 0
        %1011 = vmatprep.subr.bf16.mxu0 0
        %1012 = vmatpush1.bf16.msra.mxu0 0
        %1013 = vmatprep.subr.bf16.mxu0 0
        %1014 = vmatpush1.bf16.msra.mxu0 0
        %1015 = vmatprep.subr.bf16.mxu0 0
        %1016 = vmatpush1.bf16.msra.mxu0 0
        %1017 = vmatprep.subr.bf16.mxu0 0
        %1018 = vmatpush1.bf16.msra.mxu0 0
        %1019 = vmatprep.subr.bf16.mxu0 0
        %1020 = vmatpush1.bf16.msra.mxu0 0
        %1021 = vmatprep.subr.bf16.mxu0 0
        %1022 = vmatpush1.bf16.msra.mxu0 0
        %1023 = vmatprep.mubr.bf16.mxu0 0
        %1024 = vmatmul.mubr.bf16.gmra.mrb[0].mxu0 %v774
        %v1025 = vpop.f32.mrb[0].mxu0
        %v1026 = vadd.f32 0.0, %v1025
        %v1027 = vpop.f32.mrb[0].mxu0
        %v1028 = vadd.f32 0.0, %v1027
        %v1029 = vpop.f32.mrb[0].mxu0
        %v1030 = vadd.f32 0.0, %v1029
        %v1031 = vpop.f32.mrb[0].mxu0
        %v1032 = vadd.f32 0.0, %v1031
        %1033 = vdwg.mxu0
        %1034 = vmatprep.subr.bf16.mxu0 0
        %1035 = vmatpush1.bf16.msra.mxu0 %v602
        %1036 = vmatprep.subr.bf16.mxu0 0
        %1037 = vmatpush1.bf16.msra.mxu0 %v615
        %1038 = vmatprep.subr.bf16.mxu0 0
        %1039 = vmatpush1.bf16.msra.mxu0 %v628
        %1040 = vmatprep.subr.bf16.mxu0 0
        %1041 = vmatpush1.bf16.msra.mxu0 %v641
        %1042 = vmatprep.subr.bf16.mxu0 0
        %1043 = vmatpush1.bf16.msra.mxu0 %v654
        %1044 = vmatprep.subr.bf16.mxu0 0
        %1045 = vmatpush1.bf16.msra.mxu0 %v667
        %1046 = vmatprep.subr.bf16.mxu0 0
        %1047 = vmatpush1.bf16.msra.mxu0 %v680
        %1048 = vmatprep.subr.bf16.mxu0 0
        %1049 = vmatpush1.bf16.msra.mxu0 0
        %1050 = vmatprep.subr.bf16.mxu0 0
        %1051 = vmatpush1.bf16.msra.mxu0 0
        %1052 = vmatprep.subr.bf16.mxu0 0
        %1053 = vmatpush1.bf16.msra.mxu0 0
        %1054 = vmatprep.subr.bf16.mxu0 0
        %1055 = vmatpush1.bf16.msra.mxu0 0
        %1056 = vmatprep.subr.bf16.mxu0 0
        %1057 = vmatpush1.bf16.msra.mxu0 0
        %1058 = vmatprep.subr.bf16.mxu0 0
        %1059 = vmatpush1.bf16.msra.mxu0 0
        %1060 = vmatprep.subr.bf16.mxu0 0
        %1061 = vmatpush1.bf16.msra.mxu0 0
        %1062 = vmatprep.subr.bf16.mxu0 0
        %1063 = vmatpush1.bf16.msra.mxu0 0
        %1064 = vmatprep.subr.bf16.mxu0 0
        %1065 = vmatpush1.bf16.msra.mxu0 0
        %1066 = vmatprep.mubr.bf16.mxu0 0
        %1067 = vmatmul.mubr.bf16.gmra.mrb[0].mxu0 %v774
        %v1068 = vpop.f32.mrb[0].mxu0
        %v1069 = vadd.f32 0.0, %v1068
        %v1070 = vpop.f32.mrb[0].mxu0
        %v1071 = vpop.f32.mrb[0].mxu0
        %v1072 = vadd.f32 0.0, %v1071
        %v1073 = vpop.f32.mrb[0].mxu0
        %1074 = vdwg.mxu0
        %1083 = vrot.lane.b32.xlu0 %v856, 96
        %v1084 = vpop.permute.xlu0 %1083
        %1085 = vrot.lane.b32.xlu0 %v897, 96
        %v1086 = vpop.permute.xlu0 %1085
        %1087 = vrot.lane.b32.xlu0 %v899, 96
        %v1088 = vpop.permute.xlu0 %1087
        %1089 = vrot.lane.b32.xlu0 %v940, 96
        %v1090 = vpop.permute.xlu0 %1089
        %1091 = vrot.lane.b32.xlu0 %v860, 96
        %v1092 = vpop.permute.xlu0 %1091
        %1093 = vrot.lane.b32.xlu0 %v901, 96
        %v1094 = vpop.permute.xlu0 %1093
        %1095 = vrot.lane.b32.xlu0 %v903, 96
        %v1096 = vpop.permute.xlu0 %1095
        %1097 = vrot.lane.b32.xlu0 %v944, 96
        %v1098 = vpop.permute.xlu0 %1097
        %vm1099 = vcmask 785408
        %v1100 = vsel %vm1099, %v1084, %v1086
        %v1101 = vsel %vm1099, %v1086, %v1088
        %v1102 = vsel %vm1099, %v1088, %v1090
        %v1103 = vsel %vm1099, %v1092, %v1094
        %v1104 = vsel %vm1099, %v1094, %v1096
        %v1105 = vsel %vm1099, %v1096, %v1098
        %v1114 = vmax.f32 %v811, %v1100
        %v1115 = vmax.f32 %v813, %v1101
        %v1116 = vmax.f32 %v854, %v1102
        %v1117 = vmax.f32 %v856, %v1090
        %v1118 = vmax.f32 %v815, %v1103
        %v1119 = vmax.f32 %v817, %v1104
        %v1120 = vmax.f32 %v858, %v1105
        %v1121 = vmax.f32 %v860, %v1098
        %1130 = vrot.lane.b32.xlu0 %v985, 96
        %v1131 = vpop.permute.xlu0 %1130
        %1132 = vrot.lane.b32.xlu0 %v1026, 96
        %v1133 = vpop.permute.xlu0 %1132
        %1134 = vrot.lane.b32.xlu0 %v1028, 96
        %v1135 = vpop.permute.xlu0 %1134
        %1136 = vrot.lane.b32.xlu0 %v1069, 96
        %v1137 = vpop.permute.xlu0 %1136
        %1138 = vrot.lane.b32.xlu0 %v989, 96
        %v1139 = vpop.permute.xlu0 %1138
        %1140 = vrot.lane.b32.xlu0 %v1030, 96
        %v1141 = vpop.permute.xlu0 %1140
        %1142 = vrot.lane.b32.xlu0 %v1032, 96
        %v1143 = vpop.permute.xlu0 %1142
        %1144 = vrot.lane.b32.xlu0 %v1072, 96
        %v1145 = vpop.permute.xlu0 %1144
        %v1146 = vsel %vm1099, %v1131, %v1133
        %v1147 = vsel %vm1099, %v1133, %v1135
        %v1148 = vsel %vm1099, %v1135, %v1137
        %v1149 = vsel %vm1099, %v1139, %v1141
        %v1150 = vsel %vm1099, %v1141, %v1143
        %v1151 = vsel %vm1099, %v1143, %v1145
        %v1160 = vmax.f32 %v940, %v1146
        %v1161 = vmax.f32 %v942, %v1147
        %v1162 = vmax.f32 %v983, %v1148
        %v1163 = vmax.f32 %v985, %v1137
        %v1164 = vmax.f32 %v944, %v1149
        %v1165 = vmax.f32 %v946, %v1150
        %v1166 = vmax.f32 %v987, %v1151
        %v1167 = vmax.f32 %v989, %v1145
        %1176 = vrot.lane.b32.xlu0 %v1160, 64
        %v1177 = vpop.permute.xlu0 %1176
        %1178 = vrot.lane.b32.xlu0 %v1161, 64
        %v1179 = vpop.permute.xlu0 %1178
        %1180 = vrot.lane.b32.xlu0 %v1162, 64
        %v1181 = vpop.permute.xlu0 %1180
        %1182 = vrot.lane.b32.xlu0 %v1163, 64
        %v1183 = vpop.permute.xlu0 %1182
        %1184 = vrot.lane.b32.xlu0 %v1164, 64
        %v1185 = vpop.permute.xlu0 %1184
        %1186 = vrot.lane.b32.xlu0 %v1165, 64
        %v1187 = vpop.permute.xlu0 %1186
        %1188 = vrot.lane.b32.xlu0 %v1166, 64
        %v1189 = vpop.permute.xlu0 %1188
        %1190 = vrot.lane.b32.xlu0 %v1167, 64
        %v1191 = vpop.permute.xlu0 %1190
        %vm1192 = vcmask 523264
        %v1193 = vsel %vm1192, %v1177, %v1179
        %v1194 = vsel %vm1192, %v1179, %v1181
        %v1195 = vsel %vm1192, %v1181, %v1183
        %v1196 = vsel %vm1192, %v1185, %v1187
        %v1197 = vsel %vm1192, %v1187, %v1189
        %v1198 = vsel %vm1192, %v1189, %v1191
        %v1207 = vmax.f32 %v1114, %v1193
        %v1208 = vmax.f32 %v1115, %v1194
        %v1209 = vmax.f32 %v1116, %v1195
        %v1210 = vmax.f32 %v1117, %v1183
        %v1211 = vmax.f32 %v1118, %v1196
        %v1212 = vmax.f32 %v1119, %v1197
        %v1213 = vmax.f32 %v1120, %v1198
        %v1214 = vmax.f32 %v1121, %v1191
        %v1215 = vld [vmem:[#allocation4] sm:$0xf]
        %v1217 = vlaneseq
        %v1218 = vshrl.u32 %v1217, 7
        %v1219 = vsub.s32 0, %v1218
        %v1220 = vrot.slane %v1215, %v1219
        %v1221 = vlaneseq
        %v1222 = vshrl.u32 %v1221, 7
        %v1223 = vsub.s32 1, %v1222
        %v1224 = vrot.slane %v1215, %v1223
        %v1225 = vlaneseq
        %v1226 = vshrl.u32 %v1225, 7
        %v1227 = vsub.s32 2, %v1226
        %v1228 = vrot.slane %v1215, %v1227
        %v1229 = vlaneseq
        %v1230 = vshrl.u32 %v1229, 7
        %v1231 = vsub.s32 3, %v1230
        %v1232 = vrot.slane %v1215, %v1231
        %v1237 = vadd.f32 %v1207, %v1220
        %v1238 = vadd.f32 %v1208, %v1224
        %v1239 = vadd.f32 %v1209, %v1228
        %v1240 = vadd.f32 %v1210, %v1232
        %v1241 = vadd.f32 %v1211, %v1220
        %v1242 = vadd.f32 %v1212, %v1224
        %v1243 = vadd.f32 %v1213, %v1228
        %v1244 = vadd.f32 %v1214, %v1232
        %v1245 = vmax.f32 %v1237, 0.0
        %v1246 = vmax.f32 %v1238, 0.0
        %v1247 = vmax.f32 %v1239, 0.0
        %v1248 = vmax.f32 %v1240, 0.0
        %v1249 = vmax.f32 %v1241, 0.0
        %v1250 = vmax.f32 %v1242, 0.0
        %v1251 = vmax.f32 %v1243, 0.0
        %v1252 = vmax.f32 %v1244, 0.0
        %v1253 = vpack.c.bf16 %v1249, %v1245
        %v1254 = vpack.c.bf16 %v1250, %v1246
        %v1255 = vpack.c.bf16 %v1251, %v1247
        %v1256 = vpack.c.bf16 %v1252, %v1248
        %v1261 = vunpack.c.l.b16 %v1253
        %v1262 = vunpack.c.l.b16 %v1254
        %v1263 = vunpack.c.l.b16 %v1255
        %v1264 = vunpack.c.l.b16 %v1256
        %v1265 = vunpack.c.h.b16 %v1253
        %v1266 = vunpack.c.h.b16 %v1254
        %v1267 = vunpack.c.h.b16 %v1255
        %v1268 = vunpack.c.h.b16 %v1256
        %v1269 = vpack.c.b16 %v1262, %v1261
        %v1270 = vpack.c.b16 %v1264, %v1263
        %v1271 = vpack.c.b16 %v1266, %v1265
        %v1272 = vpack.c.b16 %v1268, %v1267
        %1277 = vst [vmem:[%s202] sm:$0xff] %v1269
        %vm1278 = vcmask 1043456
        %vm1279 = vcmask 261124
        %vm1280 = vmor %vm1279, %vm1278
        %1281 = vst.msk [vmem:[%s202 + $0x8] sm:$0xff] %vm1280, %v1270
        %1282 = vst [vmem:[%s202 + $0x10] sm:$0xff] %v1271
        %1283 = vst.msk [vmem:[%s202 + $0x18] sm:$0xff] %vm1280, %v1272
        %s1284 = smul.u32 2, %s16
        %p1285 = scmp.lt.s32.totalorder %s1284, 3
        %s1286 = scalar_select %p1285, %s1284, 3
        %s1287 = smul.addr %s1286, 4
        %s1288 = smul.addr %s1287, 4
        %s1289 = scalar_lea.vmem %s3, %s1288
        // Predicated region
        $region41: #{mnist_cnn_forward.3} parent=31 // pred_check
          %p1290 = pneg %p102
        $region42: #{mnist_cnn_forward.3} parent=31 // pred_check_branch
          %1292 = sbr.rel (%p1290) target = $region44
        $region43: #{mnist_cnn_forward.3} parent=31 // pred_region
          %s1293 = smul.u32 2, %s16
        $region44: #{mnist_cnn_forward.3} parent=31 // pred_fallthru
          _
      $region32: #{mnist_cnn_forward.3} parent=5 // pred_fallthru
        _
      %p1294 = scmp.le.s32.totalorder 2, %s11
      // Predicated region
      $region45: #{mnist_cnn_forward.3} parent=5 // pred_check
        %p1295 = pneg %p1294
      $region46: #{mnist_cnn_forward.3} parent=5 // pred_check_branch
        %1297 = sbr.rel (%p1295) target = $region48
      $region47: #{mnist_cnn_forward.3} parent=5 // pred_region
        %s1298 = ssub.s32 %s11, 2
        // Predicated region
        $region49: #{mnist_cnn_forward.3} parent=47 // pred_check
          %p1299 = pneg %p108
        $region50: #{mnist_cnn_forward.3} parent=47 // pred_check_branch
          %1301 = sbr.rel (%p1299) target = $region52
        $region51: #{mnist_cnn_forward.3} parent=47 // pred_region
          %s1302 = smul.u32 2, %s17
          %p1303 = scmp.lt.s32.totalorder %s1302, 3
          %s1304 = scalar_select %p1303, %s1302, 3
          %s1305 = smul.addr %s1304, 4
          %s1306 = smul.addr %s1305, 4
          %s1307 = scalar_lea.vmem %s3, %s1306
        $region52: #{mnist_cnn_forward.3} parent=47 // pred_fallthru
          _
      $region48: #{mnist_cnn_forward.3} parent=5 // pred_fallthru
        _
    $region6: #{mnist_cnn_forward.3} parent=1 // loop_footer
      %s15 = sadd.s32 1, %s11
    $region7: #{mnist_cnn_forward.3} parent=1 // loop_footer_branch
      %10 = sbr.rel target = $region3
    $region8: #{mnist_cnn_forward.3} parent=1 // loop_exit
      _
    %1308 = vsyncpa [#allocation3], 1
    %s1309 = scalar_lea.sflag [#allocation3], 1
    %1310 = vsyncpa %s1309, 1
    %1311 = vsyncpa [#allocation5], 1

// kernel: mnist_cnn_forward.5
$region0: #{mnist_cnn_forward.5}
  #allocation0 [shape = 'u32[]', space=smem, size = 0x4, offset = 0x4, fixed_abs, tag = 'smem constant byte address 0x4 - core index']
  #allocation1 [shape = 'u32[144,128]{1,0:T(1,128)}', space=vmem, size = 0x12000, scoped, tag = 'internal scratch']
  %s0 = inlined_call_operand.vmem [shape: bf16[2,1600], index: 0, kind: input, shape index: {}]
  %s1 = inlined_call_operand.vmem [shape: bf16[1600,128], index: 1, kind: input, shape index: {}]
  %s2 = inlined_call_operand.vmem [shape: f32[1,128], index: 2, kind: input, shape index: {}]
  %s3 = inlined_call_operand.vmem [shape: bf16[128,128], index: 3, kind: input, shape index: {}]
  %s4 = inlined_call_operand.vmem [shape: f32[1,128], index: 4, kind: input, shape index: {}]
  %s5 = inlined_call_operand.hbm [shape: f32[2,128], index: 5, kind: output, shape index: {}]
  %s6 = sld [smem:[#allocation0]]
  $region30: #{mnist_cnn_forward.5} parent=0
    _
  %s8 = ssub.s32 1, %s6
  %s9 = scalar_select 0, %s8, %s6
  $region1: #{mnist_cnn_forward.5} parent=0
    #allocation2 [shape = 'u8[1024]{0}', space=vmem, size = 0x400, scoped, tag = 'output window, operand 0, single buffered']
    #allocation3 [shape = 's32[1]{0}', space=sflag, size = 0x4, scoped, tag = 'scoped memory for mnist_cnn_forward.5']
    %10 = vsyncpa [#allocation3], 0
    // Predicated region
    $region2: #{mnist_cnn_forward.5} parent=1 // pred_check
      _
    $region3: #{mnist_cnn_forward.5} parent=1 // pred_check_branch
      %12 = sbr.rel (0) target = $region5
    $region4: #{mnist_cnn_forward.5} parent=1 // pred_region
      _
    $region5: #{mnist_cnn_forward.5} parent=1 // pred_fallthru
      _
    // Predicated region
    $region6: #{mnist_cnn_forward.5} parent=1 // pred_check
      _
    $region7: #{mnist_cnn_forward.5} parent=1 // pred_check_branch
      %14 = sbr.rel (0) target = $region9
    $region8: #{mnist_cnn_forward.5} parent=1 // pred_region
      _
    $region9: #{mnist_cnn_forward.5} parent=1 // pred_fallthru
      _
    // Predicated region
    $region10: #{mnist_cnn_forward.5} parent=1 // pred_check
      _
    $region11: #{mnist_cnn_forward.5} parent=1 // pred_check_branch
      %16 = sbr.rel (0) target = $region13
    $region12: #{mnist_cnn_forward.5} parent=1 // pred_region
      _
    $region13: #{mnist_cnn_forward.5} parent=1 // pred_fallthru
      _
    // Predicated region
    $region14: #{mnist_cnn_forward.5} parent=1 // pred_check
      _
    $region15: #{mnist_cnn_forward.5} parent=1 // pred_check_branch
      %18 = sbr.rel (0) target = $region17
    $region16: #{mnist_cnn_forward.5} parent=1 // pred_region
      _
    $region17: #{mnist_cnn_forward.5} parent=1 // pred_fallthru
      _
    // Predicated region
    $region18: #{mnist_cnn_forward.5} parent=1 // pred_check
      _
    $region19: #{mnist_cnn_forward.5} parent=1 // pred_check_branch
      %20 = sbr.rel (0) target = $region21
    $region20: #{mnist_cnn_forward.5} parent=1 // pred_region
      _
    $region21: #{mnist_cnn_forward.5} parent=1 // pred_fallthru
      _
    %v22 = vld [vmem:[%s0] sm:$0xff]
    %v23 = vld [vmem:[%s0 + $0x8] sm:$0x1f]
    %v24 = vld [vmem:[%s1] sm:$0xf]
    %v25 = vld [vmem:[%s1 + $0x4] sm:$0xf]
    %v26 = vld [vmem:[%s1 + $0x8] sm:$0xf]
    %v27 = vld [vmem:[%s1 + $0xc] sm:$0xf]
    %v28 = vld [vmem:[%s1 + $0x10] sm:$0xf]
    %v29 = vld [vmem:[%s1 + $0x14] sm:$0xf]
    %v30 = vld [vmem:[%s1 + $0x18] sm:$0xf]
    %v31 = vld [vmem:[%s1 + $0x1c] sm:$0xf]
    %v32 = vld [vmem:[%s1 + $0x20] sm:$0xf]
    %v33 = vld [vmem:[%s1 + $0x24] sm:$0xf]
    %v34 = vld [vmem:[%s1 + $0x28] sm:$0xf]
    %v35 = vld [vmem:[%s1 + $0x2c] sm:$0xf]
    %v36 = vld [vmem:[%s1 + $0x30] sm:$0xf]
    %v37 = vld [vmem:[%s1 + $0x34] sm:$0xf]
    %v38 = vld [vmem:[%s1 + $0x38] sm:$0xf]
    %v39 = vld [vmem:[%s1 + $0x3c] sm:$0xf]
    %v40 = vld [vmem:[%s1 + $0x40] sm:$0xf]
    %v41 = vld [vmem:[%s1 + $0x44] sm:$0xf]
    %v42 = vld [vmem:[%s1 + $0x48] sm:$0xf]
    %v43 = vld [vmem:[%s1 + $0x4c] sm:$0xf]
    %v44 = vld [vmem:[%s1 + $0x50] sm:$0xf]
    %v45 = vld [vmem:[%s1 + $0x54] sm:$0xf]
    %v46 = vld [vmem:[%s1 + $0x58] sm:$0xf]
    %v47 = vld [vmem:[%s1 + $0x5c] sm:$0xf]
    %v48 = vld [vmem:[%s1 + $0x60] sm:$0xf]
    %v49 = vld [vmem:[%s1 + $0x64] sm:$0xf]
    %v50 = vld [vmem:[%s1 + $0x68] sm:$0xf]
    %v51 = vld [vmem:[%s1 + $0x6c] sm:$0xf]
    %v52 = vld [vmem:[%s1 + $0x70] sm:$0xf]
    %v53 = vld [vmem:[%s1 + $0x74] sm:$0xf]
    %v54 = vld [vmem:[%s1 + $0x78] sm:$0xf]
    %v55 = vld [vmem:[%s1 + $0x7c] sm:$0xf]
    %v56 = vld [vmem:[%s1 + $0x80] sm:$0xf]
    %v57 = vld [vmem:[%s1 + $0x84] sm:$0xf]
    %v58 = vld [vmem:[%s1 + $0x88] sm:$0xf]
    %v59 = vld [vmem:[%s1 + $0x8c] sm:$0xf]
    %v60 = vld [vmem:[%s1 + $0x90] sm:$0xf]
    %v61 = vld [vmem:[%s1 + $0x94] sm:$0xf]
    %v62 = vld [vmem:[%s1 + $0x98] sm:$0xf]
    %v63 = vld [vmem:[%s1 + $0x9c] sm:$0xf]
    %v64 = vld [vmem:[%s1 + $0xa0] sm:$0xf]
    %v65 = vld [vmem:[%s1 + $0xa4] sm:$0xf]
    %v66 = vld [vmem:[%s1 + $0xa8] sm:$0xf]
    %v67 = vld [vmem:[%s1 + $0xac] sm:$0xf]
    %v68 = vld [vmem:[%s1 + $0xb0] sm:$0xf]
    %v69 = vld [vmem:[%s1 + $0xb4] sm:$0xf]
    %v70 = vld [vmem:[%s1 + $0xb8] sm:$0xf]
    %v71 = vld [vmem:[%s1 + $0xbc] sm:$0xf]
    %v72 = vld [vmem:[%s1 + $0xc0] sm:$0xf]
    %v73 = vld [vmem:[%s1 + $0xc4] sm:$0xf]
    %v74 = vld [vmem:[%s1 + $0xc8] sm:$0xf]
    %v75 = vld [vmem:[%s1 + $0xcc] sm:$0xf]
    %v76 = vld [vmem:[%s1 + $0xd0] sm:$0xf]
    %v77 = vld [vmem:[%s1 + $0xd4] sm:$0xf]
    %v78 = vld [vmem:[%s1 + $0xd8] sm:$0xf]
    %v79 = vld [vmem:[%s1 + $0xdc] sm:$0xf]
    %v80 = vld [vmem:[%s1 + $0xe0] sm:$0xf]
    %v81 = vld [vmem:[%s1 + $0xe4] sm:$0xf]
    %v82 = vld [vmem:[%s1 + $0xe8] sm:$0xf]
    %v83 = vld [vmem:[%s1 + $0xec] sm:$0xf]
    %v84 = vld [vmem:[%s1 + $0xf0] sm:$0xf]
    %v85 = vld [vmem:[%s1 + $0xf4] sm:$0xf]
    %v86 = vld [vmem:[%s1 + $0xf8] sm:$0xf]
    %v87 = vld [vmem:[%s1 + $0xfc] sm:$0xf]
    %v88 = vld [vmem:[%s1 + $0x100] sm:$0xf]
    %v89 = vld [vmem:[%s1 + $0x104] sm:$0xf]
    %v90 = vld [vmem:[%s1 + $0x108] sm:$0xf]
    %v91 = vld [vmem:[%s1 + $0x10c] sm:$0xf]
    %v92 = vld [vmem:[%s1 + $0x110] sm:$0xf]
    %v93 = vld [vmem:[%s1 + $0x114] sm:$0xf]
    %v94 = vld [vmem:[%s1 + $0x118] sm:$0xf]
    %v95 = vld [vmem:[%s1 + $0x11c] sm:$0xf]
    %v96 = vld [vmem:[%s1 + $0x120] sm:$0xf]
    %v97 = vld [vmem:[%s1 + $0x124] sm:$0xf]
    %v98 = vld [vmem:[%s1 + $0x128] sm:$0xf]
    %v99 = vld [vmem:[%s1 + $0x12c] sm:$0xf]
    %v100 = vld [vmem:[%s1 + $0x130] sm:$0xf]
    %v101 = vld [vmem:[%s1 + $0x134] sm:$0xf]
    %v102 = vld [vmem:[%s1 + $0x138] sm:$0xf]
    %v103 = vld [vmem:[%s1 + $0x13c] sm:$0xf]
    %v104 = vld [vmem:[%s1 + $0x140] sm:$0xf]
    %v105 = vld [vmem:[%s1 + $0x144] sm:$0xf]
    %v106 = vld [vmem:[%s1 + $0x148] sm:$0xf]
    %v107 = vld [vmem:[%s1 + $0x14c] sm:$0xf]
    %v108 = vld [vmem:[%s1 + $0x150] sm:$0xf]
    %v109 = vld [vmem:[%s1 + $0x154] sm:$0xf]
    %v110 = vld [vmem:[%s1 + $0x158] sm:$0xf]
    %v111 = vld [vmem:[%s1 + $0x15c] sm:$0xf]
    %v112 = vld [vmem:[%s1 + $0x160] sm:$0xf]
    %v113 = vld [vmem:[%s1 + $0x164] sm:$0xf]
    %v114 = vld [vmem:[%s1 + $0x168] sm:$0xf]
    %v115 = vld [vmem:[%s1 + $0x16c] sm:$0xf]
    %v116 = vld [vmem:[%s1 + $0x170] sm:$0xf]
    %v117 = vld [vmem:[%s1 + $0x174] sm:$0xf]
    %v118 = vld [vmem:[%s1 + $0x178] sm:$0xf]
    %v119 = vld [vmem:[%s1 + $0x17c] sm:$0xf]
    %v120 = vld [vmem:[%s1 + $0x180] sm:$0xf]
    %v121 = vld [vmem:[%s1 + $0x184] sm:$0xf]
    %v122 = vld [vmem:[%s1 + $0x188] sm:$0xf]
    %v123 = vld [vmem:[%s1 + $0x18c] sm:$0xf]
    %v124 = vld [vmem:[%s1 + $0x190] sm:$0xf]
    %v125 = vld [vmem:[%s1 + $0x194] sm:$0xf]
    %v126 = vld [vmem:[%s1 + $0x198] sm:$0xf]
    %v127 = vld [vmem:[%s1 + $0x19c] sm:$0xf]
    %v128 = vld [vmem:[%s1 + $0x1a0] sm:$0xf]
    %v129 = vld [vmem:[%s1 + $0x1a4] sm:$0xf]
    %v130 = vld [vmem:[%s1 + $0x1a8] sm:$0xf]
    %v131 = vld [vmem:[%s1 + $0x1ac] sm:$0xf]
    %v132 = vld [vmem:[%s1 + $0x1b0] sm:$0xf]
    %v133 = vld [vmem:[%s1 + $0x1b4] sm:$0xf]
    %v134 = vld [vmem:[%s1 + $0x1b8] sm:$0xf]
    %v135 = vld [vmem:[%s1 + $0x1bc] sm:$0xf]
    %v136 = vld [vmem:[%s1 + $0x1c0] sm:$0xf]
    %v137 = vld [vmem:[%s1 + $0x1c4] sm:$0xf]
    %v138 = vld [vmem:[%s1 + $0x1c8] sm:$0xf]
    %v139 = vld [vmem:[%s1 + $0x1cc] sm:$0xf]
    %v140 = vld [vmem:[%s1 + $0x1d0] sm:$0xf]
    %v141 = vld [vmem:[%s1 + $0x1d4] sm:$0xf]
    %v142 = vld [vmem:[%s1 + $0x1d8] sm:$0xf]
    %v143 = vld [vmem:[%s1 + $0x1dc] sm:$0xf]
    %v144 = vld [vmem:[%s1 + $0x1e0] sm:$0xf]
    %v145 = vld [vmem:[%s1 + $0x1e4] sm:$0xf]
    %v146 = vld [vmem:[%s1 + $0x1e8] sm:$0xf]
    %v147 = vld [vmem:[%s1 + $0x1ec] sm:$0xf]
    %v148 = vld [vmem:[%s1 + $0x1f0] sm:$0xf]
    %v149 = vld [vmem:[%s1 + $0x1f4] sm:$0xf]
    %v150 = vld [vmem:[%s1 + $0x1f8] sm:$0xf]
    %v151 = vld [vmem:[%s1 + $0x1fc] sm:$0xf]
    %v152 = vld [vmem:[%s1 + $0x200] sm:$0xf]
    %v153 = vld [vmem:[%s1 + $0x204] sm:$0xf]
    %v154 = vld [vmem:[%s1 + $0x208] sm:$0xf]
    %v155 = vld [vmem:[%s1 + $0x20c] sm:$0xf]
    %v156 = vld [vmem:[%s1 + $0x210] sm:$0xf]
    %v157 = vld [vmem:[%s1 + $0x214] sm:$0xf]
    %v158 = vld [vmem:[%s1 + $0x218] sm:$0xf]
    %v159 = vld [vmem:[%s1 + $0x21c] sm:$0xf]
    %v160 = vld [vmem:[%s1 + $0x220] sm:$0xf]
    %v161 = vld [vmem:[%s1 + $0x224] sm:$0xf]
    %v162 = vld [vmem:[%s1 + $0x228] sm:$0xf]
    %v163 = vld [vmem:[%s1 + $0x22c] sm:$0xf]
    %v164 = vld [vmem:[%s1 + $0x230] sm:$0xf]
    %v165 = vld [vmem:[%s1 + $0x234] sm:$0xf]
    %v166 = vld [vmem:[%s1 + $0x238] sm:$0xf]
    %v167 = vld [vmem:[%s1 + $0x23c] sm:$0xf]
    %v168 = vld [vmem:[%s1 + $0x240] sm:$0xf]
    %v169 = vld [vmem:[%s1 + $0x244] sm:$0xf]
    %v170 = vld [vmem:[%s1 + $0x248] sm:$0xf]
    %v171 = vld [vmem:[%s1 + $0x24c] sm:$0xf]
    %v172 = vld [vmem:[%s1 + $0x250] sm:$0xf]
    %v173 = vld [vmem:[%s1 + $0x254] sm:$0xf]
    %v174 = vld [vmem:[%s1 + $0x258] sm:$0xf]
    %v175 = vld [vmem:[%s1 + $0x25c] sm:$0xf]
    %v176 = vld [vmem:[%s1 + $0x260] sm:$0xf]
    %v177 = vld [vmem:[%s1 + $0x264] sm:$0xf]
    %v178 = vld [vmem:[%s1 + $0x268] sm:$0xf]
    %v179 = vld [vmem:[%s1 + $0x26c] sm:$0xf]
    %v180 = vld [vmem:[%s1 + $0x270] sm:$0xf]
    %v181 = vld [vmem:[%s1 + $0x274] sm:$0xf]
    %v182 = vld [vmem:[%s1 + $0x278] sm:$0xf]
    %v183 = vld [vmem:[%s1 + $0x27c] sm:$0xf]
    %v184 = vld [vmem:[%s1 + $0x280] sm:$0xf]
    %v185 = vld [vmem:[%s1 + $0x284] sm:$0xf]
    %v186 = vld [vmem:[%s1 + $0x288] sm:$0xf]
    %v187 = vld [vmem:[%s1 + $0x28c] sm:$0xf]
    %v188 = vld [vmem:[%s1 + $0x290] sm:$0xf]
    %v189 = vld [vmem:[%s1 + $0x294] sm:$0xf]
    %v190 = vld [vmem:[%s1 + $0x298] sm:$0xf]
    %v191 = vld [vmem:[%s1 + $0x29c] sm:$0xf]
    %v192 = vld [vmem:[%s1 + $0x2a0] sm:$0xf]
    %v193 = vld [vmem:[%s1 + $0x2a4] sm:$0xf]
    %v194 = vld [vmem:[%s1 + $0x2a8] sm:$0xf]
    %v195 = vld [vmem:[%s1 + $0x2ac] sm:$0xf]
    %v196 = vld [vmem:[%s1 + $0x2b0] sm:$0xf]
    %v197 = vld [vmem:[%s1 + $0x2b4] sm:$0xf]
    %v198 = vld [vmem:[%s1 + $0x2b8] sm:$0xf]
    %v199 = vld [vmem:[%s1 + $0x2bc] sm:$0xf]
    %v200 = vld [vmem:[%s1 + $0x2c0] sm:$0xf]
    %v201 = vld [vmem:[%s1 + $0x2c4] sm:$0xf]
    %v202 = vld [vmem:[%s1 + $0x2c8] sm:$0xf]
    %v203 = vld [vmem:[%s1 + $0x2cc] sm:$0xf]
    %v204 = vld [vmem:[%s1 + $0x2d0] sm:$0xf]
    %v205 = vld [vmem:[%s1 + $0x2d4] sm:$0xf]
    %v206 = vld [vmem:[%s1 + $0x2d8] sm:$0xf]
    %v207 = vld [vmem:[%s1 + $0x2dc] sm:$0xf]
    %v208 = vld [vmem:[%s1 + $0x2e0] sm:$0xf]
    %v209 = vld [vmem:[%s1 + $0x2e4] sm:$0xf]
    %v210 = vld [vmem:[%s1 + $0x2e8] sm:$0xf]
    %v211 = vld [vmem:[%s1 + $0x2ec] sm:$0xf]
    %v212 = vld [vmem:[%s1 + $0x2f0] sm:$0xf]
    %v213 = vld [vmem:[%s1 + $0x2f4] sm:$0xf]
    %v214 = vld [vmem:[%s1 + $0x2f8] sm:$0xf]
    %v215 = vld [vmem:[%s1 + $0x2fc] sm:$0xf]
    %v216 = vld [vmem:[%s1 + $0x300] sm:$0xf]
    %v217 = vld [vmem:[%s1 + $0x304] sm:$0xf]
    %v218 = vld [vmem:[%s1 + $0x308] sm:$0xf]
    %v219 = vld [vmem:[%s1 + $0x30c] sm:$0xf]
    %v220 = vld [vmem:[%s1 + $0x310] sm:$0xf]
    %v221 = vld [vmem:[%s1 + $0x314] sm:$0xf]
    %v222 = vld [vmem:[%s1 + $0x318] sm:$0xf]
    %v223 = vld [vmem:[%s1 + $0x31c] sm:$0xf]
    %v224 = vld [vmem:[%s2] sm:$0x1]
    %v226 = vlaneseq
    %v227 = vshrl.u32 %v226, 7
    %v228 = vsub.s32 0, %v227
    %v229 = vrot.slane %v224, %v228
    %v233 = vcombine.high %v22, %v22
    %v235 = vunpack.c.l.s4 1966171168
    %v236 = vunpack.c.0.s8 %v235
    %v237 = vlaneseq
    %v238 = vshrl.u32 %v237, 7
    %v239 = vsub.s32 %v236, %v238
    %v240 = vrot.slane %v22, %v239
    %v242 = vunpack.c.l.s4 1966171168
    %v243 = vunpack.c.0.s8 %v242
    %v244 = vlaneseq
    %v245 = vshrl.u32 %v244, 7
    %v246 = vsub.s32 %v243, %v245
    %v247 = vrot.slane %v233, %v246
    %v248 = vcombine.high %v240, %v240
    %v249 = vcombine.high %v247, %v247
    %v251 = vunpack.c.l.s4 1966171168
    %v252 = vunpack.c.0.s8 %v251
    %v253 = vlaneseq
    %v254 = vshrl.u32 %v253, 7
    %v255 = vsub.s32 %v252, %v254
    %v256 = vrot.slane %v240, %v255
    %v258 = vunpack.c.l.s4 1966171168
    %v259 = vunpack.c.0.s8 %v258
    %v260 = vlaneseq
    %v261 = vshrl.u32 %v260, 7
    %v262 = vsub.s32 %v259, %v261
    %v263 = vrot.slane %v247, %v262
    %v265 = vunpack.c.l.s4 1966171168
    %v266 = vunpack.c.0.s8 %v265
    %v267 = vlaneseq
    %v268 = vshrl.u32 %v267, 7
    %v269 = vsub.s32 %v266, %v268
    %v270 = vrot.slane %v248, %v269
    %v272 = vunpack.c.l.s4 1966171168
    %v273 = vunpack.c.0.s8 %v272
    %v274 = vlaneseq
    %v275 = vshrl.u32 %v274, 7
    %v276 = vsub.s32 %v273, %v275
    %v277 = vrot.slane %v249, %v276
    %v278 = vcombine.high %v256, %v256
    %v279 = vcombine.high %v263, %v263
    %v280 = vcombine.high %v270, %v270
    %v281 = vcombine.high %v277, %v277
    %v282 = vcombine.high %v23, %v23
    %v284 = vunpack.c.l.s4 1966171168
    %v285 = vunpack.c.0.s8 %v284
    %v286 = vlaneseq
    %v287 = vshrl.u32 %v286, 7
    %v288 = vsub.s32 %v285, %v287
    %v289 = vrot.slane %v23, %v288
    %v291 = vunpack.c.l.s4 1966171168
    %v292 = vunpack.c.0.s8 %v291
    %v293 = vlaneseq
    %v294 = vshrl.u32 %v293, 7
    %v295 = vsub.s32 %v292, %v294
    %v296 = vrot.slane %v282, %v295
    %v297 = vcombine.high %v289, %v289
    %v299 = vunpack.c.l.s4 1966171168
    %v300 = vunpack.c.0.s8 %v299
    %v301 = vlaneseq
    %v302 = vshrl.u32 %v301, 7
    %v303 = vsub.s32 %v300, %v302
    %v304 = vrot.slane %v289, %v303
    %v306 = vunpack.c.l.s4 1966171168
    %v307 = vunpack.c.0.s8 %v306
    %v308 = vlaneseq
    %v309 = vshrl.u32 %v308, 7
    %v310 = vsub.s32 %v307, %v309
    %v311 = vrot.slane %v296, %v310
    %v313 = vunpack.c.l.s4 1966171168
    %v314 = vunpack.c.0.s8 %v313
    %v315 = vlaneseq
    %v316 = vshrl.u32 %v315, 7
    %v317 = vsub.s32 %v314, %v316
    %v318 = vrot.slane %v297, %v317
    %v319 = vcombine.high %v304, %v304
    %v320 = vcombine.high %v318, %v318
    %v533 = vunpack.c.l.b16 %v24
    %v534 = vunpack.c.l.b16 %v25
    %v535 = vunpack.c.l.b16 %v26
    %v536 = vunpack.c.l.b16 %v27
    %v537 = vunpack.c.l.b16 %v28
    %v538 = vunpack.c.l.b16 %v29
    %v539 = vunpack.c.l.b16 %v30
    %v540 = vunpack.c.l.b16 %v31
    %v541 = vunpack.c.l.b16 %v32
    %v542 = vunpack.c.l.b16 %v33
    %v543 = vunpack.c.l.b16 %v34
    %v544 = vunpack.c.l.b16 %v35
    %v545 = vunpack.c.l.b16 %v36
    %v546 = vunpack.c.l.b16 %v37
    %v547 = vunpack.c.l.b16 %v38
    %v548 = vunpack.c.l.b16 %v39
    %v549 = vunpack.c.l.b16 %v40
    %v550 = vunpack.c.l.b16 %v41
    %v551 = vunpack.c.l.b16 %v42
    %v552 = vunpack.c.l.b16 %v43
    %v553 = vunpack.c.l.b16 %v44
    %v554 = vunpack.c.l.b16 %v45
    %v555 = vunpack.c.l.b16 %v46
    %v556 = vunpack.c.l.b16 %v47
    %v557 = vunpack.c.l.b16 %v48
    %v558 = vunpack.c.l.b16 %v49
    %v559 = vunpack.c.l.b16 %v50
    %v560 = vunpack.c.l.b16 %v51
    %v561 = vunpack.c.l.b16 %v52
    %v562 = vunpack.c.l.b16 %v53
    %v563 = vunpack.c.l.b16 %v54
    %v564 = vunpack.c.l.b16 %v55
    %v565 = vunpack.c.l.b16 %v56
    %v566 = vunpack.c.l.b16 %v57
    %v567 = vunpack.c.l.b16 %v58
    %v568 = vunpack.c.l.b16 %v59
    %v569 = vunpack.c.l.b16 %v60
    %v570 = vunpack.c.l.b16 %v61
    %v571 = vunpack.c.l.b16 %v62
    %v572 = vunpack.c.l.b16 %v63
    %v573 = vunpack.c.l.b16 %v64
    %v574 = vunpack.c.l.b16 %v65
    %v575 = vunpack.c.l.b16 %v66
    %v576 = vunpack.c.l.b16 %v67
    %v577 = vunpack.c.l.b16 %v68
    %v578 = vunpack.c.l.b16 %v69
    %v579 = vunpack.c.l.b16 %v70
    %v580 = vunpack.c.l.b16 %v71
    %v581 = vunpack.c.l.b16 %v72
    %v582 = vunpack.c.l.b16 %v73
    %v583 = vunpack.c.l.b16 %v74
    %v584 = vunpack.c.l.b16 %v75
    %v585 = vunpack.c.l.b16 %v76
    %v586 = vunpack.c.l.b16 %v77
    %v587 = vunpack.c.l.b16 %v78
    %v588 = vunpack.c.l.b16 %v79
    %v589 = vunpack.c.l.b16 %v80
    %v590 = vunpack.c.l.b16 %v81
    %v591 = vunpack.c.l.b16 %v82
    %v592 = vunpack.c.l.b16 %v83
    %v593 = vunpack.c.l.b16 %v84
    %v594 = vunpack.c.l.b16 %v85
    %v595 = vunpack.c.l.b16 %v86
    %v596 = vunpack.c.l.b16 %v87
    %v597 = vunpack.c.l.b16 %v88
    %v598 = vunpack.c.l.b16 %v89
    %v599 = vunpack.c.l.b16 %v90
    %v600 = vunpack.c.l.b16 %v91
    %v601 = vunpack.c.l.b16 %v92
    %v602 = vunpack.c.l.b16 %v93
    %v603 = vunpack.c.l.b16 %v94
    %v604 = vunpack.c.l.b16 %v95
    %v605 = vunpack.c.l.b16 %v96
    %v606 = vunpack.c.l.b16 %v97
    %v607 = vunpack.c.l.b16 %v98
    %v608 = vunpack.c.l.b16 %v99
    %v609 = vunpack.c.l.b16 %v100
    %v610 = vunpack.c.l.b16 %v101
    %v611 = vunpack.c.l.b16 %v102
    %v612 = vunpack.c.l.b16 %v103
    %v613 = vunpack.c.l.b16 %v104
    %v614 = vunpack.c.l.b16 %v105
    %v615 = vunpack.c.l.b16 %v106
    %v616 = vunpack.c.l.b16 %v107
    %v617 = vunpack.c.l.b16 %v108
    %v618 = vunpack.c.l.b16 %v109
    %v619 = vunpack.c.l.b16 %v110
    %v620 = vunpack.c.l.b16 %v111
    %v621 = vunpack.c.l.b16 %v112
    %v622 = vunpack.c.l.b16 %v113
    %v623 = vunpack.c.l.b16 %v114
    %v624 = vunpack.c.l.b16 %v115
    %v625 = vunpack.c.l.b16 %v116
    %v626 = vunpack.c.l.b16 %v117
    %v627 = vunpack.c.l.b16 %v118
    %v628 = vunpack.c.l.b16 %v119
    %v629 = vunpack.c.l.b16 %v120
    %v630 = vunpack.c.l.b16 %v121
    %v631 = vunpack.c.l.b16 %v122
    %v632 = vunpack.c.l.b16 %v123
    %v633 = vunpack.c.l.b16 %v124
    %v634 = vunpack.c.l.b16 %v125
    %v635 = vunpack.c.l.b16 %v126
    %v636 = vunpack.c.l.b16 %v127
    %v637 = vunpack.c.l.b16 %v128
    %v638 = vunpack.c.l.b16 %v129
    %v639 = vunpack.c.l.b16 %v130
    %v640 = vunpack.c.l.b16 %v131
    %v641 = vunpack.c.l.b16 %v132
    %v642 = vunpack.c.l.b16 %v133
    %v643 = vunpack.c.l.b16 %v134
    %v644 = vunpack.c.l.b16 %v135
    %v645 = vunpack.c.l.b16 %v136
    %v646 = vunpack.c.l.b16 %v137
    %v647 = vunpack.c.l.b16 %v138
    %v648 = vunpack.c.l.b16 %v139
    %v649 = vunpack.c.l.b16 %v140
    %v650 = vunpack.c.l.b16 %v141
    %v651 = vunpack.c.l.b16 %v142
    %v652 = vunpack.c.l.b16 %v143
    %v653 = vunpack.c.l.b16 %v144
    %v654 = vunpack.c.l.b16 %v145
    %v655 = vunpack.c.l.b16 %v146
    %v656 = vunpack.c.l.b16 %v147
    %v657 = vunpack.c.l.b16 %v148
    %v658 = vunpack.c.l.b16 %v149
    %v659 = vunpack.c.l.b16 %v150
    %v660 = vunpack.c.l.b16 %v151
    %v661 = vunpack.c.l.b16 %v152
    %v662 = vunpack.c.l.b16 %v153
    %v663 = vunpack.c.l.b16 %v154
    %v664 = vunpack.c.l.b16 %v155
    %v665 = vunpack.c.l.b16 %v156
    %v666 = vunpack.c.l.b16 %v157
    %v667 = vunpack.c.l.b16 %v158
    %v668 = vunpack.c.l.b16 %v159
    %v669 = vunpack.c.l.b16 %v160
    %v670 = vunpack.c.l.b16 %v161
    %v671 = vunpack.c.l.b16 %v162
    %v672 = vunpack.c.l.b16 %v163
    %v673 = vunpack.c.l.b16 %v164
    %v674 = vunpack.c.l.b16 %v165
    %v675 = vunpack.c.l.b16 %v166
    %v676 = vunpack.c.l.b16 %v167
    %v677 = vunpack.c.l.b16 %v168
    %v678 = vunpack.c.l.b16 %v169
    %v679 = vunpack.c.l.b16 %v170
    %v680 = vunpack.c.l.b16 %v171
    %v681 = vunpack.c.l.b16 %v172
    %v682 = vunpack.c.l.b16 %v173
    %v683 = vunpack.c.l.b16 %v174
    %v684 = vunpack.c.l.b16 %v175
    %v685 = vunpack.c.l.b16 %v176
    %v686 = vunpack.c.l.b16 %v177
    %v687 = vunpack.c.l.b16 %v178
    %v688 = vunpack.c.l.b16 %v179
    %v689 = vunpack.c.l.b16 %v180
    %v690 = vunpack.c.l.b16 %v181
    %v691 = vunpack.c.l.b16 %v182
    %v692 = vunpack.c.l.b16 %v183
    %v693 = vunpack.c.l.b16 %v184
    %v694 = vunpack.c.l.b16 %v185
    %v695 = vunpack.c.l.b16 %v186
    %v696 = vunpack.c.l.b16 %v187
    %v697 = vunpack.c.l.b16 %v188
    %v698 = vunpack.c.l.b16 %v189
    %v699 = vunpack.c.l.b16 %v190
    %v700 = vunpack.c.l.b16 %v191
    %v701 = vunpack.c.l.b16 %v192
    %v702 = vunpack.c.l.b16 %v193
    %v703 = vunpack.c.l.b16 %v194
    %v704 = vunpack.c.l.b16 %v195
    %v705 = vunpack.c.l.b16 %v196
    %v706 = vunpack.c.l.b16 %v197
    %v707 = vunpack.c.l.b16 %v198
    %v708 = vunpack.c.l.b16 %v199
    %v709 = vunpack.c.l.b16 %v200
    %v710 = vunpack.c.l.b16 %v201
    %v711 = vunpack.c.l.b16 %v202
    %v712 = vunpack.c.l.b16 %v203
    %v713 = vunpack.c.l.b16 %v204
    %v714 = vunpack.c.l.b16 %v205
    %v715 = vunpack.c.l.b16 %v206
    %v716 = vunpack.c.l.b16 %v207
    %v717 = vunpack.c.l.b16 %v208
    %v718 = vunpack.c.l.b16 %v209
    %v719 = vunpack.c.l.b16 %v210
    %v720 = vunpack.c.l.b16 %v211
    %v721 = vunpack.c.l.b16 %v212
    %v722 = vunpack.c.l.b16 %v213
    %v723 = vunpack.c.l.b16 %v214
    %v724 = vunpack.c.l.b16 %v215
    %v725 = vunpack.c.l.b16 %v216
    %v726 = vunpack.c.l.b16 %v217
    %v727 = vunpack.c.l.b16 %v218
    %v728 = vunpack.c.l.b16 %v219
    %v729 = vunpack.c.l.b16 %v220
    %v730 = vunpack.c.l.b16 %v221
    %v731 = vunpack.c.l.b16 %v222
    %v732 = vunpack.c.l.b16 %v223
    %v733 = vpack.c.b16 %v534, %v533
    %v734 = vpack.c.b16 %v536, %v535
    %v735 = vpack.c.b16 %v538, %v537
    %v736 = vpack.c.b16 %v540, %v539
    %v737 = vpack.c.b16 %v542, %v541
    %v738 = vpack.c.b16 %v544, %v543
    %v739 = vpack.c.b16 %v546, %v545
    %v740 = vpack.c.b16 %v548, %v547
    %v741 = vpack.c.b16 %v550, %v549
    %v742 = vpack.c.b16 %v552, %v551
    %v743 = vpack.c.b16 %v554, %v553
    %v744 = vpack.c.b16 %v556, %v555
    %v745 = vpack.c.b16 %v558, %v557
    %v746 = vpack.c.b16 %v560, %v559
    %v747 = vpack.c.b16 %v562, %v561
    %v748 = vpack.c.b16 %v564, %v563
    %v749 = vpack.c.b16 %v566, %v565
    %v750 = vpack.c.b16 %v568, %v567
    %v751 = vpack.c.b16 %v570, %v569
    %v752 = vpack.c.b16 %v572, %v571
    %v753 = vpack.c.b16 %v574, %v573
    %v754 = vpack.c.b16 %v576, %v575
    %v755 = vpack.c.b16 %v578, %v577
    %v756 = vpack.c.b16 %v580, %v579
    %v757 = vpack.c.b16 %v582, %v581
    %v758 = vpack.c.b16 %v584, %v583
    %v759 = vpack.c.b16 %v586, %v585
    %v760 = vpack.c.b16 %v588, %v587
    %v761 = vpack.c.b16 %v590, %v589
    %v762 = vpack.c.b16 %v592, %v591
    %v763 = vpack.c.b16 %v594, %v593
    %v764 = vpack.c.b16 %v596, %v595
    %v765 = vpack.c.b16 %v598, %v597
    %v766 = vpack.c.b16 %v600, %v599
    %v767 = vpack.c.b16 %v602, %v601
    %v768 = vpack.c.b16 %v604, %v603
    %v769 = vpack.c.b16 %v606, %v605
    %v770 = vpack.c.b16 %v608, %v607
    %v771 = vpack.c.b16 %v610, %v609
    %v772 = vpack.c.b16 %v612, %v611
    %v773 = vpack.c.b16 %v614, %v613
    %v774 = vpack.c.b16 %v616, %v615
    %v775 = vpack.c.b16 %v618, %v617
    %v776 = vpack.c.b16 %v620, %v619
    %v777 = vpack.c.b16 %v622, %v621
    %v778 = vpack.c.b16 %v624, %v623
    %v779 = vpack.c.b16 %v626, %v625
    %v780 = vpack.c.b16 %v628, %v627
    %v781 = vpack.c.b16 %v630, %v629
    %v782 = vpack.c.b16 %v632, %v631
    %v783 = vpack.c.b16 %v634, %v633
    %v784 = vpack.c.b16 %v636, %v635
    %v785 = vpack.c.b16 %v638, %v637
    %v786 = vpack.c.b16 %v640, %v639
    %v787 = vpack.c.b16 %v642, %v641
    %v788 = vpack.c.b16 %v644, %v643
    %v789 = vpack.c.b16 %v646, %v645
    %v790 = vpack.c.b16 %v648, %v647
    %v791 = vpack.c.b16 %v650, %v649
    %v792 = vpack.c.b16 %v652, %v651
    %v793 = vpack.c.b16 %v654, %v653
    %v794 = vpack.c.b16 %v656, %v655
    %v795 = vpack.c.b16 %v658, %v657
    %v796 = vpack.c.b16 %v660, %v659
    %v797 = vpack.c.b16 %v662, %v661
    %v798 = vpack.c.b16 %v664, %v663
    %v799 = vpack.c.b16 %v666, %v665
    %v800 = vpack.c.b16 %v668, %v667
    %v801 = vpack.c.b16 %v670, %v669
    %v802 = vpack.c.b16 %v672, %v671
    %v803 = vpack.c.b16 %v674, %v673
    %v804 = vpack.c.b16 %v676, %v675
    %v805 = vpack.c.b16 %v678, %v677
    %v806 = vpack.c.b16 %v680, %v679
    %v807 = vpack.c.b16 %v682, %v681
    %v808 = vpack.c.b16 %v684, %v683
    %v809 = vpack.c.b16 %v686, %v685
    %v810 = vpack.c.b16 %v688, %v687
    %v811 = vpack.c.b16 %v690, %v689
    %v812 = vpack.c.b16 %v692, %v691
    %v813 = vpack.c.b16 %v694, %v693
    %v814 = vpack.c.b16 %v696, %v695
    %v815 = vpack.c.b16 %v698, %v697
    %v816 = vpack.c.b16 %v700, %v699
    %v817 = vpack.c.b16 %v702, %v701
    %v818 = vpack.c.b16 %v704, %v703
    %v819 = vpack.c.b16 %v706, %v705
    %v820 = vpack.c.b16 %v708, %v707
    %v821 = vpack.c.b16 %v710, %v709
    %v822 = vpack.c.b16 %v712, %v711
    %v823 = vpack.c.b16 %v714, %v713
    %v824 = vpack.c.b16 %v716, %v715
    %v825 = vpack.c.b16 %v718, %v717
    %v826 = vpack.c.b16 %v720, %v719
    %v827 = vpack.c.b16 %v722, %v721
    %v828 = vpack.c.b16 %v724, %v723
    %v829 = vpack.c.b16 %v726, %v725
    %v830 = vpack.c.b16 %v728, %v727
    %v831 = vpack.c.b16 %v730, %v729
    %v832 = vpack.c.b16 %v732, %v731
    %vm933 = vcmask 523264
    %v935 = vsel %vm933, %v311, 0
    %937 = vmatprep.subr.bf16.mxu0 0
    %938 = vmatpush1.bf16.msra.mxu0 %v733
    %939 = vmatprep.subr.bf16.mxu0 0
    %940 = vmatpush1.bf16.msra.mxu0 %v734
    %941 = vmatprep.subr.bf16.mxu0 0
    %942 = vmatpush1.bf16.msra.mxu0 %v735
    %943 = vmatprep.subr.bf16.mxu0 0
    %944 = vmatpush1.bf16.msra.mxu0 %v736
    %945 = vmatprep.subr.bf16.mxu0 0
    %946 = vmatpush1.bf16.msra.mxu0 %v737
    %947 = vmatprep.subr.bf16.mxu0 0
    %948 = vmatpush1.bf16.msra.mxu0 %v738
    %949 = vmatprep.subr.bf16.mxu0 0
    %950 = vmatpush1.bf16.msra.mxu0 %v739
    %951 = vmatprep.subr.bf16.mxu0 0
    %952 = vmatpush1.bf16.msra.mxu0 %v740
    %953 = vmatprep.subr.bf16.mxu0 0
    %954 = vmatpush1.bf16.msra.mxu0 %v741
    %955 = vmatprep.subr.bf16.mxu0 0
    %956 = vmatpush1.bf16.msra.mxu0 %v742
    %957 = vmatprep.subr.bf16.mxu0 0
    %958 = vmatpush1.bf16.msra.mxu0 %v743
    %959 = vmatprep.subr.bf16.mxu0 0
    %960 = vmatpush1.bf16.msra.mxu0 %v744
    %961 = vmatprep.subr.bf16.mxu0 0
    %962 = vmatpush1.bf16.msra.mxu0 %v745
    %963 = vmatprep.subr.bf16.mxu0 0
    %964 = vmatpush1.bf16.msra.mxu0 %v746
    %965 = vmatprep.subr.bf16.mxu0 0
    %966 = vmatpush1.bf16.msra.mxu0 %v747
    %967 = vmatprep.subr.bf16.mxu0 0
    %968 = vmatpush1.bf16.msra.mxu0 %v748
    %969 = vmatprep.mubr.bf16.mxu0 %v270
    %970 = vmatmul.mubr.bf16.gmra.mrb[0].mxu0 %v256
    %v971 = vpop.f32.mrb[0].mxu0
    %v972 = vadd.f32 %v229, %v971
    %v973 = vpop.f32.mrb[0].mxu0
    %v974 = vpop.f32.mrb[0].mxu0
    %v975 = vpop.f32.mrb[0].mxu0
    %976 = vdwg.mxu0
    %977 = vmatprep.subr.bf16.mxu0 0
    %978 = vmatpush1.bf16.msra.mxu0 %v749
    %979 = vmatprep.subr.bf16.mxu0 0
    %980 = vmatpush1.bf16.msra.mxu0 %v750
    %981 = vmatprep.subr.bf16.mxu0 0
    %982 = vmatpush1.bf16.msra.mxu0 %v751
    %983 = vmatprep.subr.bf16.mxu0 0
    %984 = vmatpush1.bf16.msra.mxu0 %v752
    %985 = vmatprep.subr.bf16.mxu0 0
    %986 = vmatpush1.bf16.msra.mxu0 %v753
    %987 = vmatprep.subr.bf16.mxu0 0
    %988 = vmatpush1.bf16.msra.mxu0 %v754
    %989 = vmatprep.subr.bf16.mxu0 0
    %990 = vmatpush1.bf16.msra.mxu0 %v755
    %991 = vmatprep.subr.bf16.mxu0 0
    %992 = vmatpush1.bf16.msra.mxu0 %v756
    %993 = vmatprep.subr.bf16.mxu0 0
    %994 = vmatpush1.bf16.msra.mxu0 %v757
    %995 = vmatprep.subr.bf16.mxu0 0
    %996 = vmatpush1.bf16.msra.mxu0 %v758
    %997 = vmatprep.subr.bf16.mxu0 0
    %998 = vmatpush1.bf16.msra.mxu0 %v759
    %999 = vmatprep.subr.bf16.mxu0 0
    %1000 = vmatpush1.bf16.msra.mxu0 %v760
    %1001 = vmatprep.subr.bf16.mxu0 0
    %1002 = vmatpush1.bf16.msra.mxu0 %v761
    %1003 = vmatprep.subr.bf16.mxu0 0
    %1004 = vmatpush1.bf16.msra.mxu0 %v762
    %1005 = vmatprep.subr.bf16.mxu0 0
    %1006 = vmatpush1.bf16.msra.mxu0 %v763
    %1007 = vmatprep.subr.bf16.mxu0 0
    %1008 = vmatpush1.bf16.msra.mxu0 %v764
    %1009 = vmatprep.mubr.bf16.mxu0 %v280
    %1010 = vmatmul.mubr.bf16.gmra.mrb[0].mxu0 %v278
    %v1011 = vpop.f32.mrb[0].mxu0
    %v1012 = vadd.f32 %v972, %v1011
    %v1013 = vpop.f32.mrb[0].mxu0
    %v1014 = vpop.f32.mrb[0].mxu0
    %v1015 = vpop.f32.mrb[0].mxu0
    %1016 = vdwg.mxu0
    %1017 = vmatprep.subr.bf16.mxu0 0
    %1018 = vmatpush1.bf16.msra.mxu0 %v765
    %1019 = vmatprep.subr.bf16.mxu0 0
    %1020 = vmatpush1.bf16.msra.mxu0 %v766
    %1021 = vmatprep.subr.bf16.mxu0 0
    %1022 = vmatpush1.bf16.msra.mxu0 %v767
    %1023 = vmatprep.subr.bf16.mxu0 0
    %1024 = vmatpush1.bf16.msra.mxu0 %v768
    %1025 = vmatprep.subr.bf16.mxu0 0
    %1026 = vmatpush1.bf16.msra.mxu0 %v769
    %1027 = vmatprep.subr.bf16.mxu0 0
    %1028 = vmatpush1.bf16.msra.mxu0 %v770
    %1029 = vmatprep.subr.bf16.mxu0 0
    %1030 = vmatpush1.bf16.msra.mxu0 %v771
    %1031 = vmatprep.subr.bf16.mxu0 0
    %1032 = vmatpush1.bf16.msra.mxu0 %v772
    %1033 = vmatprep.subr.bf16.mxu0 0
    %1034 = vmatpush1.bf16.msra.mxu0 %v773
    %1035 = vmatprep.subr.bf16.mxu0 0
    %1036 = vmatpush1.bf16.msra.mxu0 %v774
    %1037 = vmatprep.subr.bf16.mxu0 0
    %1038 = vmatpush1.bf16.msra.mxu0 %v775
    %1039 = vmatprep.subr.bf16.mxu0 0
    %1040 = vmatpush1.bf16.msra.mxu0 %v776
    %1041 = vmatprep.subr.bf16.mxu0 0
    %1042 = vmatpush1.bf16.msra.mxu0 %v777
    %1043 = vmatprep.subr.bf16.mxu0 0
    %1044 = vmatpush1.bf16.msra.mxu0 %v778
    %1045 = vmatprep.subr.bf16.mxu0 0
    %1046 = vmatpush1.bf16.msra.mxu0 %v779
    %1047 = vmatprep.subr.bf16.mxu0 0
    %1048 = vmatpush1.bf16.msra.mxu0 %v780
    %1049 = vmatprep.mubr.bf16.mxu0 %v277
    %1050 = vmatmul.mubr.bf16.gmra.mrb[0].mxu0 %v263
    %v1051 = vpop.f32.mrb[0].mxu0
    %v1052 = vadd.f32 %v1012, %v1051
    %v1053 = vpop.f32.mrb[0].mxu0
    %v1054 = vpop.f32.mrb[0].mxu0
    %v1055 = vpop.f32.mrb[0].mxu0
    %1056 = vdwg.mxu0
    %1057 = vmatprep.subr.bf16.mxu0 0
    %1058 = vmatpush1.bf16.msra.mxu0 %v781
    %1059 = vmatprep.subr.bf16.mxu0 0
    %1060 = vmatpush1.bf16.msra.mxu0 %v782
    %1061 = vmatprep.subr.bf16.mxu0 0
    %1062 = vmatpush1.bf16.msra.mxu0 %v783
    %1063 = vmatprep.subr.bf16.mxu0 0
    %1064 = vmatpush1.bf16.msra.mxu0 %v784
    %1065 = vmatprep.subr.bf16.mxu0 0
    %1066 = vmatpush1.bf16.msra.mxu0 %v785
    %1067 = vmatprep.subr.bf16.mxu0 0
    %1068 = vmatpush1.bf16.msra.mxu0 %v786
    %1069 = vmatprep.subr.bf16.mxu0 0
    %1070 = vmatpush1.bf16.msra.mxu0 %v787
    %1071 = vmatprep.subr.bf16.mxu0 0
    %1072 = vmatpush1.bf16.msra.mxu0 %v788
    %1073 = vmatprep.subr.bf16.mxu0 0
    %1074 = vmatpush1.bf16.msra.mxu0 %v789
    %1075 = vmatprep.subr.bf16.mxu0 0
    %1076 = vmatpush1.bf16.msra.mxu0 %v790
    %1077 = vmatprep.subr.bf16.mxu0 0
    %1078 = vmatpush1.bf16.msra.mxu0 %v791
    %1079 = vmatprep.subr.bf16.mxu0 0
    %1080 = vmatpush1.bf16.msra.mxu0 %v792
    %1081 = vmatprep.subr.bf16.mxu0 0
    %1082 = vmatpush1.bf16.msra.mxu0 %v793
    %1083 = vmatprep.subr.bf16.mxu0 0
    %1084 = vmatpush1.bf16.msra.mxu0 %v794
    %1085 = vmatprep.subr.bf16.mxu0 0
    %1086 = vmatpush1.bf16.msra.mxu0 %v795
    %1087 = vmatprep.subr.bf16.mxu0 0
    %1088 = vmatpush1.bf16.msra.mxu0 %v796
    %1089 = vmatprep.mubr.bf16.mxu0 %v281
    %1090 = vmatmul.mubr.bf16.gmra.mrb[0].mxu0 %v279
    %v1091 = vpop.f32.mrb[0].mxu0
    %v1092 = vadd.f32 %v1052, %v1091
    %v1093 = vpop.f32.mrb[0].mxu0
    %v1094 = vpop.f32.mrb[0].mxu0
    %v1095 = vpop.f32.mrb[0].mxu0
    %1096 = vdwg.mxu0
    %1097 = vmatprep.subr.bf16.mxu0 0
    %1098 = vmatpush1.bf16.msra.mxu0 %v797
    %1099 = vmatprep.subr.bf16.mxu0 0
    %1100 = vmatpush1.bf16.msra.mxu0 %v798
    %1101 = vmatprep.subr.bf16.mxu0 0
    %1102 = vmatpush1.bf16.msra.mxu0 %v799
    %1103 = vmatprep.subr.bf16.mxu0 0
    %1104 = vmatpush1.bf16.msra.mxu0 %v800
    %1105 = vmatprep.subr.bf16.mxu0 0
    %1106 = vmatpush1.bf16.msra.mxu0 %v801
    %1107 = vmatprep.subr.bf16.mxu0 0
    %1108 = vmatpush1.bf16.msra.mxu0 %v802
    %1109 = vmatprep.subr.bf16.mxu0 0
    %1110 = vmatpush1.bf16.msra.mxu0 %v803
    %1111 = vmatprep.subr.bf16.mxu0 0
    %1112 = vmatpush1.bf16.msra.mxu0 %v804
    %1113 = vmatprep.subr.bf16.mxu0 0
    %1114 = vmatpush1.bf16.msra.mxu0 %v805
    %1115 = vmatprep.subr.bf16.mxu0 0
    %1116 = vmatpush1.bf16.msra.mxu0 %v806
    %1117 = vmatprep.subr.bf16.mxu0 0
    %1118 = vmatpush1.bf16.msra.mxu0 %v807
    %1119 = vmatprep.subr.bf16.mxu0 0
    %1120 = vmatpush1.bf16.msra.mxu0 %v808
    %1121 = vmatprep.subr.bf16.mxu0 0
    %1122 = vmatpush1.bf16.msra.mxu0 %v809
    %1123 = vmatprep.subr.bf16.mxu0 0
    %1124 = vmatpush1.bf16.msra.mxu0 %v810
    %1125 = vmatprep.subr.bf16.mxu0 0
    %1126 = vmatpush1.bf16.msra.mxu0 %v811
    %1127 = vmatprep.subr.bf16.mxu0 0
    %1128 = vmatpush1.bf16.msra.mxu0 %v812
    %1129 = vmatprep.mubr.bf16.mxu0 %v318
    %1130 = vmatmul.mubr.bf16.gmra.mrb[0].mxu0 %v304
    %v1131 = vpop.f32.mrb[0].mxu0
    %v1132 = vadd.f32 %v1092, %v1131
    %v1133 = vpop.f32.mrb[0].mxu0
    %v1134 = vpop.f32.mrb[0].mxu0
    %v1135 = vpop.f32.mrb[0].mxu0
    %1136 = vdwg.mxu0
    %1137 = vmatprep.subr.bf16.mxu0 0
    %1138 = vmatpush1.bf16.msra.mxu0 %v813
    %1139 = vmatprep.subr.bf16.mxu0 0
    %1140 = vmatpush1.bf16.msra.mxu0 %v814
    %1141 = vmatprep.subr.bf16.mxu0 0
    %1142 = vmatpush1.bf16.msra.mxu0 %v815
    %1143 = vmatprep.subr.bf16.mxu0 0
    %1144 = vmatpush1.bf16.msra.mxu0 %v816
    %1145 = vmatprep.subr.bf16.mxu0 0
    %1146 = vmatpush1.bf16.msra.mxu0 %v817
    %1147 = vmatprep.subr.bf16.mxu0 0
    %1148 = vmatpush1.bf16.msra.mxu0 %v818
    %1149 = vmatprep.subr.bf16.mxu0 0
    %1150 = vmatpush1.bf16.msra.mxu0 %v819
    %1151 = vmatprep.subr.bf16.mxu0 0
    %1152 = vmatpush1.bf16.msra.mxu0 %v820
    %1153 = vmatprep.subr.bf16.mxu0 0
    %1154 = vmatpush1.bf16.msra.mxu0 %v821
    %1155 = vmatprep.subr.bf16.mxu0 0
    %1156 = vmatpush1.bf16.msra.mxu0 %v822
    %1157 = vmatprep.subr.bf16.mxu0 0
    %1158 = vmatpush1.bf16.msra.mxu0 %v823
    %1159 = vmatprep.subr.bf16.mxu0 0
    %1160 = vmatpush1.bf16.msra.mxu0 %v824
    %1161 = vmatprep.subr.bf16.mxu0 0
    %1162 = vmatpush1.bf16.msra.mxu0 %v825
    %1163 = vmatprep.subr.bf16.mxu0 0
    %1164 = vmatpush1.bf16.msra.mxu0 %v826
    %1165 = vmatprep.subr.bf16.mxu0 0
    %1166 = vmatpush1.bf16.msra.mxu0 %v827
    %1167 = vmatprep.subr.bf16.mxu0 0
    %1168 = vmatpush1.bf16.msra.mxu0 %v828
    %1169 = vmatprep.mubr.bf16.mxu0 %v320
    %1170 = vmatmul.mubr.bf16.gmra.mrb[0].mxu0 %v319
    %v1171 = vpop.f32.mrb[0].mxu0
    %v1172 = vadd.f32 %v1132, %v1171
    %v1173 = vpop.f32.mrb[0].mxu0
    %v1174 = vpop.f32.mrb[0].mxu0
    %v1175 = vpop.f32.mrb[0].mxu0
    %1176 = vdwg.mxu0
    %1177 = vmatprep.subr.bf16.mxu0 0
    %1178 = vmatpush1.bf16.msra.mxu0 %v829
    %1179 = vmatprep.subr.bf16.mxu0 0
    %1180 = vmatpush1.bf16.msra.mxu0 %v830
    %1181 = vmatprep.subr.bf16.mxu0 0
    %1182 = vmatpush1.bf16.msra.mxu0 %v831
    %1183 = vmatprep.subr.bf16.mxu0 0
    %1184 = vmatpush1.bf16.msra.mxu0 %v832
    %1185 = vmatprep.subr.bf16.mxu0 0
    %1186 = vmatpush1.bf16.msra.mxu0 0
    %1187 = vmatprep.subr.bf16.mxu0 0
    %1188 = vmatpush1.bf16.msra.mxu0 0
    %1189 = vmatprep.subr.bf16.mxu0 0
    %1190 = vmatpush1.bf16.msra.mxu0 0
    %1191 = vmatprep.subr.bf16.mxu0 0
    %1192 = vmatpush1.bf16.msra.mxu0 0
    %1193 = vmatprep.subr.bf16.mxu0 0
    %1194 = vmatpush1.bf16.msra.mxu0 0
    %1195 = vmatprep.subr.bf16.mxu0 0
    %1196 = vmatpush1.bf16.msra.mxu0 0
    %1197 = vmatprep.subr.bf16.mxu0 0
    %1198 = vmatpush1.bf16.msra.mxu0 0
    %1199 = vmatprep.subr.bf16.mxu0 0
    %1200 = vmatpush1.bf16.msra.mxu0 0
    %1201 = vmatprep.subr.bf16.mxu0 0
    %1202 = vmatpush1.bf16.msra.mxu0 0
    %1203 = vmatprep.subr.bf16.mxu0 0
    %1204 = vmatpush1.bf16.msra.mxu0 0
    %1205 = vmatprep.subr.bf16.mxu0 0
    %1206 = vmatpush1.bf16.msra.mxu0 0
    %1207 = vmatprep.subr.bf16.mxu0 0
    %1208 = vmatpush1.bf16.msra.mxu0 0
    %1209 = vmatprep.mubr.bf16.mxu0 0
    %1210 = vmatmul.mubr.bf16.gmra.mrb[0].mxu0 %v935
    %v1211 = vpop.f32.mrb[0].mxu0
    %v1212 = vadd.f32 %v1172, %v1211
    %v1213 = vpop.f32.mrb[0].mxu0
    %v1214 = vpop.f32.mrb[0].mxu0
    %v1215 = vpop.f32.mrb[0].mxu0
    %1216 = vdwg.mxu0
    %v1217 = vmax.f32 %v1212, 0.0
    %v1218 = vpack.c.bf16 %v1217, %v1217
    %v1219 = vld [vmem:[%s3] sm:$0xf]
    %v1220 = vld [vmem:[%s3 + $0x4] sm:$0xf]
    %v1221 = vld [vmem:[%s3 + $0x8] sm:$0xf]
    %v1222 = vld [vmem:[%s3 + $0xc] sm:$0xf]
    %v1223 = vld [vmem:[%s3 + $0x10] sm:$0xf]
    %v1224 = vld [vmem:[%s3 + $0x14] sm:$0xf]
    %v1225 = vld [vmem:[%s3 + $0x18] sm:$0xf]
    %v1226 = vld [vmem:[%s3 + $0x1c] sm:$0xf]
    %v1227 = vld [vmem:[%s3 + $0x20] sm:$0xf]
    %v1228 = vld [vmem:[%s3 + $0x24] sm:$0xf]
    %v1229 = vld [vmem:[%s3 + $0x28] sm:$0xf]
    %v1230 = vld [vmem:[%s3 + $0x2c] sm:$0xf]
    %v1231 = vld [vmem:[%s3 + $0x30] sm:$0xf]
    %v1232 = vld [vmem:[%s3 + $0x34] sm:$0xf]
    %v1233 = vld [vmem:[%s3 + $0x38] sm:$0xf]
    %v1234 = vld [vmem:[%s3 + $0x3c] sm:$0xf]
    %v1235 = vld [vmem:[%s4] sm:$0x1]
    %v1237 = vlaneseq
    %v1238 = vshrl.u32 %v1237, 7
    %v1239 = vsub.s32 0, %v1238
    %v1240 = vrot.slane %v1235, %v1239
    %v1258 = vunpack.c.l.b16 %v1219
    %v1259 = vunpack.c.l.b16 %v1220
    %v1260 = vunpack.c.l.b16 %v1221
    %v1261 = vunpack.c.l.b16 %v1222
    %v1262 = vunpack.c.l.b16 %v1223
    %v1263 = vunpack.c.l.b16 %v1224
    %v1264 = vunpack.c.l.b16 %v1225
    %v1265 = vunpack.c.l.b16 %v1226
    %v1266 = vunpack.c.l.b16 %v1227
    %v1267 = vunpack.c.l.b16 %v1228
    %v1268 = vunpack.c.l.b16 %v1229
    %v1269 = vunpack.c.l.b16 %v1230
    %v1270 = vunpack.c.l.b16 %v1231
    %v1271 = vunpack.c.l.b16 %v1232
    %v1272 = vunpack.c.l.b16 %v1233
    %v1273 = vunpack.c.l.b16 %v1234
    %v1274 = vpack.c.b16 %v1259, %v1258
    %v1275 = vpack.c.b16 %v1261, %v1260
    %v1276 = vpack.c.b16 %v1263, %v1262
    %v1277 = vpack.c.b16 %v1265, %v1264
    %v1278 = vpack.c.b16 %v1267, %v1266
    %v1279 = vpack.c.b16 %v1269, %v1268
    %v1280 = vpack.c.b16 %v1271, %v1270
    %v1281 = vpack.c.b16 %v1273, %v1272
    %1290 = vmatprep.subr.bf16.mxu0 0
    %1291 = vmatpush1.bf16.msra.mxu0 %v1274
    %1292 = vmatprep.subr.bf16.mxu0 0
    %1293 = vmatpush1.bf16.msra.mxu0 %v1275
    %1294 = vmatprep.subr.bf16.mxu0 0
    %1295 = vmatpush1.bf16.msra.mxu0 %v1276
    %1296 = vmatprep.subr.bf16.mxu0 0
    %1297 = vmatpush1.bf16.msra.mxu0 %v1277
    %1298 = vmatprep.subr.bf16.mxu0 0
    %1299 = vmatpush1.bf16.msra.mxu0 %v1278
    %1300 = vmatprep.subr.bf16.mxu0 0
    %1301 = vmatpush1.bf16.msra.mxu0 %v1279
    %1302 = vmatprep.subr.bf16.mxu0 0
    %1303 = vmatpush1.bf16.msra.mxu0 %v1280
    %1304 = vmatprep.subr.bf16.mxu0 0
    %1305 = vmatpush1.bf16.msra.mxu0 %v1281
    %1306 = vmatprep.subr.bf16.mxu0 0
    %1307 = vmatpush1.bf16.msra.mxu0 0
    %1308 = vmatprep.subr.bf16.mxu0 0
    %1309 = vmatpush1.bf16.msra.mxu0 0
    %1310 = vmatprep.subr.bf16.mxu0 0
    %1311 = vmatpush1.bf16.msra.mxu0 0
    %1312 = vmatprep.subr.bf16.mxu0 0
    %1313 = vmatpush1.bf16.msra.mxu0 0
    %1314 = vmatprep.subr.bf16.mxu0 0
    %1315 = vmatpush1.bf16.msra.mxu0 0
    %1316 = vmatprep.subr.bf16.mxu0 0
    %1317 = vmatpush1.bf16.msra.mxu0 0
    %1318 = vmatprep.subr.bf16.mxu0 0
    %1319 = vmatpush1.bf16.msra.mxu0 0
    %1320 = vmatprep.subr.bf16.mxu0 0
    %1321 = vmatpush1.bf16.msra.mxu0 0
    %1322 = vmatprep.mubr.bf16.mxu0 0
    %1323 = vmatmul.mubr.bf16.gmra.mrb[0].mxu0 %v1218
    %v1324 = vpop.f32.mrb[0].mxu0
    %v1325 = vadd.f32 %v1240, %v1324
    %v1326 = vpop.f32.mrb[0].mxu0
    %v1327 = vpop.f32.mrb[0].mxu0
    %v1328 = vpop.f32.mrb[0].mxu0
    %1329 = vdwg.mxu0
    %1330 = vst [vmem:[#allocation2] sm:$0x3] %v1325
    // Predicated region
    $region22: #{mnist_cnn_forward.5} parent=1 // pred_check
      _
    $region23: #{mnist_cnn_forward.5} parent=1 // pred_check_branch
      %1332 = sbr.rel (0) target = $region25
    $region24: #{mnist_cnn_forward.5} parent=1 // pred_region
      %s1334 = ssub.s32 32, 32
      %1335 = vsyncadd [#allocation3], %s1334
      %s1337 = sshll.u32 [#allocation2], 4
      %s1338 = int_to_ptr.vmem [resolvable:$true] %s1337
      %1340 = dma.vmem_to_hbm [thread:$0]  %s1338, 32, %s5, [#allocation3]
    $region25: #{mnist_cnn_forward.5} parent=1 // pred_fallthru
      _
    // Predicated region
    $region26: #{mnist_cnn_forward.5} parent=1 // pred_check
      _
    $region27: #{mnist_cnn_forward.5} parent=1 // pred_check_branch
      %1342 = sbr.rel (0) target = $region29
    $region28: #{mnist_cnn_forward.5} parent=1 // pred_region
      %1343 = dma.done [#allocation3], 32
    $region29: #{mnist_cnn_forward.5} parent=1 // pred_fallthru
      _
    %1344 = vsyncpa [#allocation3], 1

// kernel: mnist_cnn_forward.4
$region0: #{mnist_cnn_forward.4}
  #allocation0 [shape = 'u32[]', space=smem, size = 0x4, offset = 0x4, fixed_abs, tag = 'smem constant byte address 0x4 - core index']
  #allocation1 [shape = 'u32[144,128]{1,0:T(1,128)}', space=vmem, size = 0x12000, scoped, tag = 'internal scratch']
  %s0 = inlined_call_operand.vmem [shape: bf16[10,1536], index: 0, kind: input, shape index: {}]
  %s1 = inlined_call_operand.hbm [shape: bf16[1536,1280], index: 1, kind: input, shape index: {}]
  %s2 = inlined_call_operand.hbm [shape: f32[1,320], index: 2, kind: input, shape index: {}]
  %s3 = inlined_call_operand.vmem [shape: bf16[10,320], index: 3, kind: output, shape index: {}]
  %s4 = sld [smem:[#allocation0]]
  $region30: #{mnist_cnn_forward.4} parent=0
    _
  %s6 = ssub.s32 1, %s4
  %s7 = scalar_select 0, %s6, %s4
  $region1: #{mnist_cnn_forward.4} parent=0
    #allocation2 [shape = 'u8[3932160]{0}', space=vmem, size = 0x3c0000, scoped, tag = 'input window, operand 1, single buffered']
    #allocation3 [shape = 's32[1]{0}', space=sflag, size = 0x4, scoped, tag = 'scoped memory for mnist_cnn_forward.4']
    #allocation4 [shape = 'u8[1536]{0}', space=vmem, size = 0x800, scoped, tag = 'input window, operand 2, single buffered']
    #allocation5 [shape = 's32[1]{0}', space=sflag, size = 0x4, scoped, tag = 'scoped memory for mnist_cnn_forward.4']
    %8 = vsyncpa [#allocation3], 0
    %9 = vsyncpa [#allocation5], 0
    // Predicated region
    $region2: #{mnist_cnn_forward.4} parent=1 // pred_check
      _
    $region3: #{mnist_cnn_forward.4} parent=1 // pred_check_branch
      %11 = sbr.rel (0) target = $region5
    $region4: #{mnist_cnn_forward.4} parent=1 // pred_region
      _
    $region5: #{mnist_cnn_forward.4} parent=1 // pred_fallthru
      _
    // Predicated region
    $region6: #{mnist_cnn_forward.4} parent=1 // pred_check
      _
    $region7: #{mnist_cnn_forward.4} parent=1 // pred_check_branch
      %13 = sbr.rel (0) target = $region9
    $region8: #{mnist_cnn_forward.4} parent=1 // pred_region
      %s15 = ssub.s32 122880, 122880
      %16 = vsyncadd [#allocation3], %s15
      %s17 = sshll.u32 [#allocation2], 4
      %s18 = int_to_ptr.vmem [resolvable:$true] %s17
      %23 = dma.hbm_to_vmem [thread:$0]  %s1, 122880, %s18, [#allocation3], 640, 640, 40
    $region9: #{mnist_cnn_forward.4} parent=1 // pred_fallthru
      _
    // Predicated region
    $region10: #{mnist_cnn_forward.4} parent=1 // pred_check
      _
    $region11: #{mnist_cnn_forward.4} parent=1 // pred_check_branch
      %25 = sbr.rel (0) target = $region13
    $region12: #{mnist_cnn_forward.4} parent=1 // pred_region
      %s27 = ssub.s32 48, 48
      %28 = vsyncadd [#allocation5], %s27
      %s30 = sshll.u32 [#allocation4], 4
      %s31 = int_to_ptr.vmem [resolvable:$true] %s30
      %33 = dma.hbm_to_vmem [thread:$0]  %s2, 48, %s31, [#allocation5]
    $region13: #{mnist_cnn_forward.4} parent=1 // pred_fallthru
      _
    // Predicated region
    $region14: #{mnist_cnn_forward.4} parent=1 // pred_check
      _
    $region15: #{mnist_cnn_forward.4} parent=1 // pred_check_branch
      %35 = sbr.rel (0) target = $region17
    $region16: #{mnist_cnn_forward.4} parent=1 // pred_region
      %36 = dma.done [#allocation3], 122880
    $region17: #{mnist_cnn_forward.4} parent=1 // pred_fallthru
      _
    // Predicated region
    $region18: #{mnist_cnn_forward.4} parent=1 // pred_check
      _
    $region19: #{mnist_cnn_forward.4} parent=1 // pred_check_branch
      %38 = sbr.rel (0) target = $region21
    $region20: #{mnist_cnn_forward.4} parent=1 // pred_region
      %39 = dma.done [#allocation5], 48
    $region21: #{mnist_cnn_forward.4} parent=1 // pred_fallthru
      _
    %v40 = vld [vmem:[%s0] sm:$0xff]
    %v41 = vld [vmem:[%s0 + $0x8] sm:$0xff]
    %v42 = vld [vmem:[%s0 + $0x10] sm:$0xff]
    %v43 = vld [vmem:[%s0 + $0x18] sm:$0xff]
    %v44 = vld [vmem:[%s0 + $0x20] sm:$0xff]
    %v45 = vld [vmem:[%s0 + $0x28] sm:$0xff]
    %v46 = vld [vmem:[%s0 + $0x30] sm:$0x11]
    %v47 = vld [vmem:[%s0 + $0x38] sm:$0x11]
    %v48 = vld [vmem:[%s0 + $0x40] sm:$0x11]
    %v49 = vld [vmem:[%s0 + $0x48] sm:$0x11]
    %v50 = vld [vmem:[%s0 + $0x50] sm:$0x11]
    %v51 = vld [vmem:[%s0 + $0x58] sm:$0x11]
    %v52 = vld [vmem:[#allocation2] sm:$0xff]
    %v53 = vld [vmem:[#allocation2 + $0x8] sm:$0xff]
    %v54 = vld [vmem:[#allocation2 + $0x10] sm:$0xff]
    %v55 = vld [vmem:[#allocation2 + $0x18] sm:$0xff]
    %v56 = vld [vmem:[#allocation2 + $0x20] sm:$0xff]
    %v57 = vld [vmem:[#allocation2 + $0x28] sm:$0xff]
    %v58 = vld [vmem:[#allocation2 + $0x30] sm:$0xff]
    %v59 = vld [vmem:[#allocation2 + $0x38] sm:$0xff]
    %v60 = vld [vmem:[#allocation2 + $0x40] sm:$0xff]
    %v61 = vld [vmem:[#allocation2 + $0x48] sm:$0xff]
    %v62 = vld [vmem:[#allocation2 + $0x50] sm:$0xff]
    %v63 = vld [vmem:[#allocation2 + $0x58] sm:$0xff]
    %v64 = vld [vmem:[#allocation2 + $0x60] sm:$0xff]
    %v65 = vld [vmem:[#allocation2 + $0x68] sm:$0xff]
    %v66 = vld [vmem:[#allocation2 + $0x70] sm:$0xff]
    %v67 = vld [vmem:[#allocation2 + $0x78] sm:$0xff]
    %v68 = vld [vmem:[#allocation2 + $0x80] sm:$0xff]
    %v69 = vld [vmem:[#allocation2 + $0x88] sm:$0xff]
    %v70 = vld [vmem:[#allocation2 + $0x90] sm:$0xff]
    %v71 = vld [vmem:[#allocation2 + $0x98] sm:$0xff]
    %v72 = vld [vmem:[#allocation2 + $0xa0] sm:$0xff]
    %v73 = vld [vmem:[#allocation2 + $0xa8] sm:$0xff]
    %v74 = vld [vmem:[#allocation2 + $0xb0] sm:$0xff]
    %v75 = vld [vmem:[#allocation2 + $0xb8] sm:$0xff]
    %v76 = vld [vmem:[#allocation2 + $0xc0] sm:$0xff]
    %v77 = vld [vmem:[#allocation2 + $0xc8] sm:$0xff]
    %v78 = vld [vmem:[#allocation2 + $0xd0] sm:$0xff]
    %v79 = vld [vmem:[#allocation2 + $0xd8] sm:$0xff]
    %v80 = vld [vmem:[#allocation2 + $0xe0] sm:$0xff]
    %v81 = vld [vmem:[#allocation2 + $0xe8] sm:$0xff]
    %v82 = vld [vmem:[#allocation2 + $0xf0] sm:$0xff]
    %v83 = vld [vmem:[#allocation2 + $0xf8] sm:$0xff]
    %v84 = vld [vmem:[#allocation2 + $0x100] sm:$0xff]
    %v85 = vld [vmem:[#allocation2 + $0x108] sm:$0xff]
    %v86 = vld [vmem:[#allocation2 + $0x110] sm:$0xff]
    %v87 = vld [vmem:[#allocation2 + $0x118] sm:$0xff]
    %v88 = vld [vmem:[#allocation2 + $0x120] sm:$0xff]
    %v89 = vld [vmem:[#allocation2 + $0x128] sm:$0xff]
    %v90 = vld [vmem:[#allocation2 + $0x130] sm:$0xff]
    %v91 = vld [vmem:[#allocation2 + $0x138] sm:$0xff]
    %v92 = vld [vmem:[#allocation2 + $0x140] sm:$0xff]
    %v93 = vld [vmem:[#allocation2 + $0x148] sm:$0xff]
    %v94 = vld [vmem:[#allocation2 + $0x150] sm:$0xff]
    %v95 = vld [vmem:[#allocation2 + $0x158] sm:$0xff]
    %v96 = vld [vmem:[#allocation2 + $0x160] sm:$0xff]
    %v97 = vld [vmem:[#allocation2 + $0x168] sm:$0xff]
    %v98 = vld [vmem:[#allocation2 + $0x170] sm:$0xff]
    %v99 = vld [vmem:[#allocation2 + $0x178] sm:$0xff]
    %v100 = vld [vmem:[#allocation2 + $0x180] sm:$0xff]
    %v101 = vld [vmem:[#allocation2 + $0x188] sm:$0xff]
    %v102 = vld [vmem:[#allocation2 + $0x190] sm:$0xff]
    %v103 = vld [vmem:[#allocation2 + $0x198] sm:$0xff]
    %v104 = vld [vmem:[#allocation2 + $0x1a0] sm:$0xff]
    %v105 = vld [vmem:[#allocation2 + $0x1a8] sm:$0xff]
    %v106 = vld [vmem:[#allocation2 + $0x1b0] sm:$0xff]
    %v107 = vld [vmem:[#allocation2 + $0x1b8] sm:$0xff]
    %v108 = vld [vmem:[#allocation2 + $0x1c0] sm:$0xff]
    %v109 = vld [vmem:[#allocation2 + $0x1c8] sm:$0xff]
    %v110 = vld [vmem:[#allocation2 + $0x1d0] sm:$0xff]
    %v111 = vld [vmem:[#allocation2 + $0x1d8] sm:$0xff]
    %v112 = vld [vmem:[#allocation2 + $0x1e0] sm:$0xff]
    %v113 = vld [vmem:[#allocation2 + $0x1e8] sm:$0xff]
    %v114 = vld [vmem:[#allocation2 + $0x1f0] sm:$0xff]
    %v115 = vld [vmem:[#allocation2 + $0x1f8] sm:$0xff]
    %v116 = vld [vmem:[#allocation2 + $0x200] sm:$0xff]
    %v117 = vld [vmem:[#allocation2 + $0x208] sm:$0xff]
    %v118 = vld [vmem:[#allocation2 + $0x210] sm:$0xff]
    %v119 = vld [vmem:[#allocation2 + $0x218] sm:$0xff]
    %v120 = vld [vmem:[#allocation2 + $0x220] sm:$0xff]
    %v121 = vld [vmem:[#allocation2 + $0x228] sm:$0xff]
    %v122 = vld [vmem:[#allocation2 + $0x230] sm:$0xff]
    %v123 = vld [vmem:[#allocation2 + $0x238] sm:$0xff]
    %v124 = vld [vmem:[#allocation2 + $0x240] sm:$0xff]
    %v125 = vld [vmem:[#allocation2 + $0x248] sm:$0xff]
    %v126 = vld [vmem:[#allocation2 + $0x250] sm:$0xff]
    %v127 = vld [vmem:[#allocation2 + $0x258] sm:$0xff]
    %v128 = vld [vmem:[#allocation2 + $0x260] sm:$0xff]
    %v129 = vld [vmem:[#allocation2 + $0x268] sm:$0xff]
    %v130 = vld [vmem:[#allocation2 + $0x270] sm:$0xff]
    %v131 = vld [vmem:[#allocation2 + $0x278] sm:$0xff]
    %v132 = vld [vmem:[#allocation2 + $0x280] sm:$0xff]
    %v133 = vld [vmem:[#allocation2 + $0x288] sm:$0xff]
    %v134 = vld [vmem:[#allocation2 + $0x290] sm:$0xff]
    %v135 = vld [vmem:[#allocation2 + $0x298] sm:$0xff]
    %v136 = vld [vmem:[#allocation2 + $0x2a0] sm:$0xff]
    %v137 = vld [vmem:[#allocation2 + $0x2a8] sm:$0xff]
    %v138 = vld [vmem:[#allocation2 + $0x2b0] sm:$0xff]
    %v139 = vld [vmem:[#allocation2 + $0x2b8] sm:$0xff]
    %v140 = vld [vmem:[#allocation2 + $0x2c0] sm:$0xff]
    %v141 = vld [vmem:[#allocation2 + $0x2c8] sm:$0xff]
    %v142 = vld [vmem:[#allocation2 + $0x2d0] sm:$0xff]
    %v143 = vld [vmem:[#allocation2 + $0x2d8] sm:$0xff]
    %v144 = vld [vmem:[#allocation2 + $0x2e0] sm:$0xff]
    %v145 = vld [vmem:[#allocation2 + $0x2e8] sm:$0xff]
    %v146 = vld [vmem:[#allocation2 + $0x2f0] sm:$0xff]
    %v147 = vld [vmem:[#allocation2 + $0x2f8] sm:$0xff]
    %v148 = vld [vmem:[#allocation2 + $0x300] sm:$0xff]
    %v149 = vld [vmem:[#allocation2 + $0x308] sm:$0xff]
    %v150 = vld [vmem:[#allocation2 + $0x310] sm:$0xff]
    %v151 = vld [vmem:[#allocation2 + $0x318] sm:$0xff]
    %v152 = vld [vmem:[#allocation2 + $0x320] sm:$0xff]
    %v153 = vld [vmem:[#allocation2 + $0x328] sm:$0xff]
    %v154 = vld [vmem:[#allocation2 + $0x330] sm:$0xff]
    %v155 = vld [vmem:[#allocation2 + $0x338] sm:$0xff]
    %v156 = vld [vmem:[#allocation2 + $0x340] sm:$0xff]
    %v157 = vld [vmem:[#allocation2 + $0x348] sm:$0xff]
    %v158 = vld [vmem:[#allocation2 + $0x350] sm:$0xff]
    %v159 = vld [vmem:[#allocation2 + $0x358] sm:$0xff]
    %v160 = vld [vmem:[#allocation2 + $0x360] sm:$0xff]
    %v161 = vld [vmem:[#allocation2 + $0x368] sm:$0xff]
    %v162 = vld [vmem:[#allocation2 + $0x370] sm:$0xff]
    %v163 = vld [vmem:[#allocation2 + $0x378] sm:$0xff]
    %v164 = vld [vmem:[#allocation2 + $0x380] sm:$0xff]
    %v165 = vld [vmem:[#allocation2 + $0x388] sm:$0xff]
    %v166 = vld [vmem:[#allocation2 + $0x390] sm:$0xff]
    %v167 = vld [vmem:[#allocation2 + $0x398] sm:$0xff]
    %v168 = vld [vmem:[#allocation2 + $0x3a0] sm:$0xff]
    %v169 = vld [vmem:[#allocation2 + $0x3a8] sm:$0xff]
    %v170 = vld [vmem:[#allocation2 + $0x3b0] sm:$0xff]
    %v171 = vld [vmem:[#allocation2 + $0x3b8] sm:$0xff]
    %v172 = vld [vmem:[#allocation2 + $0x3c0] sm:$0xff]
    %v173 = vld [vmem:[#allocation2 + $0x3c8] sm:$0xff]
    %v174 = vld [vmem:[#allocation2 + $0x3d0] sm:$0xff]
    %v175 = vld [vmem:[#allocation2 + $0x3d8] sm:$0xff]
    %v176 = vld [vmem:[#allocation2 + $0x3e0] sm:$0xff]
    %v177 = vld [vmem:[#allocation2 + $0x3e8] sm:$0xff]
    %v178 = vld [vmem:[#allocation2 + $0x3f0] sm:$0xff]
    %v179 = vld [vmem:[#allocation2 + $0x3f8] sm:$0xff]
    %v180 = vld [vmem:[#allocation2 + $0x400] sm:$0xff]
    %v181 = vld [vmem:[#allocation2 + $0x408] sm:$0xff]
    %v182 = vld [vmem:[#allocation2 + $0x410] sm:$0xff]
    %v183 = vld [vmem:[#allocation2 + $0x418] sm:$0xff]
    %v184 = vld [vmem:[#allocation2 + $0x420] sm:$0xff]
    %v185 = vld [vmem:[#allocation2 + $0x428] sm:$0xff]
    %v186 = vld [vmem:[#allocation2 + $0x430] sm:$0xff]
    %v187 = vld [vmem:[#allocation2 + $0x438] sm:$0xff]
    %v188 = vld [vmem:[#allocation2 + $0x440] sm:$0xff]
    %v189 = vld [vmem:[#allocation2 + $0x448] sm:$0xff]
    %v190 = vld [vmem:[#allocation2 + $0x450] sm:$0xff]
    %v191 = vld [vmem:[#allocation2 + $0x458] sm:$0xff]
    %v192 = vld [vmem:[#allocation2 + $0x460] sm:$0xff]
    %v193 = vld [vmem:[#allocation2 + $0x468] sm:$0xff]
    %v194 = vld [vmem:[#allocation2 + $0x470] sm:$0xff]
    %v195 = vld [vmem:[#allocation2 + $0x478] sm:$0xff]
    %v196 = vld [vmem:[#allocation2 + $0x480] sm:$0xff]
    %v197 = vld [vmem:[#allocation2 + $0x488] sm:$0xff]
    %v198 = vld [vmem:[#allocation2 + $0x490] sm:$0xff]
    %v199 = vld [vmem:[#allocation2 + $0x498] sm:$0xff]
    %v200 = vld [vmem:[#allocation2 + $0x4a0] sm:$0xff]
    %v201 = vld [vmem:[#allocation2 + $0x4a8] sm:$0xff]
    %v202 = vld [vmem:[#allocation2 + $0x4b0] sm:$0xff]
    %v203 = vld [vmem:[#allocation2 + $0x4b8] sm:$0xff]
    %v204 = vld [vmem:[#allocation2 + $0x4c0] sm:$0xff]
    %v205 = vld [vmem:[#allocation2 + $0x4c8] sm:$0xff]
    %v206 = vld [vmem:[#allocation2 + $0x4d0] sm:$0xff]
    %v207 = vld [vmem:[#allocation2 + $0x4d8] sm:$0xff]
    %v208 = vld [vmem:[#allocation2 + $0x4e0] sm:$0xff]
    %v209 = vld [vmem:[#allocation2 + $0x4e8] sm:$0xff]
    %v210 = vld [vmem:[#allocation2 + $0x4f0] sm:$0xff]
    %v211 = vld [vmem:[#allocation2 + $0x4f8] sm:$0xff]
    %v212 = vld [vmem:[#allocation2 + $0x500] sm:$0xff]
    %v213 = vld [vmem:[#allocation2 + $0x508] sm:$0xff]
    %v214 = vld [vmem:[#allocation2 + $0x510] sm:$0xff]
    %v215 = vld [vmem:[#allocation2 + $0x518] sm:$0xff]
    %v216 = vld [vmem:[#allocation2 + $0x520] sm:$0xff]
    %v217 = vld [vmem:[#allocation2 + $0x528] sm:$0xff]
    %v218 = vld [vmem:[#allocation2 + $0x530] sm:$0xff]
    %v219 = vld [vmem:[#allocation2 + $0x538] sm:$0xff]
    %v220 = vld [vmem:[#allocation2 + $0x540] sm:$0xff]
    %v221 = vld [vmem:[#allocation2 + $0x548] sm:$0xff]
    %v222 = vld [vmem:[#allocation2 + $0x550] sm:$0xff]
    %v223 = vld [vmem:[#allocation2 + $0x558] sm:$0xff]
    %v224 = vld [vmem:[#allocation2 + $0x560] sm:$0xff]
    %v225 = vld [vmem:[#allocation2 + $0x568] sm:$0xff]
    %v226 = vld [vmem:[#allocation2 + $0x570] sm:$0xff]
    %v227 = vld [vmem:[#allocation2 + $0x578] sm:$0xff]
    %v228 = vld [vmem:[#allocation2 + $0x580] sm:$0xff]
    %v229 = vld [vmem:[#allocation2 + $0x588] sm:$0xff]
    %v230 = vld [vmem:[#allocation2 + $0x590] sm:$0xff]
    %v231 = vld [vmem:[#allocation2 + $0x598] sm:$0xff]
    %v232 = vld [vmem:[#allocation2 + $0x5a0] sm:$0xff]
    %v233 = vld [vmem:[#allocation2 + $0x5a8] sm:$0xff]
    %v234 = vld [vmem:[#allocation2 + $0x5b0] sm:$0xff]
    %v235 = vld [vmem:[#allocation2 + $0x5b8] sm:$0xff]
    %v236 = vld [vmem:[#allocation2 + $0x5c0] sm:$0xff]
    %v237 = vld [vmem:[#allocation2 + $0x5c8] sm:$0xff]
    %v238 = vld [vmem:[#allocation2 + $0x5d0] sm:$0xff]
    %v239 = vld [vmem:[#allocation2 + $0x5d8] sm:$0xff]
    %v240 = vld [vmem:[#allocation2 + $0x5e0] sm:$0xff]
    %v241 = vld [vmem:[#allocation2 + $0x5e8] sm:$0xff]
    %v242 = vld [vmem:[#allocation2 + $0x5f0] sm:$0xff]
    %v243 = vld [vmem:[#allocation2 + $0x5f8] sm:$0xff]
    %v244 = vld [vmem:[#allocation2 + $0x600] sm:$0xff]
    %v245 = vld [vmem:[#allocation2 + $0x608] sm:$0xff]
    %v246 = vld [vmem:[#allocation2 + $0x610] sm:$0xff]
    %v247 = vld [vmem:[#allocation2 + $0x618] sm:$0xff]
    %v248 = vld [vmem:[#allocation2 + $0x620] sm:$0xff]
    %v249 = vld [vmem:[#allocation2 + $0x628] sm:$0xff]
    %v250 = vld [vmem:[#allocation2 + $0x630] sm:$0xff]
    %v251 = vld [vmem:[#allocation2 + $0x638] sm:$0xff]
    %v252 = vld [vmem:[#allocation2 + $0x640] sm:$0xff]
    %v253 = vld [vmem:[#allocation2 + $0x648] sm:$0xff]
    %v254 = vld [vmem:[#allocation2 + $0x650] sm:$0xff]
    %v255 = vld [vmem:[#allocation2 + $0x658] sm:$0xff]
    %v256 = vld [vmem:[#allocation2 + $0x660] sm:$0xff]
    %v257 = vld [vmem:[#allocation2 + $0x668] sm:$0xff]
    %v258 = vld [vmem:[#allocation2 + $0x670] sm:$0xff]
    %v259 = vld [vmem:[#allocation2 + $0x678] sm:$0xff]
    %v260 = vld [vmem:[#allocation2 + $0x680] sm:$0xff]
    %v261 = vld [vmem:[#allocation2 + $0x688] sm:$0xff]
    %v262 = vld [vmem:[#allocation2 + $0x690] sm:$0xff]
    %v263 = vld [vmem:[#allocation2 + $0x698] sm:$0xff]
    %v264 = vld [vmem:[#allocation2 + $0x6a0] sm:$0xff]
    %v265 = vld [vmem:[#allocation2 + $0x6a8] sm:$0xff]
    %v266 = vld [vmem:[#allocation2 + $0x6b0] sm:$0xff]
    %v267 = vld [vmem:[#allocation2 + $0x6b8] sm:$0xff]
    %v268 = vld [vmem:[#allocation2 + $0x6c0] sm:$0xff]
    %v269 = vld [vmem:[#allocation2 + $0x6c8] sm:$0xff]
    %v270 = vld [vmem:[#allocation2 + $0x6d0] sm:$0xff]
    %v271 = vld [vmem:[#allocation2 + $0x6d8] sm:$0xff]
    %v272 = vld [vmem:[#allocation2 + $0x6e0] sm:$0xff]
    %v273 = vld [vmem:[#allocation2 + $0x6e8] sm:$0xff]
    %v274 = vld [vmem:[#allocation2 + $0x6f0] sm:$0xff]
    %v275 = vld [vmem:[#allocation2 + $0x6f8] sm:$0xff]
    %v276 = vld [vmem:[#allocation2 + $0x700] sm:$0xff]
    %v277 = vld [vmem:[#allocation2 + $0x708] sm:$0xff]
    %v278 = vld [vmem:[#allocation2 + $0x710] sm:$0xff]
    %v279 = vld [vmem:[#allocation2 + $0x718] sm:$0xff]
    %v280 = vld [vmem:[#allocation2 + $0x720] sm:$0xff]
    %v281 = vld [vmem:[#allocation2 + $0x728] sm:$0xff]
    %v282 = vld [vmem:[#allocation2 + $0x730] sm:$0xff]
    %v283 = vld [vmem:[#allocation2 + $0x738] sm:$0xff]
    %v284 = vld [vmem:[#allocation2 + $0x740] sm:$0xff]
    %v285 = vld [vmem:[#allocation2 + $0x748] sm:$0xff]
    %v286 = vld [vmem:[#allocation2 + $0x750] sm:$0xff]
    %v287 = vld [vmem:[#allocation2 + $0x758] sm:$0xff]
    %v288 = vld [vmem:[#allocation2 + $0x760] sm:$0xff]
    %v289 = vld [vmem:[#allocation2 + $0x768] sm:$0xff]
    %v290 = vld [vmem:[#allocation2 + $0x770] sm:$0xff]
    %v291 = vld [vmem:[#allocation2 + $0x778] sm:$0xff]
    %v292 = vld [vmem:[#allocation2 + $0x780] sm:$0xff]
    %v293 = vld [vmem:[#allocation2 + $0x788] sm:$0xff]
    %v294 = vld [vmem:[#allocation2 + $0x790] sm:$0xff]
    %v295 = vld [vmem:[#allocation2 + $0x798] sm:$0xff]
    %v296 = vld [vmem:[#allocation2 + $0x7a0] sm:$0xff]
    %v297 = vld [vmem:[#allocation2 + $0x7a8] sm:$0xff]
    %v298 = vld [vmem:[#allocation2 + $0x7b0] sm:$0xff]
    %v299 = vld [vmem:[#allocation2 + $0x7b8] sm:$0xff]
    %v300 = vld [vmem:[#allocation2 + $0x7c0] sm:$0xff]
    %v301 = vld [vmem:[#allocation2 + $0x7c8] sm:$0xff]
    %v302 = vld [vmem:[#allocation2 + $0x7d0] sm:$0xff]
    %v303 = vld [vmem:[#allocation2 + $0x7d8] sm:$0xff]
    %v304 = vld [vmem:[#allocation2 + $0x7e0] sm:$0xff]
    %v305 = vld [vmem:[#allocation2 + $0x7e8] sm:$0xff]
    %v306 = vld [vmem:[#allocation2 + $0x7f0] sm:$0xff]
    %v307 = vld [vmem:[#allocation2 + $0x7f8] sm:$0xff]
    %v308 = vld [vmem:[#allocation2 + $0x800] sm:$0xff]
    %v309 = vld [vmem:[#allocation2 + $0x808] sm:$0xff]
    %v310 = vld [vmem:[#allocation2 + $0x810] sm:$0xff]
    %v311 = vld [vmem:[#allocation2 + $0x818] sm:$0xff]
    %v312 = vld [vmem:[#allocation2 + $0x820] sm:$0xff]
    %v313 = vld [vmem:[#allocation2 + $0x828] sm:$0xff]
    %v314 = vld [vmem:[#allocation2 + $0x830] sm:$0xff]
    %v315 = vld [vmem:[#allocation2 + $0x838] sm:$0xff]
    %v316 = vld [vmem:[#allocation2 + $0x840] sm:$0xff]
    %v317 = vld [vmem:[#allocation2 + $0x848] sm:$0xff]
    %v318 = vld [vmem:[#allocation2 + $0x850] sm:$0xff]
    %v319 = vld [vmem:[#allocation2 + $0x858] sm:$0xff]
    %v320 = vld [vmem:[#allocation2 + $0x860] sm:$0xff]
    %v321 = vld [vmem:[#allocation2 + $0x868] sm:$0xff]
    %v322 = vld [vmem:[#allocation2 + $0x870] sm:$0xff]
    %v323 = vld [vmem:[#allocation2 + $0x878] sm:$0xff]
    %v324 = vld [vmem:[#allocation2 + $0x880] sm:$0xff]
    %v325 = vld [vmem:[#allocation2 + $0x888] sm:$0xff]
    %v326 = vld [vmem:[#allocation2 + $0x890] sm:$0xff]
    %v327 = vld [vmem:[#allocation2 + $0x898] sm:$0xff]
    %v328 = vld [vmem:[#allocation2 + $0x8a0] sm:$0xff]
    %v329 = vld [vmem:[#allocation2 + $0x8a8] sm:$0xff]
    %v330 = vld [vmem:[#allocation2 + $0x8b0] sm:$0xff]
    %v331 = vld [vmem:[#allocation2 + $0x8b8] sm:$0xff]
    %v332 = vld [vmem:[#allocation2 + $0x8c0] sm:$0xff]
    %v333 = vld [vmem:[#allocation2 + $0x8c8] sm:$0xff]
    %v334 = vld [vmem:[#allocation2 + $0x8d0] sm:$0xff]
    %v335 = vld [vmem:[#allocation2 + $0x8d8] sm:$0xff]
    %v336 = vld [vmem:[#allocation2 + $0x8e0] sm:$0xff]
    %v337 = vld [vmem:[#allocation2 + $0x8e8] sm:$0xff]
    %v338 = vld [vmem:[#allocation2 + $0x8f0] sm:$0xff]
    %v339 = vld [vmem:[#allocation2 + $0x8f8] sm:$0xff]
    %v340 = vld [vmem:[#allocation2 + $0x900] sm:$0xff]
    %v341 = vld [vmem:[#allocation2 + $0x908] sm:$0xff]
    %v342 = vld [vmem:[#allocation2 + $0x910] sm:$0xff]
    %v343 = vld [vmem:[#allocation2 + $0x918] sm:$0xff]
    %v344 = vld [vmem:[#allocation2 + $0x920] sm:$0xff]
    %v345 = vld [vmem:[#allocation2 + $0x928] sm:$0xff]
    %v346 = vld [vmem:[#allocation2 + $0x930] sm:$0xff]
    %v347 = vld [vmem:[#allocation2 + $0x938] sm:$0xff]
    %v348 = vld [vmem:[#allocation2 + $0x940] sm:$0xff]
    %v349 = vld [vmem:[#allocation2 + $0x948] sm:$0xff]
    %v350 = vld [vmem:[#allocation2 + $0x950] sm:$0xff]
    %v351 = vld [vmem:[#allocation2 + $0x958] sm:$0xff]
    %v352 = vld [vmem:[#allocation2 + $0x960] sm:$0xff]
    %v353 = vld [vmem:[#allocation2 + $0x968] sm:$0xff]
    %v354 = vld [vmem:[#allocation2 + $0x970] sm:$0xff]
    %v355 = vld [vmem:[#allocation2 + $0x978] sm:$0xff]
    %v356 = vld [vmem:[#allocation2 + $0x980] sm:$0xff]
    %v357 = vld [vmem:[#allocation2 + $0x988] sm:$0xff]
    %v358 = vld [vmem:[#allocation2 + $0x990] sm:$0xff]
    %v359 = vld [vmem:[#allocation2 + $0x998] sm:$0xff]
    %v360 = vld [vmem:[#allocation2 + $0x9a0] sm:$0xff]
    %v361 = vld [vmem:[#allocation2 + $0x9a8] sm:$0xff]
    %v362 = vld [vmem:[#allocation2 + $0x9b0] sm:$0xff]
    %v363 = vld [vmem:[#allocation2 + $0x9b8] sm:$0xff]
    %v364 = vld [vmem:[#allocation2 + $0x9c0] sm:$0xff]
    %v365 = vld [vmem:[#allocation2 + $0x9c8] sm:$0xff]
    %v366 = vld [vmem:[#allocation2 + $0x9d0] sm:$0xff]
    %v367 = vld [vmem:[#allocation2 + $0x9d8] sm:$0xff]
    %v368 = vld [vmem:[#allocation2 + $0x9e0] sm:$0xff]
    %v369 = vld [vmem:[#allocation2 + $0x9e8] sm:$0xff]
    %v370 = vld [vmem:[#allocation2 + $0x9f0] sm:$0xff]
    %v371 = vld [vmem:[#allocation2 + $0x9f8] sm:$0xff]
    %v372 = vld [vmem:[#allocation2 + $0xa00] sm:$0xff]
    %v373 = vld [vmem:[#allocation2 + $0xa08] sm:$0xff]
    %v374 = vld [vmem:[#allocation2 + $0xa10] sm:$0xff]
    %v375 = vld [vmem:[#allocation2 + $0xa18] sm:$0xff]
    %v376 = vld [vmem:[#allocation2 + $0xa20] sm:$0xff]
    %v377 = vld [vmem:[#allocation2 + $0xa28] sm:$0xff]
    %v378 = vld [vmem:[#allocation2 + $0xa30] sm:$0xff]
    %v379 = vld [vmem:[#allocation2 + $0xa38] sm:$0xff]
    %v380 = vld [vmem:[#allocation2 + $0xa40] sm:$0xff]
    %v381 = vld [vmem:[#allocation2 + $0xa48] sm:$0xff]
    %v382 = vld [vmem:[#allocation2 + $0xa50] sm:$0xff]
    %v383 = vld [vmem:[#allocation2 + $0xa58] sm:$0xff]
    %v384 = vld [vmem:[#allocation2 + $0xa60] sm:$0xff]
    %v385 = vld [vmem:[#allocation2 + $0xa68] sm:$0xff]
    %v386 = vld [vmem:[#allocation2 + $0xa70] sm:$0xff]
    %v387 = vld [vmem:[#allocation2 + $0xa78] sm:$0xff]
    %v388 = vld [vmem:[#allocation2 + $0xa80] sm:$0xff]
    %v389 = vld [vmem:[#allocation2 + $0xa88] sm:$0xff]
    %v390 = vld [vmem:[#allocation2 + $0xa90] sm:$0xff]
    %v391 = vld [vmem:[#allocation2 + $0xa98] sm:$0xff]
    %v392 = vld [vmem:[#allocation2 + $0xaa0] sm:$0xff]
    %v393 = vld [vmem:[#allocation2 + $0xaa8] sm:$0xff]
    %v394 = vld [vmem:[#allocation2 + $0xab0] sm:$0xff]
    %v395 = vld [vmem:[#allocation2 + $0xab8] sm:$0xff]
    %v396 = vld [vmem:[#allocation2 + $0xac0] sm:$0xff]
    %v397 = vld [vmem:[#allocation2 + $0xac8] sm:$0xff]
    %v398 = vld [vmem:[#allocation2 + $0xad0] sm:$0xff]
    %v399 = vld [vmem:[#allocation2 + $0xad8] sm:$0xff]
    %v400 = vld [vmem:[#allocation2 + $0xae0] sm:$0xff]
    %v401 = vld [vmem:[#allocation2 + $0xae8] sm:$0xff]
    %v402 = vld [vmem:[#allocation2 + $0xaf0] sm:$0xff]
    %v403 = vld [vmem:[#allocation2 + $0xaf8] sm:$0xff]
    %v404 = vld [vmem:[#allocation2 + $0xb00] sm:$0xff]
    %v405 = vld [vmem:[#allocation2 + $0xb08] sm:$0xff]
    %v406 = vld [vmem:[#allocation2 + $0xb10] sm:$0xff]
    %v407 = vld [vmem:[#allocation2 + $0xb18] sm:$0xff]
    %v408 = vld [vmem:[#allocation2 + $0xb20] sm:$0xff]
    %v409 = vld [vmem:[#allocation2 + $0xb28] sm:$0xff]
    %v410 = vld [vmem:[#allocation2 + $0xb30] sm:$0xff]
    %v411 = vld [vmem:[#allocation2 + $0xb38] sm:$0xff]
    %v412 = vld [vmem:[#allocation2 + $0xb40] sm:$0xff]
    %v413 = vld [vmem:[#allocation2 + $0xb48] sm:$0xff]
    %v414 = vld [vmem:[#allocation2 + $0xb50] sm:$0xff]
    %v415 = vld [vmem:[#allocation2 + $0xb58] sm:$0xff]
    %v416 = vld [vmem:[#allocation2 + $0xb60] sm:$0xff]
    %v417 = vld [vmem:[#allocation2 + $0xb68] sm:$0xff]
    %v418 = vld [vmem:[#allocation2 + $0xb70] sm:$0xff]
    %v419 = vld [vmem:[#allocation2 + $0xb78] sm:$0xff]
    %v420 = vld [vmem:[#allocation2 + $0xb80] sm:$0xff]
    %v421 = vld [vmem:[#allocation2 + $0xb88] sm:$0xff]
    %v422 = vld [vmem:[#allocation2 + $0xb90] sm:$0xff]
    %v423 = vld [vmem:[#allocation2 + $0xb98] sm:$0xff]
    %v424 = vld [vmem:[#allocation2 + $0xba0] sm:$0xff]
    %v425 = vld [vmem:[#allocation2 + $0xba8] sm:$0xff]
    %v426 = vld [vmem:[#allocation2 + $0xbb0] sm:$0xff]
    %v427 = vld [vmem:[#allocation2 + $0xbb8] sm:$0xff]
    %v428 = vld [vmem:[#allocation2 + $0xbc0] sm:$0xff]
    %v429 = vld [vmem:[#allocation2 + $0xbc8] sm:$0xff]
    %v430 = vld [vmem:[#allocation2 + $0xbd0] sm:$0xff]
    %v431 = vld [vmem:[#allocation2 + $0xbd8] sm:$0xff]
    %v432 = vld [vmem:[#allocation2 + $0xbe0] sm:$0xff]
    %v433 = vld [vmem:[#allocation2 + $0xbe8] sm:$0xff]
    %v434 = vld [vmem:[#allocation2 + $0xbf0] sm:$0xff]
    %v435 = vld [vmem:[#allocation2 + $0xbf8] sm:$0xff]
    %v436 = vld [vmem:[#allocation2 + $0xc00] sm:$0xff]
    %v437 = vld [vmem:[#allocation2 + $0xc08] sm:$0xff]
    %v438 = vld [vmem:[#allocation2 + $0xc10] sm:$0xff]
    %v439 = vld [vmem:[#allocation2 + $0xc18] sm:$0xff]
    %v440 = vld [vmem:[#allocation2 + $0xc20] sm:$0xff]
    %v441 = vld [vmem:[#allocation2 + $0xc28] sm:$0xff]
    %v442 = vld [vmem:[#allocation2 + $0xc30] sm:$0xff]
    %v443 = vld [vmem:[#allocation2 + $0xc38] sm:$0xff]
    %v444 = vld [vmem:[#allocation2 + $0xc40] sm:$0xff]
    %v445 = vld [vmem:[#allocation2 + $0xc48] sm:$0xff]
    %v446 = vld [vmem:[#allocation2 + $0xc50] sm:$0xff]
    %v447 = vld [vmem:[#allocation2 + $0xc58] sm:$0xff]
    %v448 = vld [vmem:[#allocation2 + $0xc60] sm:$0xff]
    %v449 = vld [vmem:[#allocation2 + $0xc68] sm:$0xff]
    %v450 = vld [vmem:[#allocation2 + $0xc70] sm:$0xff]
    %v451 = vld [vmem:[#allocation2 + $0xc78] sm:$0xff]
    %v452 = vld [vmem:[#allocation2 + $0xc80] sm:$0xff]
    %v453 = vld [vmem:[#allocation2 + $0xc88] sm:$0xff]
    %v454 = vld [vmem:[#allocation2 + $0xc90] sm:$0xff]
    %v455 = vld [vmem:[#allocation2 + $0xc98] sm:$0xff]
    %v456 = vld [vmem:[#allocation2 + $0xca0] sm:$0xff]
    %v457 = vld [vmem:[#allocation2 + $0xca8] sm:$0xff]
    %v458 = vld [vmem:[#allocation2 + $0xcb0] sm:$0xff]
    %v459 = vld [vmem:[#allocation2 + $0xcb8] sm:$0xff]
    %v460 = vld [vmem:[#allocation2 + $0xcc0] sm:$0xff]
    %v461 = vld [vmem:[#allocation2 + $0xcc8] sm:$0xff]
    %v462 = vld [vmem:[#allocation2 + $0xcd0] sm:$0xff]
    %v463 = vld [vmem:[#allocation2 + $0xcd8] sm:$0xff]
    %v464 = vld [vmem:[#allocation2 + $0xce0] sm:$0xff]
    %v465 = vld [vmem:[#allocation2 + $0xce8] sm:$0xff]
    %v466 = vld [vmem:[#allocation2 + $0xcf0] sm:$0xff]
    %v467 = vld [vmem:[#allocation2 + $0xcf8] sm:$0xff]
    %v468 = vld [vmem:[#allocation2 + $0xd00] sm:$0xff]
    %v469 = vld [vmem:[#allocation2 + $0xd08] sm:$0xff]
    %v470 = vld [vmem:[#allocation2 + $0xd10] sm:$0xff]
    %v471 = vld [vmem:[#allocation2 + $0xd18] sm:$0xff]
    %v472 = vld [vmem:[#allocation2 + $0xd20] sm:$0xff]
    %v473 = vld [vmem:[#allocation2 + $0xd28] sm:$0xff]
    %v474 = vld [vmem:[#allocation2 + $0xd30] sm:$0xff]
    %v475 = vld [vmem:[#allocation2 + $0xd38] sm:$0xff]
    %v476 = vld [vmem:[#allocation2 + $0xd40] sm:$0xff]
    %v477 = vld [vmem:[#allocation2 + $0xd48] sm:$0xff]
    %v478 = vld [vmem:[#allocation2 + $0xd50] sm:$0xff]
    %v479 = vld [vmem:[#allocation2 + $0xd58] sm:$0xff]
    %v480 = vld [vmem:[#allocation2 + $0xd60] sm:$0xff]
    %v481 = vld [vmem:[#allocation2 + $0xd68] sm:$0xff]
    %v482 = vld [vmem:[#allocation2 + $0xd70] sm:$0xff]
    %v483 = vld [vmem:[#allocation2 + $0xd78] sm:$0xff]
    %v484 = vld [vmem:[#allocation2 + $0xd80] sm:$0xff]
    %v485 = vld [vmem:[#allocation2 + $0xd88] sm:$0xff]
    %v486 = vld [vmem:[#allocation2 + $0xd90] sm:$0xff]
    %v487 = vld [vmem:[#allocation2 + $0xd98] sm:$0xff]
    %v488 = vld [vmem:[#allocation2 + $0xda0] sm:$0xff]
    %v489 = vld [vmem:[#allocation2 + $0xda8] sm:$0xff]
    %v490 = vld [vmem:[#allocation2 + $0xdb0] sm:$0xff]
    %v491 = vld [vmem:[#allocation2 + $0xdb8] sm:$0xff]
    %v492 = vld [vmem:[#allocation2 + $0xdc0] sm:$0xff]
    %v493 = vld [vmem:[#allocation2 + $0xdc8] sm:$0xff]
    %v494 = vld [vmem:[#allocation2 + $0xdd0] sm:$0xff]
    %v495 = vld [vmem:[#allocation2 + $0xdd8] sm:$0xff]
    %v496 = vld [vmem:[#allocation2 + $0xde0] sm:$0xff]
    %v497 = vld [vmem:[#allocation2 + $0xde8] sm:$0xff]
    %v498 = vld [vmem:[#allocation2 + $0xdf0] sm:$0xff]
    %v499 = vld [vmem:[#allocation2 + $0xdf8] sm:$0xff]
    %v500 = vld [vmem:[#allocation2 + $0xe00] sm:$0xff]
    %v501 = vld [vmem:[#allocation2 + $0xe08] sm:$0xff]
    %v502 = vld [vmem:[#allocation2 + $0xe10] sm:$0xff]
    %v503 = vld [vmem:[#allocation2 + $0xe18] sm:$0xff]
    %v504 = vld [vmem:[#allocation2 + $0xe20] sm:$0xff]
    %v505 = vld [vmem:[#allocation2 + $0xe28] sm:$0xff]
    %v506 = vld [vmem:[#allocation2 + $0xe30] sm:$0xff]
    %v507 = vld [vmem:[#allocation2 + $0xe38] sm:$0xff]
    %v508 = vld [vmem:[#allocation2 + $0xe40] sm:$0xff]
    %v509 = vld [vmem:[#allocation2 + $0xe48] sm:$0xff]
    %v510 = vld [vmem:[#allocation2 + $0xe50] sm:$0xff]
    %v511 = vld [vmem:[#allocation2 + $0xe58] sm:$0xff]
    %v512 = vld [vmem:[#allocation2 + $0xe60] sm:$0xff]
    %v513 = vld [vmem:[#allocation2 + $0xe68] sm:$0xff]
    %v514 = vld [vmem:[#allocation2 + $0xe70] sm:$0xff]
    %v515 = vld [vmem:[#allocation2 + $0xe78] sm:$0xff]
    %v516 = vld [vmem:[#allocation2 + $0xe80] sm:$0xff]
    %v517 = vld [vmem:[#allocation2 + $0xe88] sm:$0xff]
    %v518 = vld [vmem:[#allocation2 + $0xe90] sm:$0xff]
    %v519 = vld [vmem:[#allocation2 + $0xe98] sm:$0xff]
    %v520 = vld [vmem:[#allocation2 + $0xea0] sm:$0xff]
    %v521 = vld [vmem:[#allocation2 + $0xea8] sm:$0xff]
    %v522 = vld [vmem:[#allocation2 + $0xeb0] sm:$0xff]
    %v523 = vld [vmem:[#allocation2 + $0xeb8] sm:$0xff]
    %v524 = vld [vmem:[#allocation2 + $0xec0] sm:$0xff]
    %v525 = vld [vmem:[#allocation2 + $0xec8] sm:$0xff]
    %v526 = vld [vmem:[#allocation2 + $0xed0] sm:$0xff]
    %v527 = vld [vmem:[#allocation2 + $0xed8] sm:$0xff]
    %v528 = vld [vmem:[#allocation2 + $0xee0] sm:$0xff]
    %v529 = vld [vmem:[#allocation2 + $0xee8] sm:$0xff]
    %v530 = vld [vmem:[#allocation2 + $0xef0] sm:$0xff]
    %v531 = vld [vmem:[#allocation2 + $0xef8] sm:$0xff]
    %v532 = vld [vmem:[#allocation2 + $0xf00] sm:$0xff]
    %v533 = vld [vmem:[#allocation2 + $0xf08] sm:$0xff]
    %v534 = vld [vmem:[#allocation2 + $0xf10] sm:$0xff]
    %v535 = vld [vmem:[#allocation2 + $0xf18] sm:$0xff]
    %v536 = vld [vmem:[#allocation2 + $0xf20] sm:$0xff]
    %v537 = vld [vmem:[#allocation2 + $0xf28] sm:$0xff]
    %v538 = vld [vmem:[#allocation2 + $0xf30] sm:$0xff]
    %v539 = vld [vmem:[#allocation2 + $0xf38] sm:$0xff]
    %v540 = vld [vmem:[#allocation2 + $0xf40] sm:$0xff]
    %v541 = vld [vmem:[#allocation2 + $0xf48] sm:$0xff]
    %v542 = vld [vmem:[#allocation2 + $0xf50] sm:$0xff]
    %v543 = vld [vmem:[#allocation2 + $0xf58] sm:$0xff]
    %v544 = vld [vmem:[#allocation2 + $0xf60] sm:$0xff]
    %v545 = vld [vmem:[#allocation2 + $0xf68] sm:$0xff]
    %v546 = vld [vmem:[#allocation2 + $0xf70] sm:$0xff]
    %v547 = vld [vmem:[#allocation2 + $0xf78] sm:$0xff]
    %v548 = vld [vmem:[#allocation2 + $0xf80] sm:$0xff]
    %v549 = vld [vmem:[#allocation2 + $0xf88] sm:$0xff]
    %v550 = vld [vmem:[#allocation2 + $0xf90] sm:$0xff]
    %v551 = vld [vmem:[#allocation2 + $0xf98] sm:$0xff]
    %v552 = vld [vmem:[#allocation2 + $0xfa0] sm:$0xff]
    %v553 = vld [vmem:[#allocation2 + $0xfa8] sm:$0xff]
    %v554 = vld [vmem:[#allocation2 + $0xfb0] sm:$0xff]
    %v555 = vld [vmem:[#allocation2 + $0xfb8] sm:$0xff]
    %v556 = vld [vmem:[#allocation2 + $0xfc0] sm:$0xff]
    %v557 = vld [vmem:[#allocation2 + $0xfc8] sm:$0xff]
    %v558 = vld [vmem:[#allocation2 + $0xfd0] sm:$0xff]
    %v559 = vld [vmem:[#allocation2 + $0xfd8] sm:$0xff]
    %v560 = vld [vmem:[#allocation2 + $0xfe0] sm:$0xff]
    %v561 = vld [vmem:[#allocation2 + $0xfe8] sm:$0xff]
    %v562 = vld [vmem:[#allocation2 + $0xff0] sm:$0xff]
    %v563 = vld [vmem:[#allocation2 + $0xff8] sm:$0xff]
    %v564 = vld [vmem:[#allocation2 + $0x1000] sm:$0xff]
    %v565 = vld [vmem:[#allocation2 + $0x1008] sm:$0xff]
    %v566 = vld [vmem:[#allocation2 + $0x1010] sm:$0xff]
    %v567 = vld [vmem:[#allocation2 + $0x1018] sm:$0xff]
    %v568 = vld [vmem:[#allocation2 + $0x1020] sm:$0xff]
    %v569 = vld [vmem:[#allocation2 + $0x1028] sm:$0xff]
    %v570 = vld [vmem:[#allocation2 + $0x1030] sm:$0xff]
    %v571 = vld [vmem:[#allocation2 + $0x1038] sm:$0xff]
    %v572 = vld [vmem:[#allocation2 + $0x1040] sm:$0xff]
    %v573 = vld [vmem:[#allocation2 + $0x1048] sm:$0xff]
    %v574 = vld [vmem:[#allocation2 + $0x1050] sm:$0xff]
    %v575 = vld [vmem:[#allocation2 + $0x1058] sm:$0xff]
    %v576 = vld [vmem:[#allocation2 + $0x1060] sm:$0xff]
    %v577 = vld [vmem:[#allocation2 + $0x1068] sm:$0xff]
    %v578 = vld [vmem:[#allocation2 + $0x1070] sm:$0xff]
    %v579 = vld [vmem:[#allocation2 + $0x1078] sm:$0xff]
    %v580 = vld [vmem:[#allocation2 + $0x1080] sm:$0xff]
    %v581 = vld [vmem:[#allocation2 + $0x1088] sm:$0xff]
    %v582 = vld [vmem:[#allocation2 + $0x1090] sm:$0xff]
    %v583 = vld [vmem:[#allocation2 + $0x1098] sm:$0xff]
    %v584 = vld [vmem:[#allocation2 + $0x10a0] sm:$0xff]
    %v585 = vld [vmem:[#allocation2 + $0x10a8] sm:$0xff]
    %v586 = vld [vmem:[#allocation2 + $0x10b0] sm:$0xff]
    %v587 = vld [vmem:[#allocation2 + $0x10b8] sm:$0xff]
    %v588 = vld [vmem:[#allocation2 + $0x10c0] sm:$0xff]
    %v589 = vld [vmem:[#allocation2 + $0x10c8] sm:$0xff]
    %v590 = vld [vmem:[#allocation2 + $0x10d0] sm:$0xff]
    %v591 = vld [vmem:[#allocation2 + $0x10d8] sm:$0xff]
    %v592 = vld [vmem:[#allocation2 + $0x10e0] sm:$0xff]
    %v593 = vld [vmem:[#allocation2 + $0x10e8] sm:$0xff]
    %v594 = vld [vmem:[#allocation2 + $0x10f0] sm:$0xff]
    %v595 = vld [vmem:[#allocation2 + $0x10f8] sm:$0xff]
    %v596 = vld [vmem:[#allocation2 + $0x1100] sm:$0xff]
    %v597 = vld [vmem:[#allocation2 + $0x1108] sm:$0xff]
    %v598 = vld [vmem:[#allocation2 + $0x1110] sm:$0xff]
    %v599 = vld [vmem:[#allocation2 + $0x1118] sm:$0xff]
    %v600 = vld [vmem:[#allocation2 + $0x1120] sm:$0xff]
    %v601 = vld [vmem:[#allocation2 + $0x1128] sm:$0xff]
    %v602 = vld [vmem:[#allocation2 + $0x1130] sm:$0xff]
    %v603 = vld [vmem:[#allocation2 + $0x1138] sm:$0xff]
    %v604 = vld [vmem:[#allocation2 + $0x1140] sm:$0xff]
    %v605 = vld [vmem:[#allocation2 + $0x1148] sm:$0xff]
    %v606 = vld [vmem:[#allocation2 + $0x1150] sm:$0xff]
    %v607 = vld [vmem:[#allocation2 + $0x1158] sm:$0xff]
    %v608 = vld [vmem:[#allocation2 + $0x1160] sm:$0xff]
    %v609 = vld [vmem:[#allocation2 + $0x1168] sm:$0xff]
    %v610 = vld [vmem:[#allocation2 + $0x1170] sm:$0xff]
    %v611 = vld [vmem:[#allocation2 + $0x1178] sm:$0xff]
    %v612 = vld [vmem:[#allocation2 + $0x1180] sm:$0xff]
    %v613 = vld [vmem:[#allocation2 + $0x1188] sm:$0xff]
    %v614 = vld [vmem:[#allocation2 + $0x1190] sm:$0xff]
    %v615 = vld [vmem:[#allocation2 + $0x1198] sm:$0xff]
    %v616 = vld [vmem:[#allocation2 + $0x11a0] sm:$0xff]
    %v617 = vld [vmem:[#allocation2 + $0x11a8] sm:$0xff]
    %v618 = vld [vmem:[#allocation2 + $0x11b0] sm:$0xff]
    %v619 = vld [vmem:[#allocation2 + $0x11b8] sm:$0xff]
    %v620 = vld [vmem:[#allocation2 + $0x11c0] sm:$0xff]
    %v621 = vld [vmem:[#allocation2 + $0x11c8] sm:$0xff]
    %v622 = vld [vmem:[#allocation2 + $0x11d0] sm:$0xff]
    %v623 = vld [vmem:[#allocation2 + $0x11d8] sm:$0xff]
    %v624 = vld [vmem:[#allocation2 + $0x11e0] sm:$0xff]
    %v625 = vld [vmem:[#allocation2 + $0x11e8] sm:$0xff]
    %v626 = vld [vmem:[#allocation2 + $0x11f0] sm:$0xff]
    %v627 = vld [vmem:[#allocation2 + $0x11f8] sm:$0xff]
    %v628 = vld [vmem:[#allocation2 + $0x1200] sm:$0xff]
    %v629 = vld [vmem:[#allocation2 + $0x1208] sm:$0xff]
    %v630 = vld [vmem:[#allocation2 + $0x1210] sm:$0xff]
    %v631 = vld [vmem:[#allocation2 + $0x1218] sm:$0xff]
    %v632 = vld [vmem:[#allocation2 + $0x1220] sm:$0xff]
    %v633 = vld [vmem:[#allocation2 + $0x1228] sm:$0xff]
    %v634 = vld [vmem:[#allocation2 + $0x1230] sm:$0xff]
    %v635 = vld [vmem:[#allocation2 + $0x1238] sm:$0xff]
    %v636 = vld [vmem:[#allocation2 + $0x1240] sm:$0xff]
    %v637 = vld [vmem:[#allocation2 + $0x1248] sm:$0xff]
    %v638 = vld [vmem:[#allocation2 + $0x1250] sm:$0xff]
    %v639 = vld [vmem:[#allocation2 + $0x1258] sm:$0xff]
    %v640 = vld [vmem:[#allocation2 + $0x1260] sm:$0xff]
    %v641 = vld [vmem:[#allocation2 + $0x1268] sm:$0xff]
    %v642 = vld [vmem:[#allocation2 + $0x1270] sm:$0xff]
    %v643 = vld [vmem:[#allocation2 + $0x1278] sm:$0xff]
    %v644 = vld [vmem:[#allocation2 + $0x1280] sm:$0xff]
    %v645 = vld [vmem:[#allocation2 + $0x1288] sm:$0xff]
    %v646 = vld [vmem:[#allocation2 + $0x1290] sm:$0xff]
    %v647 = vld [vmem:[#allocation2 + $0x1298] sm:$0xff]
    %v648 = vld [vmem:[#allocation2 + $0x12a0] sm:$0xff]
    %v649 = vld [vmem:[#allocation2 + $0x12a8] sm:$0xff]
    %v650 = vld [vmem:[#allocation2 + $0x12b0] sm:$0xff]
    %v651 = vld [vmem:[#allocation2 + $0x12b8] sm:$0xff]
    %v652 = vld [vmem:[#allocation2 + $0x12c0] sm:$0xff]
    %v653 = vld [vmem:[#allocation2 + $0x12c8] sm:$0xff]
    %v654 = vld [vmem:[#allocation2 + $0x12d0] sm:$0xff]
    %v655 = vld [vmem:[#allocation2 + $0x12d8] sm:$0xff]
    %v656 = vld [vmem:[#allocation2 + $0x12e0] sm:$0xff]
    %v657 = vld [vmem:[#allocation2 + $0x12e8] sm:$0xff]
    %v658 = vld [vmem:[#allocation2 + $0x12f0] sm:$0xff]
    %v659 = vld [vmem:[#allocation2 + $0x12f8] sm:$0xff]
    %v660 = vld [vmem:[#allocation2 + $0x1300] sm:$0xff]
    %v661 = vld [vmem:[#allocation2 + $0x1308] sm:$0xff]
    %v662 = vld [vmem:[#allocation2 + $0x1310] sm:$0xff]
    %v663 = vld [vmem:[#allocation2 + $0x1318] sm:$0xff]
    %v664 = vld [vmem:[#allocation2 + $0x1320] sm:$0xff]
    %v665 = vld [vmem:[#allocation2 + $0x1328] sm:$0xff]
    %v666 = vld [vmem:[#allocation2 + $0x1330] sm:$0xff]
    %v667 = vld [vmem:[#allocation2 + $0x1338] sm:$0xff]
    %v668 = vld [vmem:[#allocation2 + $0x1340] sm:$0xff]
    %v669 = vld [vmem:[#allocation2 + $0x1348] sm:$0xff]
    %v670 = vld [vmem:[#allocation2 + $0x1350] sm:$0xff]
    %v671 = vld [vmem:[#allocation2 + $0x1358] sm:$0xff]
    %v672 = vld [vmem:[#allocation2 + $0x1360] sm:$0xff]
    %v673 = vld [vmem:[#allocation2 + $0x1368] sm:$0xff]
    %v674 = vld [vmem:[#allocation2 + $0x1370] sm:$0xff]
    %v675 = vld [vmem:[#allocation2 + $0x1378] sm:$0xff]
    %v676 = vld [vmem:[#allocation2 + $0x1380] sm:$0xff]
    %v677 = vld [vmem:[#allocation2 + $0x1388] sm:$0xff]
    %v678 = vld [vmem:[#allocation2 + $0x1390] sm:$0xff]
    %v679 = vld [vmem:[#allocation2 + $0x1398] sm:$0xff]
    %v680 = vld [vmem:[#allocation2 + $0x13a0] sm:$0xff]
    %v681 = vld [vmem:[#allocation2 + $0x13a8] sm:$0xff]
    %v682 = vld [vmem:[#allocation2 + $0x13b0] sm:$0xff]
    %v683 = vld [vmem:[#allocation2 + $0x13b8] sm:$0xff]
    %v684 = vld [vmem:[#allocation2 + $0x13c0] sm:$0xff]
    %v685 = vld [vmem:[#allocation2 + $0x13c8] sm:$0xff]
    %v686 = vld [vmem:[#allocation2 + $0x13d0] sm:$0xff]
    %v687 = vld [vmem:[#allocation2 + $0x13d8] sm:$0xff]
    %v688 = vld [vmem:[#allocation2 + $0x13e0] sm:$0xff]
    %v689 = vld [vmem:[#allocation2 + $0x13e8] sm:$0xff]
    %v690 = vld [vmem:[#allocation2 + $0x13f0] sm:$0xff]
    %v691 = vld [vmem:[#allocation2 + $0x13f8] sm:$0xff]
    %v692 = vld [vmem:[#allocation2 + $0x1400] sm:$0xff]
    %v693 = vld [vmem:[#allocation2 + $0x1408] sm:$0xff]
    %v694 = vld [vmem:[#allocation2 + $0x1410] sm:$0xff]
    %v695 = vld [vmem:[#allocation2 + $0x1418] sm:$0xff]
    %v696 = vld [vmem:[#allocation2 + $0x1420] sm:$0xff]
    %v697 = vld [vmem:[#allocation2 + $0x1428] sm:$0xff]
    %v698 = vld [vmem:[#allocation2 + $0x1430] sm:$0xff]
    %v699 = vld [vmem:[#allocation2 + $0x1438] sm:$0xff]
    %v700 = vld [vmem:[#allocation2 + $0x1440] sm:$0xff]
    %v701 = vld [vmem:[#allocation2 + $0x1448] sm:$0xff]
    %v702 = vld [vmem:[#allocation2 + $0x1450] sm:$0xff]
    %v703 = vld [vmem:[#allocation2 + $0x1458] sm:$0xff]
    %v704 = vld [vmem:[#allocation2 + $0x1460] sm:$0xff]
    %v705 = vld [vmem:[#allocation2 + $0x1468] sm:$0xff]
    %v706 = vld [vmem:[#allocation2 + $0x1470] sm:$0xff]
    %v707 = vld [vmem:[#allocation2 + $0x1478] sm:$0xff]
    %v708 = vld [vmem:[#allocation2 + $0x1480] sm:$0xff]
    %v709 = vld [vmem:[#allocation2 + $0x1488] sm:$0xff]
    %v710 = vld [vmem:[#allocation2 + $0x1490] sm:$0xff]
    %v711 = vld [vmem:[#allocation2 + $0x1498] sm:$0xff]
    %v712 = vld [vmem:[#allocation2 + $0x14a0] sm:$0xff]
    %v713 = vld [vmem:[#allocation2 + $0x14a8] sm:$0xff]
    %v714 = vld [vmem:[#allocation2 + $0x14b0] sm:$0xff]
    %v715 = vld [vmem:[#allocation2 + $0x14b8] sm:$0xff]
    %v716 = vld [vmem:[#allocation2 + $0x14c0] sm:$0xff]
    %v717 = vld [vmem:[#allocation2 + $0x14c8] sm:$0xff]
    %v718 = vld [vmem:[#allocation2 + $0x14d0] sm:$0xff]
    %v719 = vld [vmem:[#allocation2 + $0x14d8] sm:$0xff]
    %v720 = vld [vmem:[#allocation2 + $0x14e0] sm:$0xff]
    %v721 = vld [vmem:[#allocation2 + $0x14e8] sm:$0xff]
    %v722 = vld [vmem:[#allocation2 + $0x14f0] sm:$0xff]
    %v723 = vld [vmem:[#allocation2 + $0x14f8] sm:$0xff]
    %v724 = vld [vmem:[#allocation2 + $0x1500] sm:$0xff]
    %v725 = vld [vmem:[#allocation2 + $0x1508] sm:$0xff]
    %v726 = vld [vmem:[#allocation2 + $0x1510] sm:$0xff]
    %v727 = vld [vmem:[#allocation2 + $0x1518] sm:$0xff]
    %v728 = vld [vmem:[#allocation2 + $0x1520] sm:$0xff]
    %v729 = vld [vmem:[#allocation2 + $0x1528] sm:$0xff]
    %v730 = vld [vmem:[#allocation2 + $0x1530] sm:$0xff]
    %v731 = vld [vmem:[#allocation2 + $0x1538] sm:$0xff]
    %v732 = vld [vmem:[#allocation2 + $0x1540] sm:$0xff]
    %v733 = vld [vmem:[#allocation2 + $0x1548] sm:$0xff]
    %v734 = vld [vmem:[#allocation2 + $0x1550] sm:$0xff]
    %v735 = vld [vmem:[#allocation2 + $0x1558] sm:$0xff]
    %v736 = vld [vmem:[#allocation2 + $0x1560] sm:$0xff]
    %v737 = vld [vmem:[#allocation2 + $0x1568] sm:$0xff]
    %v738 = vld [vmem:[#allocation2 + $0x1570] sm:$0xff]
    %v739 = vld [vmem:[#allocation2 + $0x1578] sm:$0xff]
    %v740 = vld [vmem:[#allocation2 + $0x1580] sm:$0xff]
    %v741 = vld [vmem:[#allocation2 + $0x1588] sm:$0xff]
    %v742 = vld [vmem:[#allocation2 + $0x1590] sm:$0xff]
    %v743 = vld [vmem:[#allocation2 + $0x1598] sm:$0xff]
    %v744 = vld [vmem:[#allocation2 + $0x15a0] sm:$0xff]
    %v745 = vld [vmem:[#allocation2 + $0x15a8] sm:$0xff]
    %v746 = vld [vmem:[#allocation2 + $0x15b0] sm:$0xff]
    %v747 = vld [vmem:[#allocation2 + $0x15b8] sm:$0xff]
    %v748 = vld [vmem:[#allocation2 + $0x15c0] sm:$0xff]
    %v749 = vld [vmem:[#allocation2 + $0x15c8] sm:$0xff]
    %v750 = vld [vmem:[#allocation2 + $0x15d0] sm:$0xff]
    %v751 = vld [vmem:[#allocation2 + $0x15d8] sm:$0xff]
    %v752 = vld [vmem:[#allocation2 + $0x15e0] sm:$0xff]
    %v753 = vld [vmem:[#allocation2 + $0x15e8] sm:$0xff]
    %v754 = vld [vmem:[#allocation2 + $0x15f0] sm:$0xff]
    %v755 = vld [vmem:[#allocation2 + $0x15f8] sm:$0xff]
    %v756 = vld [vmem:[#allocation2 + $0x1600] sm:$0xff]
    %v757 = vld [vmem:[#allocation2 + $0x1608] sm:$0xff]
    %v758 = vld [vmem:[#allocation2 + $0x1610] sm:$0xff]
    %v759 = vld [vmem:[#allocation2 + $0x1618] sm:$0xff]
    %v760 = vld [vmem:[#allocation2 + $0x1620] sm:$0xff]
    %v761 = vld [vmem:[#allocation2 + $0x1628] sm:$0xff]
    %v762 = vld [vmem:[#allocation2 + $0x1630] sm:$0xff]
    %v763 = vld [vmem:[#allocation2 + $0x1638] sm:$0xff]
    %v764 = vld [vmem:[#allocation2 + $0x1640] sm:$0xff]
    %v765 = vld [vmem:[#allocation2 + $0x1648] sm:$0xff]
    %v766 = vld [vmem:[#allocation2 + $0x1650] sm:$0xff]
    %v767 = vld [vmem:[#allocation2 + $0x1658] sm:$0xff]
    %v768 = vld [vmem:[#allocation2 + $0x1660] sm:$0xff]
    %v769 = vld [vmem:[#allocation2 + $0x1668] sm:$0xff]
    %v770 = vld [vmem:[#allocation2 + $0x1670] sm:$0xff]
    %v771 = vld [vmem:[#allocation2 + $0x1678] sm:$0xff]
    %v772 = vld [vmem:[#allocation2 + $0x1680] sm:$0xff]
    %v773 = vld [vmem:[#allocation2 + $0x1688] sm:$0xff]
    %v774 = vld [vmem:[#allocation2 + $0x1690] sm:$0xff]
    %v775 = vld [vmem:[#allocation2 + $0x1698] sm:$0xff]
    %v776 = vld [vmem:[#allocation2 + $0x16a0] sm:$0xff]
    %v777 = vld [vmem:[#allocation2 + $0x16a8] sm:$0xff]
    %v778 = vld [vmem:[#allocation2 + $0x16b0] sm:$0xff]
    %v779 = vld [vmem:[#allocation2 + $0x16b8] sm:$0xff]
    %v780 = vld [vmem:[#allocation2 + $0x16c0] sm:$0xff]
    %v781 = vld [vmem:[#allocation2 + $0x16c8] sm:$0xff]
    %v782 = vld [vmem:[#allocation2 + $0x16d0] sm:$0xff]
    %v783 = vld [vmem:[#allocation2 + $0x16d8] sm:$0xff]
    %v784 = vld [vmem:[#allocation2 + $0x16e0] sm:$0xff]
    %v785 = vld [vmem:[#allocation2 + $0x16e8] sm:$0xff]
    %v786 = vld [vmem:[#allocation2 + $0x16f0] sm:$0xff]
    %v787 = vld [vmem:[#allocation2 + $0x16f8] sm:$0xff]
    %v788 = vld [vmem:[#allocation2 + $0x1700] sm:$0xff]
    %v789 = vld [vmem:[#allocation2 + $0x1708] sm:$0xff]
    %v790 = vld [vmem:[#allocation2 + $0x1710] sm:$0xff]
    %v791 = vld [vmem:[#allocation2 + $0x1718] sm:$0xff]
    %v792 = vld [vmem:[#allocation2 + $0x1720] sm:$0xff]
    %v793 = vld [vmem:[#allocation2 + $0x1728] sm:$0xff]
    %v794 = vld [vmem:[#allocation2 + $0x1730] sm:$0xff]
    %v795 = vld [vmem:[#allocation2 + $0x1738] sm:$0xff]
    %v796 = vld [vmem:[#allocation2 + $0x1740] sm:$0xff]
    %v797 = vld [vmem:[#allocation2 + $0x1748] sm:$0xff]
    %v798 = vld [vmem:[#allocation2 + $0x1750] sm:$0xff]
    %v799 = vld [vmem:[#allocation2 + $0x1758] sm:$0xff]
    %v800 = vld [vmem:[#allocation2 + $0x1760] sm:$0xff]
    %v801 = vld [vmem:[#allocation2 + $0x1768] sm:$0xff]
    %v802 = vld [vmem:[#allocation2 + $0x1770] sm:$0xff]
    %v803 = vld [vmem:[#allocation2 + $0x1778] sm:$0xff]
    %v804 = vld [vmem:[#allocation2 + $0x1780] sm:$0xff]
    %v805 = vld [vmem:[#allocation2 + $0x1788] sm:$0xff]
    %v806 = vld [vmem:[#allocation2 + $0x1790] sm:$0xff]
    %v807 = vld [vmem:[#allocation2 + $0x1798] sm:$0xff]
    %v808 = vld [vmem:[#allocation2 + $0x17a0] sm:$0xff]
    %v809 = vld [vmem:[#allocation2 + $0x17a8] sm:$0xff]
    %v810 = vld [vmem:[#allocation2 + $0x17b0] sm:$0xff]
    %v811 = vld [vmem:[#allocation2 + $0x17b8] sm:$0xff]
    %v812 = vld [vmem:[#allocation2 + $0x17c0] sm:$0xff]
    %v813 = vld [vmem:[#allocation2 + $0x17c8] sm:$0xff]
    %v814 = vld [vmem:[#allocation2 + $0x17d0] sm:$0xff]
    %v815 = vld [vmem:[#allocation2 + $0x17d8] sm:$0xff]
    %v816 = vld [vmem:[#allocation2 + $0x17e0] sm:$0xff]
    %v817 = vld [vmem:[#allocation2 + $0x17e8] sm:$0xff]
    %v818 = vld [vmem:[#allocation2 + $0x17f0] sm:$0xff]
    %v819 = vld [vmem:[#allocation2 + $0x17f8] sm:$0xff]
    %v820 = vld [vmem:[#allocation2 + $0x1800] sm:$0xff]
    %v821 = vld [vmem:[#allocation2 + $0x1808] sm:$0xff]
    %v822 = vld [vmem:[#allocation2 + $0x1810] sm:$0xff]
    %v823 = vld [vmem:[#allocation2 + $0x1818] sm:$0xff]
    %v824 = vld [vmem:[#allocation2 + $0x1820] sm:$0xff]
    %v825 = vld [vmem:[#allocation2 + $0x1828] sm:$0xff]
    %v826 = vld [vmem:[#allocation2 + $0x1830] sm:$0xff]
    %v827 = vld [vmem:[#allocation2 + $0x1838] sm:$0xff]
    %v828 = vld [vmem:[#allocation2 + $0x1840] sm:$0xff]
    %v829 = vld [vmem:[#allocation2 + $0x1848] sm:$0xff]
    %v830 = vld [vmem:[#allocation2 + $0x1850] sm:$0xff]
    %v831 = vld [vmem:[#allocation2 + $0x1858] sm:$0xff]
    %v832 = vld [vmem:[#allocation2 + $0x1860] sm:$0xff]
    %v833 = vld [vmem:[#allocation2 + $0x1868] sm:$0xff]
    %v834 = vld [vmem:[#allocation2 + $0x1870] sm:$0xff]
    %v835 = vld [vmem:[#allocation2 + $0x1878] sm:$0xff]
    %v836 = vld [vmem:[#allocation2 + $0x1880] sm:$0xff]
    %v837 = vld [vmem:[#allocation2 + $0x1888] sm:$0xff]
    %v838 = vld [vmem:[#allocation2 + $0x1890] sm:$0xff]
    %v839 = vld [vmem:[#allocation2 + $0x1898] sm:$0xff]
    %v840 = vld [vmem:[#allocation2 + $0x18a0] sm:$0xff]
    %v841 = vld [vmem:[#allocation2 + $0x18a8] sm:$0xff]
    %v842 = vld [vmem:[#allocation2 + $0x18b0] sm:$0xff]
    %v843 = vld [vmem:[#allocation2 + $0x18b8] sm:$0xff]
    %v844 = vld [vmem:[#allocation2 + $0x18c0] sm:$0xff]
    %v845 = vld [vmem:[#allocation2 + $0x18c8] sm:$0xff]
    %v846 = vld [vmem:[#allocation2 + $0x18d0] sm:$0xff]
    %v847 = vld [vmem:[#allocation2 + $0x18d8] sm:$0xff]
    %v848 = vld [vmem:[#allocation2 + $0x18e0] sm:$0xff]
    %v849 = vld [vmem:[#allocation2 + $0x18e8] sm:$0xff]
    %v850 = vld [vmem:[#allocation2 + $0x18f0] sm:$0xff]
    %v851 = vld [vmem:[#allocation2 + $0x18f8] sm:$0xff]
    %v852 = vld [vmem:[#allocation2 + $0x1900] sm:$0xff]
    %v853 = vld [vmem:[#allocation2 + $0x1908] sm:$0xff]
    %v854 = vld [vmem:[#allocation2 + $0x1910] sm:$0xff]
    %v855 = vld [vmem:[#allocation2 + $0x1918] sm:$0xff]
    %v856 = vld [vmem:[#allocation2 + $0x1920] sm:$0xff]
    %v857 = vld [vmem:[#allocation2 + $0x1928] sm:$0xff]
    %v858 = vld [vmem:[#allocation2 + $0x1930] sm:$0xff]
    %v859 = vld [vmem:[#allocation2 + $0x1938] sm:$0xff]
    %v860 = vld [vmem:[#allocation2 + $0x1940] sm:$0xff]
    %v861 = vld [vmem:[#allocation2 + $0x1948] sm:$0xff]
    %v862 = vld [vmem:[#allocation2 + $0x1950] sm:$0xff]
    %v863 = vld [vmem:[#allocation2 + $0x1958] sm:$0xff]
    %v864 = vld [vmem:[#allocation2 + $0x1960] sm:$0xff]
    %v865 = vld [vmem:[#allocation2 + $0x1968] sm:$0xff]
    %v866 = vld [vmem:[#allocation2 + $0x1970] sm:$0xff]
    %v867 = vld [vmem:[#allocation2 + $0x1978] sm:$0xff]
    %v868 = vld [vmem:[#allocation2 + $0x1980] sm:$0xff]
    %v869 = vld [vmem:[#allocation2 + $0x1988] sm:$0xff]
    %v870 = vld [vmem:[#allocation2 + $0x1990] sm:$0xff]
    %v871 = vld [vmem:[#allocation2 + $0x1998] sm:$0xff]
    %v872 = vld [vmem:[#allocation2 + $0x19a0] sm:$0xff]
    %v873 = vld [vmem:[#allocation2 + $0x19a8] sm:$0xff]
    %v874 = vld [vmem:[#allocation2 + $0x19b0] sm:$0xff]
    %v875 = vld [vmem:[#allocation2 + $0x19b8] sm:$0xff]
    %v876 = vld [vmem:[#allocation2 + $0x19c0] sm:$0xff]
    %v877 = vld [vmem:[#allocation2 + $0x19c8] sm:$0xff]
    %v878 = vld [vmem:[#allocation2 + $0x19d0] sm:$0xff]
    %v879 = vld [vmem:[#allocation2 + $0x19d8] sm:$0xff]
    %v880 = vld [vmem:[#allocation2 + $0x19e0] sm:$0xff]
    %v881 = vld [vmem:[#allocation2 + $0x19e8] sm:$0xff]
    %v882 = vld [vmem:[#allocation2 + $0x19f0] sm:$0xff]
    %v883 = vld [vmem:[#allocation2 + $0x19f8] sm:$0xff]
    %v884 = vld [vmem:[#allocation2 + $0x1a00] sm:$0xff]
    %v885 = vld [vmem:[#allocation2 + $0x1a08] sm:$0xff]
    %v886 = vld [vmem:[#allocation2 + $0x1a10] sm:$0xff]
    %v887 = vld [vmem:[#allocation2 + $0x1a18] sm:$0xff]
    %v888 = vld [vmem:[#allocation2 + $0x1a20] sm:$0xff]
    %v889 = vld [vmem:[#allocation2 + $0x1a28] sm:$0xff]
    %v890 = vld [vmem:[#allocation2 + $0x1a30] sm:$0xff]
    %v891 = vld [vmem:[#allocation2 + $0x1a38] sm:$0xff]
    %v892 = vld [vmem:[#allocation2 + $0x1a40] sm:$0xff]
    %v893 = vld [vmem:[#allocation2 + $0x1a48] sm:$0xff]
    %v894 = vld [vmem:[#allocation2 + $0x1a50] sm:$0xff]
    %v895 = vld [vmem:[#allocation2 + $0x1a58] sm:$0xff]
    %v896 = vld [vmem:[#allocation2 + $0x1a60] sm:$0xff]
    %v897 = vld [vmem:[#allocation2 + $0x1a68] sm:$0xff]
    %v898 = vld [vmem:[#allocation2 + $0x1a70] sm:$0xff]
    %v899 = vld [vmem:[#allocation2 + $0x1a78] sm:$0xff]
    %v900 = vld [vmem:[#allocation2 + $0x1a80] sm:$0xff]
    %v901 = vld [vmem:[#allocation2 + $0x1a88] sm:$0xff]
    %v902 = vld [vmem:[#allocation2 + $0x1a90] sm:$0xff]
    %v903 = vld [vmem:[#allocation2 + $0x1a98] sm:$0xff]
    %v904 = vld [vmem:[#allocation2 + $0x1aa0] sm:$0xff]
    %v905 = vld [vmem:[#allocation2 + $0x1aa8] sm:$0xff]
    %v906 = vld [vmem:[#allocation2 + $0x1ab0] sm:$0xff]
    %v907 = vld [vmem:[#allocation2 + $0x1ab8] sm:$0xff]
    %v908 = vld [vmem:[#allocation2 + $0x1ac0] sm:$0xff]
    %v909 = vld [vmem:[#allocation2 + $0x1ac8] sm:$0xff]
    %v910 = vld [vmem:[#allocation2 + $0x1ad0] sm:$0xff]
    %v911 = vld [vmem:[#allocation2 + $0x1ad8] sm:$0xff]
    %v912 = vld [vmem:[#allocation2 + $0x1ae0] sm:$0xff]
    %v913 = vld [vmem:[#allocation2 + $0x1ae8] sm:$0xff]
    %v914 = vld [vmem:[#allocation2 + $0x1af0] sm:$0xff]
    %v915 = vld [vmem:[#allocation2 + $0x1af8] sm:$0xff]
    %v916 = vld [vmem:[#allocation2 + $0x1b00] sm:$0xff]
    %v917 = vld [vmem:[#allocation2 + $0x1b08] sm:$0xff]
    %v918 = vld [vmem:[#allocation2 + $0x1b10] sm:$0xff]
    %v919 = vld [vmem:[#allocation2 + $0x1b18] sm:$0xff]
    %v920 = vld [vmem:[#allocation2 + $0x1b20] sm:$0xff]
    %v921 = vld [vmem:[#allocation2 + $0x1b28] sm:$0xff]
    %v922 = vld [vmem:[#allocation2 + $0x1b30] sm:$0xff]
    %v923 = vld [vmem:[#allocation2 + $0x1b38] sm:$0xff]
    %v924 = vld [vmem:[#allocation2 + $0x1b40] sm:$0xff]
    %v925 = vld [vmem:[#allocation2 + $0x1b48] sm:$0xff]
    %v926 = vld [vmem:[#allocation2 + $0x1b50] sm:$0xff]
    %v927 = vld [vmem:[#allocation2 + $0x1b58] sm:$0xff]
    %v928 = vld [vmem:[#allocation2 + $0x1b60] sm:$0xff]
    %v929 = vld [vmem:[#allocation2 + $0x1b68] sm:$0xff]
    %v930 = vld [vmem:[#allocation2 + $0x1b70] sm:$0xff]
    %v931 = vld [vmem:[#allocation2 + $0x1b78] sm:$0xff]
    %v932 = vld [vmem:[#allocation2 + $0x1b80] sm:$0xff]
    %v933 = vld [vmem:[#allocation2 + $0x1b88] sm:$0xff]
    %v934 = vld [vmem:[#allocation2 + $0x1b90] sm:$0xff]
    %v935 = vld [vmem:[#allocation2 + $0x1b98] sm:$0xff]
    %v936 = vld [vmem:[#allocation2 + $0x1ba0] sm:$0xff]
    %v937 = vld [vmem:[#allocation2 + $0x1ba8] sm:$0xff]
    %v938 = vld [vmem:[#allocation2 + $0x1bb0] sm:$0xff]
    %v939 = vld [vmem:[#allocation2 + $0x1bb8] sm:$0xff]
    %v940 = vld [vmem:[#allocation2 + $0x1bc0] sm:$0xff]
    %v941 = vld [vmem:[#allocation2 + $0x1bc8] sm:$0xff]
    %v942 = vld [vmem:[#allocation2 + $0x1bd0] sm:$0xff]
    %v943 = vld [vmem:[#allocation2 + $0x1bd8] sm:$0xff]
    %v944 = vld [vmem:[#allocation2 + $0x1be0] sm:$0xff]
    %v945 = vld [vmem:[#allocation2 + $0x1be8] sm:$0xff]
    %v946 = vld [vmem:[#allocation2 + $0x1bf0] sm:$0xff]
    %v947 = vld [vmem:[#allocation2 + $0x1bf8] sm:$0xff]
    %v948 = vld [vmem:[#allocation2 + $0x1c00] sm:$0xff]
    %v949 = vld [vmem:[#allocation2 + $0x1c08] sm:$0xff]
    %v950 = vld [vmem:[#allocation2 + $0x1c10] sm:$0xff]
    %v951 = vld [vmem:[#allocation2 + $0x1c18] sm:$0xff]
    %v952 = vld [vmem:[#allocation2 + $0x1c20] sm:$0xff]
    %v953 = vld [vmem:[#allocation2 + $0x1c28] sm:$0xff]
    %v954 = vld [vmem:[#allocation2 + $0x1c30] sm:$0xff]
    %v955 = vld [vmem:[#allocation2 + $0x1c38] sm:$0xff]
    %v956 = vld [vmem:[#allocation2 + $0x1c40] sm:$0xff]
    %v957 = vld [vmem:[#allocation2 + $0x1c48] sm:$0xff]
    %v958 = vld [vmem:[#allocation2 + $0x1c50] sm:$0xff]
    %v959 = vld [vmem:[#allocation2 + $0x1c58] sm:$0xff]
    %v960 = vld [vmem:[#allocation2 + $0x1c60] sm:$0xff]
    %v961 = vld [vmem:[#allocation2 + $0x1c68] sm:$0xff]
    %v962 = vld [vmem:[#allocation2 + $0x1c70] sm:$0xff]
    %v963 = vld [vmem:[#allocation2 + $0x1c78] sm:$0xff]
    %v964 = vld [vmem:[#allocation2 + $0x1c80] sm:$0xff]
    %v965 = vld [vmem:[#allocation2 + $0x1c88] sm:$0xff]
    %v966 = vld [vmem:[#allocation2 + $0x1c90] sm:$0xff]
    %v967 = vld [vmem:[#allocation2 + $0x1c98] sm:$0xff]
    %v968 = vld [vmem:[#allocation2 + $0x1ca0] sm:$0xff]
    %v969 = vld [vmem:[#allocation2 + $0x1ca8] sm:$0xff]
    %v970 = vld [vmem:[#allocation2 + $0x1cb0] sm:$0xff]
    %v971 = vld [vmem:[#allocation2 + $0x1cb8] sm:$0xff]
    %v972 = vld [vmem:[#allocation2 + $0x1cc0] sm:$0xff]
    %v973 = vld [vmem:[#allocation2 + $0x1cc8] sm:$0xff]
    %v974 = vld [vmem:[#allocation2 + $0x1cd0] sm:$0xff]
    %v975 = vld [vmem:[#allocation2 + $0x1cd8] sm:$0xff]
    %v976 = vld [vmem:[#allocation2 + $0x1ce0] sm:$0xff]
    %v977 = vld [vmem:[#allocation2 + $0x1ce8] sm:$0xff]
    %v978 = vld [vmem:[#allocation2 + $0x1cf0] sm:$0xff]
    %v979 = vld [vmem:[#allocation2 + $0x1cf8] sm:$0xff]
    %v980 = vld [vmem:[#allocation2 + $0x1d00] sm:$0xff]
    %v981 = vld [vmem:[#allocation2 + $0x1d08] sm:$0xff]
    %v982 = vld [vmem:[#allocation2 + $0x1d10] sm:$0xff]
    %v983 = vld [vmem:[#allocation2 + $0x1d18] sm:$0xff]
    %v984 = vld [vmem:[#allocation2 + $0x1d20] sm:$0xff]
    %v985 = vld [vmem:[#allocation2 + $0x1d28] sm:$0xff]
    %v986 = vld [vmem:[#allocation2 + $0x1d30] sm:$0xff]
    %v987 = vld [vmem:[#allocation2 + $0x1d38] sm:$0xff]
    %v988 = vld [vmem:[#allocation2 + $0x1d40] sm:$0xff]
    %v989 = vld [vmem:[#allocation2 + $0x1d48] sm:$0xff]
    %v990 = vld [vmem:[#allocation2 + $0x1d50] sm:$0xff]
    %v991 = vld [vmem:[#allocation2 + $0x1d58] sm:$0xff]
    %v992 = vld [vmem:[#allocation2 + $0x1d60] sm:$0xff]
    %v993 = vld [vmem:[#allocation2 + $0x1d68] sm:$0xff]
    %v994 = vld [vmem:[#allocation2 + $0x1d70] sm:$0xff]
    %v995 = vld [vmem:[#allocation2 + $0x1d78] sm:$0xff]
    %v996 = vld [vmem:[#allocation2 + $0x1d80] sm:$0xff]
    %v997 = vld [vmem:[#allocation2 + $0x1d88] sm:$0xff]
    %v998 = vld [vmem:[#allocation2 + $0x1d90] sm:$0xff]
    %v999 = vld [vmem:[#allocation2 + $0x1d98] sm:$0xff]
    %v1000 = vld [vmem:[#allocation2 + $0x1da0] sm:$0xff]
    %v1001 = vld [vmem:[#allocation2 + $0x1da8] sm:$0xff]
    %v1002 = vld [vmem:[#allocation2 + $0x1db0] sm:$0xff]
    %v1003 = vld [vmem:[#allocation2 + $0x1db8] sm:$0xff]
    %v1004 = vld [vmem:[#allocation2 + $0x1dc0] sm:$0xff]
    %v1005 = vld [vmem:[#allocation2 + $0x1dc8] sm:$0xff]
    %v1006 = vld [vmem:[#allocation2 + $0x1dd0] sm:$0xff]
    %v1007 = vld [vmem:[#allocation2 + $0x1dd8] sm:$0xff]
    %v1008 = vld [vmem:[#allocation2 + $0x1de0] sm:$0xff]
    %v1009 = vld [vmem:[#allocation2 + $0x1de8] sm:$0xff]
    %v1010 = vld [vmem:[#allocation2 + $0x1df0] sm:$0xff]
    %v1011 = vld [vmem:[#allocation2 + $0x1df8] sm:$0xff]
    %v1024 = vunpack.c.l.b16 %v40
    %v1025 = vunpack.c.h.b16 %v40
    %v1026 = vunpack.c.l.b16 %v41
    %v1027 = vunpack.c.h.b16 %v41
    %v1028 = vunpack.c.l.b16 %v42
    %v1029 = vunpack.c.h.b16 %v42
    %v1030 = vunpack.c.l.b16 %v43
    %v1031 = vunpack.c.h.b16 %v43
    %v1032 = vunpack.c.l.b16 %v44
    %v1033 = vunpack.c.h.b16 %v44
    %v1034 = vunpack.c.l.b16 %v45
    %v1035 = vunpack.c.h.b16 %v45
    %v1036 = vunpack.c.l.b16 %v46
    %v1037 = vunpack.c.h.b16 %v46
    %v1038 = vunpack.c.l.b16 %v47
    %v1039 = vunpack.c.h.b16 %v47
    %v1040 = vunpack.c.l.b16 %v48
    %v1041 = vunpack.c.h.b16 %v48
    %v1042 = vunpack.c.l.b16 %v49
    %v1043 = vunpack.c.h.b16 %v49
    %v1044 = vunpack.c.l.b16 %v50
    %v1045 = vunpack.c.h.b16 %v50
    %v1046 = vunpack.c.l.b16 %v51
    %v1047 = vunpack.c.h.b16 %v51
    %v1048 = vpack.c.b16 %v1036, %v1024
    %v1049 = vpack.c.b16 %v1037, %v1025
    %v1050 = vpack.c.b16 %v1038, %v1026
    %v1051 = vpack.c.b16 %v1039, %v1027
    %v1052 = vpack.c.b16 %v1040, %v1028
    %v1053 = vpack.c.b16 %v1041, %v1029
    %v1054 = vpack.c.b16 %v1042, %v1030
    %v1055 = vpack.c.b16 %v1043, %v1031
    %v1056 = vpack.c.b16 %v1044, %v1032
    %v1057 = vpack.c.b16 %v1045, %v1033
    %v1058 = vpack.c.b16 %v1046, %v1034
    %v1059 = vpack.c.b16 %v1047, %v1035
    %v2032 = vunpack.c.l.b16 %v52
    %v2033 = vunpack.c.h.b16 %v52
    %v2034 = vunpack.c.l.b16 %v53
    %v2035 = vunpack.c.h.b16 %v53
    %v2036 = vunpack.c.l.b16 %v54
    %v2037 = vunpack.c.h.b16 %v54
    %v2038 = vunpack.c.l.b16 %v55
    %v2039 = vunpack.c.h.b16 %v55
    %v2040 = vunpack.c.l.b16 %v56
    %v2041 = vunpack.c.h.b16 %v56
    %v2042 = vunpack.c.l.b16 %v57
    %v2043 = vunpack.c.h.b16 %v57
    %v2044 = vunpack.c.l.b16 %v58
    %v2045 = vunpack.c.h.b16 %v58
    %v2046 = vunpack.c.l.b16 %v59
    %v2047 = vunpack.c.h.b16 %v59
    %v2048 = vunpack.c.l.b16 %v60
    %v2049 = vunpack.c.h.b16 %v60
    %v2050 = vunpack.c.l.b16 %v61
    %v2051 = vunpack.c.h.b16 %v61
    %v2052 = vunpack.c.l.b16 %v62
    %v2053 = vunpack.c.h.b16 %v62
    %v2054 = vunpack.c.l.b16 %v63
    %v2055 = vunpack.c.h.b16 %v63
    %v2056 = vunpack.c.l.b16 %v64
    %v2057 = vunpack.c.h.b16 %v64
    %v2058 = vunpack.c.l.b16 %v65
    %v2059 = vunpack.c.h.b16 %v65
    %v2060 = vunpack.c.l.b16 %v66
    %v2061 = vunpack.c.h.b16 %v66
    %v2062 = vunpack.c.l.b16 %v67
    %v2063 = vunpack.c.h.b16 %v67
    %v2064 = vunpack.c.l.b16 %v68
    %v2065 = vunpack.c.h.b16 %v68
    %v2066 = vunpack.c.l.b16 %v69
    %v2067 = vunpack.c.h.b16 %v69
    %v2068 = vunpack.c.l.b16 %v70
    %v2069 = vunpack.c.h.b16 %v70
    %v2070 = vunpack.c.l.b16 %v71
    %v2071 = vunpack.c.h.b16 %v71
    %v2072 = vunpack.c.l.b16 %v72
    %v2073 = vunpack.c.h.b16 %v72
    %v2074 = vunpack.c.l.b16 %v73
    %v2075 = vunpack.c.h.b16 %v73
    %v2076 = vunpack.c.l.b16 %v74
    %v2077 = vunpack.c.h.b16 %v74
    %v2078 = vunpack.c.l.b16 %v75
    %v2079 = vunpack.c.h.b16 %v75
    %v2080 = vunpack.c.l.b16 %v76
    %v2081 = vunpack.c.h.b16 %v76
    %v2082 = vunpack.c.l.b16 %v77
    %v2083 = vunpack.c.h.b16 %v77
    %v2084 = vunpack.c.l.b16 %v78
    %v2085 = vunpack.c.h.b16 %v78
    %v2086 = vunpack.c.l.b16 %v79
    %v2087 = vunpack.c.h.b16 %v79
    %v2088 = vunpack.c.l.b16 %v80
    %v2089 = vunpack.c.h.b16 %v80
    %v2090 = vunpack.c.l.b16 %v81
    %v2091 = vunpack.c.h.b16 %v81
    %v2092 = vunpack.c.l.b16 %v82
    %v2093 = vunpack.c.h.b16 %v82
    %v2094 = vunpack.c.l.b16 %v83
    %v2095 = vunpack.c.h.b16 %v83
    %v2096 = vunpack.c.l.b16 %v84
    %v2097 = vunpack.c.h.b16 %v84
    %v2098 = vunpack.c.l.b16 %v85
    %v2099 = vunpack.c.h.b16 %v85
    %v2100 = vunpack.c.l.b16 %v86
    %v2101 = vunpack.c.h.b16 %v86
    %v2102 = vunpack.c.l.b16 %v87
    %v2103 = vunpack.c.h.b16 %v87
    %v2104 = vunpack.c.l.b16 %v88
    %v2105 = vunpack.c.h.b16 %v88
    %v2106 = vunpack.c.l.b16 %v89
    %v2107 = vunpack.c.h.b16 %v89
    %v2108 = vunpack.c.l.b16 %v90
    %v2109 = vunpack.c.h.b16 %v90
    %v2110 = vunpack.c.l.b16 %v91
    %v2111 = vunpack.c.h.b16 %v91
    %v2112 = vunpack.c.l.b16 %v92
    %v2113 = vunpack.c.h.b16 %v92
    %v2114 = vunpack.c.l.b16 %v93
    %v2115 = vunpack.c.h.b16 %v93
    %v2116 = vunpack.c.l.b16 %v94
    %v2117 = vunpack.c.h.b16 %v94
    %v2118 = vunpack.c.l.b16 %v95
    %v2119 = vunpack.c.h.b16 %v95
    %v2120 = vunpack.c.l.b16 %v96
    %v2121 = vunpack.c.h.b16 %v96
    %v2122 = vunpack.c.l.b16 %v97
    %v2123 = vunpack.c.h.b16 %v97
    %v2124 = vunpack.c.l.b16 %v98
    %v2125 = vunpack.c.h.b16 %v98
    %v2126 = vunpack.c.l.b16 %v99
    %v2127 = vunpack.c.h.b16 %v99
    %v2128 = vunpack.c.l.b16 %v100
    %v2129 = vunpack.c.h.b16 %v100
    %v2130 = vunpack.c.l.b16 %v101
    %v2131 = vunpack.c.h.b16 %v101
    %v2132 = vunpack.c.l.b16 %v102
    %v2133 = vunpack.c.h.b16 %v102
    %v2134 = vunpack.c.l.b16 %v103
    %v2135 = vunpack.c.h.b16 %v103
    %v2136 = vunpack.c.l.b16 %v104
    %v2137 = vunpack.c.h.b16 %v104
    %v2138 = vunpack.c.l.b16 %v105
    %v2139 = vunpack.c.h.b16 %v105
    %v2140 = vunpack.c.l.b16 %v106
    %v2141 = vunpack.c.h.b16 %v106
    %v2142 = vunpack.c.l.b16 %v107
    %v2143 = vunpack.c.h.b16 %v107
    %v2144 = vunpack.c.l.b16 %v108
    %v2145 = vunpack.c.h.b16 %v108
    %v2146 = vunpack.c.l.b16 %v109
    %v2147 = vunpack.c.h.b16 %v109
    %v2148 = vunpack.c.l.b16 %v110
    %v2149 = vunpack.c.h.b16 %v110
    %v2150 = vunpack.c.l.b16 %v111
    %v2151 = vunpack.c.h.b16 %v111
    %v2152 = vunpack.c.l.b16 %v112
    %v2153 = vunpack.c.h.b16 %v112
    %v2154 = vunpack.c.l.b16 %v113
    %v2155 = vunpack.c.h.b16 %v113
    %v2156 = vunpack.c.l.b16 %v114
    %v2157 = vunpack.c.h.b16 %v114
    %v2158 = vunpack.c.l.b16 %v115
    %v2159 = vunpack.c.h.b16 %v115
    %v2160 = vunpack.c.l.b16 %v116
    %v2161 = vunpack.c.h.b16 %v116
    %v2162 = vunpack.c.l.b16 %v117
    %v2163 = vunpack.c.h.b16 %v117
    %v2164 = vunpack.c.l.b16 %v118
    %v2165 = vunpack.c.h.b16 %v118
    %v2166 = vunpack.c.l.b16 %v119
    %v2167 = vunpack.c.h.b16 %v119
    %v2168 = vunpack.c.l.b16 %v120
    %v2169 = vunpack.c.h.b16 %v120
    %v2170 = vunpack.c.l.b16 %v121
    %v2171 = vunpack.c.h.b16 %v121
    %v2172 = vunpack.c.l.b16 %v122
    %v2173 = vunpack.c.h.b16 %v122
    %v2174 = vunpack.c.l.b16 %v123
    %v2175 = vunpack.c.h.b16 %v123
    %v2176 = vunpack.c.l.b16 %v124
    %v2177 = vunpack.c.h.b16 %v124
    %v2178 = vunpack.c.l.b16 %v125
    %v2179 = vunpack.c.h.b16 %v125
    %v2180 = vunpack.c.l.b16 %v126
    %v2181 = vunpack.c.h.b16 %v126
    %v2182 = vunpack.c.l.b16 %v127
    %v2183 = vunpack.c.h.b16 %v127
    %v2184 = vunpack.c.l.b16 %v128
    %v2185 = vunpack.c.h.b16 %v128
    %v2186 = vunpack.c.l.b16 %v129
    %v2187 = vunpack.c.h.b16 %v129
    %v2188 = vunpack.c.l.b16 %v130
    %v2189 = vunpack.c.h.b16 %v130
    %v2190 = vunpack.c.l.b16 %v131
    %v2191 = vunpack.c.h.b16 %v131
    %v2192 = vunpack.c.l.b16 %v132
    %v2193 = vunpack.c.h.b16 %v132
    %v2194 = vunpack.c.l.b16 %v133
    %v2195 = vunpack.c.h.b16 %v133
    %v2196 = vunpack.c.l.b16 %v134
    %v2197 = vunpack.c.h.b16 %v134
    %v2198 = vunpack.c.l.b16 %v135
    %v2199 = vunpack.c.h.b16 %v135
    %v2200 = vunpack.c.l.b16 %v136
    %v2201 = vunpack.c.h.b16 %v136
    %v2202 = vunpack.c.l.b16 %v137
    %v2203 = vunpack.c.h.b16 %v137
    %v2204 = vunpack.c.l.b16 %v138
    %v2205 = vunpack.c.h.b16 %v138
    %v2206 = vunpack.c.l.b16 %v139
    %v2207 = vunpack.c.h.b16 %v139
    %v2208 = vunpack.c.l.b16 %v140
    %v2209 = vunpack.c.h.b16 %v140
    %v2210 = vunpack.c.l.b16 %v141
    %v2211 = vunpack.c.h.b16 %v141
    %v2212 = vunpack.c.l.b16 %v142
    %v2213 = vunpack.c.h.b16 %v142
    %v2214 = vunpack.c.l.b16 %v143
    %v2215 = vunpack.c.h.b16 %v143
    %v2216 = vunpack.c.l.b16 %v144
    %v2217 = vunpack.c.h.b16 %v144
    %v2218 = vunpack.c.l.b16 %v145
    %v2219 = vunpack.c.h.b16 %v145
    %v2220 = vunpack.c.l.b16 %v146
    %v2221 = vunpack.c.h.b16 %v146
    %v2222 = vunpack.c.l.b16 %v147
    %v2223 = vunpack.c.h.b16 %v147
    %v2224 = vunpack.c.l.b16 %v148
    %v2225 = vunpack.c.h.b16 %v148
    %v2226 = vunpack.c.l.b16 %v149
    %v2227 = vunpack.c.h.b16 %v149
    %v2228 = vunpack.c.l.b16 %v150
    %v2229 = vunpack.c.h.b16 %v150
    %v2230 = vunpack.c.l.b16 %v151
    %v2231 = vunpack.c.h.b16 %v151
    %v2232 = vunpack.c.l.b16 %v152
    %v2233 = vunpack.c.h.b16 %v152
    %v2234 = vunpack.c.l.b16 %v153
    %v2235 = vunpack.c.h.b16 %v153
    %v2236 = vunpack.c.l.b16 %v154
    %v2237 = vunpack.c.h.b16 %v154
    %v2238 = vunpack.c.l.b16 %v155
    %v2239 = vunpack.c.h.b16 %v155
    %v2240 = vunpack.c.l.b16 %v156
    %v2241 = vunpack.c.h.b16 %v156
    %v2242 = vunpack.c.l.b16 %v157
    %v2243 = vunpack.c.h.b16 %v157
    %v2244 = vunpack.c.l.b16 %v158
    %v2245 = vunpack.c.h.b16 %v158
    %v2246 = vunpack.c.l.b16 %v159
    %v2247 = vunpack.c.h.b16 %v159
    %v2248 = vunpack.c.l.b16 %v160
    %v2249 = vunpack.c.h.b16 %v160
    %v2250 = vunpack.c.l.b16 %v161
    %v2251 = vunpack.c.h.b16 %v161
    %v2252 = vunpack.c.l.b16 %v162
    %v2253 = vunpack.c.h.b16 %v162
    %v2254 = vunpack.c.l.b16 %v163
    %v2255 = vunpack.c.h.b16 %v163
    %v2256 = vunpack.c.l.b16 %v164
    %v2257 = vunpack.c.h.b16 %v164
    %v2258 = vunpack.c.l.b16 %v165
    %v2259 = vunpack.c.h.b16 %v165
    %v2260 = vunpack.c.l.b16 %v166
    %v2261 = vunpack.c.h.b16 %v166
    %v2262 = vunpack.c.l.b16 %v167
    %v2263 = vunpack.c.h.b16 %v167
    %v2264 = vunpack.c.l.b16 %v168
    %v2265 = vunpack.c.h.b16 %v168
    %v2266 = vunpack.c.l.b16 %v169
    %v2267 = vunpack.c.h.b16 %v169
    %v2268 = vunpack.c.l.b16 %v170
    %v2269 = vunpack.c.h.b16 %v170
    %v2270 = vunpack.c.l.b16 %v171
    %v2271 = vunpack.c.h.b16 %v171
    %v2272 = vunpack.c.l.b16 %v172
    %v2273 = vunpack.c.h.b16 %v172
    %v2274 = vunpack.c.l.b16 %v173
    %v2275 = vunpack.c.h.b16 %v173
    %v2276 = vunpack.c.l.b16 %v174
    %v2277 = vunpack.c.h.b16 %v174
    %v2278 = vunpack.c.l.b16 %v175
    %v2279 = vunpack.c.h.b16 %v175
    %v2280 = vunpack.c.l.b16 %v176
    %v2281 = vunpack.c.h.b16 %v176
    %v2282 = vunpack.c.l.b16 %v177
    %v2283 = vunpack.c.h.b16 %v177
    %v2284 = vunpack.c.l.b16 %v178
    %v2285 = vunpack.c.h.b16 %v178
    %v2286 = vunpack.c.l.b16 %v179
    %v2287 = vunpack.c.h.b16 %v179
    %v2288 = vunpack.c.l.b16 %v180
    %v2289 = vunpack.c.h.b16 %v180
    %v2290 = vunpack.c.l.b16 %v181
    %v2291 = vunpack.c.h.b16 %v181
    %v2292 = vunpack.c.l.b16 %v182
    %v2293 = vunpack.c.h.b16 %v182
    %v2294 = vunpack.c.l.b16 %v183
    %v2295 = vunpack.c.h.b16 %v183
    %v2296 = vunpack.c.l.b16 %v184
    %v2297 = vunpack.c.h.b16 %v184
    %v2298 = vunpack.c.l.b16 %v185
    %v2299 = vunpack.c.h.b16 %v185
    %v2300 = vunpack.c.l.b16 %v186
    %v2301 = vunpack.c.h.b16 %v186
    %v2302 = vunpack.c.l.b16 %v187
    %v2303 = vunpack.c.h.b16 %v187
    %v2304 = vunpack.c.l.b16 %v188
    %v2305 = vunpack.c.h.b16 %v188
    %v2306 = vunpack.c.l.b16 %v189
    %v2307 = vunpack.c.h.b16 %v189
    %v2308 = vunpack.c.l.b16 %v190
    %v2309 = vunpack.c.h.b16 %v190
    %v2310 = vunpack.c.l.b16 %v191
    %v2311 = vunpack.c.h.b16 %v191
    %v2312 = vunpack.c.l.b16 %v192
    %v2313 = vunpack.c.h.b16 %v192
    %v2314 = vunpack.c.l.b16 %v193
    %v2315 = vunpack.c.h.b16 %v193
    %v2316 = vunpack.c.l.b16 %v194
    %v2317 = vunpack.c.h.b16 %v194
    %v2318 = vunpack.c.l.b16 %v195
    %v2319 = vunpack.c.h.b16 %v195
    %v2320 = vunpack.c.l.b16 %v196
    %v2321 = vunpack.c.h.b16 %v196
    %v2322 = vunpack.c.l.b16 %v197
    %v2323 = vunpack.c.h.b16 %v197
    %v2324 = vunpack.c.l.b16 %v198
    %v2325 = vunpack.c.h.b16 %v198
    %v2326 = vunpack.c.l.b16 %v199
    %v2327 = vunpack.c.h.b16 %v199
    %v2328 = vunpack.c.l.b16 %v200
    %v2329 = vunpack.c.h.b16 %v200
    %v2330 = vunpack.c.l.b16 %v201
    %v2331 = vunpack.c.h.b16 %v201
    %v2332 = vunpack.c.l.b16 %v202
    %v2333 = vunpack.c.h.b16 %v202
    %v2334 = vunpack.c.l.b16 %v203
    %v2335 = vunpack.c.h.b16 %v203
    %v2336 = vunpack.c.l.b16 %v204
    %v2337 = vunpack.c.h.b16 %v204
    %v2338 = vunpack.c.l.b16 %v205
    %v2339 = vunpack.c.h.b16 %v205
    %v2340 = vunpack.c.l.b16 %v206
    %v2341 = vunpack.c.h.b16 %v206
    %v2342 = vunpack.c.l.b16 %v207
    %v2343 = vunpack.c.h.b16 %v207
    %v2344 = vunpack.c.l.b16 %v208
    %v2345 = vunpack.c.h.b16 %v208
    %v2346 = vunpack.c.l.b16 %v209
    %v2347 = vunpack.c.h.b16 %v209
    %v2348 = vunpack.c.l.b16 %v210
    %v2349 = vunpack.c.h.b16 %v210
    %v2350 = vunpack.c.l.b16 %v211
    %v2351 = vunpack.c.h.b16 %v211
    %v2352 = vunpack.c.l.b16 %v212
    %v2353 = vunpack.c.h.b16 %v212
    %v2354 = vunpack.c.l.b16 %v213
    %v2355 = vunpack.c.h.b16 %v213
    %v2356 = vunpack.c.l.b16 %v214
    %v2357 = vunpack.c.h.b16 %v214
    %v2358 = vunpack.c.l.b16 %v215
    %v2359 = vunpack.c.h.b16 %v215
    %v2360 = vunpack.c.l.b16 %v216
    %v2361 = vunpack.c.h.b16 %v216
    %v2362 = vunpack.c.l.b16 %v217
    %v2363 = vunpack.c.h.b16 %v217
    %v2364 = vunpack.c.l.b16 %v218
    %v2365 = vunpack.c.h.b16 %v218
    %v2366 = vunpack.c.l.b16 %v219
    %v2367 = vunpack.c.h.b16 %v219
    %v2368 = vunpack.c.l.b16 %v220
    %v2369 = vunpack.c.h.b16 %v220
    %v2370 = vunpack.c.l.b16 %v221
    %v2371 = vunpack.c.h.b16 %v221
    %v2372 = vunpack.c.l.b16 %v222
    %v2373 = vunpack.c.h.b16 %v222
    %v2374 = vunpack.c.l.b16 %v223
    %v2375 = vunpack.c.h.b16 %v223
    %v2376 = vunpack.c.l.b16 %v224
    %v2377 = vunpack.c.h.b16 %v224
    %v2378 = vunpack.c.l.b16 %v225
    %v2379 = vunpack.c.h.b16 %v225
    %v2380 = vunpack.c.l.b16 %v226
    %v2381 = vunpack.c.h.b16 %v226
    %v2382 = vunpack.c.l.b16 %v227
    %v2383 = vunpack.c.h.b16 %v227
    %v2384 = vunpack.c.l.b16 %v228
    %v2385 = vunpack.c.h.b16 %v228
    %v2386 = vunpack.c.l.b16 %v229
    %v2387 = vunpack.c.h.b16 %v229
    %v2388 = vunpack.c.l.b16 %v230
    %v2389 = vunpack.c.h.b16 %v230
    %v2390 = vunpack.c.l.b16 %v231
    %v2391 = vunpack.c.h.b16 %v231
    %v2392 = vunpack.c.l.b16 %v232
    %v2393 = vunpack.c.h.b16 %v232
    %v2394 = vunpack.c.l.b16 %v233
    %v2395 = vunpack.c.h.b16 %v233
    %v2396 = vunpack.c.l.b16 %v234
    %v2397 = vunpack.c.h.b16 %v234
    %v2398 = vunpack.c.l.b16 %v235
    %v2399 = vunpack.c.h.b16 %v235
    %v2400 = vunpack.c.l.b16 %v236
    %v2401 = vunpack.c.h.b16 %v236
    %v2402 = vunpack.c.l.b16 %v237
    %v2403 = vunpack.c.h.b16 %v237
    %v2404 = vunpack.c.l.b16 %v238
    %v2405 = vunpack.c.h.b16 %v238
    %v2406 = vunpack.c.l.b16 %v239
    %v2407 = vunpack.c.h.b16 %v239
    %v2408 = vunpack.c.l.b16 %v240
    %v2409 = vunpack.c.h.b16 %v240
    %v2410 = vunpack.c.l.b16 %v241
    %v2411 = vunpack.c.h.b16 %v241
    %v2412 = vunpack.c.l.b16 %v242
    %v2413 = vunpack.c.h.b16 %v242
    %v2414 = vunpack.c.l.b16 %v243
    %v2415 = vunpack.c.h.b16 %v243
    %v2416 = vunpack.c.l.b16 %v244
    %v2417 = vunpack.c.h.b16 %v244
    %v2418 = vunpack.c.l.b16 %v245
    %v2419 = vunpack.c.h.b16 %v245
    %v2420 = vunpack.c.l.b16 %v246
    %v2421 = vunpack.c.h.b16 %v246
    %v2422 = vunpack.c.l.b16 %v247
    %v2423 = vunpack.c.h.b16 %v247
    %v2424 = vunpack.c.l.b16 %v248
    %v2425 = vunpack.c.h.b16 %v248
    %v2426 = vunpack.c.l.b16 %v249
    %v2427 = vunpack.c.h.b16 %v249
    %v2428 = vunpack.c.l.b16 %v250
    %v2429 = vunpack.c.h.b16 %v250
    %v2430 = vunpack.c.l.b16 %v251
    %v2431 = vunpack.c.h.b16 %v251
    %v2432 = vunpack.c.l.b16 %v252
    %v2433 = vunpack.c.h.b16 %v252
    %v2434 = vunpack.c.l.b16 %v253
    %v2435 = vunpack.c.h.b16 %v253
    %v2436 = vunpack.c.l.b16 %v254
    %v2437 = vunpack.c.h.b16 %v254
    %v2438 = vunpack.c.l.b16 %v255
    %v2439 = vunpack.c.h.b16 %v255
    %v2440 = vunpack.c.l.b16 %v256
    %v2441 = vunpack.c.h.b16 %v256
    %v2442 = vunpack.c.l.b16 %v257
    %v2443 = vunpack.c.h.b16 %v257
    %v2444 = vunpack.c.l.b16 %v258
    %v2445 = vunpack.c.h.b16 %v258
    %v2446 = vunpack.c.l.b16 %v259
    %v2447 = vunpack.c.h.b16 %v259
    %v2448 = vunpack.c.l.b16 %v260
    %v2449 = vunpack.c.h.b16 %v260
    %v2450 = vunpack.c.l.b16 %v261
    %v2451 = vunpack.c.h.b16 %v261
    %v2452 = vunpack.c.l.b16 %v262
    %v2453 = vunpack.c.h.b16 %v262
    %v2454 = vunpack.c.l.b16 %v263
    %v2455 = vunpack.c.h.b16 %v263
    %v2456 = vunpack.c.l.b16 %v264
    %v2457 = vunpack.c.h.b16 %v264
    %v2458 = vunpack.c.l.b16 %v265
    %v2459 = vunpack.c.h.b16 %v265
    %v2460 = vunpack.c.l.b16 %v266
    %v2461 = vunpack.c.h.b16 %v266
    %v2462 = vunpack.c.l.b16 %v267
    %v2463 = vunpack.c.h.b16 %v267
    %v2464 = vunpack.c.l.b16 %v268
    %v2465 = vunpack.c.h.b16 %v268
    %v2466 = vunpack.c.l.b16 %v269
    %v2467 = vunpack.c.h.b16 %v269
    %v2468 = vunpack.c.l.b16 %v270
    %v2469 = vunpack.c.h.b16 %v270
    %v2470 = vunpack.c.l.b16 %v271
    %v2471 = vunpack.c.h.b16 %v271
    %v2472 = vunpack.c.l.b16 %v272
    %v2473 = vunpack.c.h.b16 %v272
    %v2474 = vunpack.c.l.b16 %v273
    %v2475 = vunpack.c.h.b16 %v273
    %v2476 = vunpack.c.l.b16 %v274
    %v2477 = vunpack.c.h.b16 %v274
    %v2478 = vunpack.c.l.b16 %v275
    %v2479 = vunpack.c.h.b16 %v275
    %v2480 = vunpack.c.l.b16 %v276
    %v2481 = vunpack.c.h.b16 %v276
    %v2482 = vunpack.c.l.b16 %v277
    %v2483 = vunpack.c.h.b16 %v277
    %v2484 = vunpack.c.l.b16 %v278
    %v2485 = vunpack.c.h.b16 %v278
    %v2486 = vunpack.c.l.b16 %v279
    %v2487 = vunpack.c.h.b16 %v279
    %v2488 = vunpack.c.l.b16 %v280
    %v2489 = vunpack.c.h.b16 %v280
    %v2490 = vunpack.c.l.b16 %v281
    %v2491 = vunpack.c.h.b16 %v281
    %v2492 = vunpack.c.l.b16 %v282
    %v2493 = vunpack.c.h.b16 %v282
    %v2494 = vunpack.c.l.b16 %v283
    %v2495 = vunpack.c.h.b16 %v283
    %v2496 = vunpack.c.l.b16 %v284
    %v2497 = vunpack.c.h.b16 %v284
    %v2498 = vunpack.c.l.b16 %v285
    %v2499 = vunpack.c.h.b16 %v285
    %v2500 = vunpack.c.l.b16 %v286
    %v2501 = vunpack.c.h.b16 %v286
    %v2502 = vunpack.c.l.b16 %v287
    %v2503 = vunpack.c.h.b16 %v287
    %v2504 = vunpack.c.l.b16 %v288
    %v2505 = vunpack.c.h.b16 %v288
    %v2506 = vunpack.c.l.b16 %v289
    %v2507 = vunpack.c.h.b16 %v289
    %v2508 = vunpack.c.l.b16 %v290
    %v2509 = vunpack.c.h.b16 %v290
    %v2510 = vunpack.c.l.b16 %v291
    %v2511 = vunpack.c.h.b16 %v291
    %v2512 = vunpack.c.l.b16 %v292
    %v2513 = vunpack.c.h.b16 %v292
    %v2514 = vunpack.c.l.b16 %v293
    %v2515 = vunpack.c.h.b16 %v293
    %v2516 = vunpack.c.l.b16 %v294
    %v2517 = vunpack.c.h.b16 %v294
    %v2518 = vunpack.c.l.b16 %v295
    %v2519 = vunpack.c.h.b16 %v295
    %v2520 = vunpack.c.l.b16 %v296
    %v2521 = vunpack.c.h.b16 %v296
    %v2522 = vunpack.c.l.b16 %v297
    %v2523 = vunpack.c.h.b16 %v297
    %v2524 = vunpack.c.l.b16 %v298
    %v2525 = vunpack.c.h.b16 %v298
    %v2526 = vunpack.c.l.b16 %v299
    %v2527 = vunpack.c.h.b16 %v299
    %v2528 = vunpack.c.l.b16 %v300
    %v2529 = vunpack.c.h.b16 %v300
    %v2530 = vunpack.c.l.b16 %v301
    %v2531 = vunpack.c.h.b16 %v301
    %v2532 = vunpack.c.l.b16 %v302
    %v2533 = vunpack.c.h.b16 %v302
    %v2534 = vunpack.c.l.b16 %v303
    %v2535 = vunpack.c.h.b16 %v303
    %v2536 = vunpack.c.l.b16 %v304
    %v2537 = vunpack.c.h.b16 %v304
    %v2538 = vunpack.c.l.b16 %v305
    %v2539 = vunpack.c.h.b16 %v305
    %v2540 = vunpack.c.l.b16 %v306
    %v2541 = vunpack.c.h.b16 %v306
    %v2542 = vunpack.c.l.b16 %v307
    %v2543 = vunpack.c.h.b16 %v307
    %v2544 = vunpack.c.l.b16 %v308
    %v2545 = vunpack.c.h.b16 %v308
    %v2546 = vunpack.c.l.b16 %v309
    %v2547 = vunpack.c.h.b16 %v309
    %v2548 = vunpack.c.l.b16 %v310
    %v2549 = vunpack.c.h.b16 %v310
    %v2550 = vunpack.c.l.b16 %v311
    %v2551 = vunpack.c.h.b16 %v311
    %v2552 = vunpack.c.l.b16 %v312
    %v2553 = vunpack.c.h.b16 %v312
    %v2554 = vunpack.c.l.b16 %v313
    %v2555 = vunpack.c.h.b16 %v313
    %v2556 = vunpack.c.l.b16 %v314
    %v2557 = vunpack.c.h.b16 %v314
    %v2558 = vunpack.c.l.b16 %v315
    %v2559 = vunpack.c.h.b16 %v315
    %v2560 = vunpack.c.l.b16 %v316
    %v2561 = vunpack.c.h.b16 %v316
    %v2562 = vunpack.c.l.b16 %v317
    %v2563 = vunpack.c.h.b16 %v317
    %v2564 = vunpack.c.l.b16 %v318
    %v2565 = vunpack.c.h.b16 %v318
    %v2566 = vunpack.c.l.b16 %v319
    %v2567 = vunpack.c.h.b16 %v319
    %v2568 = vunpack.c.l.b16 %v320
    %v2569 = vunpack.c.h.b16 %v320
    %v2570 = vunpack.c.l.b16 %v321
    %v2571 = vunpack.c.h.b16 %v321
    %v2572 = vunpack.c.l.b16 %v322
    %v2573 = vunpack.c.h.b16 %v322
    %v2574 = vunpack.c.l.b16 %v323
    %v2575 = vunpack.c.h.b16 %v323
    %v2576 = vunpack.c.l.b16 %v324
    %v2577 = vunpack.c.h.b16 %v324
    %v2578 = vunpack.c.l.b16 %v325
    %v2579 = vunpack.c.h.b16 %v325
    %v2580 = vunpack.c.l.b16 %v326
    %v2581 = vunpack.c.h.b16 %v326
    %v2582 = vunpack.c.l.b16 %v327
    %v2583 = vunpack.c.h.b16 %v327
    %v2584 = vunpack.c.l.b16 %v328
    %v2585 = vunpack.c.h.b16 %v328
    %v2586 = vunpack.c.l.b16 %v329
    %v2587 = vunpack.c.h.b16 %v329
    %v2588 = vunpack.c.l.b16 %v330
    %v2589 = vunpack.c.h.b16 %v330
    %v2590 = vunpack.c.l.b16 %v331
    %v2591 = vunpack.c.h.b16 %v331
    %v2592 = vunpack.c.l.b16 %v332
    %v2593 = vunpack.c.h.b16 %v332
    %v2594 = vunpack.c.l.b16 %v333
    %v2595 = vunpack.c.h.b16 %v333
    %v2596 = vunpack.c.l.b16 %v334
    %v2597 = vunpack.c.h.b16 %v334
    %v2598 = vunpack.c.l.b16 %v335
    %v2599 = vunpack.c.h.b16 %v335
    %v2600 = vunpack.c.l.b16 %v336
    %v2601 = vunpack.c.h.b16 %v336
    %v2602 = vunpack.c.l.b16 %v337
    %v2603 = vunpack.c.h.b16 %v337
    %v2604 = vunpack.c.l.b16 %v338
    %v2605 = vunpack.c.h.b16 %v338
    %v2606 = vunpack.c.l.b16 %v339
    %v2607 = vunpack.c.h.b16 %v339
    %v2608 = vunpack.c.l.b16 %v340
    %v2609 = vunpack.c.h.b16 %v340
    %v2610 = vunpack.c.l.b16 %v341
    %v2611 = vunpack.c.h.b16 %v341
    %v2612 = vunpack.c.l.b16 %v342
    %v2613 = vunpack.c.h.b16 %v342
    %v2614 = vunpack.c.l.b16 %v343
    %v2615 = vunpack.c.h.b16 %v343
    %v2616 = vunpack.c.l.b16 %v344
    %v2617 = vunpack.c.h.b16 %v344
    %v2618 = vunpack.c.l.b16 %v345
    %v2619 = vunpack.c.h.b16 %v345
    %v2620 = vunpack.c.l.b16 %v346
    %v2621 = vunpack.c.h.b16 %v346
    %v2622 = vunpack.c.l.b16 %v347
    %v2623 = vunpack.c.h.b16 %v347
    %v2624 = vunpack.c.l.b16 %v348
    %v2625 = vunpack.c.h.b16 %v348
    %v2626 = vunpack.c.l.b16 %v349
    %v2627 = vunpack.c.h.b16 %v349
    %v2628 = vunpack.c.l.b16 %v350
    %v2629 = vunpack.c.h.b16 %v350
    %v2630 = vunpack.c.l.b16 %v351
    %v2631 = vunpack.c.h.b16 %v351
    %v2632 = vunpack.c.l.b16 %v352
    %v2633 = vunpack.c.h.b16 %v352
    %v2634 = vunpack.c.l.b16 %v353
    %v2635 = vunpack.c.h.b16 %v353
    %v2636 = vunpack.c.l.b16 %v354
    %v2637 = vunpack.c.h.b16 %v354
    %v2638 = vunpack.c.l.b16 %v355
    %v2639 = vunpack.c.h.b16 %v355
    %v2640 = vunpack.c.l.b16 %v356
    %v2641 = vunpack.c.h.b16 %v356
    %v2642 = vunpack.c.l.b16 %v357
    %v2643 = vunpack.c.h.b16 %v357
    %v2644 = vunpack.c.l.b16 %v358
    %v2645 = vunpack.c.h.b16 %v358
    %v2646 = vunpack.c.l.b16 %v359
    %v2647 = vunpack.c.h.b16 %v359
    %v2648 = vunpack.c.l.b16 %v360
    %v2649 = vunpack.c.h.b16 %v360
    %v2650 = vunpack.c.l.b16 %v361
    %v2651 = vunpack.c.h.b16 %v361
    %v2652 = vunpack.c.l.b16 %v362
    %v2653 = vunpack.c.h.b16 %v362
    %v2654 = vunpack.c.l.b16 %v363
    %v2655 = vunpack.c.h.b16 %v363
    %v2656 = vunpack.c.l.b16 %v364
    %v2657 = vunpack.c.h.b16 %v364
    %v2658 = vunpack.c.l.b16 %v365
    %v2659 = vunpack.c.h.b16 %v365
    %v2660 = vunpack.c.l.b16 %v366
    %v2661 = vunpack.c.h.b16 %v366
    %v2662 = vunpack.c.l.b16 %v367
    %v2663 = vunpack.c.h.b16 %v367
    %v2664 = vunpack.c.l.b16 %v368
    %v2665 = vunpack.c.h.b16 %v368
    %v2666 = vunpack.c.l.b16 %v369
    %v2667 = vunpack.c.h.b16 %v369
    %v2668 = vunpack.c.l.b16 %v370
    %v2669 = vunpack.c.h.b16 %v370
    %v2670 = vunpack.c.l.b16 %v371
    %v2671 = vunpack.c.h.b16 %v371
    %v2672 = vunpack.c.l.b16 %v372
    %v2673 = vunpack.c.h.b16 %v372
    %v2674 = vunpack.c.l.b16 %v373
    %v2675 = vunpack.c.h.b16 %v373
    %v2676 = vunpack.c.l.b16 %v374
    %v2677 = vunpack.c.h.b16 %v374
    %v2678 = vunpack.c.l.b16 %v375
    %v2679 = vunpack.c.h.b16 %v375
    %v2680 = vunpack.c.l.b16 %v376
    %v2681 = vunpack.c.h.b16 %v376
    %v2682 = vunpack.c.l.b16 %v377
    %v2683 = vunpack.c.h.b16 %v377
    %v2684 = vunpack.c.l.b16 %v378
    %v2685 = vunpack.c.h.b16 %v378
    %v2686 = vunpack.c.l.b16 %v379
    %v2687 = vunpack.c.h.b16 %v379
    %v2688 = vunpack.c.l.b16 %v380
    %v2689 = vunpack.c.h.b16 %v380
    %v2690 = vunpack.c.l.b16 %v381
    %v2691 = vunpack.c.h.b16 %v381
    %v2692 = vunpack.c.l.b16 %v382
    %v2693 = vunpack.c.h.b16 %v382
    %v2694 = vunpack.c.l.b16 %v383
    %v2695 = vunpack.c.h.b16 %v383
    %v2696 = vunpack.c.l.b16 %v384
    %v2697 = vunpack.c.h.b16 %v384
    %v2698 = vunpack.c.l.b16 %v385
    %v2699 = vunpack.c.h.b16 %v385
    %v2700 = vunpack.c.l.b16 %v386
    %v2701 = vunpack.c.h.b16 %v386
    %v2702 = vunpack.c.l.b16 %v387
    %v2703 = vunpack.c.h.b16 %v387
    %v2704 = vunpack.c.l.b16 %v388
    %v2705 = vunpack.c.h.b16 %v388
    %v2706 = vunpack.c.l.b16 %v389
    %v2707 = vunpack.c.h.b16 %v389
    %v2708 = vunpack.c.l.b16 %v390
    %v2709 = vunpack.c.h.b16 %v390
    %v2710 = vunpack.c.l.b16 %v391
    %v2711 = vunpack.c.h.b16 %v391
    %v2712 = vunpack.c.l.b16 %v392
    %v2713 = vunpack.c.h.b16 %v392
    %v2714 = vunpack.c.l.b16 %v393
    %v2715 = vunpack.c.h.b16 %v393
    %v2716 = vunpack.c.l.b16 %v394
    %v2717 = vunpack.c.h.b16 %v394
    %v2718 = vunpack.c.l.b16 %v395
    %v2719 = vunpack.c.h.b16 %v395
    %v2720 = vunpack.c.l.b16 %v396
    %v2721 = vunpack.c.h.b16 %v396
    %v2722 = vunpack.c.l.b16 %v397
    %v2723 = vunpack.c.h.b16 %v397
    %v2724 = vunpack.c.l.b16 %v398
    %v2725 = vunpack.c.h.b16 %v398
    %v2726 = vunpack.c.l.b16 %v399
    %v2727 = vunpack.c.h.b16 %v399
    %v2728 = vunpack.c.l.b16 %v400
    %v2729 = vunpack.c.h.b16 %v400
    %v2730 = vunpack.c.l.b16 %v401
    %v2731 = vunpack.c.h.b16 %v401
    %v2732 = vunpack.c.l.b16 %v402
    %v2733 = vunpack.c.h.b16 %v402
    %v2734 = vunpack.c.l.b16 %v403
    %v2735 = vunpack.c.h.b16 %v403
    %v2736 = vunpack.c.l.b16 %v404
    %v2737 = vunpack.c.h.b16 %v404
    %v2738 = vunpack.c.l.b16 %v405
    %v2739 = vunpack.c.h.b16 %v405
    %v2740 = vunpack.c.l.b16 %v406
    %v2741 = vunpack.c.h.b16 %v406
    %v2742 = vunpack.c.l.b16 %v407
    %v2743 = vunpack.c.h.b16 %v407
    %v2744 = vunpack.c.l.b16 %v408
    %v2745 = vunpack.c.h.b16 %v408
    %v2746 = vunpack.c.l.b16 %v409
    %v2747 = vunpack.c.h.b16 %v409
    %v2748 = vunpack.c.l.b16 %v410
    %v2749 = vunpack.c.h.b16 %v410
    %v2750 = vunpack.c.l.b16 %v411
    %v2751 = vunpack.c.h.b16 %v411
    %v2752 = vunpack.c.l.b16 %v412
    %v2753 = vunpack.c.h.b16 %v412
    %v2754 = vunpack.c.l.b16 %v413
    %v2755 = vunpack.c.h.b16 %v413
    %v2756 = vunpack.c.l.b16 %v414
    %v2757 = vunpack.c.h.b16 %v414
    %v2758 = vunpack.c.l.b16 %v415
    %v2759 = vunpack.c.h.b16 %v415
    %v2760 = vunpack.c.l.b16 %v416
    %v2761 = vunpack.c.h.b16 %v416
    %v2762 = vunpack.c.l.b16 %v417
    %v2763 = vunpack.c.h.b16 %v417
    %v2764 = vunpack.c.l.b16 %v418
    %v2765 = vunpack.c.h.b16 %v418
    %v2766 = vunpack.c.l.b16 %v419
    %v2767 = vunpack.c.h.b16 %v419
    %v2768 = vunpack.c.l.b16 %v420
    %v2769 = vunpack.c.h.b16 %v420
    %v2770 = vunpack.c.l.b16 %v421
    %v2771 = vunpack.c.h.b16 %v421
    %v2772 = vunpack.c.l.b16 %v422
    %v2773 = vunpack.c.h.b16 %v422
    %v2774 = vunpack.c.l.b16 %v423
    %v2775 = vunpack.c.h.b16 %v423
    %v2776 = vunpack.c.l.b16 %v424
    %v2777 = vunpack.c.h.b16 %v424
    %v2778 = vunpack.c.l.b16 %v425
    %v2779 = vunpack.c.h.b16 %v425
    %v2780 = vunpack.c.l.b16 %v426
    %v2781 = vunpack.c.h.b16 %v426
    %v2782 = vunpack.c.l.b16 %v427
    %v2783 = vunpack.c.h.b16 %v427
    %v2784 = vunpack.c.l.b16 %v428
    %v2785 = vunpack.c.h.b16 %v428
    %v2786 = vunpack.c.l.b16 %v429
    %v2787 = vunpack.c.h.b16 %v429
    %v2788 = vunpack.c.l.b16 %v430
    %v2789 = vunpack.c.h.b16 %v430
    %v2790 = vunpack.c.l.b16 %v431
    %v2791 = vunpack.c.h.b16 %v431
    %v2792 = vunpack.c.l.b16 %v432
    %v2793 = vunpack.c.h.b16 %v432
    %v2794 = vunpack.c.l.b16 %v433
    %v2795 = vunpack.c.h.b16 %v433
    %v2796 = vunpack.c.l.b16 %v434
    %v2797 = vunpack.c.h.b16 %v434
    %v2798 = vunpack.c.l.b16 %v435
    %v2799 = vunpack.c.h.b16 %v435
    %v2800 = vunpack.c.l.b16 %v436
    %v2801 = vunpack.c.h.b16 %v436
    %v2802 = vunpack.c.l.b16 %v437
    %v2803 = vunpack.c.h.b16 %v437
    %v2804 = vunpack.c.l.b16 %v438
    %v2805 = vunpack.c.h.b16 %v438
    %v2806 = vunpack.c.l.b16 %v439
    %v2807 = vunpack.c.h.b16 %v439
    %v2808 = vunpack.c.l.b16 %v440
    %v2809 = vunpack.c.h.b16 %v440
    %v2810 = vunpack.c.l.b16 %v441
    %v2811 = vunpack.c.h.b16 %v441
    %v2812 = vunpack.c.l.b16 %v442
    %v2813 = vunpack.c.h.b16 %v442
    %v2814 = vunpack.c.l.b16 %v443
    %v2815 = vunpack.c.h.b16 %v443
    %v2816 = vunpack.c.l.b16 %v444
    %v2817 = vunpack.c.h.b16 %v444
    %v2818 = vunpack.c.l.b16 %v445
    %v2819 = vunpack.c.h.b16 %v445
    %v2820 = vunpack.c.l.b16 %v446
    %v2821 = vunpack.c.h.b16 %v446
    %v2822 = vunpack.c.l.b16 %v447
    %v2823 = vunpack.c.h.b16 %v447
    %v2824 = vunpack.c.l.b16 %v448
    %v2825 = vunpack.c.h.b16 %v448
    %v2826 = vunpack.c.l.b16 %v449
    %v2827 = vunpack.c.h.b16 %v449
    %v2828 = vunpack.c.l.b16 %v450
    %v2829 = vunpack.c.h.b16 %v450
    %v2830 = vunpack.c.l.b16 %v451
    %v2831 = vunpack.c.h.b16 %v451
    %v2832 = vunpack.c.l.b16 %v452
    %v2833 = vunpack.c.h.b16 %v452
    %v2834 = vunpack.c.l.b16 %v453
    %v2835 = vunpack.c.h.b16 %v453
    %v2836 = vunpack.c.l.b16 %v454
    %v2837 = vunpack.c.h.b16 %v454
    %v2838 = vunpack.c.l.b16 %v455
    %v2839 = vunpack.c.h.b16 %v455
    %v2840 = vunpack.c.l.b16 %v456
    %v2841 = vunpack.c.h.b16 %v456
    %v2842 = vunpack.c.l.b16 %v457
    %v2843 = vunpack.c.h.b16 %v457
    %v2844 = vunpack.c.l.b16 %v458
    %v2845 = vunpack.c.h.b16 %v458
    %v2846 = vunpack.c.l.b16 %v459
    %v2847 = vunpack.c.h.b16 %v459
    %v2848 = vunpack.c.l.b16 %v460
    %v2849 = vunpack.c.h.b16 %v460
    %v2850 = vunpack.c.l.b16 %v461
    %v2851 = vunpack.c.h.b16 %v461
    %v2852 = vunpack.c.l.b16 %v462
    %v2853 = vunpack.c.h.b16 %v462
    %v2854 = vunpack.c.l.b16 %v463
    %v2855 = vunpack.c.h.b16 %v463
    %v2856 = vunpack.c.l.b16 %v464
    %v2857 = vunpack.c.h.b16 %v464
    %v2858 = vunpack.c.l.b16 %v465
    %v2859 = vunpack.c.h.b16 %v465
    %v2860 = vunpack.c.l.b16 %v466
    %v2861 = vunpack.c.h.b16 %v466
    %v2862 = vunpack.c.l.b16 %v467
    %v2863 = vunpack.c.h.b16 %v467
    %v2864 = vunpack.c.l.b16 %v468
    %v2865 = vunpack.c.h.b16 %v468
    %v2866 = vunpack.c.l.b16 %v469
    %v2867 = vunpack.c.h.b16 %v469
    %v2868 = vunpack.c.l.b16 %v470
    %v2869 = vunpack.c.h.b16 %v470
    %v2870 = vunpack.c.l.b16 %v471
    %v2871 = vunpack.c.h.b16 %v471
    %v2872 = vunpack.c.l.b16 %v472
    %v2873 = vunpack.c.h.b16 %v472
    %v2874 = vunpack.c.l.b16 %v473
    %v2875 = vunpack.c.h.b16 %v473
    %v2876 = vunpack.c.l.b16 %v474
    %v2877 = vunpack.c.h.b16 %v474
    %v2878 = vunpack.c.l.b16 %v475
    %v2879 = vunpack.c.h.b16 %v475
    %v2880 = vunpack.c.l.b16 %v476
    %v2881 = vunpack.c.h.b16 %v476
    %v2882 = vunpack.c.l.b16 %v477
    %v2883 = vunpack.c.h.b16 %v477
    %v2884 = vunpack.c.l.b16 %v478
    %v2885 = vunpack.c.h.b16 %v478
    %v2886 = vunpack.c.l.b16 %v479
    %v2887 = vunpack.c.h.b16 %v479
    %v2888 = vunpack.c.l.b16 %v480
    %v2889 = vunpack.c.h.b16 %v480
    %v2890 = vunpack.c.l.b16 %v481
    %v2891 = vunpack.c.h.b16 %v481
    %v2892 = vunpack.c.l.b16 %v482
    %v2893 = vunpack.c.h.b16 %v482
    %v2894 = vunpack.c.l.b16 %v483
    %v2895 = vunpack.c.h.b16 %v483
    %v2896 = vunpack.c.l.b16 %v484
    %v2897 = vunpack.c.h.b16 %v484
    %v2898 = vunpack.c.l.b16 %v485
    %v2899 = vunpack.c.h.b16 %v485
    %v2900 = vunpack.c.l.b16 %v486
    %v2901 = vunpack.c.h.b16 %v486
    %v2902 = vunpack.c.l.b16 %v487
    %v2903 = vunpack.c.h.b16 %v487
    %v2904 = vunpack.c.l.b16 %v488
    %v2905 = vunpack.c.h.b16 %v488
    %v2906 = vunpack.c.l.b16 %v489
    %v2907 = vunpack.c.h.b16 %v489
    %v2908 = vunpack.c.l.b16 %v490
    %v2909 = vunpack.c.h.b16 %v490
    %v2910 = vunpack.c.l.b16 %v491
    %v2911 = vunpack.c.h.b16 %v491
    %v2912 = vunpack.c.l.b16 %v492
    %v2913 = vunpack.c.h.b16 %v492
    %v2914 = vunpack.c.l.b16 %v493
    %v2915 = vunpack.c.h.b16 %v493
    %v2916 = vunpack.c.l.b16 %v494
    %v2917 = vunpack.c.h.b16 %v494
    %v2918 = vunpack.c.l.b16 %v495
    %v2919 = vunpack.c.h.b16 %v495
    %v2920 = vunpack.c.l.b16 %v496
    %v2921 = vunpack.c.h.b16 %v496
    %v2922 = vunpack.c.l.b16 %v497
    %v2923 = vunpack.c.h.b16 %v497
    %v2924 = vunpack.c.l.b16 %v498
    %v2925 = vunpack.c.h.b16 %v498
    %v2926 = vunpack.c.l.b16 %v499
    %v2927 = vunpack.c.h.b16 %v499
    %v2928 = vunpack.c.l.b16 %v500
    %v2929 = vunpack.c.h.b16 %v500
    %v2930 = vunpack.c.l.b16 %v501
    %v2931 = vunpack.c.h.b16 %v501
    %v2932 = vunpack.c.l.b16 %v502
    %v2933 = vunpack.c.h.b16 %v502
    %v2934 = vunpack.c.l.b16 %v503
    %v2935 = vunpack.c.h.b16 %v503
    %v2936 = vunpack.c.l.b16 %v504
    %v2937 = vunpack.c.h.b16 %v504
    %v2938 = vunpack.c.l.b16 %v505
    %v2939 = vunpack.c.h.b16 %v505
    %v2940 = vunpack.c.l.b16 %v506
    %v2941 = vunpack.c.h.b16 %v506
    %v2942 = vunpack.c.l.b16 %v507
    %v2943 = vunpack.c.h.b16 %v507
    %v2944 = vunpack.c.l.b16 %v508
    %v2945 = vunpack.c.h.b16 %v508
    %v2946 = vunpack.c.l.b16 %v509
    %v2947 = vunpack.c.h.b16 %v509
    %v2948 = vunpack.c.l.b16 %v510
    %v2949 = vunpack.c.h.b16 %v510
    %v2950 = vunpack.c.l.b16 %v511
    %v2951 = vunpack.c.h.b16 %v511
    %v2952 = vunpack.c.l.b16 %v512
    %v2953 = vunpack.c.h.b16 %v512
    %v2954 = vunpack.c.l.b16 %v513
    %v2955 = vunpack.c.h.b16 %v513
    %v2956 = vunpack.c.l.b16 %v514
    %v2957 = vunpack.c.h.b16 %v514
    %v2958 = vunpack.c.l.b16 %v515
    %v2959 = vunpack.c.h.b16 %v515
    %v2960 = vunpack.c.l.b16 %v516
    %v2961 = vunpack.c.h.b16 %v516
    %v2962 = vunpack.c.l.b16 %v517
    %v2963 = vunpack.c.h.b16 %v517
    %v2964 = vunpack.c.l.b16 %v518
    %v2965 = vunpack.c.h.b16 %v518
    %v2966 = vunpack.c.l.b16 %v519
    %v2967 = vunpack.c.h.b16 %v519
    %v2968 = vunpack.c.l.b16 %v520
    %v2969 = vunpack.c.h.b16 %v520
    %v2970 = vunpack.c.l.b16 %v521
    %v2971 = vunpack.c.h.b16 %v521
    %v2972 = vunpack.c.l.b16 %v522
    %v2973 = vunpack.c.h.b16 %v522
    %v2974 = vunpack.c.l.b16 %v523
    %v2975 = vunpack.c.h.b16 %v523
    %v2976 = vunpack.c.l.b16 %v524
    %v2977 = vunpack.c.h.b16 %v524
    %v2978 = vunpack.c.l.b16 %v525
    %v2979 = vunpack.c.h.b16 %v525
    %v2980 = vunpack.c.l.b16 %v526
    %v2981 = vunpack.c.h.b16 %v526
    %v2982 = vunpack.c.l.b16 %v527
    %v2983 = vunpack.c.h.b16 %v527
    %v2984 = vunpack.c.l.b16 %v528
    %v2985 = vunpack.c.h.b16 %v528
    %v2986 = vunpack.c.l.b16 %v529
    %v2987 = vunpack.c.h.b16 %v529
    %v2988 = vunpack.c.l.b16 %v530
    %v2989 = vunpack.c.h.b16 %v530
    %v2990 = vunpack.c.l.b16 %v531
    %v2991 = vunpack.c.h.b16 %v531
    %v2992 = vunpack.c.l.b16 %v532
    %v2993 = vunpack.c.h.b16 %v532
    %v2994 = vunpack.c.l.b16 %v533
    %v2995 = vunpack.c.h.b16 %v533
    %v2996 = vunpack.c.l.b16 %v534
    %v2997 = vunpack.c.h.b16 %v534
    %v2998 = vunpack.c.l.b16 %v535
    %v2999 = vunpack.c.h.b16 %v535
    %v3000 = vunpack.c.l.b16 %v536
    %v3001 = vunpack.c.h.b16 %v536
    %v3002 = vunpack.c.l.b16 %v537
    %v3003 = vunpack.c.h.b16 %v537
    %v3004 = vunpack.c.l.b16 %v538
    %v3005 = vunpack.c.h.b16 %v538
    %v3006 = vunpack.c.l.b16 %v539
    %v3007 = vunpack.c.h.b16 %v539
    %v3008 = vunpack.c.l.b16 %v540
    %v3009 = vunpack.c.h.b16 %v540
    %v3010 = vunpack.c.l.b16 %v541
    %v3011 = vunpack.c.h.b16 %v541
    %v3012 = vunpack.c.l.b16 %v542
    %v3013 = vunpack.c.h.b16 %v542
    %v3014 = vunpack.c.l.b16 %v543
    %v3015 = vunpack.c.h.b16 %v543
    %v3016 = vunpack.c.l.b16 %v544
    %v3017 = vunpack.c.h.b16 %v544
    %v3018 = vunpack.c.l.b16 %v545
    %v3019 = vunpack.c.h.b16 %v545
    %v3020 = vunpack.c.l.b16 %v546
    %v3021 = vunpack.c.h.b16 %v546
    %v3022 = vunpack.c.l.b16 %v547
    %v3023 = vunpack.c.h.b16 %v547
    %v3024 = vunpack.c.l.b16 %v548
    %v3025 = vunpack.c.h.b16 %v548
    %v3026 = vunpack.c.l.b16 %v549
    %v3027 = vunpack.c.h.b16 %v549
    %v3028 = vunpack.c.l.b16 %v550
    %v3029 = vunpack.c.h.b16 %v550
    %v3030 = vunpack.c.l.b16 %v551
    %v3031 = vunpack.c.h.b16 %v551
    %v3032 = vunpack.c.l.b16 %v552
    %v3033 = vunpack.c.h.b16 %v552
    %v3034 = vunpack.c.l.b16 %v553
    %v3035 = vunpack.c.h.b16 %v553
    %v3036 = vunpack.c.l.b16 %v554
    %v3037 = vunpack.c.h.b16 %v554
    %v3038 = vunpack.c.l.b16 %v555
    %v3039 = vunpack.c.h.b16 %v555
    %v3040 = vunpack.c.l.b16 %v556
    %v3041 = vunpack.c.h.b16 %v556
    %v3042 = vunpack.c.l.b16 %v557
    %v3043 = vunpack.c.h.b16 %v557
    %v3044 = vunpack.c.l.b16 %v558
    %v3045 = vunpack.c.h.b16 %v558
    %v3046 = vunpack.c.l.b16 %v559
    %v3047 = vunpack.c.h.b16 %v559
    %v3048 = vunpack.c.l.b16 %v560
    %v3049 = vunpack.c.h.b16 %v560
    %v3050 = vunpack.c.l.b16 %v561
    %v3051 = vunpack.c.h.b16 %v561
    %v3052 = vunpack.c.l.b16 %v562
    %v3053 = vunpack.c.h.b16 %v562
    %v3054 = vunpack.c.l.b16 %v563
    %v3055 = vunpack.c.h.b16 %v563
    %v3056 = vunpack.c.l.b16 %v564
    %v3057 = vunpack.c.h.b16 %v564
    %v3058 = vunpack.c.l.b16 %v565
    %v3059 = vunpack.c.h.b16 %v565
    %v3060 = vunpack.c.l.b16 %v566
    %v3061 = vunpack.c.h.b16 %v566
    %v3062 = vunpack.c.l.b16 %v567
    %v3063 = vunpack.c.h.b16 %v567
    %v3064 = vunpack.c.l.b16 %v568
    %v3065 = vunpack.c.h.b16 %v568
    %v3066 = vunpack.c.l.b16 %v569
    %v3067 = vunpack.c.h.b16 %v569
    %v3068 = vunpack.c.l.b16 %v570
    %v3069 = vunpack.c.h.b16 %v570
    %v3070 = vunpack.c.l.b16 %v571
    %v3071 = vunpack.c.h.b16 %v571
    %v3072 = vunpack.c.l.b16 %v572
    %v3073 = vunpack.c.h.b16 %v572
    %v3074 = vunpack.c.l.b16 %v573
    %v3075 = vunpack.c.h.b16 %v573
    %v3076 = vunpack.c.l.b16 %v574
    %v3077 = vunpack.c.h.b16 %v574
    %v3078 = vunpack.c.l.b16 %v575
    %v3079 = vunpack.c.h.b16 %v575
    %v3080 = vunpack.c.l.b16 %v576
    %v3081 = vunpack.c.h.b16 %v576
    %v3082 = vunpack.c.l.b16 %v577
    %v3083 = vunpack.c.h.b16 %v577
    %v3084 = vunpack.c.l.b16 %v578
    %v3085 = vunpack.c.h.b16 %v578
    %v3086 = vunpack.c.l.b16 %v579
    %v3087 = vunpack.c.h.b16 %v579
    %v3088 = vunpack.c.l.b16 %v580
    %v3089 = vunpack.c.h.b16 %v580
    %v3090 = vunpack.c.l.b16 %v581
    %v3091 = vunpack.c.h.b16 %v581
    %v3092 = vunpack.c.l.b16 %v582
    %v3093 = vunpack.c.h.b16 %v582
    %v3094 = vunpack.c.l.b16 %v583
    %v3095 = vunpack.c.h.b16 %v583
    %v3096 = vunpack.c.l.b16 %v584
    %v3097 = vunpack.c.h.b16 %v584
    %v3098 = vunpack.c.l.b16 %v585
    %v3099 = vunpack.c.h.b16 %v585
    %v3100 = vunpack.c.l.b16 %v586
    %v3101 = vunpack.c.h.b16 %v586
    %v3102 = vunpack.c.l.b16 %v587
    %v3103 = vunpack.c.h.b16 %v587
    %v3104 = vunpack.c.l.b16 %v588
    %v3105 = vunpack.c.h.b16 %v588
    %v3106 = vunpack.c.l.b16 %v589
    %v3107 = vunpack.c.h.b16 %v589
    %v3108 = vunpack.c.l.b16 %v590
    %v3109 = vunpack.c.h.b16 %v590
    %v3110 = vunpack.c.l.b16 %v591
    %v3111 = vunpack.c.h.b16 %v591
    %v3112 = vunpack.c.l.b16 %v592
    %v3113 = vunpack.c.h.b16 %v592
    %v3114 = vunpack.c.l.b16 %v593
    %v3115 = vunpack.c.h.b16 %v593
    %v3116 = vunpack.c.l.b16 %v594
    %v3117 = vunpack.c.h.b16 %v594
    %v3118 = vunpack.c.l.b16 %v595
    %v3119 = vunpack.c.h.b16 %v595
    %v3120 = vunpack.c.l.b16 %v596
    %v3121 = vunpack.c.h.b16 %v596
    %v3122 = vunpack.c.l.b16 %v597
    %v3123 = vunpack.c.h.b16 %v597
    %v3124 = vunpack.c.l.b16 %v598
    %v3125 = vunpack.c.h.b16 %v598
    %v3126 = vunpack.c.l.b16 %v599
    %v3127 = vunpack.c.h.b16 %v599
    %v3128 = vunpack.c.l.b16 %v600
    %v3129 = vunpack.c.h.b16 %v600
    %v3130 = vunpack.c.l.b16 %v601
    %v3131 = vunpack.c.h.b16 %v601
    %v3132 = vunpack.c.l.b16 %v602
    %v3133 = vunpack.c.h.b16 %v602
    %v3134 = vunpack.c.l.b16 %v603
    %v3135 = vunpack.c.h.b16 %v603
    %v3136 = vunpack.c.l.b16 %v604
    %v3137 = vunpack.c.h.b16 %v604
    %v3138 = vunpack.c.l.b16 %v605
    %v3139 = vunpack.c.h.b16 %v605
    %v3140 = vunpack.c.l.b16 %v606
    %v3141 = vunpack.c.h.b16 %v606
    %v3142 = vunpack.c.l.b16 %v607
    %v3143 = vunpack.c.h.b16 %v607
    %v3144 = vunpack.c.l.b16 %v608
    %v3145 = vunpack.c.h.b16 %v608
    %v3146 = vunpack.c.l.b16 %v609
    %v3147 = vunpack.c.h.b16 %v609
    %v3148 = vunpack.c.l.b16 %v610
    %v3149 = vunpack.c.h.b16 %v610
    %v3150 = vunpack.c.l.b16 %v611
    %v3151 = vunpack.c.h.b16 %v611
    %v3152 = vunpack.c.l.b16 %v612
    %v3153 = vunpack.c.h.b16 %v612
    %v3154 = vunpack.c.l.b16 %v613
    %v3155 = vunpack.c.h.b16 %v613
    %v3156 = vunpack.c.l.b16 %v614
    %v3157 = vunpack.c.h.b16 %v614
    %v3158 = vunpack.c.l.b16 %v615
    %v3159 = vunpack.c.h.b16 %v615
    %v3160 = vunpack.c.l.b16 %v616
    %v3161 = vunpack.c.h.b16 %v616
    %v3162 = vunpack.c.l.b16 %v617
    %v3163 = vunpack.c.h.b16 %v617
    %v3164 = vunpack.c.l.b16 %v618
    %v3165 = vunpack.c.h.b16 %v618
    %v3166 = vunpack.c.l.b16 %v619
    %v3167 = vunpack.c.h.b16 %v619
    %v3168 = vunpack.c.l.b16 %v620
    %v3169 = vunpack.c.h.b16 %v620
    %v3170 = vunpack.c.l.b16 %v621
    %v3171 = vunpack.c.h.b16 %v621
    %v3172 = vunpack.c.l.b16 %v622
    %v3173 = vunpack.c.h.b16 %v622
    %v3174 = vunpack.c.l.b16 %v623
    %v3175 = vunpack.c.h.b16 %v623
    %v3176 = vunpack.c.l.b16 %v624
    %v3177 = vunpack.c.h.b16 %v624
    %v3178 = vunpack.c.l.b16 %v625
    %v3179 = vunpack.c.h.b16 %v625
    %v3180 = vunpack.c.l.b16 %v626
    %v3181 = vunpack.c.h.b16 %v626
    %v3182 = vunpack.c.l.b16 %v627
    %v3183 = vunpack.c.h.b16 %v627
    %v3184 = vunpack.c.l.b16 %v628
    %v3185 = vunpack.c.h.b16 %v628
    %v3186 = vunpack.c.l.b16 %v629
    %v3187 = vunpack.c.h.b16 %v629
    %v3188 = vunpack.c.l.b16 %v630
    %v3189 = vunpack.c.h.b16 %v630
    %v3190 = vunpack.c.l.b16 %v631
    %v3191 = vunpack.c.h.b16 %v631
    %v3192 = vunpack.c.l.b16 %v632
    %v3193 = vunpack.c.h.b16 %v632
    %v3194 = vunpack.c.l.b16 %v633
    %v3195 = vunpack.c.h.b16 %v633
    %v3196 = vunpack.c.l.b16 %v634
    %v3197 = vunpack.c.h.b16 %v634
    %v3198 = vunpack.c.l.b16 %v635
    %v3199 = vunpack.c.h.b16 %v635
    %v3200 = vunpack.c.l.b16 %v636
    %v3201 = vunpack.c.h.b16 %v636
    %v3202 = vunpack.c.l.b16 %v637
    %v3203 = vunpack.c.h.b16 %v637
    %v3204 = vunpack.c.l.b16 %v638
    %v3205 = vunpack.c.h.b16 %v638
    %v3206 = vunpack.c.l.b16 %v639
    %v3207 = vunpack.c.h.b16 %v639
    %v3208 = vunpack.c.l.b16 %v640
    %v3209 = vunpack.c.h.b16 %v640
    %v3210 = vunpack.c.l.b16 %v641
    %v3211 = vunpack.c.h.b16 %v641
    %v3212 = vunpack.c.l.b16 %v642
    %v3213 = vunpack.c.h.b16 %v642
    %v3214 = vunpack.c.l.b16 %v643
    %v3215 = vunpack.c.h.b16 %v643
    %v3216 = vunpack.c.l.b16 %v644
    %v3217 = vunpack.c.h.b16 %v644
    %v3218 = vunpack.c.l.b16 %v645
    %v3219 = vunpack.c.h.b16 %v645
    %v3220 = vunpack.c.l.b16 %v646
    %v3221 = vunpack.c.h.b16 %v646
    %v3222 = vunpack.c.l.b16 %v647
    %v3223 = vunpack.c.h.b16 %v647
    %v3224 = vunpack.c.l.b16 %v648
    %v3225 = vunpack.c.h.b16 %v648
    %v3226 = vunpack.c.l.b16 %v649
    %v3227 = vunpack.c.h.b16 %v649
    %v3228 = vunpack.c.l.b16 %v650
    %v3229 = vunpack.c.h.b16 %v650
    %v3230 = vunpack.c.l.b16 %v651
    %v3231 = vunpack.c.h.b16 %v651
    %v3232 = vunpack.c.l.b16 %v652
    %v3233 = vunpack.c.h.b16 %v652
    %v3234 = vunpack.c.l.b16 %v653
    %v3235 = vunpack.c.h.b16 %v653
    %v3236 = vunpack.c.l.b16 %v654
    %v3237 = vunpack.c.h.b16 %v654
    %v3238 = vunpack.c.l.b16 %v655
    %v3239 = vunpack.c.h.b16 %v655
    %v3240 = vunpack.c.l.b16 %v656
    %v3241 = vunpack.c.h.b16 %v656
    %v3242 = vunpack.c.l.b16 %v657
    %v3243 = vunpack.c.h.b16 %v657
    %v3244 = vunpack.c.l.b16 %v658
    %v3245 = vunpack.c.h.b16 %v658
    %v3246 = vunpack.c.l.b16 %v659
    %v3247 = vunpack.c.h.b16 %v659
    %v3248 = vunpack.c.l.b16 %v660
    %v3249 = vunpack.c.h.b16 %v660
    %v3250 = vunpack.c.l.b16 %v661
    %v3251 = vunpack.c.h.b16 %v661
    %v3252 = vunpack.c.l.b16 %v662
    %v3253 = vunpack.c.h.b16 %v662
    %v3254 = vunpack.c.l.b16 %v663
    %v3255 = vunpack.c.h.b16 %v663
    %v3256 = vunpack.c.l.b16 %v664
    %v3257 = vunpack.c.h.b16 %v664
    %v3258 = vunpack.c.l.b16 %v665
    %v3259 = vunpack.c.h.b16 %v665
    %v3260 = vunpack.c.l.b16 %v666
    %v3261 = vunpack.c.h.b16 %v666
    %v3262 = vunpack.c.l.b16 %v667
    %v3263 = vunpack.c.h.b16 %v667
    %v3264 = vunpack.c.l.b16 %v668
    %v3265 = vunpack.c.h.b16 %v668
    %v3266 = vunpack.c.l.b16 %v669
    %v3267 = vunpack.c.h.b16 %v669
    %v3268 = vunpack.c.l.b16 %v670
    %v3269 = vunpack.c.h.b16 %v670
    %v3270 = vunpack.c.l.b16 %v671
    %v3271 = vunpack.c.h.b16 %v671
    %v3272 = vunpack.c.l.b16 %v672
    %v3273 = vunpack.c.h.b16 %v672
    %v3274 = vunpack.c.l.b16 %v673
    %v3275 = vunpack.c.h.b16 %v673
    %v3276 = vunpack.c.l.b16 %v674
    %v3277 = vunpack.c.h.b16 %v674
    %v3278 = vunpack.c.l.b16 %v675
    %v3279 = vunpack.c.h.b16 %v675
    %v3280 = vunpack.c.l.b16 %v676
    %v3281 = vunpack.c.h.b16 %v676
    %v3282 = vunpack.c.l.b16 %v677
    %v3283 = vunpack.c.h.b16 %v677
    %v3284 = vunpack.c.l.b16 %v678
    %v3285 = vunpack.c.h.b16 %v678
    %v3286 = vunpack.c.l.b16 %v679
    %v3287 = vunpack.c.h.b16 %v679
    %v3288 = vunpack.c.l.b16 %v680
    %v3289 = vunpack.c.h.b16 %v680
    %v3290 = vunpack.c.l.b16 %v681
    %v3291 = vunpack.c.h.b16 %v681
    %v3292 = vunpack.c.l.b16 %v682
    %v3293 = vunpack.c.h.b16 %v682
    %v3294 = vunpack.c.l.b16 %v683
    %v3295 = vunpack.c.h.b16 %v683
    %v3296 = vunpack.c.l.b16 %v684
    %v3297 = vunpack.c.h.b16 %v684
    %v3298 = vunpack.c.l.b16 %v685
    %v3299 = vunpack.c.h.b16 %v685
    %v3300 = vunpack.c.l.b16 %v686
    %v3301 = vunpack.c.h.b16 %v686
    %v3302 = vunpack.c.l.b16 %v687
    %v3303 = vunpack.c.h.b16 %v687
    %v3304 = vunpack.c.l.b16 %v688
    %v3305 = vunpack.c.h.b16 %v688
    %v3306 = vunpack.c.l.b16 %v689
    %v3307 = vunpack.c.h.b16 %v689
    %v3308 = vunpack.c.l.b16 %v690
    %v3309 = vunpack.c.h.b16 %v690
    %v3310 = vunpack.c.l.b16 %v691
    %v3311 = vunpack.c.h.b16 %v691
    %v3312 = vunpack.c.l.b16 %v692
    %v3313 = vunpack.c.h.b16 %v692
    %v3314 = vunpack.c.l.b16 %v693
    %v3315 = vunpack.c.h.b16 %v693
    %v3316 = vunpack.c.l.b16 %v694
    %v3317 = vunpack.c.h.b16 %v694
    %v3318 = vunpack.c.l.b16 %v695
    %v3319 = vunpack.c.h.b16 %v695
    %v3320 = vunpack.c.l.b16 %v696
    %v3321 = vunpack.c.h.b16 %v696
    %v3322 = vunpack.c.l.b16 %v697
    %v3323 = vunpack.c.h.b16 %v697
    %v3324 = vunpack.c.l.b16 %v698
    %v3325 = vunpack.c.h.b16 %v698
    %v3326 = vunpack.c.l.b16 %v699
    %v3327 = vunpack.c.h.b16 %v699
    %v3328 = vunpack.c.l.b16 %v700
    %v3329 = vunpack.c.h.b16 %v700
    %v3330 = vunpack.c.l.b16 %v701
    %v3331 = vunpack.c.h.b16 %v701
    %v3332 = vunpack.c.l.b16 %v702
    %v3333 = vunpack.c.h.b16 %v702
    %v3334 = vunpack.c.l.b16 %v703
    %v3335 = vunpack.c.h.b16 %v703
    %v3336 = vunpack.c.l.b16 %v704
    %v3337 = vunpack.c.h.b16 %v704
    %v3338 = vunpack.c.l.b16 %v705
    %v3339 = vunpack.c.h.b16 %v705
    %v3340 = vunpack.c.l.b16 %v706
    %v3341 = vunpack.c.h.b16 %v706
    %v3342 = vunpack.c.l.b16 %v707
    %v3343 = vunpack.c.h.b16 %v707
    %v3344 = vunpack.c.l.b16 %v708
    %v3345 = vunpack.c.h.b16 %v708
    %v3346 = vunpack.c.l.b16 %v709
    %v3347 = vunpack.c.h.b16 %v709
    %v3348 = vunpack.c.l.b16 %v710
    %v3349 = vunpack.c.h.b16 %v710
    %v3350 = vunpack.c.l.b16 %v711
    %v3351 = vunpack.c.h.b16 %v711
    %v3352 = vunpack.c.l.b16 %v712
    %v3353 = vunpack.c.h.b16 %v712
    %v3354 = vunpack.c.l.b16 %v713
    %v3355 = vunpack.c.h.b16 %v713
    %v3356 = vunpack.c.l.b16 %v714
    %v3357 = vunpack.c.h.b16 %v714
    %v3358 = vunpack.c.l.b16 %v715
    %v3359 = vunpack.c.h.b16 %v715
    %v3360 = vunpack.c.l.b16 %v716
    %v3361 = vunpack.c.h.b16 %v716
    %v3362 = vunpack.c.l.b16 %v717
    %v3363 = vunpack.c.h.b16 %v717
    %v3364 = vunpack.c.l.b16 %v718
    %v3365 = vunpack.c.h.b16 %v718
    %v3366 = vunpack.c.l.b16 %v719
    %v3367 = vunpack.c.h.b16 %v719
    %v3368 = vunpack.c.l.b16 %v720
    %v3369 = vunpack.c.h.b16 %v720
    %v3370 = vunpack.c.l.b16 %v721
    %v3371 = vunpack.c.h.b16 %v721
    %v3372 = vunpack.c.l.b16 %v722
    %v3373 = vunpack.c.h.b16 %v722
    %v3374 = vunpack.c.l.b16 %v723
    %v3375 = vunpack.c.h.b16 %v723
    %v3376 = vunpack.c.l.b16 %v724
    %v3377 = vunpack.c.h.b16 %v724
    %v3378 = vunpack.c.l.b16 %v725
    %v3379 = vunpack.c.h.b16 %v725
    %v3380 = vunpack.c.l.b16 %v726
    %v3381 = vunpack.c.h.b16 %v726
    %v3382 = vunpack.c.l.b16 %v727
    %v3383 = vunpack.c.h.b16 %v727
    %v3384 = vunpack.c.l.b16 %v728
    %v3385 = vunpack.c.h.b16 %v728
    %v3386 = vunpack.c.l.b16 %v729
    %v3387 = vunpack.c.h.b16 %v729
    %v3388 = vunpack.c.l.b16 %v730
    %v3389 = vunpack.c.h.b16 %v730
    %v3390 = vunpack.c.l.b16 %v731
    %v3391 = vunpack.c.h.b16 %v731
    %v3392 = vunpack.c.l.b16 %v732
    %v3393 = vunpack.c.h.b16 %v732
    %v3394 = vunpack.c.l.b16 %v733
    %v3395 = vunpack.c.h.b16 %v733
    %v3396 = vunpack.c.l.b16 %v734
    %v3397 = vunpack.c.h.b16 %v734
    %v3398 = vunpack.c.l.b16 %v735
    %v3399 = vunpack.c.h.b16 %v735
    %v3400 = vunpack.c.l.b16 %v736
    %v3401 = vunpack.c.h.b16 %v736
    %v3402 = vunpack.c.l.b16 %v737
    %v3403 = vunpack.c.h.b16 %v737
    %v3404 = vunpack.c.l.b16 %v738
    %v3405 = vunpack.c.h.b16 %v738
    %v3406 = vunpack.c.l.b16 %v739
    %v3407 = vunpack.c.h.b16 %v739
    %v3408 = vunpack.c.l.b16 %v740
    %v3409 = vunpack.c.h.b16 %v740
    %v3410 = vunpack.c.l.b16 %v741
    %v3411 = vunpack.c.h.b16 %v741
    %v3412 = vunpack.c.l.b16 %v742
    %v3413 = vunpack.c.h.b16 %v742
    %v3414 = vunpack.c.l.b16 %v743
    %v3415 = vunpack.c.h.b16 %v743
    %v3416 = vunpack.c.l.b16 %v744
    %v3417 = vunpack.c.h.b16 %v744
    %v3418 = vunpack.c.l.b16 %v745
    %v3419 = vunpack.c.h.b16 %v745
    %v3420 = vunpack.c.l.b16 %v746
    %v3421 = vunpack.c.h.b16 %v746
    %v3422 = vunpack.c.l.b16 %v747
    %v3423 = vunpack.c.h.b16 %v747
    %v3424 = vunpack.c.l.b16 %v748
    %v3425 = vunpack.c.h.b16 %v748
    %v3426 = vunpack.c.l.b16 %v749
    %v3427 = vunpack.c.h.b16 %v749
    %v3428 = vunpack.c.l.b16 %v750
    %v3429 = vunpack.c.h.b16 %v750
    %v3430 = vunpack.c.l.b16 %v751
    %v3431 = vunpack.c.h.b16 %v751
    %v3432 = vunpack.c.l.b16 %v752
    %v3433 = vunpack.c.h.b16 %v752
    %v3434 = vunpack.c.l.b16 %v753
    %v3435 = vunpack.c.h.b16 %v753
    %v3436 = vunpack.c.l.b16 %v754
    %v3437 = vunpack.c.h.b16 %v754
    %v3438 = vunpack.c.l.b16 %v755
    %v3439 = vunpack.c.h.b16 %v755
    %v3440 = vunpack.c.l.b16 %v756
    %v3441 = vunpack.c.h.b16 %v756
    %v3442 = vunpack.c.l.b16 %v757
    %v3443 = vunpack.c.h.b16 %v757
    %v3444 = vunpack.c.l.b16 %v758
    %v3445 = vunpack.c.h.b16 %v758
    %v3446 = vunpack.c.l.b16 %v759
    %v3447 = vunpack.c.h.b16 %v759
    %v3448 = vunpack.c.l.b16 %v760
    %v3449 = vunpack.c.h.b16 %v760
    %v3450 = vunpack.c.l.b16 %v761
    %v3451 = vunpack.c.h.b16 %v761
    %v3452 = vunpack.c.l.b16 %v762
    %v3453 = vunpack.c.h.b16 %v762
    %v3454 = vunpack.c.l.b16 %v763
    %v3455 = vunpack.c.h.b16 %v763
    %v3456 = vunpack.c.l.b16 %v764
    %v3457 = vunpack.c.h.b16 %v764
    %v3458 = vunpack.c.l.b16 %v765
    %v3459 = vunpack.c.h.b16 %v765
    %v3460 = vunpack.c.l.b16 %v766
    %v3461 = vunpack.c.h.b16 %v766
    %v3462 = vunpack.c.l.b16 %v767
    %v3463 = vunpack.c.h.b16 %v767
    %v3464 = vunpack.c.l.b16 %v768
    %v3465 = vunpack.c.h.b16 %v768
    %v3466 = vunpack.c.l.b16 %v769
    %v3467 = vunpack.c.h.b16 %v769
    %v3468 = vunpack.c.l.b16 %v770
    %v3469 = vunpack.c.h.b16 %v770
    %v3470 = vunpack.c.l.b16 %v771
    %v3471 = vunpack.c.h.b16 %v771
    %v3472 = vunpack.c.l.b16 %v772
    %v3473 = vunpack.c.h.b16 %v772
    %v3474 = vunpack.c.l.b16 %v773
    %v3475 = vunpack.c.h.b16 %v773
    %v3476 = vunpack.c.l.b16 %v774
    %v3477 = vunpack.c.h.b16 %v774
    %v3478 = vunpack.c.l.b16 %v775
    %v3479 = vunpack.c.h.b16 %v775
    %v3480 = vunpack.c.l.b16 %v776
    %v3481 = vunpack.c.h.b16 %v776
    %v3482 = vunpack.c.l.b16 %v777
    %v3483 = vunpack.c.h.b16 %v777
    %v3484 = vunpack.c.l.b16 %v778
    %v3485 = vunpack.c.h.b16 %v778
    %v3486 = vunpack.c.l.b16 %v779
    %v3487 = vunpack.c.h.b16 %v779
    %v3488 = vunpack.c.l.b16 %v780
    %v3489 = vunpack.c.h.b16 %v780
    %v3490 = vunpack.c.l.b16 %v781
    %v3491 = vunpack.c.h.b16 %v781
    %v3492 = vunpack.c.l.b16 %v782
    %v3493 = vunpack.c.h.b16 %v782
    %v3494 = vunpack.c.l.b16 %v783
    %v3495 = vunpack.c.h.b16 %v783
    %v3496 = vunpack.c.l.b16 %v784
    %v3497 = vunpack.c.h.b16 %v784
    %v3498 = vunpack.c.l.b16 %v785
    %v3499 = vunpack.c.h.b16 %v785
    %v3500 = vunpack.c.l.b16 %v786
    %v3501 = vunpack.c.h.b16 %v786
    %v3502 = vunpack.c.l.b16 %v787
    %v3503 = vunpack.c.h.b16 %v787
    %v3504 = vunpack.c.l.b16 %v788
    %v3505 = vunpack.c.h.b16 %v788
    %v3506 = vunpack.c.l.b16 %v789
    %v3507 = vunpack.c.h.b16 %v789
    %v3508 = vunpack.c.l.b16 %v790
    %v3509 = vunpack.c.h.b16 %v790
    %v3510 = vunpack.c.l.b16 %v791
    %v3511 = vunpack.c.h.b16 %v791
    %v3512 = vunpack.c.l.b16 %v792
    %v3513 = vunpack.c.h.b16 %v792
    %v3514 = vunpack.c.l.b16 %v793
    %v3515 = vunpack.c.h.b16 %v793
    %v3516 = vunpack.c.l.b16 %v794
    %v3517 = vunpack.c.h.b16 %v794
    %v3518 = vunpack.c.l.b16 %v795
    %v3519 = vunpack.c.h.b16 %v795
    %v3520 = vunpack.c.l.b16 %v796
    %v3521 = vunpack.c.h.b16 %v796
    %v3522 = vunpack.c.l.b16 %v797
    %v3523 = vunpack.c.h.b16 %v797
    %v3524 = vunpack.c.l.b16 %v798
    %v3525 = vunpack.c.h.b16 %v798
    %v3526 = vunpack.c.l.b16 %v799
    %v3527 = vunpack.c.h.b16 %v799
    %v3528 = vunpack.c.l.b16 %v800
    %v3529 = vunpack.c.h.b16 %v800
    %v3530 = vunpack.c.l.b16 %v801
    %v3531 = vunpack.c.h.b16 %v801
    %v3532 = vunpack.c.l.b16 %v802
    %v3533 = vunpack.c.h.b16 %v802
    %v3534 = vunpack.c.l.b16 %v803
    %v3535 = vunpack.c.h.b16 %v803
    %v3536 = vunpack.c.l.b16 %v804
    %v3537 = vunpack.c.h.b16 %v804
    %v3538 = vunpack.c.l.b16 %v805
    %v3539 = vunpack.c.h.b16 %v805
    %v3540 = vunpack.c.l.b16 %v806
    %v3541 = vunpack.c.h.b16 %v806
    %v3542 = vunpack.c.l.b16 %v807
    %v3543 = vunpack.c.h.b16 %v807
    %v3544 = vunpack.c.l.b16 %v808
    %v3545 = vunpack.c.h.b16 %v808
    %v3546 = vunpack.c.l.b16 %v809
    %v3547 = vunpack.c.h.b16 %v809
    %v3548 = vunpack.c.l.b16 %v810
    %v3549 = vunpack.c.h.b16 %v810
    %v3550 = vunpack.c.l.b16 %v811
    %v3551 = vunpack.c.h.b16 %v811
    %v3552 = vunpack.c.l.b16 %v812
    %v3553 = vunpack.c.h.b16 %v812
    %v3554 = vunpack.c.l.b16 %v813
    %v3555 = vunpack.c.h.b16 %v813
    %v3556 = vunpack.c.l.b16 %v814
    %v3557 = vunpack.c.h.b16 %v814
    %v3558 = vunpack.c.l.b16 %v815
    %v3559 = vunpack.c.h.b16 %v815
    %v3560 = vunpack.c.l.b16 %v816
    %v3561 = vunpack.c.h.b16 %v816
    %v3562 = vunpack.c.l.b16 %v817
    %v3563 = vunpack.c.h.b16 %v817
    %v3564 = vunpack.c.l.b16 %v818
    %v3565 = vunpack.c.h.b16 %v818
    %v3566 = vunpack.c.l.b16 %v819
    %v3567 = vunpack.c.h.b16 %v819
    %v3568 = vunpack.c.l.b16 %v820
    %v3569 = vunpack.c.h.b16 %v820
    %v3570 = vunpack.c.l.b16 %v821
    %v3571 = vunpack.c.h.b16 %v821
    %v3572 = vunpack.c.l.b16 %v822
    %v3573 = vunpack.c.h.b16 %v822
    %v3574 = vunpack.c.l.b16 %v823
    %v3575 = vunpack.c.h.b16 %v823
    %v3576 = vunpack.c.l.b16 %v824
    %v3577 = vunpack.c.h.b16 %v824
    %v3578 = vunpack.c.l.b16 %v825
    %v3579 = vunpack.c.h.b16 %v825
    %v3580 = vunpack.c.l.b16 %v826
    %v3581 = vunpack.c.h.b16 %v826
    %v3582 = vunpack.c.l.b16 %v827
    %v3583 = vunpack.c.h.b16 %v827
    %v3584 = vunpack.c.l.b16 %v828
    %v3585 = vunpack.c.h.b16 %v828
    %v3586 = vunpack.c.l.b16 %v829
    %v3587 = vunpack.c.h.b16 %v829
    %v3588 = vunpack.c.l.b16 %v830
    %v3589 = vunpack.c.h.b16 %v830
    %v3590 = vunpack.c.l.b16 %v831
    %v3591 = vunpack.c.h.b16 %v831
    %v3592 = vunpack.c.l.b16 %v832
    %v3593 = vunpack.c.h.b16 %v832
    %v3594 = vunpack.c.l.b16 %v833
    %v3595 = vunpack.c.h.b16 %v833
    %v3596 = vunpack.c.l.b16 %v834
    %v3597 = vunpack.c.h.b16 %v834
    %v3598 = vunpack.c.l.b16 %v835
    %v3599 = vunpack.c.h.b16 %v835
    %v3600 = vunpack.c.l.b16 %v836
    %v3601 = vunpack.c.h.b16 %v836
    %v3602 = vunpack.c.l.b16 %v837
    %v3603 = vunpack.c.h.b16 %v837
    %v3604 = vunpack.c.l.b16 %v838
    %v3605 = vunpack.c.h.b16 %v838
    %v3606 = vunpack.c.l.b16 %v839
    %v3607 = vunpack.c.h.b16 %v839
    %v3608 = vunpack.c.l.b16 %v840
    %v3609 = vunpack.c.h.b16 %v840
    %v3610 = vunpack.c.l.b16 %v841
    %v3611 = vunpack.c.h.b16 %v841
    %v3612 = vunpack.c.l.b16 %v842
    %v3613 = vunpack.c.h.b16 %v842
    %v3614 = vunpack.c.l.b16 %v843
    %v3615 = vunpack.c.h.b16 %v843
    %v3616 = vunpack.c.l.b16 %v844
    %v3617 = vunpack.c.h.b16 %v844
    %v3618 = vunpack.c.l.b16 %v845
    %v3619 = vunpack.c.h.b16 %v845
    %v3620 = vunpack.c.l.b16 %v846
    %v3621 = vunpack.c.h.b16 %v846
    %v3622 = vunpack.c.l.b16 %v847
    %v3623 = vunpack.c.h.b16 %v847
    %v3624 = vunpack.c.l.b16 %v848
    %v3625 = vunpack.c.h.b16 %v848
    %v3626 = vunpack.c.l.b16 %v849
    %v3627 = vunpack.c.h.b16 %v849
    %v3628 = vunpack.c.l.b16 %v850
    %v3629 = vunpack.c.h.b16 %v850
    %v3630 = vunpack.c.l.b16 %v851
    %v3631 = vunpack.c.h.b16 %v851
    %v3632 = vunpack.c.l.b16 %v852
    %v3633 = vunpack.c.h.b16 %v852
    %v3634 = vunpack.c.l.b16 %v853
    %v3635 = vunpack.c.h.b16 %v853
    %v3636 = vunpack.c.l.b16 %v854
    %v3637 = vunpack.c.h.b16 %v854
    %v3638 = vunpack.c.l.b16 %v855
    %v3639 = vunpack.c.h.b16 %v855
    %v3640 = vunpack.c.l.b16 %v856
    %v3641 = vunpack.c.h.b16 %v856
    %v3642 = vunpack.c.l.b16 %v857
    %v3643 = vunpack.c.h.b16 %v857
    %v3644 = vunpack.c.l.b16 %v858
    %v3645 = vunpack.c.h.b16 %v858
    %v3646 = vunpack.c.l.b16 %v859
    %v3647 = vunpack.c.h.b16 %v859
    %v3648 = vunpack.c.l.b16 %v860
    %v3649 = vunpack.c.h.b16 %v860
    %v3650 = vunpack.c.l.b16 %v861
    %v3651 = vunpack.c.h.b16 %v861
    %v3652 = vunpack.c.l.b16 %v862
    %v3653 = vunpack.c.h.b16 %v862
    %v3654 = vunpack.c.l.b16 %v863
    %v3655 = vunpack.c.h.b16 %v863
    %v3656 = vunpack.c.l.b16 %v864
    %v3657 = vunpack.c.h.b16 %v864
    %v3658 = vunpack.c.l.b16 %v865
    %v3659 = vunpack.c.h.b16 %v865
    %v3660 = vunpack.c.l.b16 %v866
    %v3661 = vunpack.c.h.b16 %v866
    %v3662 = vunpack.c.l.b16 %v867
    %v3663 = vunpack.c.h.b16 %v867
    %v3664 = vunpack.c.l.b16 %v868
    %v3665 = vunpack.c.h.b16 %v868
    %v3666 = vunpack.c.l.b16 %v869
    %v3667 = vunpack.c.h.b16 %v869
    %v3668 = vunpack.c.l.b16 %v870
    %v3669 = vunpack.c.h.b16 %v870
    %v3670 = vunpack.c.l.b16 %v871
    %v3671 = vunpack.c.h.b16 %v871
    %v3672 = vunpack.c.l.b16 %v872
    %v3673 = vunpack.c.h.b16 %v872
    %v3674 = vunpack.c.l.b16 %v873
    %v3675 = vunpack.c.h.b16 %v873
    %v3676 = vunpack.c.l.b16 %v874
    %v3677 = vunpack.c.h.b16 %v874
    %v3678 = vunpack.c.l.b16 %v875
    %v3679 = vunpack.c.h.b16 %v875
    %v3680 = vunpack.c.l.b16 %v876
    %v3681 = vunpack.c.h.b16 %v876
    %v3682 = vunpack.c.l.b16 %v877
    %v3683 = vunpack.c.h.b16 %v877
    %v3684 = vunpack.c.l.b16 %v878
    %v3685 = vunpack.c.h.b16 %v878
    %v3686 = vunpack.c.l.b16 %v879
    %v3687 = vunpack.c.h.b16 %v879
    %v3688 = vunpack.c.l.b16 %v880
    %v3689 = vunpack.c.h.b16 %v880
    %v3690 = vunpack.c.l.b16 %v881
    %v3691 = vunpack.c.h.b16 %v881
    %v3692 = vunpack.c.l.b16 %v882
    %v3693 = vunpack.c.h.b16 %v882
    %v3694 = vunpack.c.l.b16 %v883
    %v3695 = vunpack.c.h.b16 %v883
    %v3696 = vunpack.c.l.b16 %v884
    %v3697 = vunpack.c.h.b16 %v884
    %v3698 = vunpack.c.l.b16 %v885
    %v3699 = vunpack.c.h.b16 %v885
    %v3700 = vunpack.c.l.b16 %v886
    %v3701 = vunpack.c.h.b16 %v886
    %v3702 = vunpack.c.l.b16 %v887
    %v3703 = vunpack.c.h.b16 %v887
    %v3704 = vunpack.c.l.b16 %v888
    %v3705 = vunpack.c.h.b16 %v888
    %v3706 = vunpack.c.l.b16 %v889
    %v3707 = vunpack.c.h.b16 %v889
    %v3708 = vunpack.c.l.b16 %v890
    %v3709 = vunpack.c.h.b16 %v890
    %v3710 = vunpack.c.l.b16 %v891
    %v3711 = vunpack.c.h.b16 %v891
    %v3712 = vunpack.c.l.b16 %v892
    %v3713 = vunpack.c.h.b16 %v892
    %v3714 = vunpack.c.l.b16 %v893
    %v3715 = vunpack.c.h.b16 %v893
    %v3716 = vunpack.c.l.b16 %v894
    %v3717 = vunpack.c.h.b16 %v894
    %v3718 = vunpack.c.l.b16 %v895
    %v3719 = vunpack.c.h.b16 %v895
    %v3720 = vunpack.c.l.b16 %v896
    %v3721 = vunpack.c.h.b16 %v896
    %v3722 = vunpack.c.l.b16 %v897
    %v3723 = vunpack.c.h.b16 %v897
    %v3724 = vunpack.c.l.b16 %v898
    %v3725 = vunpack.c.h.b16 %v898
    %v3726 = vunpack.c.l.b16 %v899
    %v3727 = vunpack.c.h.b16 %v899
    %v3728 = vunpack.c.l.b16 %v900
    %v3729 = vunpack.c.h.b16 %v900
    %v3730 = vunpack.c.l.b16 %v901
    %v3731 = vunpack.c.h.b16 %v901
    %v3732 = vunpack.c.l.b16 %v902
    %v3733 = vunpack.c.h.b16 %v902
    %v3734 = vunpack.c.l.b16 %v903
    %v3735 = vunpack.c.h.b16 %v903
    %v3736 = vunpack.c.l.b16 %v904
    %v3737 = vunpack.c.h.b16 %v904
    %v3738 = vunpack.c.l.b16 %v905
    %v3739 = vunpack.c.h.b16 %v905
    %v3740 = vunpack.c.l.b16 %v906
    %v3741 = vunpack.c.h.b16 %v906
    %v3742 = vunpack.c.l.b16 %v907
    %v3743 = vunpack.c.h.b16 %v907
    %v3744 = vunpack.c.l.b16 %v908
    %v3745 = vunpack.c.h.b16 %v908
    %v3746 = vunpack.c.l.b16 %v909
    %v3747 = vunpack.c.h.b16 %v909
    %v3748 = vunpack.c.l.b16 %v910
    %v3749 = vunpack.c.h.b16 %v910
    %v3750 = vunpack.c.l.b16 %v911
    %v3751 = vunpack.c.h.b16 %v911
    %v3752 = vunpack.c.l.b16 %v912
    %v3753 = vunpack.c.h.b16 %v912
    %v3754 = vunpack.c.l.b16 %v913
    %v3755 = vunpack.c.h.b16 %v913
    %v3756 = vunpack.c.l.b16 %v914
    %v3757 = vunpack.c.h.b16 %v914
    %v3758 = vunpack.c.l.b16 %v915
    %v3759 = vunpack.c.h.b16 %v915
    %v3760 = vunpack.c.l.b16 %v916
    %v3761 = vunpack.c.h.b16 %v916
    %v3762 = vunpack.c.l.b16 %v917
    %v3763 = vunpack.c.h.b16 %v917
    %v3764 = vunpack.c.l.b16 %v918
    %v3765 = vunpack.c.h.b16 %v918
    %v3766 = vunpack.c.l.b16 %v919
    %v3767 = vunpack.c.h.b16 %v919
    %v3768 = vunpack.c.l.b16 %v920
    %v3769 = vunpack.c.h.b16 %v920
    %v3770 = vunpack.c.l.b16 %v921
    %v3771 = vunpack.c.h.b16 %v921
    %v3772 = vunpack.c.l.b16 %v922
    %v3773 = vunpack.c.h.b16 %v922
    %v3774 = vunpack.c.l.b16 %v923
    %v3775 = vunpack.c.h.b16 %v923
    %v3776 = vunpack.c.l.b16 %v924
    %v3777 = vunpack.c.h.b16 %v924
    %v3778 = vunpack.c.l.b16 %v925
    %v3779 = vunpack.c.h.b16 %v925
    %v3780 = vunpack.c.l.b16 %v926
    %v3781 = vunpack.c.h.b16 %v926
    %v3782 = vunpack.c.l.b16 %v927
    %v3783 = vunpack.c.h.b16 %v927
    %v3784 = vunpack.c.l.b16 %v928
    %v3785 = vunpack.c.h.b16 %v928
    %v3786 = vunpack.c.l.b16 %v929
    %v3787 = vunpack.c.h.b16 %v929
    %v3788 = vunpack.c.l.b16 %v930
    %v3789 = vunpack.c.h.b16 %v930
    %v3790 = vunpack.c.l.b16 %v931
    %v3791 = vunpack.c.h.b16 %v931
    %v3792 = vunpack.c.l.b16 %v932
    %v3793 = vunpack.c.h.b16 %v932
    %v3794 = vunpack.c.l.b16 %v933
    %v3795 = vunpack.c.h.b16 %v933
    %v3796 = vunpack.c.l.b16 %v934
    %v3797 = vunpack.c.h.b16 %v934
    %v3798 = vunpack.c.l.b16 %v935
    %v3799 = vunpack.c.h.b16 %v935
    %v3800 = vunpack.c.l.b16 %v936
    %v3801 = vunpack.c.h.b16 %v936
    %v3802 = vunpack.c.l.b16 %v937
    %v3803 = vunpack.c.h.b16 %v937
    %v3804 = vunpack.c.l.b16 %v938
    %v3805 = vunpack.c.h.b16 %v938
    %v3806 = vunpack.c.l.b16 %v939
    %v3807 = vunpack.c.h.b16 %v939
    %v3808 = vunpack.c.l.b16 %v940
    %v3809 = vunpack.c.h.b16 %v940
    %v3810 = vunpack.c.l.b16 %v941
    %v3811 = vunpack.c.h.b16 %v941
    %v3812 = vunpack.c.l.b16 %v942
    %v3813 = vunpack.c.h.b16 %v942
    %v3814 = vunpack.c.l.b16 %v943
    %v3815 = vunpack.c.h.b16 %v943
    %v3816 = vunpack.c.l.b16 %v944
    %v3817 = vunpack.c.h.b16 %v944
    %v3818 = vunpack.c.l.b16 %v945
    %v3819 = vunpack.c.h.b16 %v945
    %v3820 = vunpack.c.l.b16 %v946
    %v3821 = vunpack.c.h.b16 %v946
    %v3822 = vunpack.c.l.b16 %v947
    %v3823 = vunpack.c.h.b16 %v947
    %v3824 = vunpack.c.l.b16 %v948
    %v3825 = vunpack.c.h.b16 %v948
    %v3826 = vunpack.c.l.b16 %v949
    %v3827 = vunpack.c.h.b16 %v949
    %v3828 = vunpack.c.l.b16 %v950
    %v3829 = vunpack.c.h.b16 %v950
    %v3830 = vunpack.c.l.b16 %v951
    %v3831 = vunpack.c.h.b16 %v951
    %v3832 = vunpack.c.l.b16 %v952
    %v3833 = vunpack.c.h.b16 %v952
    %v3834 = vunpack.c.l.b16 %v953
    %v3835 = vunpack.c.h.b16 %v953
    %v3836 = vunpack.c.l.b16 %v954
    %v3837 = vunpack.c.h.b16 %v954
    %v3838 = vunpack.c.l.b16 %v955
    %v3839 = vunpack.c.h.b16 %v955
    %v3840 = vunpack.c.l.b16 %v956
    %v3841 = vunpack.c.h.b16 %v956
    %v3842 = vunpack.c.l.b16 %v957
    %v3843 = vunpack.c.h.b16 %v957
    %v3844 = vunpack.c.l.b16 %v958
    %v3845 = vunpack.c.h.b16 %v958
    %v3846 = vunpack.c.l.b16 %v959
    %v3847 = vunpack.c.h.b16 %v959
    %v3848 = vunpack.c.l.b16 %v960
    %v3849 = vunpack.c.h.b16 %v960
    %v3850 = vunpack.c.l.b16 %v961
    %v3851 = vunpack.c.h.b16 %v961
    %v3852 = vunpack.c.l.b16 %v962
    %v3853 = vunpack.c.h.b16 %v962
    %v3854 = vunpack.c.l.b16 %v963
    %v3855 = vunpack.c.h.b16 %v963
    %v3856 = vunpack.c.l.b16 %v964
    %v3857 = vunpack.c.h.b16 %v964
    %v3858 = vunpack.c.l.b16 %v965
    %v3859 = vunpack.c.h.b16 %v965
    %v3860 = vunpack.c.l.b16 %v966
    %v3861 = vunpack.c.h.b16 %v966
    %v3862 = vunpack.c.l.b16 %v967
    %v3863 = vunpack.c.h.b16 %v967
    %v3864 = vunpack.c.l.b16 %v968
    %v3865 = vunpack.c.h.b16 %v968
    %v3866 = vunpack.c.l.b16 %v969
    %v3867 = vunpack.c.h.b16 %v969
    %v3868 = vunpack.c.l.b16 %v970
    %v3869 = vunpack.c.h.b16 %v970
    %v3870 = vunpack.c.l.b16 %v971
    %v3871 = vunpack.c.h.b16 %v971
    %v3872 = vunpack.c.l.b16 %v972
    %v3873 = vunpack.c.h.b16 %v972
    %v3874 = vunpack.c.l.b16 %v973
    %v3875 = vunpack.c.h.b16 %v973
    %v3876 = vunpack.c.l.b16 %v974
    %v3877 = vunpack.c.h.b16 %v974
    %v3878 = vunpack.c.l.b16 %v975
    %v3879 = vunpack.c.h.b16 %v975
    %v3880 = vunpack.c.l.b16 %v976
    %v3881 = vunpack.c.h.b16 %v976
    %v3882 = vunpack.c.l.b16 %v977
    %v3883 = vunpack.c.h.b16 %v977
    %v3884 = vunpack.c.l.b16 %v978
    %v3885 = vunpack.c.h.b16 %v978
    %v3886 = vunpack.c.l.b16 %v979
    %v3887 = vunpack.c.h.b16 %v979
    %v3888 = vunpack.c.l.b16 %v980
    %v3889 = vunpack.c.h.b16 %v980
    %v3890 = vunpack.c.l.b16 %v981
    %v3891 = vunpack.c.h.b16 %v981
    %v3892 = vunpack.c.l.b16 %v982
    %v3893 = vunpack.c.h.b16 %v982
    %v3894 = vunpack.c.l.b16 %v983
    %v3895 = vunpack.c.h.b16 %v983
    %v3896 = vunpack.c.l.b16 %v984
    %v3897 = vunpack.c.h.b16 %v984
    %v3898 = vunpack.c.l.b16 %v985
    %v3899 = vunpack.c.h.b16 %v985
    %v3900 = vunpack.c.l.b16 %v986
    %v3901 = vunpack.c.h.b16 %v986
    %v3902 = vunpack.c.l.b16 %v987
    %v3903 = vunpack.c.h.b16 %v987
    %v3904 = vunpack.c.l.b16 %v988
    %v3905 = vunpack.c.h.b16 %v988
    %v3906 = vunpack.c.l.b16 %v989
    %v3907 = vunpack.c.h.b16 %v989
    %v3908 = vunpack.c.l.b16 %v990
    %v3909 = vunpack.c.h.b16 %v990
    %v3910 = vunpack.c.l.b16 %v991
    %v3911 = vunpack.c.h.b16 %v991
    %v3912 = vunpack.c.l.b16 %v992
    %v3913 = vunpack.c.h.b16 %v992
    %v3914 = vunpack.c.l.b16 %v993
    %v3915 = vunpack.c.h.b16 %v993
    %v3916 = vunpack.c.l.b16 %v994
    %v3917 = vunpack.c.h.b16 %v994
    %v3918 = vunpack.c.l.b16 %v995
    %v3919 = vunpack.c.h.b16 %v995
    %v3920 = vunpack.c.l.b16 %v996
    %v3921 = vunpack.c.h.b16 %v996
    %v3922 = vunpack.c.l.b16 %v997
    %v3923 = vunpack.c.h.b16 %v997
    %v3924 = vunpack.c.l.b16 %v998
    %v3925 = vunpack.c.h.b16 %v998
    %v3926 = vunpack.c.l.b16 %v999
    %v3927 = vunpack.c.h.b16 %v999
    %v3928 = vunpack.c.l.b16 %v1000
    %v3929 = vunpack.c.h.b16 %v1000
    %v3930 = vunpack.c.l.b16 %v1001
    %v3931 = vunpack.c.h.b16 %v1001
    %v3932 = vunpack.c.l.b16 %v1002
    %v3933 = vunpack.c.h.b16 %v1002
    %v3934 = vunpack.c.l.b16 %v1003
    %v3935 = vunpack.c.h.b16 %v1003
    %v3936 = vunpack.c.l.b16 %v1004
    %v3937 = vunpack.c.h.b16 %v1004
    %v3938 = vunpack.c.l.b16 %v1005
    %v3939 = vunpack.c.h.b16 %v1005
    %v3940 = vunpack.c.l.b16 %v1006
    %v3941 = vunpack.c.h.b16 %v1006
    %v3942 = vunpack.c.l.b16 %v1007
    %v3943 = vunpack.c.h.b16 %v1007
    %v3944 = vunpack.c.l.b16 %v1008
    %v3945 = vunpack.c.h.b16 %v1008
    %v3946 = vunpack.c.l.b16 %v1009
    %v3947 = vunpack.c.h.b16 %v1009
    %v3948 = vunpack.c.l.b16 %v1010
    %v3949 = vunpack.c.h.b16 %v1010
    %v3950 = vunpack.c.l.b16 %v1011
    %v3951 = vunpack.c.h.b16 %v1011
    %v3952 = vpack.c.b16 %v2042, %v2032
    %v3953 = vpack.c.b16 %v2043, %v2033
    %v3954 = vpack.c.b16 %v2044, %v2034
    %v3955 = vpack.c.b16 %v2045, %v2035
    %v3956 = vpack.c.b16 %v2046, %v2036
    %v3957 = vpack.c.b16 %v2047, %v2037
    %v3958 = vpack.c.b16 %v2048, %v2038
    %v3959 = vpack.c.b16 %v2049, %v2039
    %v3960 = vpack.c.b16 %v2050, %v2040
    %v3961 = vpack.c.b16 %v2051, %v2041
    %v3962 = vpack.c.b16 %v2062, %v2052
    %v3963 = vpack.c.b16 %v2063, %v2053
    %v3964 = vpack.c.b16 %v2064, %v2054
    %v3965 = vpack.c.b16 %v2065, %v2055
    %v3966 = vpack.c.b16 %v2066, %v2056
    %v3967 = vpack.c.b16 %v2067, %v2057
    %v3968 = vpack.c.b16 %v2068, %v2058
    %v3969 = vpack.c.b16 %v2069, %v2059
    %v3970 = vpack.c.b16 %v2070, %v2060
    %v3971 = vpack.c.b16 %v2071, %v2061
    %v3972 = vpack.c.b16 %v2082, %v2072
    %v3973 = vpack.c.b16 %v2083, %v2073
    %v3974 = vpack.c.b16 %v2084, %v2074
    %v3975 = vpack.c.b16 %v2085, %v2075
    %v3976 = vpack.c.b16 %v2086, %v2076
    %v3977 = vpack.c.b16 %v2087, %v2077
    %v3978 = vpack.c.b16 %v2088, %v2078
    %v3979 = vpack.c.b16 %v2089, %v2079
    %v3980 = vpack.c.b16 %v2090, %v2080
    %v3981 = vpack.c.b16 %v2091, %v2081
    %v3982 = vpack.c.b16 %v2102, %v2092
    %v3983 = vpack.c.b16 %v2103, %v2093
    %v3984 = vpack.c.b16 %v2104, %v2094
    %v3985 = vpack.c.b16 %v2105, %v2095
    %v3986 = vpack.c.b16 %v2106, %v2096
    %v3987 = vpack.c.b16 %v2107, %v2097
    %v3988 = vpack.c.b16 %v2108, %v2098
    %v3989 = vpack.c.b16 %v2109, %v2099
    %v3990 = vpack.c.b16 %v2110, %v2100
    %v3991 = vpack.c.b16 %v2111, %v2101
    %v3992 = vpack.c.b16 %v2122, %v2112
    %v3993 = vpack.c.b16 %v2123, %v2113
    %v3994 = vpack.c.b16 %v2124, %v2114
    %v3995 = vpack.c.b16 %v2125, %v2115
    %v3996 = vpack.c.b16 %v2126, %v2116
    %v3997 = vpack.c.b16 %v2127, %v2117
    %v3998 = vpack.c.b16 %v2128, %v2118
    %v3999 = vpack.c.b16 %v2129, %v2119
    %v4000 = vpack.c.b16 %v2130, %v2120
    %v4001 = vpack.c.b16 %v2131, %v2121
    %v4002 = vpack.c.b16 %v2142, %v2132
    %v4003 = vpack.c.b16 %v2143, %v2133
    %v4004 = vpack.c.b16 %v2144, %v2134
    %v4005 = vpack.c.b16 %v2145, %v2135
    %v4006 = vpack.c.b16 %v2146, %v2136
    %v4007 = vpack.c.b16 %v2147, %v2137
    %v4008 = vpack.c.b16 %v2148, %v2138
    %v4009 = vpack.c.b16 %v2149, %v2139
    %v4010 = vpack.c.b16 %v2150, %v2140
    %v4011 = vpack.c.b16 %v2151, %v2141
    %v4012 = vpack.c.b16 %v2162, %v2152
    %v4013 = vpack.c.b16 %v2163, %v2153
    %v4014 = vpack.c.b16 %v2164, %v2154
    %v4015 = vpack.c.b16 %v2165, %v2155
    %v4016 = vpack.c.b16 %v2166, %v2156
    %v4017 = vpack.c.b16 %v2167, %v2157
    %v4018 = vpack.c.b16 %v2168, %v2158
    %v4019 = vpack.c.b16 %v2169, %v2159
    %v4020 = vpack.c.b16 %v2170, %v2160
    %v4021 = vpack.c.b16 %v2171, %v2161
    %v4022 = vpack.c.b16 %v2182, %v2172
    %v4023 = vpack.c.b16 %v2183, %v2173
    %v4024 = vpack.c.b16 %v2184, %v2174
    %v4025 = vpack.c.b16 %v2185, %v2175
    %v4026 = vpack.c.b16 %v2186, %v2176
    %v4027 = vpack.c.b16 %v2187, %v2177
    %v4028 = vpack.c.b16 %v2188, %v2178
    %v4029 = vpack.c.b16 %v2189, %v2179
    %v4030 = vpack.c.b16 %v2190, %v2180
    %v4031 = vpack.c.b16 %v2191, %v2181
    %v4032 = vpack.c.b16 %v2202, %v2192
    %v4033 = vpack.c.b16 %v2203, %v2193
    %v4034 = vpack.c.b16 %v2204, %v2194
    %v4035 = vpack.c.b16 %v2205, %v2195
    %v4036 = vpack.c.b16 %v2206, %v2196
    %v4037 = vpack.c.b16 %v2207, %v2197
    %v4038 = vpack.c.b16 %v2208, %v2198
    %v4039 = vpack.c.b16 %v2209, %v2199
    %v4040 = vpack.c.b16 %v2210, %v2200
    %v4041 = vpack.c.b16 %v2211, %v2201
    %v4042 = vpack.c.b16 %v2222, %v2212
    %v4043 = vpack.c.b16 %v2223, %v2213
    %v4044 = vpack.c.b16 %v2224, %v2214
    %v4045 = vpack.c.b16 %v2225, %v2215
    %v4046 = vpack.c.b16 %v2226, %v2216
    %v4047 = vpack.c.b16 %v2227, %v2217
    %v4048 = vpack.c.b16 %v2228, %v2218
    %v4049 = vpack.c.b16 %v2229, %v2219
    %v4050 = vpack.c.b16 %v2230, %v2220
    %v4051 = vpack.c.b16 %v2231, %v2221
    %v4052 = vpack.c.b16 %v2242, %v2232
    %v4053 = vpack.c.b16 %v2243, %v2233
    %v4054 = vpack.c.b16 %v2244, %v2234
    %v4055 = vpack.c.b16 %v2245, %v2235
    %v4056 = vpack.c.b16 %v2246, %v2236
    %v4057 = vpack.c.b16 %v2247, %v2237
    %v4058 = vpack.c.b16 %v2248, %v2238
    %v4059 = vpack.c.b16 %v2249, %v2239
    %v4060 = vpack.c.b16 %v2250, %v2240
    %v4061 = vpack.c.b16 %v2251, %v2241
    %v4062 = vpack.c.b16 %v2262, %v2252
    %v4063 = vpack.c.b16 %v2263, %v2253
    %v4064 = vpack.c.b16 %v2264, %v2254
    %v4065 = vpack.c.b16 %v2265, %v2255
    %v4066 = vpack.c.b16 %v2266, %v2256
    %v4067 = vpack.c.b16 %v2267, %v2257
    %v4068 = vpack.c.b16 %v2268, %v2258
    %v4069 = vpack.c.b16 %v2269, %v2259
    %v4070 = vpack.c.b16 %v2270, %v2260
    %v4071 = vpack.c.b16 %v2271, %v2261
    %v4072 = vpack.c.b16 %v2282, %v2272
    %v4073 = vpack.c.b16 %v2283, %v2273
    %v4074 = vpack.c.b16 %v2284, %v2274
    %v4075 = vpack.c.b16 %v2285, %v2275
    %v4076 = vpack.c.b16 %v2286, %v2276
    %v4077 = vpack.c.b16 %v2287, %v2277
    %v4078 = vpack.c.b16 %v2288, %v2278
    %v4079 = vpack.c.b16 %v2289, %v2279
    %v4080 = vpack.c.b16 %v2290, %v2280
    %v4081 = vpack.c.b16 %v2291, %v2281
    %v4082 = vpack.c.b16 %v2302, %v2292
    %v4083 = vpack.c.b16 %v2303, %v2293
    %v4084 = vpack.c.b16 %v2304, %v2294
    %v4085 = vpack.c.b16 %v2305, %v2295
    %v4086 = vpack.c.b16 %v2306, %v2296
    %v4087 = vpack.c.b16 %v2307, %v2297
    %v4088 = vpack.c.b16 %v2308, %v2298
    %v4089 = vpack.c.b16 %v2309, %v2299
    %v4090 = vpack.c.b16 %v2310, %v2300
    %v4091 = vpack.c.b16 %v2311, %v2301
    %v4092 = vpack.c.b16 %v2322, %v2312
    %v4093 = vpack.c.b16 %v2323, %v2313
    %v4094 = vpack.c.b16 %v2324, %v2314
    %v4095 = vpack.c.b16 %v2325, %v2315
    %v4096 = vpack.c.b16 %v2326, %v2316
    %v4097 = vpack.c.b16 %v2327, %v2317
    %v4098 = vpack.c.b16 %v2328, %v2318
    %v4099 = vpack.c.b16 %v2329, %v2319
    %v4100 = vpack.c.b16 %v2330, %v2320
    %v4101 = vpack.c.b16 %v2331, %v2321
    %v4102 = vpack.c.b16 %v2342, %v2332
    %v4103 = vpack.c.b16 %v2343, %v2333
    %v4104 = vpack.c.b16 %v2344, %v2334
    %v4105 = vpack.c.b16 %v2345, %v2335
    %v4106 = vpack.c.b16 %v2346, %v2336
    %v4107 = vpack.c.b16 %v2347, %v2337
    %v4108 = vpack.c.b16 %v2348, %v2338
    %v4109 = vpack.c.b16 %v2349, %v2339
    %v4110 = vpack.c.b16 %v2350, %v2340
    %v4111 = vpack.c.b16 %v2351, %v2341
    %v4112 = vpack.c.b16 %v2362, %v2352
    %v4113 = vpack.c.b16 %v2363, %v2353
    %v4114 = vpack.c.b16 %v2364, %v2354
    %v4115 = vpack.c.b16 %v2365, %v2355
    %v4116 = vpack.c.b16 %v2366, %v2356
    %v4117 = vpack.c.b16 %v2367, %v2357
    %v4118 = vpack.c.b16 %v2368, %v2358
    %v4119 = vpack.c.b16 %v2369, %v2359
    %v4120 = vpack.c.b16 %v2370, %v2360
    %v4121 = vpack.c.b16 %v2371, %v2361
    %v4122 = vpack.c.b16 %v2382, %v2372
    %v4123 = vpack.c.b16 %v2383, %v2373
    %v4124 = vpack.c.b16 %v2384, %v2374
    %v4125 = vpack.c.b16 %v2385, %v2375
    %v4126 = vpack.c.b16 %v2386, %v2376
    %v4127 = vpack.c.b16 %v2387, %v2377
    %v4128 = vpack.c.b16 %v2388, %v2378
    %v4129 = vpack.c.b16 %v2389, %v2379
    %v4130 = vpack.c.b16 %v2390, %v2380
    %v4131 = vpack.c.b16 %v2391, %v2381
    %v4132 = vpack.c.b16 %v2402, %v2392
    %v4133 = vpack.c.b16 %v2403, %v2393
    %v4134 = vpack.c.b16 %v2404, %v2394
    %v4135 = vpack.c.b16 %v2405, %v2395
    %v4136 = vpack.c.b16 %v2406, %v2396
    %v4137 = vpack.c.b16 %v2407, %v2397
    %v4138 = vpack.c.b16 %v2408, %v2398
    %v4139 = vpack.c.b16 %v2409, %v2399
    %v4140 = vpack.c.b16 %v2410, %v2400
    %v4141 = vpack.c.b16 %v2411, %v2401
    %v4142 = vpack.c.b16 %v2422, %v2412
    %v4143 = vpack.c.b16 %v2423, %v2413
    %v4144 = vpack.c.b16 %v2424, %v2414
    %v4145 = vpack.c.b16 %v2425, %v2415
    %v4146 = vpack.c.b16 %v2426, %v2416
    %v4147 = vpack.c.b16 %v2427, %v2417
    %v4148 = vpack.c.b16 %v2428, %v2418
    %v4149 = vpack.c.b16 %v2429, %v2419
    %v4150 = vpack.c.b16 %v2430, %v2420
    %v4151 = vpack.c.b16 %v2431, %v2421
    %v4152 = vpack.c.b16 %v2442, %v2432
    %v4153 = vpack.c.b16 %v2443, %v2433
    %v4154 = vpack.c.b16 %v2444, %v2434
    %v4155 = vpack.c.b16 %v2445, %v2435
    %v4156 = vpack.c.b16 %v2446, %v2436
    %v4157 = vpack.c.b16 %v2447, %v2437
    %v4158 = vpack.c.b16 %v2448, %v2438
    %v4159 = vpack.c.b16 %v2449, %v2439
    %v4160 = vpack.c.b16 %v2450, %v2440
    %v4161 = vpack.c.b16 %v2451, %v2441
    %v4162 = vpack.c.b16 %v2462, %v2452
    %v4163 = vpack.c.b16 %v2463, %v2453
    %v4164 = vpack.c.b16 %v2464, %v2454
    %v4165 = vpack.c.b16 %v2465, %v2455
    %v4166 = vpack.c.b16 %v2466, %v2456
    %v4167 = vpack.c.b16 %v2467, %v2457
    %v4168 = vpack.c.b16 %v2468, %v2458
    %v4169 = vpack.c.b16 %v2469, %v2459
    %v4170 = vpack.c.b16 %v2470, %v2460
    %v4171 = vpack.c.b16 %v2471, %v2461
    %v4172 = vpack.c.b16 %v2482, %v2472
    %v4173 = vpack.c.b16 %v2483, %v2473
    %v4174 = vpack.c.b16 %v2484, %v2474
    %v4175 = vpack.c.b16 %v2485, %v2475
    %v4176 = vpack.c.b16 %v2486, %v2476
    %v4177 = vpack.c.b16 %v2487, %v2477
    %v4178 = vpack.c.b16 %v2488, %v2478
    %v4179 = vpack.c.b16 %v2489, %v2479
    %v4180 = vpack.c.b16 %v2490, %v2480
    %v4181 = vpack.c.b16 %v2491, %v2481
    %v4182 = vpack.c.b16 %v2502, %v2492
    %v4183 = vpack.c.b16 %v2503, %v2493
    %v4184 = vpack.c.b16 %v2504, %v2494
    %v4185 = vpack.c.b16 %v2505, %v2495
    %v4186 = vpack.c.b16 %v2506, %v2496
    %v4187 = vpack.c.b16 %v2507, %v2497
    %v4188 = vpack.c.b16 %v2508, %v2498
    %v4189 = vpack.c.b16 %v2509, %v2499
    %v4190 = vpack.c.b16 %v2510, %v2500
    %v4191 = vpack.c.b16 %v2511, %v2501
    %v4192 = vpack.c.b16 %v2522, %v2512
    %v4193 = vpack.c.b16 %v2523, %v2513
    %v4194 = vpack.c.b16 %v2524, %v2514
    %v4195 = vpack.c.b16 %v2525, %v2515
    %v4196 = vpack.c.b16 %v2526, %v2516
    %v4197 = vpack.c.b16 %v2527, %v2517
    %v4198 = vpack.c.b16 %v2528, %v2518
    %v4199 = vpack.c.b16 %v2529, %v2519
    %v4200 = vpack.c.b16 %v2530, %v2520
    %v4201 = vpack.c.b16 %v2531, %v2521
    %v4202 = vpack.c.b16 %v2542, %v2532
    %v4203 = vpack.c.b16 %v2543, %v2533
    %v4204 = vpack.c.b16 %v2544, %v2534
    %v4205 = vpack.c.b16 %v2545, %v2535
    %v4206 = vpack.c.b16 %v2546, %v2536
    %v4207 = vpack.c.b16 %v2547, %v2537
    %v4208 = vpack.c.b16 %v2548, %v2538
    %v4209 = vpack.c.b16 %v2549, %v2539
    %v4210 = vpack.c.b16 %v2550, %v2540
    %v4211 = vpack.c.b16 %v2551, %v2541
    %v4212 = vpack.c.b16 %v2562, %v2552
    %v4213 = vpack.c.b16 %v2563, %v2553
    %v4214 = vpack.c.b16 %v2564, %v2554
    %v4215 = vpack.c.b16 %v2565, %v2555
    %v4216 = vpack.c.b16 %v2566, %v2556
    %v4217 = vpack.c.b16 %v2567, %v2557
    %v4218 = vpack.c.b16 %v2568, %v2558
    %v4219 = vpack.c.b16 %v2569, %v2559
    %v4220 = vpack.c.b16 %v2570, %v2560
    %v4221 = vpack.c.b16 %v2571, %v2561
    %v4222 = vpack.c.b16 %v2582, %v2572
    %v4223 = vpack.c.b16 %v2583, %v2573
    %v4224 = vpack.c.b16 %v2584, %v2574
    %v4225 = vpack.c.b16 %v2585, %v2575
    %v4226 = vpack.c.b16 %v2586, %v2576
    %v4227 = vpack.c.b16 %v2587, %v2577
    %v4228 = vpack.c.b16 %v2588, %v2578
    %v4229 = vpack.c.b16 %v2589, %v2579
    %v4230 = vpack.c.b16 %v2590, %v2580
    %v4231 = vpack.c.b16 %v2591, %v2581
    %v4232 = vpack.c.b16 %v2602, %v2592
    %v4233 = vpack.c.b16 %v2603, %v2593
    %v4234 = vpack.c.b16 %v2604, %v2594
    %v4235 = vpack.c.b16 %v2605, %v2595
    %v4236 = vpack.c.b16 %v2606, %v2596
    %v4237 = vpack.c.b16 %v2607, %v2597
    %v4238 = vpack.c.b16 %v2608, %v2598
    %v4239 = vpack.c.b16 %v2609, %v2599
    %v4240 = vpack.c.b16 %v2610, %v2600
    %v4241 = vpack.c.b16 %v2611, %v2601
    %v4242 = vpack.c.b16 %v2622, %v2612
    %v4243 = vpack.c.b16 %v2623, %v2613
    %v4244 = vpack.c.b16 %v2624, %v2614
    %v4245 = vpack.c.b16 %v2625, %v2615
    %v4246 = vpack.c.b16 %v2626, %v2616
    %v4247 = vpack.c.b16 %v2627, %v2617
    %v4248 = vpack.c.b16 %v2628, %v2618
    %v4249 = vpack.c.b16 %v2629, %v2619
    %v4250 = vpack.c.b16 %v2630, %v2620
    %v4251 = vpack.c.b16 %v2631, %v2621
    %v4252 = vpack.c.b16 %v2642, %v2632
    %v4253 = vpack.c.b16 %v2643, %v2633
    %v4254 = vpack.c.b16 %v2644, %v2634
    %v4255 = vpack.c.b16 %v2645, %v2635
    %v4256 = vpack.c.b16 %v2646, %v2636
    %v4257 = vpack.c.b16 %v2647, %v2637
    %v4258 = vpack.c.b16 %v2648, %v2638
    %v4259 = vpack.c.b16 %v2649, %v2639
    %v4260 = vpack.c.b16 %v2650, %v2640
    %v4261 = vpack.c.b16 %v2651, %v2641
    %v4262 = vpack.c.b16 %v2662, %v2652
    %v4263 = vpack.c.b16 %v2663, %v2653
    %v4264 = vpack.c.b16 %v2664, %v2654
    %v4265 = vpack.c.b16 %v2665, %v2655
    %v4266 = vpack.c.b16 %v2666, %v2656
    %v4267 = vpack.c.b16 %v2667, %v2657
    %v4268 = vpack.c.b16 %v2668, %v2658
    %v4269 = vpack.c.b16 %v2669, %v2659
    %v4270 = vpack.c.b16 %v2670, %v2660
    %v4271 = vpack.c.b16 %v2671, %v2661
    %v4272 = vpack.c.b16 %v2682, %v2672
    %v4273 = vpack.c.b16 %v2683, %v2673
    %v4274 = vpack.c.b16 %v2684, %v2674
    %v4275 = vpack.c.b16 %v2685, %v2675
    %v4276 = vpack.c.b16 %v2686, %v2676
    %v4277 = vpack.c.b16 %v2687, %v2677
    %v4278 = vpack.c.b16 %v2688, %v2678
    %v4279 = vpack.c.b16 %v2689, %v2679
    %v4280 = vpack.c.b16 %v2690, %v2680
    %v4281 = vpack.c.b16 %v2691, %v2681
    %v4282 = vpack.c.b16 %v2702, %v2692
    %v4283 = vpack.c.b16 %v2703, %v2693
    %v4284 = vpack.c.b16 %v2704, %v2694
    %v4285 = vpack.c.b16 %v2705, %v2695
    %v4286 = vpack.c.b16 %v2706, %v2696
    %v4287 = vpack.c.b16 %v2707, %v2697
    %v4288 = vpack.c.b16 %v2708, %v2698
    %v4289 = vpack.c.b16 %v2709, %v2699
    %v4290 = vpack.c.b16 %v2710, %v2700
    %v4291 = vpack.c.b16 %v2711, %v2701
    %v4292 = vpack.c.b16 %v2722, %v2712
    %v4293 = vpack.c.b16 %v2723, %v2713
    %v4294 = vpack.c.b16 %v2724, %v2714
    %v4295 = vpack.c.b16 %v2725, %v2715
    %v4296 = vpack.c.b16 %v2726, %v2716
    %v4297 = vpack.c.b16 %v2727, %v2717
    %v4298 = vpack.c.b16 %v2728, %v2718
    %v4299 = vpack.c.b16 %v2729, %v2719
    %v4300 = vpack.c.b16 %v2730, %v2720
    %v4301 = vpack.c.b16 %v2731, %v2721
    %v4302 = vpack.c.b16 %v2742, %v2732
    %v4303 = vpack.c.b16 %v2743, %v2733
    %v4304 = vpack.c.b16 %v2744, %v2734
    %v4305 = vpack.c.b16 %v2745, %v2735
    %v4306 = vpack.c.b16 %v2746, %v2736
    %v4307 = vpack.c.b16 %v2747, %v2737
    %v4308 = vpack.c.b16 %v2748, %v2738
    %v4309 = vpack.c.b16 %v2749, %v2739
    %v4310 = vpack.c.b16 %v2750, %v2740
    %v4311 = vpack.c.b16 %v2751, %v2741
    %v4312 = vpack.c.b16 %v2762, %v2752
    %v4313 = vpack.c.b16 %v2763, %v2753
    %v4314 = vpack.c.b16 %v2764, %v2754
    %v4315 = vpack.c.b16 %v2765, %v2755
    %v4316 = vpack.c.b16 %v2766, %v2756
    %v4317 = vpack.c.b16 %v2767, %v2757
    %v4318 = vpack.c.b16 %v2768, %v2758
    %v4319 = vpack.c.b16 %v2769, %v2759
    %v4320 = vpack.c.b16 %v2770, %v2760
    %v4321 = vpack.c.b16 %v2771, %v2761
    %v4322 = vpack.c.b16 %v2782, %v2772
    %v4323 = vpack.c.b16 %v2783, %v2773
    %v4324 = vpack.c.b16 %v2784, %v2774
    %v4325 = vpack.c.b16 %v2785, %v2775
    %v4326 = vpack.c.b16 %v2786, %v2776
    %v4327 = vpack.c.b16 %v2787, %v2777
    %v4328 = vpack.c.b16 %v2788, %v2778
    %v4329 = vpack.c.b16 %v2789, %v2779
    %v4330 = vpack.c.b16 %v2790, %v2780
    %v4331 = vpack.c.b16 %v2791, %v2781
    %v4332 = vpack.c.b16 %v2802, %v2792
    %v4333 = vpack.c.b16 %v2803, %v2793
    %v4334 = vpack.c.b16 %v2804, %v2794
    %v4335 = vpack.c.b16 %v2805, %v2795
    %v4336 = vpack.c.b16 %v2806, %v2796
    %v4337 = vpack.c.b16 %v2807, %v2797
    %v4338 = vpack.c.b16 %v2808, %v2798
    %v4339 = vpack.c.b16 %v2809, %v2799
    %v4340 = vpack.c.b16 %v2810, %v2800
    %v4341 = vpack.c.b16 %v2811, %v2801
    %v4342 = vpack.c.b16 %v2822, %v2812
    %v4343 = vpack.c.b16 %v2823, %v2813
    %v4344 = vpack.c.b16 %v2824, %v2814
    %v4345 = vpack.c.b16 %v2825, %v2815
    %v4346 = vpack.c.b16 %v2826, %v2816
    %v4347 = vpack.c.b16 %v2827, %v2817
    %v4348 = vpack.c.b16 %v2828, %v2818
    %v4349 = vpack.c.b16 %v2829, %v2819
    %v4350 = vpack.c.b16 %v2830, %v2820
    %v4351 = vpack.c.b16 %v2831, %v2821
    %v4352 = vpack.c.b16 %v2842, %v2832
    %v4353 = vpack.c.b16 %v2843, %v2833
    %v4354 = vpack.c.b16 %v2844, %v2834
    %v4355 = vpack.c.b16 %v2845, %v2835
    %v4356 = vpack.c.b16 %v2846, %v2836
    %v4357 = vpack.c.b16 %v2847, %v2837
    %v4358 = vpack.c.b16 %v2848, %v2838
    %v4359 = vpack.c.b16 %v2849, %v2839
    %v4360 = vpack.c.b16 %v2850, %v2840
    %v4361 = vpack.c.b16 %v2851, %v2841
    %v4362 = vpack.c.b16 %v2862, %v2852
    %v4363 = vpack.c.b16 %v2863, %v2853
    %v4364 = vpack.c.b16 %v2864, %v2854
    %v4365 = vpack.c.b16 %v2865, %v2855
    %v4366 = vpack.c.b16 %v2866, %v2856
    %v4367 = vpack.c.b16 %v2867, %v2857
    %v4368 = vpack.c.b16 %v2868, %v2858
    %v4369 = vpack.c.b16 %v2869, %v2859
    %v4370 = vpack.c.b16 %v2870, %v2860
    %v4371 = vpack.c.b16 %v2871, %v2861
    %v4372 = vpack.c.b16 %v2882, %v2872
    %v4373 = vpack.c.b16 %v2883, %v2873
    %v4374 = vpack.c.b16 %v2884, %v2874
    %v4375 = vpack.c.b16 %v2885, %v2875
    %v4376 = vpack.c.b16 %v2886, %v2876
    %v4377 = vpack.c.b16 %v2887, %v2877
    %v4378 = vpack.c.b16 %v2888, %v2878
    %v4379 = vpack.c.b16 %v2889, %v2879
    %v4380 = vpack.c.b16 %v2890, %v2880
    %v4381 = vpack.c.b16 %v2891, %v2881
    %v4382 = vpack.c.b16 %v2902, %v2892
    %v4383 = vpack.c.b16 %v2903, %v2893
    %v4384 = vpack.c.b16 %v2904, %v2894
    %v4385 = vpack.c.b16 %v2905, %v2895
    %v4386 = vpack.c.b16 %v2906, %v2896
    %v4387 = vpack.c.b16 %v2907, %v2897
    %v4388 = vpack.c.b16 %v2908, %v2898
    %v4389 = vpack.c.b16 %v2909, %v2899
    %v4390 = vpack.c.b16 %v2910, %v2900
    %v4391 = vpack.c.b16 %v2911, %v2901
    %v4392 = vpack.c.b16 %v2922, %v2912
    %v4393 = vpack.c.b16 %v2923, %v2913
    %v4394 = vpack.c.b16 %v2924, %v2914
    %v4395 = vpack.c.b16 %v2925, %v2915
    %v4396 = vpack.c.b16 %v2926, %v2916
    %v4397 = vpack.c.b16 %v2927, %v2917
    %v4398 = vpack.c.b16 %v2928, %v2918
    %v4399 = vpack.c.b16 %v2929, %v2919
    %v4400 = vpack.c.b16 %v2930, %v2920
    %v4401 = vpack.c.b16 %v2931, %v2921
    %v4402 = vpack.c.b16 %v2942, %v2932
    %v4403 = vpack.c.b16 %v2943, %v2933
    %v4404 = vpack.c.b16 %v2944, %v2934
    %v4405 = vpack.c.b16 %v2945, %v2935
    %v4406 = vpack.c.b16 %v2946, %v2936
    %v4407 = vpack.c.b16 %v2947, %v2937
    %v4408 = vpack.c.b16 %v2948, %v2938
    %v4409 = vpack.c.b16 %v2949, %v2939
    %v4410 = vpack.c.b16 %v2950, %v2940
    %v4411 = vpack.c.b16 %v2951, %v2941
    %v4412 = vpack.c.b16 %v2962, %v2952
    %v4413 = vpack.c.b16 %v2963, %v2953
    %v4414 = vpack.c.b16 %v2964, %v2954
    %v4415 = vpack.c.b16 %v2965, %v2955
    %v4416 = vpack.c.b16 %v2966, %v2956
    %v4417 = vpack.c.b16 %v2967, %v2957
    %v4418 = vpack.c.b16 %v2968, %v2958
    %v4419 = vpack.c.b16 %v2969, %v2959
    %v4420 = vpack.c.b16 %v2970, %v2960
    %v4421 = vpack.c.b16 %v2971, %v2961
    %v4422 = vpack.c.b16 %v2982, %v2972
    %v4423 = vpack.c.b16 %v2983, %v2973
    %v4424 = vpack.c.b16 %v2984, %v2974
    %v4425 = vpack.c.b16 %v2985, %v2975
    %v4426 = vpack.c.b16 %v2986, %v2976
    %v4427 = vpack.c.b16 %v2987, %v2977
    %v4428 = vpack.c.b16 %v2988, %v2978
    %v4429 = vpack.c.b16 %v2989, %v2979
    %v4430 = vpack.c.b16 %v2990, %v2980
    %v4431 = vpack.c.b16 %v2991, %v2981
    %v4432 = vpack.c.b16 %v3002, %v2992
    %v4433 = vpack.c.b16 %v3003, %v2993
    %v4434 = vpack.c.b16 %v3004, %v2994
    %v4435 = vpack.c.b16 %v3005, %v2995
    %v4436 = vpack.c.b16 %v3006, %v2996
    %v4437 = vpack.c.b16 %v3007, %v2997
    %v4438 = vpack.c.b16 %v3008, %v2998
    %v4439 = vpack.c.b16 %v3009, %v2999
    %v4440 = vpack.c.b16 %v3010, %v3000
    %v4441 = vpack.c.b16 %v3011, %v3001
    %v4442 = vpack.c.b16 %v3022, %v3012
    %v4443 = vpack.c.b16 %v3023, %v3013
    %v4444 = vpack.c.b16 %v3024, %v3014
    %v4445 = vpack.c.b16 %v3025, %v3015
    %v4446 = vpack.c.b16 %v3026, %v3016
    %v4447 = vpack.c.b16 %v3027, %v3017
    %v4448 = vpack.c.b16 %v3028, %v3018
    %v4449 = vpack.c.b16 %v3029, %v3019
    %v4450 = vpack.c.b16 %v3030, %v3020
    %v4451 = vpack.c.b16 %v3031, %v3021
    %v4452 = vpack.c.b16 %v3042, %v3032
    %v4453 = vpack.c.b16 %v3043, %v3033
    %v4454 = vpack.c.b16 %v3044, %v3034
    %v4455 = vpack.c.b16 %v3045, %v3035
    %v4456 = vpack.c.b16 %v3046, %v3036
    %v4457 = vpack.c.b16 %v3047, %v3037
    %v4458 = vpack.c.b16 %v3048, %v3038
    %v4459 = vpack.c.b16 %v3049, %v3039
    %v4460 = vpack.c.b16 %v3050, %v3040
    %v4461 = vpack.c.b16 %v3051, %v3041
    %v4462 = vpack.c.b16 %v3062, %v3052
    %v4463 = vpack.c.b16 %v3063, %v3053
    %v4464 = vpack.c.b16 %v3064, %v3054
    %v4465 = vpack.c.b16 %v3065, %v3055
    %v4466 = vpack.c.b16 %v3066, %v3056
    %v4467 = vpack.c.b16 %v3067, %v3057
    %v4468 = vpack.c.b16 %v3068, %v3058
    %v4469 = vpack.c.b16 %v3069, %v3059
    %v4470 = vpack.c.b16 %v3070, %v3060
    %v4471 = vpack.c.b16 %v3071, %v3061
    %v4472 = vpack.c.b16 %v3082, %v3072
    %v4473 = vpack.c.b16 %v3083, %v3073
    %v4474 = vpack.c.b16 %v3084, %v3074
    %v4475 = vpack.c.b16 %v3085, %v3075
    %v4476 = vpack.c.b16 %v3086, %v3076
    %v4477 = vpack.c.b16 %v3087, %v3077
    %v4478 = vpack.c.b16 %v3088, %v3078
    %v4479 = vpack.c.b16 %v3089, %v3079
    %v4480 = vpack.c.b16 %v3090, %v3080
    %v4481 = vpack.c.b16 %v3091, %v3081
    %v4482 = vpack.c.b16 %v3102, %v3092
    %v4483 = vpack.c.b16 %v3103, %v3093
    %v4484 = vpack.c.b16 %v3104, %v3094
    %v4485 = vpack.c.b16 %v3105, %v3095
    %v4486 = vpack.c.b16 %v3106, %v3096
    %v4487 = vpack.c.b16 %v3107, %v3097
    %v4488 = vpack.c.b16 %v3108, %v3098
    %v4489 = vpack.c.b16 %v3109, %v3099
    %v4490 = vpack.c.b16 %v3110, %v3100
    %v4491 = vpack.c.b16 %v3111, %v3101
    %v4492 = vpack.c.b16 %v3122, %v3112
    %v4493 = vpack.c.b16 %v3123, %v3113
    %v4494 = vpack.c.b16 %v3124, %v3114
    %v4495 = vpack.c.b16 %v3125, %v3115
    %v4496 = vpack.c.b16 %v3126, %v3116
    %v4497 = vpack.c.b16 %v3127, %v3117
    %v4498 = vpack.c.b16 %v3128, %v3118
    %v4499 = vpack.c.b16 %v3129, %v3119
    %v4500 = vpack.c.b16 %v3130, %v3120
    %v4501 = vpack.c.b16 %v3131, %v3121
    %v4502 = vpack.c.b16 %v3142, %v3132
    %v4503 = vpack.c.b16 %v3143, %v3133
    %v4504 = vpack.c.b16 %v3144, %v3134
    %v4505 = vpack.c.b16 %v3145, %v3135
    %v4506 = vpack.c.b16 %v3146, %v3136
    %v4507 = vpack.c.b16 %v3147, %v3137
    %v4508 = vpack.c.b16 %v3148, %v3138
    %v4509 = vpack.c.b16 %v3149, %v3139
    %v4510 = vpack.c.b16 %v3150, %v3140
    %v4511 = vpack.c.b16 %v3151, %v3141
    %v4512 = vpack.c.b16 %v3162, %v3152
    %v4513 = vpack.c.b16 %v3163, %v3153
    %v4514 = vpack.c.b16 %v3164, %v3154
    %v4515 = vpack.c.b16 %v3165, %v3155
    %v4516 = vpack.c.b16 %v3166, %v3156
    %v4517 = vpack.c.b16 %v3167, %v3157
    %v4518 = vpack.c.b16 %v3168, %v3158
    %v4519 = vpack.c.b16 %v3169, %v3159
    %v4520 = vpack.c.b16 %v3170, %v3160
    %v4521 = vpack.c.b16 %v3171, %v3161
    %v4522 = vpack.c.b16 %v3182, %v3172
    %v4523 = vpack.c.b16 %v3183, %v3173
    %v4524 = vpack.c.b16 %v3184, %v3174
    %v4525 = vpack.c.b16 %v3185, %v3175
    %v4526 = vpack.c.b16 %v3186, %v3176
    %v4527 = vpack.c.b16 %v3187, %v3177
    %v4528 = vpack.c.b16 %v3188, %v3178
    %v4529 = vpack.c.b16 %v3189, %v3179
    %v4530 = vpack.c.b16 %v3190, %v3180
    %v4531 = vpack.c.b16 %v3191, %v3181
    %v4532 = vpack.c.b16 %v3202, %v3192
    %v4533 = vpack.c.b16 %v3203, %v3193
    %v4534 = vpack.c.b16 %v3204, %v3194
    %v4535 = vpack.c.b16 %v3205, %v3195
    %v4536 = vpack.c.b16 %v3206, %v3196
    %v4537 = vpack.c.b16 %v3207, %v3197
    %v4538 = vpack.c.b16 %v3208, %v3198
    %v4539 = vpack.c.b16 %v3209, %v3199
    %v4540 = vpack.c.b16 %v3210, %v3200
    %v4541 = vpack.c.b16 %v3211, %v3201
    %v4542 = vpack.c.b16 %v3222, %v3212
    %v4543 = vpack.c.b16 %v3223, %v3213
    %v4544 = vpack.c.b16 %v3224, %v3214
    %v4545 = vpack.c.b16 %v3225, %v3215
    %v4546 = vpack.c.b16 %v3226, %v3216
    %v4547 = vpack.c.b16 %v3227, %v3217
    %v4548 = vpack.c.b16 %v3228, %v3218
    %v4549 = vpack.c.b16 %v3229, %v3219
    %v4550 = vpack.c.b16 %v3230, %v3220
    %v4551 = vpack.c.b16 %v3231, %v3221
    %v4552 = vpack.c.b16 %v3242, %v3232
    %v4553 = vpack.c.b16 %v3243, %v3233
    %v4554 = vpack.c.b16 %v3244, %v3234
    %v4555 = vpack.c.b16 %v3245, %v3235
    %v4556 = vpack.c.b16 %v3246, %v3236
    %v4557 = vpack.c.b16 %v3247, %v3237
    %v4558 = vpack.c.b16 %v3248, %v3238
    %v4559 = vpack.c.b16 %v3249, %v3239
    %v4560 = vpack.c.b16 %v3250, %v3240
    %v4561 = vpack.c.b16 %v3251, %v3241
    %v4562 = vpack.c.b16 %v3262, %v3252
    %v4563 = vpack.c.b16 %v3263, %v3253
    %v4564 = vpack.c.b16 %v3264, %v3254
    %v4565 = vpack.c.b16 %v3265, %v3255
    %v4566 = vpack.c.b16 %v3266, %v3256
    %v4567 = vpack.c.b16 %v3267, %v3257
    %v4568 = vpack.c.b16 %v3268, %v3258
    %v4569 = vpack.c.b16 %v3269, %v3259
    %v4570 = vpack.c.b16 %v3270, %v3260
    %v4571 = vpack.c.b16 %v3271, %v3261
    %v4572 = vpack.c.b16 %v3282, %v3272
    %v4573 = vpack.c.b16 %v3283, %v3273
    %v4574 = vpack.c.b16 %v3284, %v3274
    %v4575 = vpack.c.b16 %v3285, %v3275
    %v4576 = vpack.c.b16 %v3286, %v3276
    %v4577 = vpack.c.b16 %v3287, %v3277
    %v4578 = vpack.c.b16 %v3288, %v3278
    %v4579 = vpack.c.b16 %v3289, %v3279
    %v4580 = vpack.c.b16 %v3290, %v3280
    %v4581 = vpack.c.b16 %v3291, %v3281
    %v4582 = vpack.c.b16 %v3302, %v3292
    %v4583 = vpack.c.b16 %v3303, %v3293
    %v4584 = vpack.c.b16 %v3304, %v3294
    %v4585 = vpack.c.b16 %v3305, %v3295
    %v4586 = vpack.c.b16 %v3306, %v3296
    %v4587 = vpack.c.b16 %v3307, %v3297
    %v4588 = vpack.c.b16 %v3308, %v3298
    %v4589 = vpack.c.b16 %v3309, %v3299
    %v4590 = vpack.c.b16 %v3310, %v3300
    %v4591 = vpack.c.b16 %v3311, %v3301
    %v4592 = vpack.c.b16 %v3322, %v3312
    %v4593 = vpack.c.b16 %v3323, %v3313
    %v4594 = vpack.c.b16 %v3324, %v3314
    %v4595 = vpack.c.b16 %v3325, %v3315
    %v4596 = vpack.c.b16 %v3326, %v3316
    %v4597 = vpack.c.b16 %v3327, %v3317
    %v4598 = vpack.c.b16 %v3328, %v3318
    %v4599 = vpack.c.b16 %v3329, %v3319
    %v4600 = vpack.c.b16 %v3330, %v3320
    %v4601 = vpack.c.b16 %v3331, %v3321
    %v4602 = vpack.c.b16 %v3342, %v3332
    %v4603 = vpack.c.b16 %v3343, %v3333
    %v4604 = vpack.c.b16 %v3344, %v3334
    %v4605 = vpack.c.b16 %v3345, %v3335
    %v4606 = vpack.c.b16 %v3346, %v3336
    %v4607 = vpack.c.b16 %v3347, %v3337
    %v4608 = vpack.c.b16 %v3348, %v3338
    %v4609 = vpack.c.b16 %v3349, %v3339
    %v4610 = vpack.c.b16 %v3350, %v3340
    %v4611 = vpack.c.b16 %v3351, %v3341
    %v4612 = vpack.c.b16 %v3362, %v3352
    %v4613 = vpack.c.b16 %v3363, %v3353
    %v4614 = vpack.c.b16 %v3364, %v3354
    %v4615 = vpack.c.b16 %v3365, %v3355
    %v4616 = vpack.c.b16 %v3366, %v3356
    %v4617 = vpack.c.b16 %v3367, %v3357
    %v4618 = vpack.c.b16 %v3368, %v3358
    %v4619 = vpack.c.b16 %v3369, %v3359
    %v4620 = vpack.c.b16 %v3370, %v3360
    %v4621 = vpack.c.b16 %v3371, %v3361
    %v4622 = vpack.c.b16 %v3382, %v3372
    %v4623 = vpack.c.b16 %v3383, %v3373
    %v4624 = vpack.c.b16 %v3384, %v3374
    %v4625 = vpack.c.b16 %v3385, %v3375
    %v4626 = vpack.c.b16 %v3386, %v3376
    %v4627 = vpack.c.b16 %v3387, %v3377
    %v4628 = vpack.c.b16 %v3388, %v3378
    %v4629 = vpack.c.b16 %v3389, %v3379
    %v4630 = vpack.c.b16 %v3390, %v3380
    %v4631 = vpack.c.b16 %v3391, %v3381
    %v4632 = vpack.c.b16 %v3402, %v3392
    %v4633 = vpack.c.b16 %v3403, %v3393
    %v4634 = vpack.c.b16 %v3404, %v3394
    %v4635 = vpack.c.b16 %v3405, %v3395
    %v4636 = vpack.c.b16 %v3406, %v3396
    %v4637 = vpack.c.b16 %v3407, %v3397
    %v4638 = vpack.c.b16 %v3408, %v3398
    %v4639 = vpack.c.b16 %v3409, %v3399
    %v4640 = vpack.c.b16 %v3410, %v3400
    %v4641 = vpack.c.b16 %v3411, %v3401
    %v4642 = vpack.c.b16 %v3422, %v3412
    %v4643 = vpack.c.b16 %v3423, %v3413
    %v4644 = vpack.c.b16 %v3424, %v3414
    %v4645 = vpack.c.b16 %v3425, %v3415
    %v4646 = vpack.c.b16 %v3426, %v3416
    %v4647 = vpack.c.b16 %v3427, %v3417
    %v4648 = vpack.c.b16 %v3428, %v3418
    %v4649 = vpack.c.b16 %v3429, %v3419
    %v4650 = vpack.c.b16 %v3430, %v3420
    %v4651 = vpack.c.b16 %v3431, %v3421
    %v4652 = vpack.c.b16 %v3442, %v3432
    %v4653 = vpack.c.b16 %v3443, %v3433
    %v4654 = vpack.c.b16 %v3444, %v3434
    %v4655 = vpack.c.b16 %v3445, %v3435
    %v4656 = vpack.c.b16 %v3446, %v3436
    %v4657 = vpack.c.b16 %v3447, %v3437
    %v4658 = vpack.c.b16 %v3448, %v3438
    %v4659 = vpack.c.b16 %v3449, %v3439
    %v4660 = vpack.c.b16 %v3450, %v3440
    %v4661 = vpack.c.b16 %v3451, %v3441
    %v4662 = vpack.c.b16 %v3462, %v3452
    %v4663 = vpack.c.b16 %v3463, %v3453
    %v4664 = vpack.c.b16 %v3464, %v3454
    %v4665 = vpack.c.b16 %v3465, %v3455
    %v4666 = vpack.c.b16 %v3466, %v3456
    %v4667 = vpack.c.b16 %v3467, %v3457
    %v4668 = vpack.c.b16 %v3468, %v3458
    %v4669 = vpack.c.b16 %v3469, %v3459
    %v4670 = vpack.c.b16 %v3470, %v3460
    %v4671 = vpack.c.b16 %v3471, %v3461
    %v4672 = vpack.c.b16 %v3482, %v3472
    %v4673 = vpack.c.b16 %v3483, %v3473
    %v4674 = vpack.c.b16 %v3484, %v3474
    %v4675 = vpack.c.b16 %v3485, %v3475
    %v4676 = vpack.c.b16 %v3486, %v3476
    %v4677 = vpack.c.b16 %v3487, %v3477
    %v4678 = vpack.c.b16 %v3488, %v3478
    %v4679 = vpack.c.b16 %v3489, %v3479
    %v4680 = vpack.c.b16 %v3490, %v3480
    %v4681 = vpack.c.b16 %v3491, %v3481
    %v4682 = vpack.c.b16 %v3502, %v3492
    %v4683 = vpack.c.b16 %v3503, %v3493
    %v4684 = vpack.c.b16 %v3504, %v3494
    %v4685 = vpack.c.b16 %v3505, %v3495
    %v4686 = vpack.c.b16 %v3506, %v3496
    %v4687 = vpack.c.b16 %v3507, %v3497
    %v4688 = vpack.c.b16 %v3508, %v3498
    %v4689 = vpack.c.b16 %v3509, %v3499
    %v4690 = vpack.c.b16 %v3510, %v3500
    %v4691 = vpack.c.b16 %v3511, %v3501
    %v4692 = vpack.c.b16 %v3522, %v3512
    %v4693 = vpack.c.b16 %v3523, %v3513
    %v4694 = vpack.c.b16 %v3524, %v3514
    %v4695 = vpack.c.b16 %v3525, %v3515
    %v4696 = vpack.c.b16 %v3526, %v3516
    %v4697 = vpack.c.b16 %v3527, %v3517
    %v4698 = vpack.c.b16 %v3528, %v3518
    %v4699 = vpack.c.b16 %v3529, %v3519
    %v4700 = vpack.c.b16 %v3530, %v3520
    %v4701 = vpack.c.b16 %v3531, %v3521
    %v4702 = vpack.c.b16 %v3542, %v3532
    %v4703 = vpack.c.b16 %v3543, %v3533
    %v4704 = vpack.c.b16 %v3544, %v3534
    %v4705 = vpack.c.b16 %v3545, %v3535
    %v4706 = vpack.c.b16 %v3546, %v3536
    %v4707 = vpack.c.b16 %v3547, %v3537
    %v4708 = vpack.c.b16 %v3548, %v3538
    %v4709 = vpack.c.b16 %v3549, %v3539
    %v4710 = vpack.c.b16 %v3550, %v3540
    %v4711 = vpack.c.b16 %v3551, %v3541
    %v4712 = vpack.c.b16 %v3562, %v3552
    %v4713 = vpack.c.b16 %v3563, %v3553
    %v4714 = vpack.c.b16 %v3564, %v3554
    %v4715 = vpack.c.b16 %v3565, %v3555
    %v4716 = vpack.c.b16 %v3566, %v3556
    %v4717 = vpack.c.b16 %v3567, %v3557
    %v4718 = vpack.c.b16 %v3568, %v3558
    %v4719 = vpack.c.b16 %v3569, %v3559
    %v4720 = vpack.c.b16 %v3570, %v3560
    %v4721 = vpack.c.b16 %v3571, %v3561
    %v4722 = vpack.c.b16 %v3582, %v3572
    %v4723 = vpack.c.b16 %v3583, %v3573
    %v4724 = vpack.c.b16 %v3584, %v3574
    %v4725 = vpack.c.b16 %v3585, %v3575
    %v4726 = vpack.c.b16 %v3586, %v3576
    %v4727 = vpack.c.b16 %v3587, %v3577
    %v4728 = vpack.c.b16 %v3588, %v3578
    %v4729 = vpack.c.b16 %v3589, %v3579
    %v4730 = vpack.c.b16 %v3590, %v3580
    %v4731 = vpack.c.b16 %v3591, %v3581
    %v4732 = vpack.c.b16 %v3602, %v3592
    %v4733 = vpack.c.b16 %v3603, %v3593
    %v4734 = vpack.c.b16 %v3604, %v3594
    %v4735 = vpack.c.b16 %v3605, %v3595
    %v4736 = vpack.c.b16 %v3606, %v3596
    %v4737 = vpack.c.b16 %v3607, %v3597
    %v4738 = vpack.c.b16 %v3608, %v3598
    %v4739 = vpack.c.b16 %v3609, %v3599
    %v4740 = vpack.c.b16 %v3610, %v3600
    %v4741 = vpack.c.b16 %v3611, %v3601
    %v4742 = vpack.c.b16 %v3622, %v3612
    %v4743 = vpack.c.b16 %v3623, %v3613
    %v4744 = vpack.c.b16 %v3624, %v3614
    %v4745 = vpack.c.b16 %v3625, %v3615
    %v4746 = vpack.c.b16 %v3626, %v3616
    %v4747 = vpack.c.b16 %v3627, %v3617
    %v4748 = vpack.c.b16 %v3628, %v3618
    %v4749 = vpack.c.b16 %v3629, %v3619
    %v4750 = vpack.c.b16 %v3630, %v3620
    %v4751 = vpack.c.b16 %v3631, %v3621
    %v4752 = vpack.c.b16 %v3642, %v3632
    %v4753 = vpack.c.b16 %v3643, %v3633
    %v4754 = vpack.c.b16 %v3644, %v3634
    %v4755 = vpack.c.b16 %v3645, %v3635
    %v4756 = vpack.c.b16 %v3646, %v3636
    %v4757 = vpack.c.b16 %v3647, %v3637
    %v4758 = vpack.c.b16 %v3648, %v3638
    %v4759 = vpack.c.b16 %v3649, %v3639
    %v4760 = vpack.c.b16 %v3650, %v3640
    %v4761 = vpack.c.b16 %v3651, %v3641
    %v4762 = vpack.c.b16 %v3662, %v3652
    %v4763 = vpack.c.b16 %v3663, %v3653
    %v4764 = vpack.c.b16 %v3664, %v3654
    %v4765 = vpack.c.b16 %v3665, %v3655
    %v4766 = vpack.c.b16 %v3666, %v3656
    %v4767 = vpack.c.b16 %v3667, %v3657
    %v4768 = vpack.c.b16 %v3668, %v3658
    %v4769 = vpack.c.b16 %v3669, %v3659
    %v4770 = vpack.c.b16 %v3670, %v3660
    %v4771 = vpack.c.b16 %v3671, %v3661
    %v4772 = vpack.c.b16 %v3682, %v3672
    %v4773 = vpack.c.b16 %v3683, %v3673
    %v4774 = vpack.c.b16 %v3684, %v3674
    %v4775 = vpack.c.b16 %v3685, %v3675
    %v4776 = vpack.c.b16 %v3686, %v3676
    %v4777 = vpack.c.b16 %v3687, %v3677
    %v4778 = vpack.c.b16 %v3688, %v3678
    %v4779 = vpack.c.b16 %v3689, %v3679
    %v4780 = vpack.c.b16 %v3690, %v3680
    %v4781 = vpack.c.b16 %v3691, %v3681
    %v4782 = vpack.c.b16 %v3702, %v3692
    %v4783 = vpack.c.b16 %v3703, %v3693
    %v4784 = vpack.c.b16 %v3704, %v3694
    %v4785 = vpack.c.b16 %v3705, %v3695
    %v4786 = vpack.c.b16 %v3706, %v3696
    %v4787 = vpack.c.b16 %v3707, %v3697
    %v4788 = vpack.c.b16 %v3708, %v3698
    %v4789 = vpack.c.b16 %v3709, %v3699
    %v4790 = vpack.c.b16 %v3710, %v3700
    %v4791 = vpack.c.b16 %v3711, %v3701
    %v4792 = vpack.c.b16 %v3722, %v3712
    %v4793 = vpack.c.b16 %v3723, %v3713
    %v4794 = vpack.c.b16 %v3724, %v3714
    %v4795 = vpack.c.b16 %v3725, %v3715
    %v4796 = vpack.c.b16 %v3726, %v3716
    %v4797 = vpack.c.b16 %v3727, %v3717
    %v4798 = vpack.c.b16 %v3728, %v3718
    %v4799 = vpack.c.b16 %v3729, %v3719
    %v4800 = vpack.c.b16 %v3730, %v3720
    %v4801 = vpack.c.b16 %v3731, %v3721
    %v4802 = vpack.c.b16 %v3742, %v3732
    %v4803 = vpack.c.b16 %v3743, %v3733
    %v4804 = vpack.c.b16 %v3744, %v3734
    %v4805 = vpack.c.b16 %v3745, %v3735
    %v4806 = vpack.c.b16 %v3746, %v3736
    %v4807 = vpack.c.b16 %v3747, %v3737
    %v4808 = vpack.c.b16 %v3748, %v3738
    %v4809 = vpack.c.b16 %v3749, %v3739
    %v4810 = vpack.c.b16 %v3750, %v3740
    %v4811 = vpack.c.b16 %v3751, %v3741
    %v4812 = vpack.c.b16 %v3762, %v3752
    %v4813 = vpack.c.b16 %v3763, %v3753
    %v4814 = vpack.c.b16 %v3764, %v3754
    %v4815 = vpack.c.b16 %v3765, %v3755
    %v4816 = vpack.c.b16 %v3766, %v3756
    %v4817 = vpack.c.b16 %v3767, %v3757
    %v4818 = vpack.c.b16 %v3768, %v3758
    %v4819 = vpack.c.b16 %v3769, %v3759
    %v4820 = vpack.c.b16 %v3770, %v3760
    %v4821 = vpack.c.b16 %v3771, %v3761
    %v4822 = vpack.c.b16 %v3782, %v3772
    %v4823 = vpack.c.b16 %v3783, %v3773
    %v4824 = vpack.c.b16 %v3784, %v3774
    %v4825 = vpack.c.b16 %v3785, %v3775
    %v4826 = vpack.c.b16 %v3786, %v3776
    %v4827 = vpack.c.b16 %v3787, %v3777
    %v4828 = vpack.c.b16 %v3788, %v3778
    %v4829 = vpack.c.b16 %v3789, %v3779
    %v4830 = vpack.c.b16 %v3790, %v3780
    %v4831 = vpack.c.b16 %v3791, %v3781
    %v4832 = vpack.c.b16 %v3802, %v3792
    %v4833 = vpack.c.b16 %v3803, %v3793
    %v4834 = vpack.c.b16 %v3804, %v3794
    %v4835 = vpack.c.b16 %v3805, %v3795
    %v4836 = vpack.c.b16 %v3806, %v3796
    %v4837 = vpack.c.b16 %v3807, %v3797
    %v4838 = vpack.c.b16 %v3808, %v3798
    %v4839 = vpack.c.b16 %v3809, %v3799
    %v4840 = vpack.c.b16 %v3810, %v3800
    %v4841 = vpack.c.b16 %v3811, %v3801
    %v4842 = vpack.c.b16 %v3822, %v3812
    %v4843 = vpack.c.b16 %v3823, %v3813
    %v4844 = vpack.c.b16 %v3824, %v3814
    %v4845 = vpack.c.b16 %v3825, %v3815
    %v4846 = vpack.c.b16 %v3826, %v3816
    %v4847 = vpack.c.b16 %v3827, %v3817
    %v4848 = vpack.c.b16 %v3828, %v3818
    %v4849 = vpack.c.b16 %v3829, %v3819
    %v4850 = vpack.c.b16 %v3830, %v3820
    %v4851 = vpack.c.b16 %v3831, %v3821
    %v4852 = vpack.c.b16 %v3842, %v3832
    %v4853 = vpack.c.b16 %v3843, %v3833
    %v4854 = vpack.c.b16 %v3844, %v3834
    %v4855 = vpack.c.b16 %v3845, %v3835
    %v4856 = vpack.c.b16 %v3846, %v3836
    %v4857 = vpack.c.b16 %v3847, %v3837
    %v4858 = vpack.c.b16 %v3848, %v3838
    %v4859 = vpack.c.b16 %v3849, %v3839
    %v4860 = vpack.c.b16 %v3850, %v3840
    %v4861 = vpack.c.b16 %v3851, %v3841
    %v4862 = vpack.c.b16 %v3862, %v3852
    %v4863 = vpack.c.b16 %v3863, %v3853
    %v4864 = vpack.c.b16 %v3864, %v3854
    %v4865 = vpack.c.b16 %v3865, %v3855
    %v4866 = vpack.c.b16 %v3866, %v3856
    %v4867 = vpack.c.b16 %v3867, %v3857
    %v4868 = vpack.c.b16 %v3868, %v3858
    %v4869 = vpack.c.b16 %v3869, %v3859
    %v4870 = vpack.c.b16 %v3870, %v3860
    %v4871 = vpack.c.b16 %v3871, %v3861
    %v4872 = vpack.c.b16 %v3882, %v3872
    %v4873 = vpack.c.b16 %v3883, %v3873
    %v4874 = vpack.c.b16 %v3884, %v3874
    %v4875 = vpack.c.b16 %v3885, %v3875
    %v4876 = vpack.c.b16 %v3886, %v3876
    %v4877 = vpack.c.b16 %v3887, %v3877
    %v4878 = vpack.c.b16 %v3888, %v3878
    %v4879 = vpack.c.b16 %v3889, %v3879
    %v4880 = vpack.c.b16 %v3890, %v3880
    %v4881 = vpack.c.b16 %v3891, %v3881
    %v4882 = vpack.c.b16 %v3902, %v3892
    %v4883 = vpack.c.b16 %v3903, %v3893
    %v4884 = vpack.c.b16 %v3904, %v3894
    %v4885 = vpack.c.b16 %v3905, %v3895
    %v4886 = vpack.c.b16 %v3906, %v3896
    %v4887 = vpack.c.b16 %v3907, %v3897
    %v4888 = vpack.c.b16 %v3908, %v3898
    %v4889 = vpack.c.b16 %v3909, %v3899
    %v4890 = vpack.c.b16 %v3910, %v3900
    %v4891 = vpack.c.b16 %v3911, %v3901
    %v4892 = vpack.c.b16 %v3922, %v3912
    %v4893 = vpack.c.b16 %v3923, %v3913
    %v4894 = vpack.c.b16 %v3924, %v3914
    %v4895 = vpack.c.b16 %v3925, %v3915
    %v4896 = vpack.c.b16 %v3926, %v3916
    %v4897 = vpack.c.b16 %v3927, %v3917
    %v4898 = vpack.c.b16 %v3928, %v3918
    %v4899 = vpack.c.b16 %v3929, %v3919
    %v4900 = vpack.c.b16 %v3930, %v3920
    %v4901 = vpack.c.b16 %v3931, %v3921
    %v4902 = vpack.c.b16 %v3942, %v3932
    %v4903 = vpack.c.b16 %v3943, %v3933
    %v4904 = vpack.c.b16 %v3944, %v3934
    %v4905 = vpack.c.b16 %v3945, %v3935
    %v4906 = vpack.c.b16 %v3946, %v3936
    %v4907 = vpack.c.b16 %v3947, %v3937
    %v4908 = vpack.c.b16 %v3948, %v3938
    %v4909 = vpack.c.b16 %v3949, %v3939
    %v4910 = vpack.c.b16 %v3950, %v3940
    %v4911 = vpack.c.b16 %v3951, %v3941
    %5872 = vmatprep.subr.bf16.mxu0 %v3953
    %5873 = vmatpush1.bf16.msra.mxu0 %v3952
    %5874 = vmatprep.subr.bf16.mxu0 %v3963
    %5875 = vmatpush1.bf16.msra.mxu0 %v3962
    %5876 = vmatprep.subr.bf16.mxu0 %v3973
    %5877 = vmatpush1.bf16.msra.mxu0 %v3972
    %5878 = vmatprep.subr.bf16.mxu0 %v3983
    %5879 = vmatpush1.bf16.msra.mxu0 %v3982
    %5880 = vmatprep.subr.bf16.mxu0 %v3993
    %5881 = vmatpush1.bf16.msra.mxu0 %v3992
    %5882 = vmatprep.subr.bf16.mxu0 %v4003
    %5883 = vmatpush1.bf16.msra.mxu0 %v4002
    %5884 = vmatprep.subr.bf16.mxu0 %v4013
    %5885 = vmatpush1.bf16.msra.mxu0 %v4012
    %5886 = vmatprep.subr.bf16.mxu0 %v4023
    %5887 = vmatpush1.bf16.msra.mxu0 %v4022
    %5888 = vmatprep.subr.bf16.mxu0 %v4033
    %5889 = vmatpush1.bf16.msra.mxu0 %v4032
    %5890 = vmatprep.subr.bf16.mxu0 %v4043
    %5891 = vmatpush1.bf16.msra.mxu0 %v4042
    %5892 = vmatprep.subr.bf16.mxu0 %v4053
    %5893 = vmatpush1.bf16.msra.mxu0 %v4052
    %5894 = vmatprep.subr.bf16.mxu0 %v4063
    %5895 = vmatpush1.bf16.msra.mxu0 %v4062
    %5896 = vmatprep.subr.bf16.mxu0 %v4073
    %5897 = vmatpush1.bf16.msra.mxu0 %v4072
    %5898 = vmatprep.subr.bf16.mxu0 %v4083
    %5899 = vmatpush1.bf16.msra.mxu0 %v4082
    %5900 = vmatprep.subr.bf16.mxu0 %v4093
    %5901 = vmatpush1.bf16.msra.mxu0 %v4092
    %5902 = vmatprep.subr.bf16.mxu0 %v4103
    %5903 = vmatpush1.bf16.msra.mxu0 %v4102
    %5904 = vmatprep.mubr.bf16.mxu0 %v1049
    %5905 = vmatmul.mubr.bf16.gmra.mrb[0].mxu0 %v1048
    %v5906 = vpop.f32.mrb[0].mxu0
    %v5907 = vadd.f32 0.0, %v5906
    %v5908 = vpop.f32.mrb[0].mxu0
    %v5909 = vadd.f32 0.0, %v5908
    %v5910 = vpop.f32.mrb[0].mxu0
    %v5911 = vadd.f32 0.0, %v5910
    %v5912 = vpop.f32.mrb[0].mxu0
    %v5913 = vadd.f32 0.0, %v5912
    %5914 = vdwg.mxu0
    %5915 = vmatprep.subr.bf16.mxu0 %v4113
    %5916 = vmatpush1.bf16.msra.mxu0 %v4112
    %5917 = vmatprep.subr.bf16.mxu0 %v4123
    %5918 = vmatpush1.bf16.msra.mxu0 %v4122
    %5919 = vmatprep.subr.bf16.mxu0 %v4133
    %5920 = vmatpush1.bf16.msra.mxu0 %v4132
    %5921 = vmatprep.subr.bf16.mxu0 %v4143
    %5922 = vmatpush1.bf16.msra.mxu0 %v4142
    %5923 = vmatprep.subr.bf16.mxu0 %v4153
    %5924 = vmatpush1.bf16.msra.mxu0 %v4152
    %5925 = vmatprep.subr.bf16.mxu0 %v4163
    %5926 = vmatpush1.bf16.msra.mxu0 %v4162
    %5927 = vmatprep.subr.bf16.mxu0 %v4173
    %5928 = vmatpush1.bf16.msra.mxu0 %v4172
    %5929 = vmatprep.subr.bf16.mxu0 %v4183
    %5930 = vmatpush1.bf16.msra.mxu0 %v4182
    %5931 = vmatprep.subr.bf16.mxu0 %v4193
    %5932 = vmatpush1.bf16.msra.mxu0 %v4192
    %5933 = vmatprep.subr.bf16.mxu0 %v4203
    %5934 = vmatpush1.bf16.msra.mxu0 %v4202
    %5935 = vmatprep.subr.bf16.mxu0 %v4213
    %5936 = vmatpush1.bf16.msra.mxu0 %v4212
    %5937 = vmatprep.subr.bf16.mxu0 %v4223
    %5938 = vmatpush1.bf16.msra.mxu0 %v4222
    %5939 = vmatprep.subr.bf16.mxu0 %v4233
    %5940 = vmatpush1.bf16.msra.mxu0 %v4232
    %5941 = vmatprep.subr.bf16.mxu0 %v4243
    %5942 = vmatpush1.bf16.msra.mxu0 %v4242
    %5943 = vmatprep.subr.bf16.mxu0 %v4253
    %5944 = vmatpush1.bf16.msra.mxu0 %v4252
    %5945 = vmatprep.subr.bf16.mxu0 %v4263
    %5946 = vmatpush1.bf16.msra.mxu0 %v4262
    %5947 = vmatprep.mubr.bf16.mxu0 %v1051
    %5948 = vmatmul.mubr.bf16.gmra.mrb[0].mxu0 %v1050
    %v5949 = vpop.f32.mrb[0].mxu0
    %v5950 = vadd.f32 %v5907, %v5949
    %v5951 = vpop.f32.mrb[0].mxu0
    %v5952 = vadd.f32 %v5909, %v5951
    %v5953 = vpop.f32.mrb[0].mxu0
    %v5954 = vadd.f32 %v5911, %v5953
    %v5955 = vpop.f32.mrb[0].mxu0
    %v5956 = vadd.f32 %v5913, %v5955
    %5957 = vdwg.mxu0
    %5958 = vmatprep.subr.bf16.mxu0 %v4273
    %5959 = vmatpush1.bf16.msra.mxu0 %v4272
    %5960 = vmatprep.subr.bf16.mxu0 %v4283
    %5961 = vmatpush1.bf16.msra.mxu0 %v4282
    %5962 = vmatprep.subr.bf16.mxu0 %v4293
    %5963 = vmatpush1.bf16.msra.mxu0 %v4292
    %5964 = vmatprep.subr.bf16.mxu0 %v4303
    %5965 = vmatpush1.bf16.msra.mxu0 %v4302
    %5966 = vmatprep.subr.bf16.mxu0 %v4313
    %5967 = vmatpush1.bf16.msra.mxu0 %v4312
    %5968 = vmatprep.subr.bf16.mxu0 %v4323
    %5969 = vmatpush1.bf16.msra.mxu0 %v4322
    %5970 = vmatprep.subr.bf16.mxu0 %v4333
    %5971 = vmatpush1.bf16.msra.mxu0 %v4332
    %5972 = vmatprep.subr.bf16.mxu0 %v4343
    %5973 = vmatpush1.bf16.msra.mxu0 %v4342
    %5974 = vmatprep.subr.bf16.mxu0 %v4353
    %5975 = vmatpush1.bf16.msra.mxu0 %v4352
    %5976 = vmatprep.subr.bf16.mxu0 %v4363
    %5977 = vmatpush1.bf16.msra.mxu0 %v4362
    %5978 = vmatprep.subr.bf16.mxu0 %v4373
    %5979 = vmatpush1.bf16.msra.mxu0 %v4372
    %5980 = vmatprep.subr.bf16.mxu0 %v4383
    %5981 = vmatpush1.bf16.msra.mxu0 %v4382
    %5982 = vmatprep.subr.bf16.mxu0 %v4393
    %5983 = vmatpush1.bf16.msra.mxu0 %v4392
    %5984 = vmatprep.subr.bf16.mxu0 %v4403
    %5985 = vmatpush1.bf16.msra.mxu0 %v4402
    %5986 = vmatprep.subr.bf16.mxu0 %v4413
    %5987 = vmatpush1.bf16.msra.mxu0 %v4412
    %5988 = vmatprep.subr.bf16.mxu0 %v4423
    %5989 = vmatpush1.bf16.msra.mxu0 %v4422
    %5990 = vmatprep.mubr.bf16.mxu0 %v1053
    %5991 = vmatmul.mubr.bf16.gmra.mrb[0].mxu0 %v1052
    %v5992 = vpop.f32.mrb[0].mxu0
    %v5993 = vadd.f32 %v5950, %v5992
    %v5994 = vpop.f32.mrb[0].mxu0
    %v5995 = vadd.f32 %v5952, %v5994
    %v5996 = vpop.f32.mrb[0].mxu0
    %v5997 = vadd.f32 %v5954, %v5996
    %v5998 = vpop.f32.mrb[0].mxu0
    %v5999 = vadd.f32 %v5956, %v5998
    %6000 = vdwg.mxu0
    %6001 = vmatprep.subr.bf16.mxu0 %v4433
    %6002 = vmatpush1.bf16.msra.mxu0 %v4432
    %6003 = vmatprep.subr.bf16.mxu0 %v4443
    %6004 = vmatpush1.bf16.msra.mxu0 %v4442
    %6005 = vmatprep.subr.bf16.mxu0 %v4453
    %6006 = vmatpush1.bf16.msra.mxu0 %v4452
    %6007 = vmatprep.subr.bf16.mxu0 %v4463
    %6008 = vmatpush1.bf16.msra.mxu0 %v4462
    %6009 = vmatprep.subr.bf16.mxu0 %v4473
    %6010 = vmatpush1.bf16.msra.mxu0 %v4472
    %6011 = vmatprep.subr.bf16.mxu0 %v4483
    %6012 = vmatpush1.bf16.msra.mxu0 %v4482
    %6013 = vmatprep.subr.bf16.mxu0 %v4493
    %6014 = vmatpush1.bf16.msra.mxu0 %v4492
    %6015 = vmatprep.subr.bf16.mxu0 %v4503
    %6016 = vmatpush1.bf16.msra.mxu0 %v4502
    %6017 = vmatprep.subr.bf16.mxu0 %v4513
    %6018 = vmatpush1.bf16.msra.mxu0 %v4512
    %6019 = vmatprep.subr.bf16.mxu0 %v4523
    %6020 = vmatpush1.bf16.msra.mxu0 %v4522
    %6021 = vmatprep.subr.bf16.mxu0 %v4533
    %6022 = vmatpush1.bf16.msra.mxu0 %v4532
    %6023 = vmatprep.subr.bf16.mxu0 %v4543
    %6024 = vmatpush1.bf16.msra.mxu0 %v4542
    %6025 = vmatprep.subr.bf16.mxu0 %v4553
    %6026 = vmatpush1.bf16.msra.mxu0 %v4552
    %6027 = vmatprep.subr.bf16.mxu0 %v4563
    %6028 = vmatpush1.bf16.msra.mxu0 %v4562
    %6029 = vmatprep.subr.bf16.mxu0 %v4573
    %6030 = vmatpush1.bf16.msra.mxu0 %v4572
    %6031 = vmatprep.subr.bf16.mxu0 %v4583
    %6032 = vmatpush1.bf16.msra.mxu0 %v4582
    %6033 = vmatprep.mubr.bf16.mxu0 %v1055
    %6034 = vmatmul.mubr.bf16.gmra.mrb[0].mxu0 %v1054
    %v6035 = vpop.f32.mrb[0].mxu0
    %v6036 = vadd.f32 %v5993, %v6035
    %v6037 = vpop.f32.mrb[0].mxu0
    %v6038 = vadd.f32 %v5995, %v6037
    %v6039 = vpop.f32.mrb[0].mxu0
    %v6040 = vadd.f32 %v5997, %v6039
    %v6041 = vpop.f32.mrb[0].mxu0
    %v6042 = vadd.f32 %v5999, %v6041
    %6043 = vdwg.mxu0
    %6044 = vmatprep.subr.bf16.mxu0 %v4593
    %6045 = vmatpush1.bf16.msra.mxu0 %v4592
    %6046 = vmatprep.subr.bf16.mxu0 %v4603
    %6047 = vmatpush1.bf16.msra.mxu0 %v4602
    %6048 = vmatprep.subr.bf16.mxu0 %v4613
    %6049 = vmatpush1.bf16.msra.mxu0 %v4612
    %6050 = vmatprep.subr.bf16.mxu0 %v4623
    %6051 = vmatpush1.bf16.msra.mxu0 %v4622
    %6052 = vmatprep.subr.bf16.mxu0 %v4633
    %6053 = vmatpush1.bf16.msra.mxu0 %v4632
    %6054 = vmatprep.subr.bf16.mxu0 %v4643
    %6055 = vmatpush1.bf16.msra.mxu0 %v4642
    %6056 = vmatprep.subr.bf16.mxu0 %v4653
    %6057 = vmatpush1.bf16.msra.mxu0 %v4652
    %6058 = vmatprep.subr.bf16.mxu0 %v4663
    %6059 = vmatpush1.bf16.msra.mxu0 %v4662
    %6060 = vmatprep.subr.bf16.mxu0 %v4673
    %6061 = vmatpush1.bf16.msra.mxu0 %v4672
    %6062 = vmatprep.subr.bf16.mxu0 %v4683
    %6063 = vmatpush1.bf16.msra.mxu0 %v4682
    %6064 = vmatprep.subr.bf16.mxu0 %v4693
    %6065 = vmatpush1.bf16.msra.mxu0 %v4692
    %6066 = vmatprep.subr.bf16.mxu0 %v4703
    %6067 = vmatpush1.bf16.msra.mxu0 %v4702
    %6068 = vmatprep.subr.bf16.mxu0 %v4713
    %6069 = vmatpush1.bf16.msra.mxu0 %v4712
    %6070 = vmatprep.subr.bf16.mxu0 %v4723
    %6071 = vmatpush1.bf16.msra.mxu0 %v4722
    %6072 = vmatprep.subr.bf16.mxu0 %v4733
    %6073 = vmatpush1.bf16.msra.mxu0 %v4732
    %6074 = vmatprep.subr.bf16.mxu0 %v4743
    %6075 = vmatpush1.bf16.msra.mxu0 %v4742
    %6076 = vmatprep.mubr.bf16.mxu0 %v1057
    %6077 = vmatmul.mubr.bf16.gmra.mrb[0].mxu0 %v1056
    %v6078 = vpop.f32.mrb[0].mxu0
    %v6079 = vadd.f32 %v6036, %v6078
    %v6080 = vpop.f32.mrb[0].mxu0
    %v6081 = vadd.f32 %v6038, %v6080
    %v6082 = vpop.f32.mrb[0].mxu0
    %v6083 = vadd.f32 %v6040, %v6082
    %v6084 = vpop.f32.mrb[0].mxu0
    %v6085 = vadd.f32 %v6042, %v6084
    %6086 = vdwg.mxu0
    %6087 = vmatprep.subr.bf16.mxu0 %v4753
    %6088 = vmatpush1.bf16.msra.mxu0 %v4752
    %6089 = vmatprep.subr.bf16.mxu0 %v4763
    %6090 = vmatpush1.bf16.msra.mxu0 %v4762
    %6091 = vmatprep.subr.bf16.mxu0 %v4773
    %6092 = vmatpush1.bf16.msra.mxu0 %v4772
    %6093 = vmatprep.subr.bf16.mxu0 %v4783
    %6094 = vmatpush1.bf16.msra.mxu0 %v4782
    %6095 = vmatprep.subr.bf16.mxu0 %v4793
    %6096 = vmatpush1.bf16.msra.mxu0 %v4792
    %6097 = vmatprep.subr.bf16.mxu0 %v4803
    %6098 = vmatpush1.bf16.msra.mxu0 %v4802
    %6099 = vmatprep.subr.bf16.mxu0 %v4813
    %6100 = vmatpush1.bf16.msra.mxu0 %v4812
    %6101 = vmatprep.subr.bf16.mxu0 %v4823
    %6102 = vmatpush1.bf16.msra.mxu0 %v4822
    %6103 = vmatprep.subr.bf16.mxu0 %v4833
    %6104 = vmatpush1.bf16.msra.mxu0 %v4832
    %6105 = vmatprep.subr.bf16.mxu0 %v4843
    %6106 = vmatpush1.bf16.msra.mxu0 %v4842
    %6107 = vmatprep.subr.bf16.mxu0 %v4853
    %6108 = vmatpush1.bf16.msra.mxu0 %v4852
    %6109 = vmatprep.subr.bf16.mxu0 %v4863
    %6110 = vmatpush1.bf16.msra.mxu0 %v4862
    %6111 = vmatprep.subr.bf16.mxu0 %v4873
    %6112 = vmatpush1.bf16.msra.mxu0 %v4872
    %6113 = vmatprep.subr.bf16.mxu0 %v4883
    %6114 = vmatpush1.bf16.msra.mxu0 %v4882
    %6115 = vmatprep.subr.bf16.mxu0 %v4893
    %6116 = vmatpush1.bf16.msra.mxu0 %v4892
    %6117 = vmatprep.subr.bf16.mxu0 %v4903
    %6118 = vmatpush1.bf16.msra.mxu0 %v4902
    %6119 = vmatprep.mubr.bf16.mxu0 %v1059
    %6120 = vmatmul.mubr.bf16.gmra.mrb[0].mxu0 %v1058
    %v6121 = vpop.f32.mrb[0].mxu0
    %v6122 = vadd.f32 %v6079, %v6121
    %v6123 = vpop.f32.mrb[0].mxu0
    %v6124 = vadd.f32 %v6081, %v6123
    %v6125 = vpop.f32.mrb[0].mxu0
    %v6126 = vadd.f32 %v6083, %v6125
    %v6127 = vpop.f32.mrb[0].mxu0
    %v6128 = vadd.f32 %v6085, %v6127
    %6129 = vdwg.mxu0
    %6130 = vmatprep.subr.bf16.mxu0 %v3955
    %6131 = vmatpush1.bf16.msra.mxu0 %v3954
    %6132 = vmatprep.subr.bf16.mxu0 %v3965
    %6133 = vmatpush1.bf16.msra.mxu0 %v3964
    %6134 = vmatprep.subr.bf16.mxu0 %v3975
    %6135 = vmatpush1.bf16.msra.mxu0 %v3974
    %6136 = vmatprep.subr.bf16.mxu0 %v3985
    %6137 = vmatpush1.bf16.msra.mxu0 %v3984
    %6138 = vmatprep.subr.bf16.mxu0 %v3995
    %6139 = vmatpush1.bf16.msra.mxu0 %v3994
    %6140 = vmatprep.subr.bf16.mxu0 %v4005
    %6141 = vmatpush1.bf16.msra.mxu0 %v4004
    %6142 = vmatprep.subr.bf16.mxu0 %v4015
    %6143 = vmatpush1.bf16.msra.mxu0 %v4014
    %6144 = vmatprep.subr.bf16.mxu0 %v4025
    %6145 = vmatpush1.bf16.msra.mxu0 %v4024
    %6146 = vmatprep.subr.bf16.mxu0 %v4035
    %6147 = vmatpush1.bf16.msra.mxu0 %v4034
    %6148 = vmatprep.subr.bf16.mxu0 %v4045
    %6149 = vmatpush1.bf16.msra.mxu0 %v4044
    %6150 = vmatprep.subr.bf16.mxu0 %v4055
    %6151 = vmatpush1.bf16.msra.mxu0 %v4054
    %6152 = vmatprep.subr.bf16.mxu0 %v4065
    %6153 = vmatpush1.bf16.msra.mxu0 %v4064
    %6154 = vmatprep.subr.bf16.mxu0 %v4075
    %6155 = vmatpush1.bf16.msra.mxu0 %v4074
    %6156 = vmatprep.subr.bf16.mxu0 %v4085
    %6157 = vmatpush1.bf16.msra.mxu0 %v4084
    %6158 = vmatprep.subr.bf16.mxu0 %v4095
    %6159 = vmatpush1.bf16.msra.mxu0 %v4094
    %6160 = vmatprep.subr.bf16.mxu0 %v4105
    %6161 = vmatpush1.bf16.msra.mxu0 %v4104
    %6162 = vmatprep.mubr.bf16.mxu0 %v1049
    %6163 = vmatmul.mubr.bf16.gmra.mrb[0].mxu0 %v1048
    %v6164 = vpop.f32.mrb[0].mxu0
    %v6165 = vadd.f32 0.0, %v6164
    %v6166 = vpop.f32.mrb[0].mxu0
    %v6167 = vadd.f32 0.0, %v6166
    %v6168 = vpop.f32.mrb[0].mxu0
    %v6169 = vadd.f32 0.0, %v6168
    %v6170 = vpop.f32.mrb[0].mxu0
    %v6171 = vadd.f32 0.0, %v6170
    %6172 = vdwg.mxu0
    %6173 = vmatprep.subr.bf16.mxu0 %v4115
    %6174 = vmatpush1.bf16.msra.mxu0 %v4114
    %6175 = vmatprep.subr.bf16.mxu0 %v4125
    %6176 = vmatpush1.bf16.msra.mxu0 %v4124
    %6177 = vmatprep.subr.bf16.mxu0 %v4135
    %6178 = vmatpush1.bf16.msra.mxu0 %v4134
    %6179 = vmatprep.subr.bf16.mxu0 %v4145
    %6180 = vmatpush1.bf16.msra.mxu0 %v4144
    %6181 = vmatprep.subr.bf16.mxu0 %v4155
    %6182 = vmatpush1.bf16.msra.mxu0 %v4154
    %6183 = vmatprep.subr.bf16.mxu0 %v4165
    %6184 = vmatpush1.bf16.msra.mxu0 %v4164
    %6185 = vmatprep.subr.bf16.mxu0 %v4175
    %6186 = vmatpush1.bf16.msra.mxu0 %v4174
    %6187 = vmatprep.subr.bf16.mxu0 %v4185
    %6188 = vmatpush1.bf16.msra.mxu0 %v4184
    %6189 = vmatprep.subr.bf16.mxu0 %v4195
    %6190 = vmatpush1.bf16.msra.mxu0 %v4194
    %6191 = vmatprep.subr.bf16.mxu0 %v4205
    %6192 = vmatpush1.bf16.msra.mxu0 %v4204
    %6193 = vmatprep.subr.bf16.mxu0 %v4215
    %6194 = vmatpush1.bf16.msra.mxu0 %v4214
    %6195 = vmatprep.subr.bf16.mxu0 %v4225
    %6196 = vmatpush1.bf16.msra.mxu0 %v4224
    %6197 = vmatprep.subr.bf16.mxu0 %v4235
    %6198 = vmatpush1.bf16.msra.mxu0 %v4234
    %6199 = vmatprep.subr.bf16.mxu0 %v4245
    %6200 = vmatpush1.bf16.msra.mxu0 %v4244
    %6201 = vmatprep.subr.bf16.mxu0 %v4255
    %6202 = vmatpush1.bf16.msra.mxu0 %v4254
    %6203 = vmatprep.subr.bf16.mxu0 %v4265
    %6204 = vmatpush1.bf16.msra.mxu0 %v4264
    %6205 = vmatprep.mubr.bf16.mxu0 %v1051
    %6206 = vmatmul.mubr.bf16.gmra.mrb[0].mxu0 %v1050
    %v6207 = vpop.f32.mrb[0].mxu0
    %v6208 = vadd.f32 %v6165, %v6207
    %v6209 = vpop.f32.mrb[0].mxu0
    %v6210 = vadd.f32 %v6167, %v6209
    %v6211 = vpop.f32.mrb[0].mxu0
    %v6212 = vadd.f32 %v6169, %v6211
    %v6213 = vpop.f32.mrb[0].mxu0
    %v6214 = vadd.f32 %v6171, %v6213
    %6215 = vdwg.mxu0
    %6216 = vmatprep.subr.bf16.mxu0 %v4275
    %6217 = vmatpush1.bf16.msra.mxu0 %v4274
    %6218 = vmatprep.subr.bf16.mxu0 %v4285
    %6219 = vmatpush1.bf16.msra.mxu0 %v4284
    %6220 = vmatprep.subr.bf16.mxu0 %v4295
    %6221 = vmatpush1.bf16.msra.mxu0 %v4294
    %6222 = vmatprep.subr.bf16.mxu0 %v4305
    %6223 = vmatpush1.bf16.msra.mxu0 %v4304
    %6224 = vmatprep.subr.bf16.mxu0 %v4315
    %6225 = vmatpush1.bf16.msra.mxu0 %v4314
    %6226 = vmatprep.subr.bf16.mxu0 %v4325
    %6227 = vmatpush1.bf16.msra.mxu0 %v4324
    %6228 = vmatprep.subr.bf16.mxu0 %v4335
    %6229 = vmatpush1.bf16.msra.mxu0 %v4334
    %6230 = vmatprep.subr.bf16.mxu0 %v4345
    %6231 = vmatpush1.bf16.msra.mxu0 %v4344
    %6232 = vmatprep.subr.bf16.mxu0 %v4355
    %6233 = vmatpush1.bf16.msra.mxu0 %v4354
    %6234 = vmatprep.subr.bf16.mxu0 %v4365
    %6235 = vmatpush1.bf16.msra.mxu0 %v4364
    %6236 = vmatprep.subr.bf16.mxu0 %v4375
    %6237 = vmatpush1.bf16.msra.mxu0 %v4374
    %6238 = vmatprep.subr.bf16.mxu0 %v4385
    %6239 = vmatpush1.bf16.msra.mxu0 %v4384
    %6240 = vmatprep.subr.bf16.mxu0 %v4395
    %6241 = vmatpush1.bf16.msra.mxu0 %v4394
    %6242 = vmatprep.subr.bf16.mxu0 %v4405
    %6243 = vmatpush1.bf16.msra.mxu0 %v4404
    %6244 = vmatprep.subr.bf16.mxu0 %v4415
    %6245 = vmatpush1.bf16.msra.mxu0 %v4414
    %6246 = vmatprep.subr.bf16.mxu0 %v4425
    %6247 = vmatpush1.bf16.msra.mxu0 %v4424
    %6248 = vmatprep.mubr.bf16.mxu0 %v1053
    %6249 = vmatmul.mubr.bf16.gmra.mrb[0].mxu0 %v1052
    %v6250 = vpop.f32.mrb[0].mxu0
    %v6251 = vadd.f32 %v6208, %v6250
    %v6252 = vpop.f32.mrb[0].mxu0
    %v6253 = vadd.f32 %v6210, %v6252
    %v6254 = vpop.f32.mrb[0].mxu0
    %v6255 = vadd.f32 %v6212, %v6254
    %v6256 = vpop.f32.mrb[0].mxu0
    %v6257 = vadd.f32 %v6214, %v6256
    %6258 = vdwg.mxu0
    %6259 = vmatprep.subr.bf16.mxu0 %v4435
    %6260 = vmatpush1.bf16.msra.mxu0 %v4434
    %6261 = vmatprep.subr.bf16.mxu0 %v4445
    %6262 = vmatpush1.bf16.msra.mxu0 %v4444
    %6263 = vmatprep.subr.bf16.mxu0 %v4455
    %6264 = vmatpush1.bf16.msra.mxu0 %v4454
    %6265 = vmatprep.subr.bf16.mxu0 %v4465
    %6266 = vmatpush1.bf16.msra.mxu0 %v4464
    %6267 = vmatprep.subr.bf16.mxu0 %v4475
    %6268 = vmatpush1.bf16.msra.mxu0 %v4474
    %6269 = vmatprep.subr.bf16.mxu0 %v4485
    %6270 = vmatpush1.bf16.msra.mxu0 %v4484
    %6271 = vmatprep.subr.bf16.mxu0 %v4495
    %6272 = vmatpush1.bf16.msra.mxu0 %v4494
    %6273 = vmatprep.subr.bf16.mxu0 %v4505
    %6274 = vmatpush1.bf16.msra.mxu0 %v4504
    %6275 = vmatprep.subr.bf16.mxu0 %v4515
    %6276 = vmatpush1.bf16.msra.mxu0 %v4514
    %6277 = vmatprep.subr.bf16.mxu0 %v4525
    %6278 = vmatpush1.bf16.msra.mxu0 %v4524
    %6279 = vmatprep.subr.bf16.mxu0 %v4535
    %6280 = vmatpush1.bf16.msra.mxu0 %v4534
    %6281 = vmatprep.subr.bf16.mxu0 %v4545
    %6282 = vmatpush1.bf16.msra.mxu0 %v4544
    %6283 = vmatprep.subr.bf16.mxu0 %v4555
    %6284 = vmatpush1.bf16.msra.mxu0 %v4554
    %6285 = vmatprep.subr.bf16.mxu0 %v4565
    %6286 = vmatpush1.bf16.msra.mxu0 %v4564
    %6287 = vmatprep.subr.bf16.mxu0 %v4575
    %6288 = vmatpush1.bf16.msra.mxu0 %v4574
    %6289 = vmatprep.subr.bf16.mxu0 %v4585
    %6290 = vmatpush1.bf16.msra.mxu0 %v4584
    %6291 = vmatprep.mubr.bf16.mxu0 %v1055
    %6292 = vmatmul.mubr.bf16.gmra.mrb[0].mxu0 %v1054
    %v6293 = vpop.f32.mrb[0].mxu0
    %v6294 = vadd.f32 %v6251, %v6293
    %v6295 = vpop.f32.mrb[0].mxu0
    %v6296 = vadd.f32 %v6253, %v6295
    %v6297 = vpop.f32.mrb[0].mxu0
    %v6298 = vadd.f32 %v6255, %v6297
    %v6299 = vpop.f32.mrb[0].mxu0
    %v6300 = vadd.f32 %v6257, %v6299
    %6301 = vdwg.mxu0
    %6302 = vmatprep.subr.bf16.mxu0 %v4595
    %6303 = vmatpush1.bf16.msra.mxu0 %v4594
    %6304 = vmatprep.subr.bf16.mxu0 %v4605
    %6305 = vmatpush1.bf16.msra.mxu0 %v4604
    %6306 = vmatprep.subr.bf16.mxu0 %v4615
    %6307 = vmatpush1.bf16.msra.mxu0 %v4614
    %6308 = vmatprep.subr.bf16.mxu0 %v4625
    %6309 = vmatpush1.bf16.msra.mxu0 %v4624
    %6310 = vmatprep.subr.bf16.mxu0 %v4635
    %6311 = vmatpush1.bf16.msra.mxu0 %v4634
    %6312 = vmatprep.subr.bf16.mxu0 %v4645
    %6313 = vmatpush1.bf16.msra.mxu0 %v4644
    %6314 = vmatprep.subr.bf16.mxu0 %v4655
    %6315 = vmatpush1.bf16.msra.mxu0 %v4654
    %6316 = vmatprep.subr.bf16.mxu0 %v4665
    %6317 = vmatpush1.bf16.msra.mxu0 %v4664
    %6318 = vmatprep.subr.bf16.mxu0 %v4675
    %6319 = vmatpush1.bf16.msra.mxu0 %v4674
    %6320 = vmatprep.subr.bf16.mxu0 %v4685
    %6321 = vmatpush1.bf16.msra.mxu0 %v4684
    %6322 = vmatprep.subr.bf16.mxu0 %v4695
    %6323 = vmatpush1.bf16.msra.mxu0 %v4694
    %6324 = vmatprep.subr.bf16.mxu0 %v4705
    %6325 = vmatpush1.bf16.msra.mxu0 %v4704
    %6326 = vmatprep.subr.bf16.mxu0 %v4715
    %6327 = vmatpush1.bf16.msra.mxu0 %v4714
    %6328 = vmatprep.subr.bf16.mxu0 %v4725
    %6329 = vmatpush1.bf16.msra.mxu0 %v4724
    %6330 = vmatprep.subr.bf16.mxu0 %v4735
    %6331 = vmatpush1.bf16.msra.mxu0 %v4734
    %6332 = vmatprep.subr.bf16.mxu0 %v4745
    %6333 = vmatpush1.bf16.msra.mxu0 %v4744
    %6334 = vmatprep.mubr.bf16.mxu0 %v1057
    %6335 = vmatmul.mubr.bf16.gmra.mrb[0].mxu0 %v1056
    %v6336 = vpop.f32.mrb[0].mxu0
    %v6337 = vadd.f32 %v6294, %v6336
    %v6338 = vpop.f32.mrb[0].mxu0
    %v6339 = vadd.f32 %v6296, %v6338
    %v6340 = vpop.f32.mrb[0].mxu0
    %v6341 = vadd.f32 %v6298, %v6340
    %v6342 = vpop.f32.mrb[0].mxu0
    %v6343 = vadd.f32 %v6300, %v6342
    %6344 = vdwg.mxu0
    %6345 = vmatprep.subr.bf16.mxu0 %v4755
    %6346 = vmatpush1.bf16.msra.mxu0 %v4754
    %6347 = vmatprep.subr.bf16.mxu0 %v4765
    %6348 = vmatpush1.bf16.msra.mxu0 %v4764
    %6349 = vmatprep.subr.bf16.mxu0 %v4775
    %6350 = vmatpush1.bf16.msra.mxu0 %v4774
    %6351 = vmatprep.subr.bf16.mxu0 %v4785
    %6352 = vmatpush1.bf16.msra.mxu0 %v4784
    %6353 = vmatprep.subr.bf16.mxu0 %v4795
    %6354 = vmatpush1.bf16.msra.mxu0 %v4794
    %6355 = vmatprep.subr.bf16.mxu0 %v4805
    %6356 = vmatpush1.bf16.msra.mxu0 %v4804
    %6357 = vmatprep.subr.bf16.mxu0 %v4815
    %6358 = vmatpush1.bf16.msra.mxu0 %v4814
    %6359 = vmatprep.subr.bf16.mxu0 %v4825
    %6360 = vmatpush1.bf16.msra.mxu0 %v4824
    %6361 = vmatprep.subr.bf16.mxu0 %v4835
    %6362 = vmatpush1.bf16.msra.mxu0 %v4834
    %6363 = vmatprep.subr.bf16.mxu0 %v4845
    %6364 = vmatpush1.bf16.msra.mxu0 %v4844
    %6365 = vmatprep.subr.bf16.mxu0 %v4855
    %6366 = vmatpush1.bf16.msra.mxu0 %v4854
    %6367 = vmatprep.subr.bf16.mxu0 %v4865
    %6368 = vmatpush1.bf16.msra.mxu0 %v4864
    %6369 = vmatprep.subr.bf16.mxu0 %v4875
    %6370 = vmatpush1.bf16.msra.mxu0 %v4874
    %6371 = vmatprep.subr.bf16.mxu0 %v4885
    %6372 = vmatpush1.bf16.msra.mxu0 %v4884
    %6373 = vmatprep.subr.bf16.mxu0 %v4895
    %6374 = vmatpush1.bf16.msra.mxu0 %v4894
    %6375 = vmatprep.subr.bf16.mxu0 %v4905
    %6376 = vmatpush1.bf16.msra.mxu0 %v4904
    %6377 = vmatprep.mubr.bf16.mxu0 %v1059
    %6378 = vmatmul.mubr.bf16.gmra.mrb[0].mxu0 %v1058
    %v6379 = vpop.f32.mrb[0].mxu0
    %v6380 = vadd.f32 %v6337, %v6379
    %v6381 = vpop.f32.mrb[0].mxu0
    %v6382 = vadd.f32 %v6339, %v6381
    %v6383 = vpop.f32.mrb[0].mxu0
    %v6384 = vadd.f32 %v6341, %v6383
    %v6385 = vpop.f32.mrb[0].mxu0
    %v6386 = vadd.f32 %v6343, %v6385
    %6387 = vdwg.mxu0
    %6388 = vmatprep.subr.bf16.mxu0 %v3957
    %6389 = vmatpush1.bf16.msra.mxu0 %v3956
    %6390 = vmatprep.subr.bf16.mxu0 %v3967
    %6391 = vmatpush1.bf16.msra.mxu0 %v3966
    %6392 = vmatprep.subr.bf16.mxu0 %v3977
    %6393 = vmatpush1.bf16.msra.mxu0 %v3976
    %6394 = vmatprep.subr.bf16.mxu0 %v3987
    %6395 = vmatpush1.bf16.msra.mxu0 %v3986
    %6396 = vmatprep.subr.bf16.mxu0 %v3997
    %6397 = vmatpush1.bf16.msra.mxu0 %v3996
    %6398 = vmatprep.subr.bf16.mxu0 %v4007
    %6399 = vmatpush1.bf16.msra.mxu0 %v4006
    %6400 = vmatprep.subr.bf16.mxu0 %v4017
    %6401 = vmatpush1.bf16.msra.mxu0 %v4016
    %6402 = vmatprep.subr.bf16.mxu0 %v4027
    %6403 = vmatpush1.bf16.msra.mxu0 %v4026
    %6404 = vmatprep.subr.bf16.mxu0 %v4037
    %6405 = vmatpush1.bf16.msra.mxu0 %v4036
    %6406 = vmatprep.subr.bf16.mxu0 %v4047
    %6407 = vmatpush1.bf16.msra.mxu0 %v4046
    %6408 = vmatprep.subr.bf16.mxu0 %v4057
    %6409 = vmatpush1.bf16.msra.mxu0 %v4056
    %6410 = vmatprep.subr.bf16.mxu0 %v4067
    %6411 = vmatpush1.bf16.msra.mxu0 %v4066
    %6412 = vmatprep.subr.bf16.mxu0 %v4077
    %6413 = vmatpush1.bf16.msra.mxu0 %v4076
    %6414 = vmatprep.subr.bf16.mxu0 %v4087
    %6415 = vmatpush1.bf16.msra.mxu0 %v4086
    %6416 = vmatprep.subr.bf16.mxu0 %v4097
    %6417 = vmatpush1.bf16.msra.mxu0 %v4096
    %6418 = vmatprep.subr.bf16.mxu0 %v4107
    %6419 = vmatpush1.bf16.msra.mxu0 %v4106
    %6420 = vmatprep.mubr.bf16.mxu0 %v1049
    %6421 = vmatmul.mubr.bf16.gmra.mrb[0].mxu0 %v1048
    %v6422 = vpop.f32.mrb[0].mxu0
    %v6423 = vadd.f32 0.0, %v6422
    %v6424 = vpop.f32.mrb[0].mxu0
    %v6425 = vadd.f32 0.0, %v6424
    %v6426 = vpop.f32.mrb[0].mxu0
    %v6427 = vadd.f32 0.0, %v6426
    %v6428 = vpop.f32.mrb[0].mxu0
    %v6429 = vadd.f32 0.0, %v6428
    %6430 = vdwg.mxu0
    %6431 = vmatprep.subr.bf16.mxu0 %v4117
    %6432 = vmatpush1.bf16.msra.mxu0 %v4116
    %6433 = vmatprep.subr.bf16.mxu0 %v4127
    %6434 = vmatpush1.bf16.msra.mxu0 %v4126
    %6435 = vmatprep.subr.bf16.mxu0 %v4137
    %6436 = vmatpush1.bf16.msra.mxu0 %v4136
    %6437 = vmatprep.subr.bf16.mxu0 %v4147
    %6438 = vmatpush1.bf16.msra.mxu0 %v4146
    %6439 = vmatprep.subr.bf16.mxu0 %v4157
    %6440 = vmatpush1.bf16.msra.mxu0 %v4156
    %6441 = vmatprep.subr.bf16.mxu0 %v4167
    %6442 = vmatpush1.bf16.msra.mxu0 %v4166
    %6443 = vmatprep.subr.bf16.mxu0 %v4177
    %6444 = vmatpush1.bf16.msra.mxu0 %v4176
    %6445 = vmatprep.subr.bf16.mxu0 %v4187
    %6446 = vmatpush1.bf16.msra.mxu0 %v4186
    %6447 = vmatprep.subr.bf16.mxu0 %v4197
    %6448 = vmatpush1.bf16.msra.mxu0 %v4196
    %6449 = vmatprep.subr.bf16.mxu0 %v4207
    %6450 = vmatpush1.bf16.msra.mxu0 %v4206
    %6451 = vmatprep.subr.bf16.mxu0 %v4217
    %6452 = vmatpush1.bf16.msra.mxu0 %v4216
    %6453 = vmatprep.subr.bf16.mxu0 %v4227
    %6454 = vmatpush1.bf16.msra.mxu0 %v4226
    %6455 = vmatprep.subr.bf16.mxu0 %v4237
    %6456 = vmatpush1.bf16.msra.mxu0 %v4236
    %6457 = vmatprep.subr.bf16.mxu0 %v4247
    %6458 = vmatpush1.bf16.msra.mxu0 %v4246
    %6459 = vmatprep.subr.bf16.mxu0 %v4257
    %6460 = vmatpush1.bf16.msra.mxu0 %v4256
    %6461 = vmatprep.subr.bf16.mxu0 %v4267
    %6462 = vmatpush1.bf16.msra.mxu0 %v4266
    %6463 = vmatprep.mubr.bf16.mxu0 %v1051
    %6464 = vmatmul.mubr.bf16.gmra.mrb[0].mxu0 %v1050
    %v6465 = vpop.f32.mrb[0].mxu0
    %v6466 = vadd.f32 %v6423, %v6465
    %v6467 = vpop.f32.mrb[0].mxu0
    %v6468 = vadd.f32 %v6425, %v6467
    %v6469 = vpop.f32.mrb[0].mxu0
    %v6470 = vadd.f32 %v6427, %v6469
    %v6471 = vpop.f32.mrb[0].mxu0
    %v6472 = vadd.f32 %v6429, %v6471
    %6473 = vdwg.mxu0
    %6474 = vmatprep.subr.bf16.mxu0 %v4277
    %6475 = vmatpush1.bf16.msra.mxu0 %v4276
    %6476 = vmatprep.subr.bf16.mxu0 %v4287
    %6477 = vmatpush1.bf16.msra.mxu0 %v4286
    %6478 = vmatprep.subr.bf16.mxu0 %v4297
    %6479 = vmatpush1.bf16.msra.mxu0 %v4296
    %6480 = vmatprep.subr.bf16.mxu0 %v4307
    %6481 = vmatpush1.bf16.msra.mxu0 %v4306
    %6482 = vmatprep.subr.bf16.mxu0 %v4317
    %6483 = vmatpush1.bf16.msra.mxu0 %v4316
    %6484 = vmatprep.subr.bf16.mxu0 %v4327
    %6485 = vmatpush1.bf16.msra.mxu0 %v4326
    %6486 = vmatprep.subr.bf16.mxu0 %v4337
    %6487 = vmatpush1.bf16.msra.mxu0 %v4336
    %6488 = vmatprep.subr.bf16.mxu0 %v4347
    %6489 = vmatpush1.bf16.msra.mxu0 %v4346
    %6490 = vmatprep.subr.bf16.mxu0 %v4357
    %6491 = vmatpush1.bf16.msra.mxu0 %v4356
    %6492 = vmatprep.subr.bf16.mxu0 %v4367
    %6493 = vmatpush1.bf16.msra.mxu0 %v4366
    %6494 = vmatprep.subr.bf16.mxu0 %v4377
    %6495 = vmatpush1.bf16.msra.mxu0 %v4376
    %6496 = vmatprep.subr.bf16.mxu0 %v4387
    %6497 = vmatpush1.bf16.msra.mxu0 %v4386
    %6498 = vmatprep.subr.bf16.mxu0 %v4397
    %6499 = vmatpush1.bf16.msra.mxu0 %v4396
    %6500 = vmatprep.subr.bf16.mxu0 %v4407
    %6501 = vmatpush1.bf16.msra.mxu0 %v4406
    %6502 = vmatprep.subr.bf16.mxu0 %v4417
    %6503 = vmatpush1.bf16.msra.mxu0 %v4416
    %6504 = vmatprep.subr.bf16.mxu0 %v4427
    %6505 = vmatpush1.bf16.msra.mxu0 %v4426
    %6506 = vmatprep.mubr.bf16.mxu0 %v1053
    %6507 = vmatmul.mubr.bf16.gmra.mrb[0].mxu0 %v1052
    %v6508 = vpop.f32.mrb[0].mxu0
    %v6509 = vadd.f32 %v6466, %v6508
    %v6510 = vpop.f32.mrb[0].mxu0
    %v6511 = vadd.f32 %v6468, %v6510
    %v6512 = vpop.f32.mrb[0].mxu0
    %v6513 = vadd.f32 %v6470, %v6512
    %v6514 = vpop.f32.mrb[0].mxu0
    %v6515 = vadd.f32 %v6472, %v6514
    %6516 = vdwg.mxu0
    %6517 = vmatprep.subr.bf16.mxu0 %v4437
    %6518 = vmatpush1.bf16.msra.mxu0 %v4436
    %6519 = vmatprep.subr.bf16.mxu0 %v4447
    %6520 = vmatpush1.bf16.msra.mxu0 %v4446
    %6521 = vmatprep.subr.bf16.mxu0 %v4457
    %6522 = vmatpush1.bf16.msra.mxu0 %v4456
    %6523 = vmatprep.subr.bf16.mxu0 %v4467
    %6524 = vmatpush1.bf16.msra.mxu0 %v4466
    %6525 = vmatprep.subr.bf16.mxu0 %v4477
    %6526 = vmatpush1.bf16.msra.mxu0 %v4476
    %6527 = vmatprep.subr.bf16.mxu0 %v4487
    %6528 = vmatpush1.bf16.msra.mxu0 %v4486
    %6529 = vmatprep.subr.bf16.mxu0 %v4497
    %6530 = vmatpush1.bf16.msra.mxu0 %v4496
    %6531 = vmatprep.subr.bf16.mxu0 %v4507
    %6532 = vmatpush1.bf16.msra.mxu0 %v4506
    %6533 = vmatprep.subr.bf16.mxu0 %v4517
    %6534 = vmatpush1.bf16.msra.mxu0 %v4516
    %6535 = vmatprep.subr.bf16.mxu0 %v4527
    %6536 = vmatpush1.bf16.msra.mxu0 %v4526
    %6537 = vmatprep.subr.bf16.mxu0 %v4537
    %6538 = vmatpush1.bf16.msra.mxu0 %v4536
    %6539 = vmatprep.subr.bf16.mxu0 %v4547
    %6540 = vmatpush1.bf16.msra.mxu0 %v4546
    %6541 = vmatprep.subr.bf16.mxu0 %v4557
    %6542 = vmatpush1.bf16.msra.mxu0 %v4556
    %6543 = vmatprep.subr.bf16.mxu0 %v4567
    %6544 = vmatpush1.bf16.msra.mxu0 %v4566
    %6545 = vmatprep.subr.bf16.mxu0 %v4577
    %6546 = vmatpush1.bf16.msra.mxu0 %v4576
    %6547 = vmatprep.subr.bf16.mxu0 %v4587
    %6548 = vmatpush1.bf16.msra.mxu0 %v4586
    %6549 = vmatprep.mubr.bf16.mxu0 %v1055
    %6550 = vmatmul.mubr.bf16.gmra.mrb[0].mxu0 %v1054
    %v6551 = vpop.f32.mrb[0].mxu0
    %v6552 = vadd.f32 %v6509, %v6551
    %v6553 = vpop.f32.mrb[0].mxu0
    %v6554 = vadd.f32 %v6511, %v6553
    %v6555 = vpop.f32.mrb[0].mxu0
    %v6556 = vadd.f32 %v6513, %v6555
    %v6557 = vpop.f32.mrb[0].mxu0
    %v6558 = vadd.f32 %v6515, %v6557
    %6559 = vdwg.mxu0
    %6560 = vmatprep.subr.bf16.mxu0 %v4597
    %6561 = vmatpush1.bf16.msra.mxu0 %v4596
    %6562 = vmatprep.subr.bf16.mxu0 %v4607
    %6563 = vmatpush1.bf16.msra.mxu0 %v4606
    %6564 = vmatprep.subr.bf16.mxu0 %v4617
    %6565 = vmatpush1.bf16.msra.mxu0 %v4616
    %6566 = vmatprep.subr.bf16.mxu0 %v4627
    %6567 = vmatpush1.bf16.msra.mxu0 %v4626
    %6568 = vmatprep.subr.bf16.mxu0 %v4637
    %6569 = vmatpush1.bf16.msra.mxu0 %v4636
    %6570 = vmatprep.subr.bf16.mxu0 %v4647
    %6571 = vmatpush1.bf16.msra.mxu0 %v4646
    %6572 = vmatprep.subr.bf16.mxu0 %v4657
    %6573 = vmatpush1.bf16.msra.mxu0 %v4656
    %6574 = vmatprep.subr.bf16.mxu0 %v4667
    %6575 = vmatpush1.bf16.msra.mxu0 %v4666
    %6576 = vmatprep.subr.bf16.mxu0 %v4677
    %6577 = vmatpush1.bf16.msra.mxu0 %v4676
    %6578 = vmatprep.subr.bf16.mxu0 %v4687
    %6579 = vmatpush1.bf16.msra.mxu0 %v4686
    %6580 = vmatprep.subr.bf16.mxu0 %v4697
    %6581 = vmatpush1.bf16.msra.mxu0 %v4696
    %6582 = vmatprep.subr.bf16.mxu0 %v4707
    %6583 = vmatpush1.bf16.msra.mxu0 %v4706
    %6584 = vmatprep.subr.bf16.mxu0 %v4717
    %6585 = vmatpush1.bf16.msra.mxu0 %v4716
    %6586 = vmatprep.subr.bf16.mxu0 %v4727
    %6587 = vmatpush1.bf16.msra.mxu0 %v4726
    %6588 = vmatprep.subr.bf16.mxu0 %v4737
    %6589 = vmatpush1.bf16.msra.mxu0 %v4736
    %6590 = vmatprep.subr.bf16.mxu0 %v4747
    %6591 = vmatpush1.bf16.msra.mxu0 %v4746
    %6592 = vmatprep.mubr.bf16.mxu0 %v1057
    %6593 = vmatmul.mubr.bf16.gmra.mrb[0].mxu0 %v1056
    %v6594 = vpop.f32.mrb[0].mxu0
    %v6595 = vadd.f32 %v6552, %v6594
    %v6596 = vpop.f32.mrb[0].mxu0
    %v6597 = vadd.f32 %v6554, %v6596
    %v6598 = vpop.f32.mrb[0].mxu0
    %v6599 = vadd.f32 %v6556, %v6598
    %v6600 = vpop.f32.mrb[0].mxu0
    %v6601 = vadd.f32 %v6558, %v6600
    %6602 = vdwg.mxu0
    %6603 = vmatprep.subr.bf16.mxu0 %v4757
    %6604 = vmatpush1.bf16.msra.mxu0 %v4756
    %6605 = vmatprep.subr.bf16.mxu0 %v4767
    %6606 = vmatpush1.bf16.msra.mxu0 %v4766
    %6607 = vmatprep.subr.bf16.mxu0 %v4777
    %6608 = vmatpush1.bf16.msra.mxu0 %v4776
    %6609 = vmatprep.subr.bf16.mxu0 %v4787
    %6610 = vmatpush1.bf16.msra.mxu0 %v4786
    %6611 = vmatprep.subr.bf16.mxu0 %v4797
    %6612 = vmatpush1.bf16.msra.mxu0 %v4796
    %6613 = vmatprep.subr.bf16.mxu0 %v4807
    %6614 = vmatpush1.bf16.msra.mxu0 %v4806
    %6615 = vmatprep.subr.bf16.mxu0 %v4817
    %6616 = vmatpush1.bf16.msra.mxu0 %v4816
    %6617 = vmatprep.subr.bf16.mxu0 %v4827
    %6618 = vmatpush1.bf16.msra.mxu0 %v4826
    %6619 = vmatprep.subr.bf16.mxu0 %v4837
    %6620 = vmatpush1.bf16.msra.mxu0 %v4836
    %6621 = vmatprep.subr.bf16.mxu0 %v4847
    %6622 = vmatpush1.bf16.msra.mxu0 %v4846
    %6623 = vmatprep.subr.bf16.mxu0 %v4857
    %6624 = vmatpush1.bf16.msra.mxu0 %v4856
    %6625 = vmatprep.subr.bf16.mxu0 %v4867
    %6626 = vmatpush1.bf16.msra.mxu0 %v4866
    %6627 = vmatprep.subr.bf16.mxu0 %v4877
    %6628 = vmatpush1.bf16.msra.mxu0 %v4876
    %6629 = vmatprep.subr.bf16.mxu0 %v4887
    %6630 = vmatpush1.bf16.msra.mxu0 %v4886
    %6631 = vmatprep.subr.bf16.mxu0 %v4897
    %6632 = vmatpush1.bf16.msra.mxu0 %v4896
    %6633 = vmatprep.subr.bf16.mxu0 %v4907
    %6634 = vmatpush1.bf16.msra.mxu0 %v4906
    %6635 = vmatprep.mubr.bf16.mxu0 %v1059
    %6636 = vmatmul.mubr.bf16.gmra.mrb[0].mxu0 %v1058
    %v6637 = vpop.f32.mrb[0].mxu0
    %v6638 = vadd.f32 %v6595, %v6637
    %v6639 = vpop.f32.mrb[0].mxu0
    %v6640 = vadd.f32 %v6597, %v6639
    %v6641 = vpop.f32.mrb[0].mxu0
    %v6642 = vadd.f32 %v6599, %v6641
    %v6643 = vpop.f32.mrb[0].mxu0
    %v6644 = vadd.f32 %v6601, %v6643
    %6645 = vdwg.mxu0
    %6646 = vmatprep.subr.bf16.mxu0 %v3959
    %6647 = vmatpush1.bf16.msra.mxu0 %v3958
    %6648 = vmatprep.subr.bf16.mxu0 %v3969
    %6649 = vmatpush1.bf16.msra.mxu0 %v3968
    %6650 = vmatprep.subr.bf16.mxu0 %v3979
    %6651 = vmatpush1.bf16.msra.mxu0 %v3978
    %6652 = vmatprep.subr.bf16.mxu0 %v3989
    %6653 = vmatpush1.bf16.msra.mxu0 %v3988
    %6654 = vmatprep.subr.bf16.mxu0 %v3999
    %6655 = vmatpush1.bf16.msra.mxu0 %v3998
    %6656 = vmatprep.subr.bf16.mxu0 %v4009
    %6657 = vmatpush1.bf16.msra.mxu0 %v4008
    %6658 = vmatprep.subr.bf16.mxu0 %v4019
    %6659 = vmatpush1.bf16.msra.mxu0 %v4018
    %6660 = vmatprep.subr.bf16.mxu0 %v4029
    %6661 = vmatpush1.bf16.msra.mxu0 %v4028
    %6662 = vmatprep.subr.bf16.mxu0 %v4039
    %6663 = vmatpush1.bf16.msra.mxu0 %v4038
    %6664 = vmatprep.subr.bf16.mxu0 %v4049
    %6665 = vmatpush1.bf16.msra.mxu0 %v4048
    %6666 = vmatprep.subr.bf16.mxu0 %v4059
    %6667 = vmatpush1.bf16.msra.mxu0 %v4058
    %6668 = vmatprep.subr.bf16.mxu0 %v4069
    %6669 = vmatpush1.bf16.msra.mxu0 %v4068
    %6670 = vmatprep.subr.bf16.mxu0 %v4079
    %6671 = vmatpush1.bf16.msra.mxu0 %v4078
    %6672 = vmatprep.subr.bf16.mxu0 %v4089
    %6673 = vmatpush1.bf16.msra.mxu0 %v4088
    %6674 = vmatprep.subr.bf16.mxu0 %v4099
    %6675 = vmatpush1.bf16.msra.mxu0 %v4098
    %6676 = vmatprep.subr.bf16.mxu0 %v4109
    %6677 = vmatpush1.bf16.msra.mxu0 %v4108
    %6678 = vmatprep.mubr.bf16.mxu0 %v1049
    %6679 = vmatmul.mubr.bf16.gmra.mrb[0].mxu0 %v1048
    %v6680 = vpop.f32.mrb[0].mxu0
    %v6681 = vadd.f32 0.0, %v6680
    %v6682 = vpop.f32.mrb[0].mxu0
    %v6683 = vadd.f32 0.0, %v6682
    %v6684 = vpop.f32.mrb[0].mxu0
    %v6685 = vadd.f32 0.0, %v6684
    %v6686 = vpop.f32.mrb[0].mxu0
    %v6687 = vadd.f32 0.0, %v6686
    %6688 = vdwg.mxu0
    %6689 = vmatprep.subr.bf16.mxu0 %v4119
    %6690 = vmatpush1.bf16.msra.mxu0 %v4118
    %6691 = vmatprep.subr.bf16.mxu0 %v4129
    %6692 = vmatpush1.bf16.msra.mxu0 %v4128
    %6693 = vmatprep.subr.bf16.mxu0 %v4139
    %6694 = vmatpush1.bf16.msra.mxu0 %v4138
    %6695 = vmatprep.subr.bf16.mxu0 %v4149
    %6696 = vmatpush1.bf16.msra.mxu0 %v4148
    %6697 = vmatprep.subr.bf16.mxu0 %v4159
    %6698 = vmatpush1.bf16.msra.mxu0 %v4158
    %6699 = vmatprep.subr.bf16.mxu0 %v4169
    %6700 = vmatpush1.bf16.msra.mxu0 %v4168
    %6701 = vmatprep.subr.bf16.mxu0 %v4179
    %6702 = vmatpush1.bf16.msra.mxu0 %v4178
    %6703 = vmatprep.subr.bf16.mxu0 %v4189
    %6704 = vmatpush1.bf16.msra.mxu0 %v4188
    %6705 = vmatprep.subr.bf16.mxu0 %v4199
    %6706 = vmatpush1.bf16.msra.mxu0 %v4198
    %6707 = vmatprep.subr.bf16.mxu0 %v4209
    %6708 = vmatpush1.bf16.msra.mxu0 %v4208
    %6709 = vmatprep.subr.bf16.mxu0 %v4219
    %6710 = vmatpush1.bf16.msra.mxu0 %v4218
    %6711 = vmatprep.subr.bf16.mxu0 %v4229
    %6712 = vmatpush1.bf16.msra.mxu0 %v4228
    %6713 = vmatprep.subr.bf16.mxu0 %v4239
    %6714 = vmatpush1.bf16.msra.mxu0 %v4238
    %6715 = vmatprep.subr.bf16.mxu0 %v4249
    %6716 = vmatpush1.bf16.msra.mxu0 %v4248
    %6717 = vmatprep.subr.bf16.mxu0 %v4259
    %6718 = vmatpush1.bf16.msra.mxu0 %v4258
    %6719 = vmatprep.subr.bf16.mxu0 %v4269
    %6720 = vmatpush1.bf16.msra.mxu0 %v4268
    %6721 = vmatprep.mubr.bf16.mxu0 %v1051
    %6722 = vmatmul.mubr.bf16.gmra.mrb[0].mxu0 %v1050
    %v6723 = vpop.f32.mrb[0].mxu0
    %v6724 = vadd.f32 %v6681, %v6723
    %v6725 = vpop.f32.mrb[0].mxu0
    %v6726 = vadd.f32 %v6683, %v6725
    %v6727 = vpop.f32.mrb[0].mxu0
    %v6728 = vadd.f32 %v6685, %v6727
    %v6729 = vpop.f32.mrb[0].mxu0
    %v6730 = vadd.f32 %v6687, %v6729
    %6731 = vdwg.mxu0
    %6732 = vmatprep.subr.bf16.mxu0 %v4279
    %6733 = vmatpush1.bf16.msra.mxu0 %v4278
    %6734 = vmatprep.subr.bf16.mxu0 %v4289
    %6735 = vmatpush1.bf16.msra.mxu0 %v4288
    %6736 = vmatprep.subr.bf16.mxu0 %v4299
    %6737 = vmatpush1.bf16.msra.mxu0 %v4298
    %6738 = vmatprep.subr.bf16.mxu0 %v4309
    %6739 = vmatpush1.bf16.msra.mxu0 %v4308
    %6740 = vmatprep.subr.bf16.mxu0 %v4319
    %6741 = vmatpush1.bf16.msra.mxu0 %v4318
    %6742 = vmatprep.subr.bf16.mxu0 %v4329
    %6743 = vmatpush1.bf16.msra.mxu0 %v4328
    %6744 = vmatprep.subr.bf16.mxu0 %v4339
    %6745 = vmatpush1.bf16.msra.mxu0 %v4338
    %6746 = vmatprep.subr.bf16.mxu0 %v4349
    %6747 = vmatpush1.bf16.msra.mxu0 %v4348
    %6748 = vmatprep.subr.bf16.mxu0 %v4359
    %6749 = vmatpush1.bf16.msra.mxu0 %v4358
    %6750 = vmatprep.subr.bf16.mxu0 %v4369
    %6751 = vmatpush1.bf16.msra.mxu0 %v4368
    %6752 = vmatprep.subr.bf16.mxu0 %v4379
    %6753 = vmatpush1.bf16.msra.mxu0 %v4378
    %6754 = vmatprep.subr.bf16.mxu0 %v4389
    %6755 = vmatpush1.bf16.msra.mxu0 %v4388
    %6756 = vmatprep.subr.bf16.mxu0 %v4399
    %6757 = vmatpush1.bf16.msra.mxu0 %v4398
    %6758 = vmatprep.subr.bf16.mxu0 %v4409
    %6759 = vmatpush1.bf16.msra.mxu0 %v4408
    %6760 = vmatprep.subr.bf16.mxu0 %v4419
    %6761 = vmatpush1.bf16.msra.mxu0 %v4418
    %6762 = vmatprep.subr.bf16.mxu0 %v4429
    %6763 = vmatpush1.bf16.msra.mxu0 %v4428
    %6764 = vmatprep.mubr.bf16.mxu0 %v1053
    %6765 = vmatmul.mubr.bf16.gmra.mrb[0].mxu0 %v1052
    %v6766 = vpop.f32.mrb[0].mxu0
    %v6767 = vadd.f32 %v6724, %v6766
    %v6768 = vpop.f32.mrb[0].mxu0
    %v6769 = vadd.f32 %v6726, %v6768
    %v6770 = vpop.f32.mrb[0].mxu0
    %v6771 = vadd.f32 %v6728, %v6770
    %v6772 = vpop.f32.mrb[0].mxu0
    %v6773 = vadd.f32 %v6730, %v6772
    %6774 = vdwg.mxu0
    %6775 = vmatprep.subr.bf16.mxu0 %v4439
    %6776 = vmatpush1.bf16.msra.mxu0 %v4438
    %6777 = vmatprep.subr.bf16.mxu0 %v4449
    %6778 = vmatpush1.bf16.msra.mxu0 %v4448
    %6779 = vmatprep.subr.bf16.mxu0 %v4459
    %6780 = vmatpush1.bf16.msra.mxu0 %v4458
    %6781 = vmatprep.subr.bf16.mxu0 %v4469
    %6782 = vmatpush1.bf16.msra.mxu0 %v4468
    %6783 = vmatprep.subr.bf16.mxu0 %v4479
    %6784 = vmatpush1.bf16.msra.mxu0 %v4478
    %6785 = vmatprep.subr.bf16.mxu0 %v4489
    %6786 = vmatpush1.bf16.msra.mxu0 %v4488
    %6787 = vmatprep.subr.bf16.mxu0 %v4499
    %6788 = vmatpush1.bf16.msra.mxu0 %v4498
    %6789 = vmatprep.subr.bf16.mxu0 %v4509
    %6790 = vmatpush1.bf16.msra.mxu0 %v4508
    %6791 = vmatprep.subr.bf16.mxu0 %v4519
    %6792 = vmatpush1.bf16.msra.mxu0 %v4518
    %6793 = vmatprep.subr.bf16.mxu0 %v4529
    %6794 = vmatpush1.bf16.msra.mxu0 %v4528
    %6795 = vmatprep.subr.bf16.mxu0 %v4539
    %6796 = vmatpush1.bf16.msra.mxu0 %v4538
    %6797 = vmatprep.subr.bf16.mxu0 %v4549
    %6798 = vmatpush1.bf16.msra.mxu0 %v4548
    %6799 = vmatprep.subr.bf16.mxu0 %v4559
    %6800 = vmatpush1.bf16.msra.mxu0 %v4558
    %6801 = vmatprep.subr.bf16.mxu0 %v4569
    %6802 = vmatpush1.bf16.msra.mxu0 %v4568
    %6803 = vmatprep.subr.bf16.mxu0 %v4579
    %6804 = vmatpush1.bf16.msra.mxu0 %v4578
    %6805 = vmatprep.subr.bf16.mxu0 %v4589
    %6806 = vmatpush1.bf16.msra.mxu0 %v4588
    %6807 = vmatprep.mubr.bf16.mxu0 %v1055
    %6808 = vmatmul.mubr.bf16.gmra.mrb[0].mxu0 %v1054
    %v6809 = vpop.f32.mrb[0].mxu0
    %v6810 = vadd.f32 %v6767, %v6809
    %v6811 = vpop.f32.mrb[0].mxu0
    %v6812 = vadd.f32 %v6769, %v6811
    %v6813 = vpop.f32.mrb[0].mxu0
    %v6814 = vadd.f32 %v6771, %v6813
    %v6815 = vpop.f32.mrb[0].mxu0
    %v6816 = vadd.f32 %v6773, %v6815
    %6817 = vdwg.mxu0
    %6818 = vmatprep.subr.bf16.mxu0 %v4599
    %6819 = vmatpush1.bf16.msra.mxu0 %v4598
    %6820 = vmatprep.subr.bf16.mxu0 %v4609
    %6821 = vmatpush1.bf16.msra.mxu0 %v4608
    %6822 = vmatprep.subr.bf16.mxu0 %v4619
    %6823 = vmatpush1.bf16.msra.mxu0 %v4618
    %6824 = vmatprep.subr.bf16.mxu0 %v4629
    %6825 = vmatpush1.bf16.msra.mxu0 %v4628
    %6826 = vmatprep.subr.bf16.mxu0 %v4639
    %6827 = vmatpush1.bf16.msra.mxu0 %v4638
    %6828 = vmatprep.subr.bf16.mxu0 %v4649
    %6829 = vmatpush1.bf16.msra.mxu0 %v4648
    %6830 = vmatprep.subr.bf16.mxu0 %v4659
    %6831 = vmatpush1.bf16.msra.mxu0 %v4658
    %6832 = vmatprep.subr.bf16.mxu0 %v4669
    %6833 = vmatpush1.bf16.msra.mxu0 %v4668
    %6834 = vmatprep.subr.bf16.mxu0 %v4679
    %6835 = vmatpush1.bf16.msra.mxu0 %v4678
    %6836 = vmatprep.subr.bf16.mxu0 %v4689
    %6837 = vmatpush1.bf16.msra.mxu0 %v4688
    %6838 = vmatprep.subr.bf16.mxu0 %v4699
    %6839 = vmatpush1.bf16.msra.mxu0 %v4698
    %6840 = vmatprep.subr.bf16.mxu0 %v4709
    %6841 = vmatpush1.bf16.msra.mxu0 %v4708
    %6842 = vmatprep.subr.bf16.mxu0 %v4719
    %6843 = vmatpush1.bf16.msra.mxu0 %v4718
    %6844 = vmatprep.subr.bf16.mxu0 %v4729
    %6845 = vmatpush1.bf16.msra.mxu0 %v4728
    %6846 = vmatprep.subr.bf16.mxu0 %v4739
    %6847 = vmatpush1.bf16.msra.mxu0 %v4738
    %6848 = vmatprep.subr.bf16.mxu0 %v4749
    %6849 = vmatpush1.bf16.msra.mxu0 %v4748
    %6850 = vmatprep.mubr.bf16.mxu0 %v1057
    %6851 = vmatmul.mubr.bf16.gmra.mrb[0].mxu0 %v1056
    %v6852 = vpop.f32.mrb[0].mxu0
    %v6853 = vadd.f32 %v6810, %v6852
    %v6854 = vpop.f32.mrb[0].mxu0
    %v6855 = vadd.f32 %v6812, %v6854
    %v6856 = vpop.f32.mrb[0].mxu0
    %v6857 = vadd.f32 %v6814, %v6856
    %v6858 = vpop.f32.mrb[0].mxu0
    %v6859 = vadd.f32 %v6816, %v6858
    %6860 = vdwg.mxu0
    %6861 = vmatprep.subr.bf16.mxu0 %v4759
    %6862 = vmatpush1.bf16.msra.mxu0 %v4758
    %6863 = vmatprep.subr.bf16.mxu0 %v4769
    %6864 = vmatpush1.bf16.msra.mxu0 %v4768
    %6865 = vmatprep.subr.bf16.mxu0 %v4779
    %6866 = vmatpush1.bf16.msra.mxu0 %v4778
    %6867 = vmatprep.subr.bf16.mxu0 %v4789
    %6868 = vmatpush1.bf16.msra.mxu0 %v4788
    %6869 = vmatprep.subr.bf16.mxu0 %v4799
    %6870 = vmatpush1.bf16.msra.mxu0 %v4798
    %6871 = vmatprep.subr.bf16.mxu0 %v4809
    %6872 = vmatpush1.bf16.msra.mxu0 %v4808
    %6873 = vmatprep.subr.bf16.mxu0 %v4819
    %6874 = vmatpush1.bf16.msra.mxu0 %v4818
    %6875 = vmatprep.subr.bf16.mxu0 %v4829
    %6876 = vmatpush1.bf16.msra.mxu0 %v4828
    %6877 = vmatprep.subr.bf16.mxu0 %v4839
    %6878 = vmatpush1.bf16.msra.mxu0 %v4838
    %6879 = vmatprep.subr.bf16.mxu0 %v4849
    %6880 = vmatpush1.bf16.msra.mxu0 %v4848
    %6881 = vmatprep.subr.bf16.mxu0 %v4859
    %6882 = vmatpush1.bf16.msra.mxu0 %v4858
    %6883 = vmatprep.subr.bf16.mxu0 %v4869
    %6884 = vmatpush1.bf16.msra.mxu0 %v4868
    %6885 = vmatprep.subr.bf16.mxu0 %v4879
    %6886 = vmatpush1.bf16.msra.mxu0 %v4878
    %6887 = vmatprep.subr.bf16.mxu0 %v4889
    %6888 = vmatpush1.bf16.msra.mxu0 %v4888
    %6889 = vmatprep.subr.bf16.mxu0 %v4899
    %6890 = vmatpush1.bf16.msra.mxu0 %v4898
    %6891 = vmatprep.subr.bf16.mxu0 %v4909
    %6892 = vmatpush1.bf16.msra.mxu0 %v4908
    %6893 = vmatprep.mubr.bf16.mxu0 %v1059
    %6894 = vmatmul.mubr.bf16.gmra.mrb[0].mxu0 %v1058
    %v6895 = vpop.f32.mrb[0].mxu0
    %v6896 = vadd.f32 %v6853, %v6895
    %v6897 = vpop.f32.mrb[0].mxu0
    %v6898 = vadd.f32 %v6855, %v6897
    %v6899 = vpop.f32.mrb[0].mxu0
    %v6900 = vadd.f32 %v6857, %v6899
    %v6901 = vpop.f32.mrb[0].mxu0
    %v6902 = vadd.f32 %v6859, %v6901
    %6903 = vdwg.mxu0
    %6904 = vmatprep.subr.bf16.mxu0 %v3961
    %6905 = vmatpush1.bf16.msra.mxu0 %v3960
    %6906 = vmatprep.subr.bf16.mxu0 %v3971
    %6907 = vmatpush1.bf16.msra.mxu0 %v3970
    %6908 = vmatprep.subr.bf16.mxu0 %v3981
    %6909 = vmatpush1.bf16.msra.mxu0 %v3980
    %6910 = vmatprep.subr.bf16.mxu0 %v3991
    %6911 = vmatpush1.bf16.msra.mxu0 %v3990
    %6912 = vmatprep.subr.bf16.mxu0 %v4001
    %6913 = vmatpush1.bf16.msra.mxu0 %v4000
    %6914 = vmatprep.subr.bf16.mxu0 %v4011
    %6915 = vmatpush1.bf16.msra.mxu0 %v4010
    %6916 = vmatprep.subr.bf16.mxu0 %v4021
    %6917 = vmatpush1.bf16.msra.mxu0 %v4020
    %6918 = vmatprep.subr.bf16.mxu0 %v4031
    %6919 = vmatpush1.bf16.msra.mxu0 %v4030
    %6920 = vmatprep.subr.bf16.mxu0 %v4041
    %6921 = vmatpush1.bf16.msra.mxu0 %v4040
    %6922 = vmatprep.subr.bf16.mxu0 %v4051
    %6923 = vmatpush1.bf16.msra.mxu0 %v4050
    %6924 = vmatprep.subr.bf16.mxu0 %v4061
    %6925 = vmatpush1.bf16.msra.mxu0 %v4060
    %6926 = vmatprep.subr.bf16.mxu0 %v4071
    %6927 = vmatpush1.bf16.msra.mxu0 %v4070
    %6928 = vmatprep.subr.bf16.mxu0 %v4081
    %6929 = vmatpush1.bf16.msra.mxu0 %v4080
    %6930 = vmatprep.subr.bf16.mxu0 %v4091
    %6931 = vmatpush1.bf16.msra.mxu0 %v4090
    %6932 = vmatprep.subr.bf16.mxu0 %v4101
    %6933 = vmatpush1.bf16.msra.mxu0 %v4100
    %6934 = vmatprep.subr.bf16.mxu0 %v4111
    %6935 = vmatpush1.bf16.msra.mxu0 %v4110
    %6936 = vmatprep.mubr.bf16.mxu0 %v1049
    %6937 = vmatmul.mubr.bf16.gmra.mrb[0].mxu0 %v1048
    %v6938 = vpop.f32.mrb[0].mxu0
    %v6939 = vadd.f32 0.0, %v6938
    %v6940 = vpop.f32.mrb[0].mxu0
    %v6941 = vadd.f32 0.0, %v6940
    %v6942 = vpop.f32.mrb[0].mxu0
    %v6943 = vadd.f32 0.0, %v6942
    %v6944 = vpop.f32.mrb[0].mxu0
    %v6945 = vadd.f32 0.0, %v6944
    %6946 = vdwg.mxu0
    %6947 = vmatprep.subr.bf16.mxu0 %v4121
    %6948 = vmatpush1.bf16.msra.mxu0 %v4120
    %6949 = vmatprep.subr.bf16.mxu0 %v4131
    %6950 = vmatpush1.bf16.msra.mxu0 %v4130
    %6951 = vmatprep.subr.bf16.mxu0 %v4141
    %6952 = vmatpush1.bf16.msra.mxu0 %v4140
    %6953 = vmatprep.subr.bf16.mxu0 %v4151
    %6954 = vmatpush1.bf16.msra.mxu0 %v4150
    %6955 = vmatprep.subr.bf16.mxu0 %v4161
    %6956 = vmatpush1.bf16.msra.mxu0 %v4160
    %6957 = vmatprep.subr.bf16.mxu0 %v4171
    %6958 = vmatpush1.bf16.msra.mxu0 %v4170
    %6959 = vmatprep.subr.bf16.mxu0 %v4181
    %6960 = vmatpush1.bf16.msra.mxu0 %v4180
    %6961 = vmatprep.subr.bf16.mxu0 %v4191
    %6962 = vmatpush1.bf16.msra.mxu0 %v4190
    %6963 = vmatprep.subr.bf16.mxu0 %v4201
    %6964 = vmatpush1.bf16.msra.mxu0 %v4200
    %6965 = vmatprep.subr.bf16.mxu0 %v4211
    %6966 = vmatpush1.bf16.msra.mxu0 %v4210
    %6967 = vmatprep.subr.bf16.mxu0 %v4221
    %6968 = vmatpush1.bf16.msra.mxu0 %v4220
    %6969 = vmatprep.subr.bf16.mxu0 %v4231
    %6970 = vmatpush1.bf16.msra.mxu0 %v4230
    %6971 = vmatprep.subr.bf16.mxu0 %v4241
    %6972 = vmatpush1.bf16.msra.mxu0 %v4240
    %6973 = vmatprep.subr.bf16.mxu0 %v4251
    %6974 = vmatpush1.bf16.msra.mxu0 %v4250
    %6975 = vmatprep.subr.bf16.mxu0 %v4261
    %6976 = vmatpush1.bf16.msra.mxu0 %v4260
    %6977 = vmatprep.subr.bf16.mxu0 %v4271
    %6978 = vmatpush1.bf16.msra.mxu0 %v4270
    %6979 = vmatprep.mubr.bf16.mxu0 %v1051
    %6980 = vmatmul.mubr.bf16.gmra.mrb[0].mxu0 %v1050
    %v6981 = vpop.f32.mrb[0].mxu0
    %v6982 = vadd.f32 %v6939, %v6981
    %v6983 = vpop.f32.mrb[0].mxu0
    %v6984 = vadd.f32 %v6941, %v6983
    %v6985 = vpop.f32.mrb[0].mxu0
    %v6986 = vadd.f32 %v6943, %v6985
    %v6987 = vpop.f32.mrb[0].mxu0
    %v6988 = vadd.f32 %v6945, %v6987
    %6989 = vdwg.mxu0
    %6990 = vmatprep.subr.bf16.mxu0 %v4281
    %6991 = vmatpush1.bf16.msra.mxu0 %v4280
    %6992 = vmatprep.subr.bf16.mxu0 %v4291
    %6993 = vmatpush1.bf16.msra.mxu0 %v4290
    %6994 = vmatprep.subr.bf16.mxu0 %v4301
    %6995 = vmatpush1.bf16.msra.mxu0 %v4300
    %6996 = vmatprep.subr.bf16.mxu0 %v4311
    %6997 = vmatpush1.bf16.msra.mxu0 %v4310
    %6998 = vmatprep.subr.bf16.mxu0 %v4321
    %6999 = vmatpush1.bf16.msra.mxu0 %v4320
    %7000 = vmatprep.subr.bf16.mxu0 %v4331
    %7001 = vmatpush1.bf16.msra.mxu0 %v4330
    %7002 = vmatprep.subr.bf16.mxu0 %v4341
    %7003 = vmatpush1.bf16.msra.mxu0 %v4340
    %7004 = vmatprep.subr.bf16.mxu0 %v4351
    %7005 = vmatpush1.bf16.msra.mxu0 %v4350
    %7006 = vmatprep.subr.bf16.mxu0 %v4361
    %7007 = vmatpush1.bf16.msra.mxu0 %v4360
    %7008 = vmatprep.subr.bf16.mxu0 %v4371
    %7009 = vmatpush1.bf16.msra.mxu0 %v4370
    %7010 = vmatprep.subr.bf16.mxu0 %v4381
    %7011 = vmatpush1.bf16.msra.mxu0 %v4380
    %7012 = vmatprep.subr.bf16.mxu0 %v4391
    %7013 = vmatpush1.bf16.msra.mxu0 %v4390
    %7014 = vmatprep.subr.bf16.mxu0 %v4401
    %7015 = vmatpush1.bf16.msra.mxu0 %v4400
    %7016 = vmatprep.subr.bf16.mxu0 %v4411
    %7017 = vmatpush1.bf16.msra.mxu0 %v4410
    %7018 = vmatprep.subr.bf16.mxu0 %v4421
    %7019 = vmatpush1.bf16.msra.mxu0 %v4420
    %7020 = vmatprep.subr.bf16.mxu0 %v4431
    %7021 = vmatpush1.bf16.msra.mxu0 %v4430
    %7022 = vmatprep.mubr.bf16.mxu0 %v1053
    %7023 = vmatmul.mubr.bf16.gmra.mrb[0].mxu0 %v1052
    %v7024 = vpop.f32.mrb[0].mxu0
    %v7025 = vadd.f32 %v6982, %v7024
    %v7026 = vpop.f32.mrb[0].mxu0
    %v7027 = vadd.f32 %v6984, %v7026
    %v7028 = vpop.f32.mrb[0].mxu0
    %v7029 = vadd.f32 %v6986, %v7028
    %v7030 = vpop.f32.mrb[0].mxu0
    %v7031 = vadd.f32 %v6988, %v7030
    %7032 = vdwg.mxu0
    %7033 = vmatprep.subr.bf16.mxu0 %v4441
    %7034 = vmatpush1.bf16.msra.mxu0 %v4440
    %7035 = vmatprep.subr.bf16.mxu0 %v4451
    %7036 = vmatpush1.bf16.msra.mxu0 %v4450
    %7037 = vmatprep.subr.bf16.mxu0 %v4461
    %7038 = vmatpush1.bf16.msra.mxu0 %v4460
    %7039 = vmatprep.subr.bf16.mxu0 %v4471
    %7040 = vmatpush1.bf16.msra.mxu0 %v4470
    %7041 = vmatprep.subr.bf16.mxu0 %v4481
    %7042 = vmatpush1.bf16.msra.mxu0 %v4480
    %7043 = vmatprep.subr.bf16.mxu0 %v4491
    %7044 = vmatpush1.bf16.msra.mxu0 %v4490
    %7045 = vmatprep.subr.bf16.mxu0 %v4501
    %7046 = vmatpush1.bf16.msra.mxu0 %v4500
    %7047 = vmatprep.subr.bf16.mxu0 %v4511
    %7048 = vmatpush1.bf16.msra.mxu0 %v4510
    %7049 = vmatprep.subr.bf16.mxu0 %v4521
    %7050 = vmatpush1.bf16.msra.mxu0 %v4520
    %7051 = vmatprep.subr.bf16.mxu0 %v4531
    %7052 = vmatpush1.bf16.msra.mxu0 %v4530
    %7053 = vmatprep.subr.bf16.mxu0 %v4541
    %7054 = vmatpush1.bf16.msra.mxu0 %v4540
    %7055 = vmatprep.subr.bf16.mxu0 %v4551
    %7056 = vmatpush1.bf16.msra.mxu0 %v4550
    %7057 = vmatprep.subr.bf16.mxu0 %v4561
    %7058 = vmatpush1.bf16.msra.mxu0 %v4560
    %7059 = vmatprep.subr.bf16.mxu0 %v4571
    %7060 = vmatpush1.bf16.msra.mxu0 %v4570
    %7061 = vmatprep.subr.bf16.mxu0 %v4581
    %7062 = vmatpush1.bf16.msra.mxu0 %v4580
    %7063 = vmatprep.subr.bf16.mxu0 %v4591
    %7064 = vmatpush1.bf16.msra.mxu0 %v4590
    %7065 = vmatprep.mubr.bf16.mxu0 %v1055
    %7066 = vmatmul.mubr.bf16.gmra.mrb[0].mxu0 %v1054
    %v7067 = vpop.f32.mrb[0].mxu0
    %v7068 = vadd.f32 %v7025, %v7067
    %v7069 = vpop.f32.mrb[0].mxu0
    %v7070 = vadd.f32 %v7027, %v7069
    %v7071 = vpop.f32.mrb[0].mxu0
    %v7072 = vadd.f32 %v7029, %v7071
    %v7073 = vpop.f32.mrb[0].mxu0
    %v7074 = vadd.f32 %v7031, %v7073
    %7075 = vdwg.mxu0
    %7076 = vmatprep.subr.bf16.mxu0 %v4601
    %7077 = vmatpush1.bf16.msra.mxu0 %v4600
    %7078 = vmatprep.subr.bf16.mxu0 %v4611
    %7079 = vmatpush1.bf16.msra.mxu0 %v4610
    %7080 = vmatprep.subr.bf16.mxu0 %v4621
    %7081 = vmatpush1.bf16.msra.mxu0 %v4620
    %7082 = vmatprep.subr.bf16.mxu0 %v4631
    %7083 = vmatpush1.bf16.msra.mxu0 %v4630
    %7084 = vmatprep.subr.bf16.mxu0 %v4641
    %7085 = vmatpush1.bf16.msra.mxu0 %v4640
    %7086 = vmatprep.subr.bf16.mxu0 %v4651
    %7087 = vmatpush1.bf16.msra.mxu0 %v4650
    %7088 = vmatprep.subr.bf16.mxu0 %v4661
    %7089 = vmatpush1.bf16.msra.mxu0 %v4660
    %7090 = vmatprep.subr.bf16.mxu0 %v4671
    %7091 = vmatpush1.bf16.msra.mxu0 %v4670
    %7092 = vmatprep.subr.bf16.mxu0 %v4681
    %7093 = vmatpush1.bf16.msra.mxu0 %v4680
    %7094 = vmatprep.subr.bf16.mxu0 %v4691
    %7095 = vmatpush1.bf16.msra.mxu0 %v4690
    %7096 = vmatprep.subr.bf16.mxu0 %v4701
    %7097 = vmatpush1.bf16.msra.mxu0 %v4700
    %7098 = vmatprep.subr.bf16.mxu0 %v4711
    %7099 = vmatpush1.bf16.msra.mxu0 %v4710
    %7100 = vmatprep.subr.bf16.mxu0 %v4721
    %7101 = vmatpush1.bf16.msra.mxu0 %v4720
    %7102 = vmatprep.subr.bf16.mxu0 %v4731
    %7103 = vmatpush1.bf16.msra.mxu0 %v4730
    %7104 = vmatprep.subr.bf16.mxu0 %v4741
    %7105 = vmatpush1.bf16.msra.mxu0 %v4740
    %7106 = vmatprep.subr.bf16.mxu0 %v4751
    %7107 = vmatpush1.bf16.msra.mxu0 %v4750
    %7108 = vmatprep.mubr.bf16.mxu0 %v1057
    %7109 = vmatmul.mubr.bf16.gmra.mrb[0].mxu0 %v1056
    %v7110 = vpop.f32.mrb[0].mxu0
    %v7111 = vadd.f32 %v7068, %v7110
    %v7112 = vpop.f32.mrb[0].mxu0
    %v7113 = vadd.f32 %v7070, %v7112
    %v7114 = vpop.f32.mrb[0].mxu0
    %v7115 = vadd.f32 %v7072, %v7114
    %v7116 = vpop.f32.mrb[0].mxu0
    %v7117 = vadd.f32 %v7074, %v7116
    %7118 = vdwg.mxu0
    %7119 = vmatprep.subr.bf16.mxu0 %v4761
    %7120 = vmatpush1.bf16.msra.mxu0 %v4760
    %7121 = vmatprep.subr.bf16.mxu0 %v4771
    %7122 = vmatpush1.bf16.msra.mxu0 %v4770
    %7123 = vmatprep.subr.bf16.mxu0 %v4781
    %7124 = vmatpush1.bf16.msra.mxu0 %v4780
    %7125 = vmatprep.subr.bf16.mxu0 %v4791
    %7126 = vmatpush1.bf16.msra.mxu0 %v4790
    %7127 = vmatprep.subr.bf16.mxu0 %v4801
    %7128 = vmatpush1.bf16.msra.mxu0 %v4800
    %7129 = vmatprep.subr.bf16.mxu0 %v4811
    %7130 = vmatpush1.bf16.msra.mxu0 %v4810
    %7131 = vmatprep.subr.bf16.mxu0 %v4821
    %7132 = vmatpush1.bf16.msra.mxu0 %v4820
    %7133 = vmatprep.subr.bf16.mxu0 %v4831
    %7134 = vmatpush1.bf16.msra.mxu0 %v4830
    %7135 = vmatprep.subr.bf16.mxu0 %v4841
    %7136 = vmatpush1.bf16.msra.mxu0 %v4840
    %7137 = vmatprep.subr.bf16.mxu0 %v4851
    %7138 = vmatpush1.bf16.msra.mxu0 %v4850
    %7139 = vmatprep.subr.bf16.mxu0 %v4861
    %7140 = vmatpush1.bf16.msra.mxu0 %v4860
    %7141 = vmatprep.subr.bf16.mxu0 %v4871
    %7142 = vmatpush1.bf16.msra.mxu0 %v4870
    %7143 = vmatprep.subr.bf16.mxu0 %v4881
    %7144 = vmatpush1.bf16.msra.mxu0 %v4880
    %7145 = vmatprep.subr.bf16.mxu0 %v4891
    %7146 = vmatpush1.bf16.msra.mxu0 %v4890
    %7147 = vmatprep.subr.bf16.mxu0 %v4901
    %7148 = vmatpush1.bf16.msra.mxu0 %v4900
    %7149 = vmatprep.subr.bf16.mxu0 %v4911
    %7150 = vmatpush1.bf16.msra.mxu0 %v4910
    %7151 = vmatprep.mubr.bf16.mxu0 %v1059
    %7152 = vmatmul.mubr.bf16.gmra.mrb[0].mxu0 %v1058
    %v7153 = vpop.f32.mrb[0].mxu0
    %v7154 = vadd.f32 %v7111, %v7153
    %v7155 = vpop.f32.mrb[0].mxu0
    %v7156 = vadd.f32 %v7113, %v7155
    %v7157 = vpop.f32.mrb[0].mxu0
    %v7158 = vadd.f32 %v7115, %v7157
    %v7159 = vpop.f32.mrb[0].mxu0
    %v7160 = vadd.f32 %v7117, %v7159
    %7161 = vdwg.mxu0
    %7168 = vrot.lane.b32.xlu0 %v6380, 64
    %v7169 = vpop.permute.xlu0 %7168
    %7170 = vrot.lane.b32.xlu0 %v6382, 64
    %v7171 = vpop.permute.xlu0 %7170
    %7172 = vrot.lane.b32.xlu0 %v6638, 64
    %v7173 = vpop.permute.xlu0 %7172
    %7174 = vrot.lane.b32.xlu0 %v6384, 64
    %v7175 = vpop.permute.xlu0 %7174
    %7176 = vrot.lane.b32.xlu0 %v6386, 64
    %v7177 = vpop.permute.xlu0 %7176
    %7178 = vrot.lane.b32.xlu0 %v6642, 64
    %v7179 = vpop.permute.xlu0 %7178
    %vm7180 = vcmask 523264
    %v7181 = vsel %vm7180, %v7169, %v7171
    %v7182 = vsel %vm7180, %v7171, %v7173
    %v7183 = vsel %vm7180, %v7175, %v7177
    %v7184 = vsel %vm7180, %v7177, %v7179
    %v7191 = vmax.f32 %v6122, %v7181
    %v7192 = vmax.f32 %v6124, %v7182
    %v7193 = vmax.f32 %v6380, %v7173
    %v7194 = vmax.f32 %v6126, %v7183
    %v7195 = vmax.f32 %v6128, %v7184
    %v7196 = vmax.f32 %v6384, %v7179
    %7203 = vrot.lane.b32.xlu0 %v6898, 64
    %v7204 = vpop.permute.xlu0 %7203
    %7205 = vrot.lane.b32.xlu0 %v7154, 64
    %v7206 = vpop.permute.xlu0 %7205
    %7207 = vrot.lane.b32.xlu0 %v7156, 64
    %v7208 = vpop.permute.xlu0 %7207
    %7209 = vrot.lane.b32.xlu0 %v6902, 64
    %v7210 = vpop.permute.xlu0 %7209
    %7211 = vrot.lane.b32.xlu0 %v7158, 64
    %v7212 = vpop.permute.xlu0 %7211
    %7213 = vrot.lane.b32.xlu0 %v7160, 64
    %v7214 = vpop.permute.xlu0 %7213
    %v7215 = vsel %vm7180, %v7204, %v7206
    %v7216 = vsel %vm7180, %v7206, %v7208
    %v7217 = vsel %vm7180, %v7210, %v7212
    %v7218 = vsel %vm7180, %v7212, %v7214
    %v7225 = vmax.f32 %v6640, %v7215
    %v7226 = vmax.f32 %v6896, %v7216
    %v7227 = vmax.f32 %v6898, %v7208
    %v7228 = vmax.f32 %v6644, %v7217
    %v7229 = vmax.f32 %v6900, %v7218
    %v7230 = vmax.f32 %v6902, %v7214
    %v7231 = vmax.f32 %v7191, %v7225
    %v7232 = vmax.f32 %v7192, %v7226
    %v7233 = vmax.f32 %v7193, %v7227
    %v7234 = vmax.f32 %v7194, %v7228
    %v7235 = vmax.f32 %v7195, %v7229
    %v7236 = vmax.f32 %v7196, %v7230
    %v7237 = vld [vmem:[#allocation4] sm:$0x7]
    %v7239 = vlaneseq
    %v7240 = vshrl.u32 %v7239, 7
    %v7241 = vsub.s32 0, %v7240
    %v7242 = vrot.slane %v7237, %v7241
    %v7243 = vlaneseq
    %v7244 = vshrl.u32 %v7243, 7
    %v7245 = vsub.s32 1, %v7244
    %v7246 = vrot.slane %v7237, %v7245
    %v7247 = vlaneseq
    %v7248 = vshrl.u32 %v7247, 7
    %v7249 = vsub.s32 2, %v7248
    %v7250 = vrot.slane %v7237, %v7249
    %v7254 = vadd.f32 %v7231, %v7242
    %v7255 = vadd.f32 %v7232, %v7246
    %v7256 = vadd.f32 %v7233, %v7250
    %v7257 = vadd.f32 %v7234, %v7242
    %v7258 = vadd.f32 %v7235, %v7246
    %v7259 = vadd.f32 %v7236, %v7250
    %v7260 = vmax.f32 %v7254, 0.0
    %v7261 = vmax.f32 %v7255, 0.0
    %v7262 = vmax.f32 %v7256, 0.0
    %v7263 = vmax.f32 %v7257, 0.0
    %v7264 = vmax.f32 %v7258, 0.0
    %v7265 = vmax.f32 %v7259, 0.0
    %v7266 = vpack.c.bf16 %v7263, %v7260
    %v7267 = vpack.c.bf16 %v7264, %v7261
    %v7268 = vpack.c.bf16 %v7265, %v7262
    %v7272 = vunpack.c.l.b16 %v7266
    %v7273 = vunpack.c.l.b16 %v7267
    %v7274 = vunpack.c.l.b16 %v7268
    %v7275 = vunpack.c.h.b16 %v7266
    %v7276 = vunpack.c.h.b16 %v7267
    %v7277 = vunpack.c.h.b16 %v7268
    %v7278 = vpack.c.b16 %v7273, %v7272
    %v7279 = vpack.c.b16 %v7274, %v7274
    %v7280 = vpack.c.b16 %v7276, %v7275
    %v7281 = vpack.c.b16 %v7277, %v7277
    %7286 = vst [vmem:[%s3] sm:$0xff] %v7278
    %vm7287 = vcmask 519168
    %7288 = vst.msk [vmem:[%s3 + $0x8] sm:$0xf] %vm7287, %v7279
    %7289 = vst [vmem:[%s3 + $0xc] sm:$0x11] %v7280
    %vm7290 = vcmask 516096
    %7291 = vst.msk [vmem:[%s3 + $0x14] sm:$0x1] %vm7290, %v7281
    // Predicated region
    $region22: #{mnist_cnn_forward.4} parent=1 // pred_check
      _
    $region23: #{mnist_cnn_forward.4} parent=1 // pred_check_branch
      %7293 = sbr.rel (0) target = $region25
    $region24: #{mnist_cnn_forward.4} parent=1 // pred_region
      _
    $region25: #{mnist_cnn_forward.4} parent=1 // pred_fallthru
      _
    // Predicated region
    $region26: #{mnist_cnn_forward.4} parent=1 // pred_check
      _
    $region27: #{mnist_cnn_forward.4} parent=1 // pred_check_branch
      %7295 = sbr.rel (0) target = $region29
    $region28: #{mnist_cnn_forward.4} parent=1 // pred_region
      _
    $region29: #{mnist_cnn_forward.4} parent=1 // pred_fallthru
      _
    %7296 = vsyncpa [#allocation3], 1
    %7297 = vsyncpa [#allocation5], 1

</llo_original>
